<compile_context>
chip_gen: v7x
topology: tpu7x:2x2x1
jax: 0.10.0
libtpu: 0.0.40
codegen_flags: <defaults>
</compile_context>

<pallas_src>
import functools

import numpy as np
import jax
import jax.numpy as jnp
from jax.experimental import pallas as pl
from jax.experimental.pallas import tpu as pltpu


# Output row parity r (oh = 2a + r) -> kernel-row taps (kh, row shift of input):
#   r=0: kh=1 -> ih=a     ; kh=3 -> ih=a-1
#   r=1: kh=0 -> ih=a+1   ; kh=2 -> ih=a
_PHASE_TAPS = (((1, 0), (3, -1)), ((0, 1), (2, 0)))


# ------------------------------ Pallas kernel -------------------------------

def _decoder_kernel(z_ref, w1_ref, w2_ref, w3_ref, w4_ref,
                    b1_ref, b2_ref, b3_ref, b4_ref,
                    out_ref, p2_ref, p3_ref, p4_ref):
    f32 = jnp.float32
    bf16 = jnp.bfloat16

    # Zero scratch buffers: border rows provide the transposed-conv zero padding.
    p2_ref[...] = jnp.zeros(p2_ref.shape, f32)
    p3_ref[...] = jnp.zeros(p3_ref.shape, f32)
    p4_ref[...] = jnp.zeros(p4_ref.shape, f32)

    # --------- layer 1: ConvTranspose(L,128,4,1,0) on 1x1 input -> (4, 4*128) ---------
    z = z_ref[0].astype(bf16)                                     # (1, L)
    h1 = jnp.dot(z, w1_ref[...], preferred_element_type=f32)      # (1, 4*512)
    for oh in range(4):
        row = h1[:, oh * 512:(oh + 1) * 512] + b1_ref[...]        # (1, 512)
        row = row * jax.nn.sigmoid(row)                           # Swish
        p2_ref[1 + oh:2 + oh, :] = row

    # --------- stride-2 k=4 p=1 transposed conv via row-parity decomposition ---------
    def deconv(pin_ref, h_in, w_ref, b_ref, act):
        outs = []
        for r in range(2):
            acc = None
            for kh, dh in _PHASE_TAPS[r]:
                slab = pin_ref[1 + dh:1 + dh + h_in, :].astype(bf16)   # (h_in, W*Cin)
                t = jnp.dot(slab, w_ref[kh], preferred_element_type=f32)
                acc = t if acc is None else acc + t
            acc = acc + b_ref[...]
            if act == "swish":
                acc = acc * jax.nn.sigmoid(acc)
            else:
                acc = jax.nn.sigmoid(acc)
            outs.append(acc)                                           # (h_in, OW*Cout)
        return outs

    # layer 2: (4, 512) -> rows of (8, 8*64=512)
    z2_even, z2_odd = deconv(p2_ref, 4, w2_ref, b2_ref, "swish")
    for a in range(4):
        p3_ref[1 + 2 * a:2 + 2 * a, :] = z2_even[a:a + 1, :]
        p3_ref[2 + 2 * a:3 + 2 * a, :] = z2_odd[a:a + 1, :]

    # layer 3: (8, 512) -> rows of (16, 16*32=512)
    z3_even, z3_odd = deconv(p3_ref, 8, w3_ref, b3_ref, "swish")
    for a in range(8):
        p4_ref[1 + 2 * a:2 + 2 * a, :] = z3_even[a:a + 1, :]
        p4_ref[2 + 2 * a:3 + 2 * a, :] = z3_odd[a:a + 1, :]

    # layer 4: (16, 512) -> (32, 32*3=96), row parities kept separate in the output.
    z4_even, z4_odd = deconv(p4_ref, 16, w4_ref, b4_ref, "sigmoid")
    out_ref[0, 0, :, :] = z4_even
    out_ref[0, 1, :, :] = z4_odd


# ------------------------ host-side weight repacking -------------------------

def _pack_first_deconv(w1, b1):
    """w1: (L, 128, 4, 4) -> (L, 4*4*128) with column index oh*512 + ow*128 + oc."""
    w = np.asarray(w1, np.float32)
    L, C, K, _ = w.shape
    w1p = np.transpose(w, (0, 2, 3, 1)).reshape(L, K * K * C)
    b1r = np.tile(np.asarray(b1, np.float32), K).reshape(1, K * C)
    return w1p, b1r


def _pack_deconv(w, b, w_in, ow_out):
    """Build per-kh column-scatter matrices for ConvTranspose2d(k=4, s=2, p=1).

    B[kh, iw*Cin + ic, ow*Cout + oc] = w[ic, oc, kh, kw] with kw = ow + 1 - 2*iw
    (zero when kw is out of range).  Folds kw-taps, W-interleave and zero padding.
    """
    w = np.asarray(w, np.float32)            # (Cin, Cout, 4, 4)
    c_in, c_out = w.shape[0], w.shape[1]
    B = np.zeros((4, w_in * c_in, ow_out * c_out), np.float32)
    for kh in range(4):
        for iw in range(w_in):
            for ow in range(ow_out):
                kw = ow + 1 - 2 * iw
                if 0 <= kw < 4:
                    B[kh, iw * c_in:(iw + 1) * c_in,
                      ow * c_out:(ow + 1) * c_out] = w[:, :, kh, kw]
    br = np.tile(np.asarray(b, np.float32), ow_out).reshape(1, ow_out * c_out)
    return B, br


def init_params(key, latent_dim):
    ks = jax.random.split(key, 8)

    def uconv(k1, k2, cin, cout, ksz):
        bound = 1.0 / np.sqrt(cin * ksz * ksz)
        w = jax.random.uniform(k1, (cin, cout, ksz, ksz), jnp.float32, -bound, bound)
        b = jax.random.uniform(k2, (cout,), jnp.float32, -bound, bound)
        return w, b

    w1, b1 = uconv(ks[0], ks[1], latent_dim, 32 * 4, 4)
    w2, b2 = uconv(ks[2], ks[3], 32 * 4, 32 * 2, 4)
    w3, b3 = uconv(ks[4], ks[5], 32 * 2, 32, 4)
    w4, b4 = uconv(ks[6], ks[7], 32, 3, 4)

    w1p, b1r = _pack_first_deconv(w1, b1)          # (L, 2048)
    B2, b2r = _pack_deconv(w2, b2, 4, 8)           # (4, 512, 512)
    B3, b3r = _pack_deconv(w3, b3, 8, 16)          # (4, 512, 512)
    B4, b4r = _pack_deconv(w4, b4, 16, 32)         # (4, 512, 96)

    bf16 = jnp.bfloat16
    return dict(
        # raw conv params (used only by the pure-JAX reference)
        w1=w1, b1=b1, w2=w2, b2=b2, w3=w3, b3=b3, w4=w4, b4=b4,
        # packed kernel params (pre-reshaped once, bf16 for the MXU)
        w1p=jnp.asarray(w1p, bf16),
        B2=jnp.asarray(B2, bf16), B3=jnp.asarray(B3, bf16), B4=jnp.asarray(B4, bf16),
        b1r=jnp.asarray(b1r, jnp.float32), b2r=jnp.asarray(b2r, jnp.float32),
        b3r=jnp.asarray(b3r, jnp.float32), b4r=jnp.asarray(b4r, jnp.float32),
    )


# --------------------------------- forward ----------------------------------

def svhn_decoder_forward(z, params):
    """z: (..., latent_dim) -> (..., 3, 32, 32), same semantics as the PyTorch module."""
    lead = z.shape[:-1]
    L = z.shape[-1]
    zf = z.reshape(-1, 1, L).astype(jnp.float32)
    B = zf.shape[0]

    out = pl.pallas_call(
        _decoder_kernel,
        out_shape=jax.ShapeDtypeStruct((B, 2, 16, 96), jnp.float32),
        grid=(B,),
        in_specs=[
            pl.BlockSpec((1, 1, L), lambda i: (i, 0, 0)),          # z
            pl.BlockSpec((L, 4 * 512), lambda i: (0, 0)),          # w1p
            pl.BlockSpec((4, 512, 512), lambda i: (0, 0, 0)),      # B2
            pl.BlockSpec((4, 512, 512), lambda i: (0, 0, 0)),      # B3
            pl.BlockSpec((4, 512, 96), lambda i: (0, 0, 0)),       # B4
            pl.BlockSpec((1, 512), lambda i: (0, 0)),              # b1r
            pl.BlockSpec((1, 512), lambda i: (0, 0)),              # b2r
            pl.BlockSpec((1, 512), lambda i: (0, 0)),              # b3r
            pl.BlockSpec((1, 96), lambda i: (0, 0)),               # b4r
        ],
        out_specs=pl.BlockSpec((1, 2, 16, 96), lambda i: (i, 0, 0, 0)),
        scratch_shapes=[
            pltpu.VMEM((6, 512), jnp.float32),    # layer-1 output, zero-padded rows
            pltpu.VMEM((10, 512), jnp.float32),   # layer-2 output, zero-padded rows
            pltpu.VMEM((18, 512), jnp.float32),   # layer-3 output, zero-padded rows
        ],
        compiler_params=pltpu.CompilerParams(dimension_semantics=("parallel",)),
    )(zf, params["w1p"], params["B2"], params["B3"], params["B4"],
      params["b1r"], params["b2r"], params["b3r"], params["b4r"])

    # De-interleave the two row parities and move to NCHW (cheap XLA layout op).
    # out[b, r, a, ow*3 + oc] == image[b, oc, 2a + r, ow]
    img = out.reshape(B, 2, 16, 32, 3).transpose(0, 4, 2, 1, 3).reshape(B, 3, 32, 32)
    return img.reshape(*lead, 3, 32, 32)


# ------------------------ pure-JAX f32 reference (check) ---------------------

def _ref_deconv(x, w, b, stride, pad):
    k = w.shape[2]
    rhs = jnp.flip(w, (2, 3)).transpose(1, 0, 2, 3)  # OIHW, spatially flipped
    y = jax.lax.conv_general_dilated(
        x, rhs, window_strides=(1, 1),
        padding=[(k - 1 - pad, k - 1 - pad)] * 2,
        lhs_dilation=(stride, stride),
        dimension_numbers=("NCHW", "OIHW", "NCHW"))
    return y + b.reshape(1, -1, 1, 1)


def svhn_decoder_reference(z, params):
    lead = z.shape[:-1]
    zf = z.reshape(-1, z.shape[-1], 1, 1).astype(jnp.float32)
    swish = lambda t: t * jax.nn.sigmoid(t)
    h = swish(_ref_deconv(zf, params["w1"], params["b1"], 1, 0))
    h = swish(_ref_deconv(h, params["w2"], params["b2"], 2, 1))
    h = swish(_ref_deconv(h, params["w3"], params["b3"], 2, 1))
    h = jax.nn.sigmoid(_ref_deconv(h, params["w4"], params["b4"], 2, 1))
    return h.reshape(*lead, 3, 32, 32)


if __name__ == "__main__":
    latent_dim = 16
    batch = 2
    key = jax.random.PRNGKey(0)
    k_param, k_z = jax.random.split(key)
    params = init_params(k_param, latent_dim)
    z = jax.random.normal(k_z, (batch, latent_dim), jnp.float32)

    fwd = jax.jit(svhn_decoder_forward)
    out = jax.block_until_ready(fwd(z, params))
    assert out.shape == (batch, 3, 32, 32), out.shape

    ref = jax.block_until_ready(svhn_decoder_reference(z, params))
    # bf16 weights/activations (f32 accumulation) -> relaxed tolerance vs f32 reference.
    np.testing.assert_allclose(np.asarray(out), np.asarray(ref), rtol=1e-2, atol=1e-2)

    print("KERNEL_OK")
</pallas_src>

<mosaic_0001>
module attributes {stable_mosaic.version = 11 : i64} {
  func.func @_decoder_kernel(%arg0: i32, %arg1: memref<1x1x16xf32, #tpu.memory_space<vmem>>, %arg2: memref<16x2048xbf16, #tpu.memory_space<vmem>>, %arg3: memref<4x512x512xbf16, #tpu.memory_space<vmem>>, %arg4: memref<4x512x512xbf16, #tpu.memory_space<vmem>>, %arg5: memref<4x512x96xbf16, #tpu.memory_space<vmem>>, %arg6: memref<1x512xf32, #tpu.memory_space<vmem>>, %arg7: memref<1x512xf32, #tpu.memory_space<vmem>>, %arg8: memref<1x512xf32, #tpu.memory_space<vmem>>, %arg9: memref<1x96xf32, #tpu.memory_space<vmem>>, %arg10: memref<1x2x16x96xf32, #tpu.memory_space<vmem>>, %arg11: memref<6x512xf32, #tpu.memory_space<vmem>>, %arg12: memref<10x512xf32, #tpu.memory_space<vmem>>, %arg13: memref<18x512xf32, #tpu.memory_space<vmem>>) attributes {dimension_semantics = [#tpu.dimension_semantics<parallel>], iteration_bounds = array<i64: 2>, scalar_prefetch = 0 : i64, scratch_operands = 3 : i64, tpu.core_type = #tpu.core_type<tc>, window_params = [{transform_indices = @transform_0, window_bounds = array<i64: 1, 1, 16>}, {pipeline_mode = #tpu.pipeline_mode<synchronous>, transform_indices = @transform_1, window_bounds = array<i64: 16, 2048>}, {pipeline_mode = #tpu.pipeline_mode<synchronous>, transform_indices = @transform_2, window_bounds = array<i64: 4, 512, 512>}, {pipeline_mode = #tpu.pipeline_mode<synchronous>, transform_indices = @transform_3, window_bounds = array<i64: 4, 512, 512>}, {pipeline_mode = #tpu.pipeline_mode<synchronous>, transform_indices = @transform_4, window_bounds = array<i64: 4, 512, 96>}, {pipeline_mode = #tpu.pipeline_mode<synchronous>, transform_indices = @transform_5, window_bounds = array<i64: 1, 512>}, {pipeline_mode = #tpu.pipeline_mode<synchronous>, transform_indices = @transform_6, window_bounds = array<i64: 1, 512>}, {pipeline_mode = #tpu.pipeline_mode<synchronous>, transform_indices = @transform_7, window_bounds = array<i64: 1, 512>}, {pipeline_mode = #tpu.pipeline_mode<synchronous>, transform_indices = @transform_8, window_bounds = array<i64: 1, 96>}, {transform_indices = @transform_9, window_bounds = array<i64: 1, 2, 16, 96>}]} {
    %cst = arith.constant 0.000000e+00 : f32
    %0 = vector.broadcast %cst : f32 to vector<6x512xf32>
    %c0 = arith.constant 0 : index
    %c0_0 = arith.constant 0 : index
    %1 = vector.load %arg11[%c0, %c0_0] : memref<6x512xf32, #tpu.memory_space<vmem>>, vector<6x512xf32>
    tpu.vector_store %arg11[%c0, %c0_0], %0 {strides = array<i32>} : memref<6x512xf32, #tpu.memory_space<vmem>>, vector<6x512xf32>,
    %cst_1 = arith.constant 0.000000e+00 : f32
    %2 = vector.broadcast %cst_1 : f32 to vector<10x512xf32>
    %c0_2 = arith.constant 0 : index
    %c0_3 = arith.constant 0 : index
    %3 = vector.load %arg12[%c0_2, %c0_3] : memref<10x512xf32, #tpu.memory_space<vmem>>, vector<10x512xf32>
    tpu.vector_store %arg12[%c0_2, %c0_3], %2 {strides = array<i32>} : memref<10x512xf32, #tpu.memory_space<vmem>>, vector<10x512xf32>,
    %cst_4 = arith.constant 0.000000e+00 : f32
    %4 = vector.broadcast %cst_4 : f32 to vector<18x512xf32>
    %c0_5 = arith.constant 0 : index
    %c0_6 = arith.constant 0 : index
    %5 = vector.load %arg13[%c0_5, %c0_6] : memref<18x512xf32, #tpu.memory_space<vmem>>, vector<18x512xf32>
    tpu.vector_store %arg13[%c0_5, %c0_6], %4 {strides = array<i32>} : memref<18x512xf32, #tpu.memory_space<vmem>>, vector<18x512xf32>,
    %c0_7 = arith.constant 0 : index
    %c0_8 = arith.constant 0 : index
    %c0_9 = arith.constant 0 : index
    %6 = vector.load %arg1[%c0_7, %c0_8, %c0_9] : memref<1x1x16xf32, #tpu.memory_space<vmem>>, vector<1x1x16xf32>
    %7 = vector.shape_cast %6 : vector<1x1x16xf32> to vector<1x16xf32>
    %8 = arith.truncf %7 : vector<1x16xf32> to vector<1x16xbf16>
    %c0_10 = arith.constant 0 : index
    %c0_11 = arith.constant 0 : index
    %9 = vector.load %arg2[%c0_10, %c0_11] : memref<16x2048xbf16, #tpu.memory_space<vmem>>, vector<16x2048xbf16>
    %cst_12 = arith.constant dense<0.000000e+00> : vector<1x2048xf32>
    %10 = tpu.matmul %8, %9, %cst_12 {dimension_numbers = #tpu.dot_dimension_numbers<[1], [0], [0], [1], [0, 0, 1, 1], [], []>} : vector<1x16xbf16>, vector<16x2048xbf16>, vector<1x2048xf32> -> vector<1x2048xf32>
    %11 = vector.extract_strided_slice %10 {offsets = [0, 0], sizes = [1, 512], strides = [1, 1]} : vector<1x2048xf32> to vector<1x512xf32>
    %c0_13 = arith.constant 0 : index
    %c0_14 = arith.constant 0 : index
    %12 = vector.load %arg6[%c0_13, %c0_14] : memref<1x512xf32, #tpu.memory_space<vmem>>, vector<1x512xf32>
    %13 = arith.addf %11, %12 : vector<1x512xf32>
    %14 = arith.negf %13 : vector<1x512xf32>
    %15 = math.exp %14 : vector<1x512xf32>
    %cst_15 = arith.constant 1.000000e+00 : f32
    %16 = vector.broadcast %cst_15 : f32 to vector<1x512xf32>
    %17 = arith.addf %16, %15 : vector<1x512xf32>
    %18 = arith.divf %16, %17 : vector<1x512xf32>
    %19 = arith.mulf %13, %18 : vector<1x512xf32>
    %c1 = arith.constant 1 : index
    %c0_16 = arith.constant 0 : index
    %20 = vector.load %arg11[%c1, %c0_16] : memref<6x512xf32, #tpu.memory_space<vmem>>, vector<1x512xf32>
    tpu.vector_store %arg11[%c1, %c0_16], %19 {strides = array<i32>} : memref<6x512xf32, #tpu.memory_space<vmem>>, vector<1x512xf32>,
    %21 = vector.extract_strided_slice %10 {offsets = [0, 512], sizes = [1, 512], strides = [1, 1]} : vector<1x2048xf32> to vector<1x512xf32>
    %c0_17 = arith.constant 0 : index
    %c0_18 = arith.constant 0 : index
    %22 = vector.load %arg6[%c0_17, %c0_18] : memref<1x512xf32, #tpu.memory_space<vmem>>, vector<1x512xf32>
    %23 = arith.addf %21, %22 : vector<1x512xf32>
    %24 = arith.negf %23 : vector<1x512xf32>
    %25 = math.exp %24 : vector<1x512xf32>
    %cst_19 = arith.constant 1.000000e+00 : f32
    %26 = vector.broadcast %cst_19 : f32 to vector<1x512xf32>
    %27 = arith.addf %26, %25 : vector<1x512xf32>
    %28 = arith.divf %26, %27 : vector<1x512xf32>
    %29 = arith.mulf %23, %28 : vector<1x512xf32>
    %c2 = arith.constant 2 : index
    %c0_20 = arith.constant 0 : index
    %30 = vector.load %arg11[%c2, %c0_20] : memref<6x512xf32, #tpu.memory_space<vmem>>, vector<1x512xf32>
    tpu.vector_store %arg11[%c2, %c0_20], %29 {strides = array<i32>} : memref<6x512xf32, #tpu.memory_space<vmem>>, vector<1x512xf32>,
    %31 = vector.extract_strided_slice %10 {offsets = [0, 1024], sizes = [1, 512], strides = [1, 1]} : vector<1x2048xf32> to vector<1x512xf32>
    %c0_21 = arith.constant 0 : index
    %c0_22 = arith.constant 0 : index
    %32 = vector.load %arg6[%c0_21, %c0_22] : memref<1x512xf32, #tpu.memory_space<vmem>>, vector<1x512xf32>
    %33 = arith.addf %31, %32 : vector<1x512xf32>
    %34 = arith.negf %33 : vector<1x512xf32>
    %35 = math.exp %34 : vector<1x512xf32>
    %cst_23 = arith.constant 1.000000e+00 : f32
    %36 = vector.broadcast %cst_23 : f32 to vector<1x512xf32>
    %37 = arith.addf %36, %35 : vector<1x512xf32>
    %38 = arith.divf %36, %37 : vector<1x512xf32>
    %39 = arith.mulf %33, %38 : vector<1x512xf32>
    %c3 = arith.constant 3 : index
    %c0_24 = arith.constant 0 : index
    %40 = vector.load %arg11[%c3, %c0_24] : memref<6x512xf32, #tpu.memory_space<vmem>>, vector<1x512xf32>
    tpu.vector_store %arg11[%c3, %c0_24], %39 {strides = array<i32>} : memref<6x512xf32, #tpu.memory_space<vmem>>, vector<1x512xf32>,
    %41 = vector.extract_strided_slice %10 {offsets = [0, 1536], sizes = [1, 512], strides = [1, 1]} : vector<1x2048xf32> to vector<1x512xf32>
    %c0_25 = arith.constant 0 : index
    %c0_26 = arith.constant 0 : index
    %42 = vector.load %arg6[%c0_25, %c0_26] : memref<1x512xf32, #tpu.memory_space<vmem>>, vector<1x512xf32>
    %43 = arith.addf %41, %42 : vector<1x512xf32>
    %44 = arith.negf %43 : vector<1x512xf32>
    %45 = math.exp %44 : vector<1x512xf32>
    %cst_27 = arith.constant 1.000000e+00 : f32
    %46 = vector.broadcast %cst_27 : f32 to vector<1x512xf32>
    %47 = arith.addf %46, %45 : vector<1x512xf32>
    %48 = arith.divf %46, %47 : vector<1x512xf32>
    %49 = arith.mulf %43, %48 : vector<1x512xf32>
    %c4 = arith.constant 4 : index
    %c0_28 = arith.constant 0 : index
    %50 = vector.load %arg11[%c4, %c0_28] : memref<6x512xf32, #tpu.memory_space<vmem>>, vector<1x512xf32>
    tpu.vector_store %arg11[%c4, %c0_28], %49 {strides = array<i32>} : memref<6x512xf32, #tpu.memory_space<vmem>>, vector<1x512xf32>,
    %c1_29 = arith.constant 1 : index
    %c0_30 = arith.constant 0 : index
    %51 = vector.load %arg11[%c1_29, %c0_30] : memref<6x512xf32, #tpu.memory_space<vmem>>, vector<4x512xf32>
    %52 = arith.truncf %51 : vector<4x512xf32> to vector<4x512xbf16>
    %c1_31 = arith.constant 1 : index
    %c0_32 = arith.constant 0 : index
    %c0_33 = arith.constant 0 : index
    %53 = vector.load %arg3[%c1_31, %c0_32, %c0_33] : memref<4x512x512xbf16, #tpu.memory_space<vmem>>, vector<1x512x512xbf16>
    %54 = vector.shape_cast %53 : vector<1x512x512xbf16> to vector<512x512xbf16>
    %cst_34 = arith.constant dense<0.000000e+00> : vector<4x512xf32>
    %55 = tpu.matmul %52, %54, %cst_34 {dimension_numbers = #tpu.dot_dimension_numbers<[1], [0], [0], [1], [0, 0, 1, 1], [], []>} : vector<4x512xbf16>, vector<512x512xbf16>, vector<4x512xf32> -> vector<4x512xf32>
    %c0_35 = arith.constant 0 : index
    %c0_36 = arith.constant 0 : index
    %56 = vector.load %arg11[%c0_35, %c0_36] : memref<6x512xf32, #tpu.memory_space<vmem>>, vector<4x512xf32>
    %57 = arith.truncf %56 : vector<4x512xf32> to vector<4x512xbf16>
    %c3_37 = arith.constant 3 : index
    %c0_38 = arith.constant 0 : index
    %c0_39 = arith.constant 0 : index
    %58 = vector.load %arg3[%c3_37, %c0_38, %c0_39] : memref<4x512x512xbf16, #tpu.memory_space<vmem>>, vector<1x512x512xbf16>
    %59 = vector.shape_cast %58 : vector<1x512x512xbf16> to vector<512x512xbf16>
    %cst_40 = arith.constant dense<0.000000e+00> : vector<4x512xf32>
    %60 = tpu.matmul %57, %59, %cst_40 {dimension_numbers = #tpu.dot_dimension_numbers<[1], [0], [0], [1], [0, 0, 1, 1], [], []>} : vector<4x512xbf16>, vector<512x512xbf16>, vector<4x512xf32> -> vector<4x512xf32>
    %61 = arith.addf %55, %60 : vector<4x512xf32>
    %c0_41 = arith.constant 0 : index
    %c0_42 = arith.constant 0 : index
    %62 = vector.load %arg7[%c0_41, %c0_42] : memref<1x512xf32, #tpu.memory_space<vmem>>, vector<1x512xf32>
    %63 = vector.broadcast %62 : vector<1x512xf32> to vector<4x512xf32>
    %64 = arith.addf %61, %63 : vector<4x512xf32>
    %65 = arith.negf %64 : vector<4x512xf32>
    %66 = math.exp %65 : vector<4x512xf32>
    %cst_43 = arith.constant 1.000000e+00 : f32
    %67 = vector.broadcast %cst_43 : f32 to vector<4x512xf32>
    %68 = arith.addf %67, %66 : vector<4x512xf32>
    %69 = arith.divf %67, %68 : vector<4x512xf32>
    %70 = arith.mulf %64, %69 : vector<4x512xf32>
    %c2_44 = arith.constant 2 : index
    %c0_45 = arith.constant 0 : index
    %71 = vector.load %arg11[%c2_44, %c0_45] : memref<6x512xf32, #tpu.memory_space<vmem>>, vector<4x512xf32>
    %72 = arith.truncf %71 : vector<4x512xf32> to vector<4x512xbf16>
    %c0_46 = arith.constant 0 : index
    %c0_47 = arith.constant 0 : index
    %c0_48 = arith.constant 0 : index
    %73 = vector.load %arg3[%c0_46, %c0_47, %c0_48] : memref<4x512x512xbf16, #tpu.memory_space<vmem>>, vector<1x512x512xbf16>
    %74 = vector.shape_cast %73 : vector<1x512x512xbf16> to vector<512x512xbf16>
    %cst_49 = arith.constant dense<0.000000e+00> : vector<4x512xf32>
    %75 = tpu.matmul %72, %74, %cst_49 {dimension_numbers = #tpu.dot_dimension_numbers<[1], [0], [0], [1], [0, 0, 1, 1], [], []>} : vector<4x512xbf16>, vector<512x512xbf16>, vector<4x512xf32> -> vector<4x512xf32>
    %c1_50 = arith.constant 1 : index
    %c0_51 = arith.constant 0 : index
    %76 = vector.load %arg11[%c1_50, %c0_51] : memref<6x512xf32, #tpu.memory_space<vmem>>, vector<4x512xf32>
    %77 = arith.truncf %76 : vector<4x512xf32> to vector<4x512xbf16>
    %c2_52 = arith.constant 2 : index
    %c0_53 = arith.constant 0 : index
    %c0_54 = arith.constant 0 : index
    %78 = vector.load %arg3[%c2_52, %c0_53, %c0_54] : memref<4x512x512xbf16, #tpu.memory_space<vmem>>, vector<1x512x512xbf16>
    %79 = vector.shape_cast %78 : vector<1x512x512xbf16> to vector<512x512xbf16>
    %cst_55 = arith.constant dense<0.000000e+00> : vector<4x512xf32>
    %80 = tpu.matmul %77, %79, %cst_55 {dimension_numbers = #tpu.dot_dimension_numbers<[1], [0], [0], [1], [0, 0, 1, 1], [], []>} : vector<4x512xbf16>, vector<512x512xbf16>, vector<4x512xf32> -> vector<4x512xf32>
    %81 = arith.addf %75, %80 : vector<4x512xf32>
    %c0_56 = arith.constant 0 : index
    %c0_57 = arith.constant 0 : index
    %82 = vector.load %arg7[%c0_56, %c0_57] : memref<1x512xf32, #tpu.memory_space<vmem>>, vector<1x512xf32>
    %83 = vector.broadcast %82 : vector<1x512xf32> to vector<4x512xf32>
    %84 = arith.addf %81, %83 : vector<4x512xf32>
    %85 = arith.negf %84 : vector<4x512xf32>
    %86 = math.exp %85 : vector<4x512xf32>
    %cst_58 = arith.constant 1.000000e+00 : f32
    %87 = vector.broadcast %cst_58 : f32 to vector<4x512xf32>
    %88 = arith.addf %87, %86 : vector<4x512xf32>
    %89 = arith.divf %87, %88 : vector<4x512xf32>
    %90 = arith.mulf %84, %89 : vector<4x512xf32>
    %91 = vector.extract_strided_slice %70 {offsets = [0, 0], sizes = [1, 512], strides = [1, 1]} : vector<4x512xf32> to vector<1x512xf32>
    %c1_59 = arith.constant 1 : index
    %c0_60 = arith.constant 0 : index
    %92 = vector.load %arg12[%c1_59, %c0_60] : memref<10x512xf32, #tpu.memory_space<vmem>>, vector<1x512xf32>
    tpu.vector_store %arg12[%c1_59, %c0_60], %91 {strides = array<i32>} : memref<10x512xf32, #tpu.memory_space<vmem>>, vector<1x512xf32>,
    %93 = vector.extract_strided_slice %90 {offsets = [0, 0], sizes = [1, 512], strides = [1, 1]} : vector<4x512xf32> to vector<1x512xf32>
    %c2_61 = arith.constant 2 : index
    %c0_62 = arith.constant 0 : index
    %94 = vector.load %arg12[%c2_61, %c0_62] : memref<10x512xf32, #tpu.memory_space<vmem>>, vector<1x512xf32>
    tpu.vector_store %arg12[%c2_61, %c0_62], %93 {strides = array<i32>} : memref<10x512xf32, #tpu.memory_space<vmem>>, vector<1x512xf32>,
    %95 = vector.extract_strided_slice %70 {offsets = [1, 0], sizes = [1, 512], strides = [1, 1]} : vector<4x512xf32> to vector<1x512xf32>
    %c3_63 = arith.constant 3 : index
    %c0_64 = arith.constant 0 : index
    %96 = vector.load %arg12[%c3_63, %c0_64] : memref<10x512xf32, #tpu.memory_space<vmem>>, vector<1x512xf32>
    tpu.vector_store %arg12[%c3_63, %c0_64], %95 {strides = array<i32>} : memref<10x512xf32, #tpu.memory_space<vmem>>, vector<1x512xf32>,
    %97 = vector.extract_strided_slice %90 {offsets = [1, 0], sizes = [1, 512], strides = [1, 1]} : vector<4x512xf32> to vector<1x512xf32>
    %c4_65 = arith.constant 4 : index
    %c0_66 = arith.constant 0 : index
    %98 = vector.load %arg12[%c4_65, %c0_66] : memref<10x512xf32, #tpu.memory_space<vmem>>, vector<1x512xf32>
    tpu.vector_store %arg12[%c4_65, %c0_66], %97 {strides = array<i32>} : memref<10x512xf32, #tpu.memory_space<vmem>>, vector<1x512xf32>,
    %99 = vector.extract_strided_slice %70 {offsets = [2, 0], sizes = [1, 512], strides = [1, 1]} : vector<4x512xf32> to vector<1x512xf32>
    %c5 = arith.constant 5 : index
    %c0_67 = arith.constant 0 : index
    %100 = vector.load %arg12[%c5, %c0_67] : memref<10x512xf32, #tpu.memory_space<vmem>>, vector<1x512xf32>
    tpu.vector_store %arg12[%c5, %c0_67], %99 {strides = array<i32>} : memref<10x512xf32, #tpu.memory_space<vmem>>, vector<1x512xf32>,
    %101 = vector.extract_strided_slice %90 {offsets = [2, 0], sizes = [1, 512], strides = [1, 1]} : vector<4x512xf32> to vector<1x512xf32>
    %c6 = arith.constant 6 : index
    %c0_68 = arith.constant 0 : index
    %102 = vector.load %arg12[%c6, %c0_68] : memref<10x512xf32, #tpu.memory_space<vmem>>, vector<1x512xf32>
    tpu.vector_store %arg12[%c6, %c0_68], %101 {strides = array<i32>} : memref<10x512xf32, #tpu.memory_space<vmem>>, vector<1x512xf32>,
    %103 = vector.extract_strided_slice %70 {offsets = [3, 0], sizes = [1, 512], strides = [1, 1]} : vector<4x512xf32> to vector<1x512xf32>
    %c7 = arith.constant 7 : index
    %c0_69 = arith.constant 0 : index
    %104 = vector.load %arg12[%c7, %c0_69] : memref<10x512xf32, #tpu.memory_space<vmem>>, vector<1x512xf32>
    tpu.vector_store %arg12[%c7, %c0_69], %103 {strides = array<i32>} : memref<10x512xf32, #tpu.memory_space<vmem>>, vector<1x512xf32>,
    %105 = vector.extract_strided_slice %90 {offsets = [3, 0], sizes = [1, 512], strides = [1, 1]} : vector<4x512xf32> to vector<1x512xf32>
    %c8 = arith.constant 8 : index
    %c0_70 = arith.constant 0 : index
    %106 = vector.load %arg12[%c8, %c0_70] : memref<10x512xf32, #tpu.memory_space<vmem>>, vector<1x512xf32>
    tpu.vector_store %arg12[%c8, %c0_70], %105 {strides = array<i32>} : memref<10x512xf32, #tpu.memory_space<vmem>>, vector<1x512xf32>,
    %c1_71 = arith.constant 1 : index
    %c0_72 = arith.constant 0 : index
    %107 = vector.load %arg12[%c1_71, %c0_72] : memref<10x512xf32, #tpu.memory_space<vmem>>, vector<8x512xf32>
    %108 = arith.truncf %107 : vector<8x512xf32> to vector<8x512xbf16>
    %c1_73 = arith.constant 1 : index
    %c0_74 = arith.constant 0 : index
    %c0_75 = arith.constant 0 : index
    %109 = vector.load %arg4[%c1_73, %c0_74, %c0_75] : memref<4x512x512xbf16, #tpu.memory_space<vmem>>, vector<1x512x512xbf16>
    %110 = vector.shape_cast %109 : vector<1x512x512xbf16> to vector<512x512xbf16>
    %cst_76 = arith.constant dense<0.000000e+00> : vector<8x512xf32>
    %111 = tpu.matmul %108, %110, %cst_76 {dimension_numbers = #tpu.dot_dimension_numbers<[1], [0], [0], [1], [0, 0, 1, 1], [], []>} : vector<8x512xbf16>, vector<512x512xbf16>, vector<8x512xf32> -> vector<8x512xf32>
    %c0_77 = arith.constant 0 : index
    %c0_78 = arith.constant 0 : index
    %112 = vector.load %arg12[%c0_77, %c0_78] : memref<10x512xf32, #tpu.memory_space<vmem>>, vector<8x512xf32>
    %113 = arith.truncf %112 : vector<8x512xf32> to vector<8x512xbf16>
    %c3_79 = arith.constant 3 : index
    %c0_80 = arith.constant 0 : index
    %c0_81 = arith.constant 0 : index
    %114 = vector.load %arg4[%c3_79, %c0_80, %c0_81] : memref<4x512x512xbf16, #tpu.memory_space<vmem>>, vector<1x512x512xbf16>
    %115 = vector.shape_cast %114 : vector<1x512x512xbf16> to vector<512x512xbf16>
    %cst_82 = arith.constant dense<0.000000e+00> : vector<8x512xf32>
    %116 = tpu.matmul %113, %115, %cst_82 {dimension_numbers = #tpu.dot_dimension_numbers<[1], [0], [0], [1], [0, 0, 1, 1], [], []>} : vector<8x512xbf16>, vector<512x512xbf16>, vector<8x512xf32> -> vector<8x512xf32>
    %117 = arith.addf %111, %116 : vector<8x512xf32>
    %c0_83 = arith.constant 0 : index
    %c0_84 = arith.constant 0 : index
    %118 = vector.load %arg8[%c0_83, %c0_84] : memref<1x512xf32, #tpu.memory_space<vmem>>, vector<1x512xf32>
    %119 = vector.broadcast %118 : vector<1x512xf32> to vector<8x512xf32>
    %120 = arith.addf %117, %119 : vector<8x512xf32>
    %121 = arith.negf %120 : vector<8x512xf32>
    %122 = math.exp %121 : vector<8x512xf32>
    %cst_85 = arith.constant 1.000000e+00 : f32
    %123 = vector.broadcast %cst_85 : f32 to vector<8x512xf32>
    %124 = arith.addf %123, %122 : vector<8x512xf32>
    %125 = arith.divf %123, %124 : vector<8x512xf32>
    %126 = arith.mulf %120, %125 : vector<8x512xf32>
    %c2_86 = arith.constant 2 : index
    %c0_87 = arith.constant 0 : index
    %127 = vector.load %arg12[%c2_86, %c0_87] : memref<10x512xf32, #tpu.memory_space<vmem>>, vector<8x512xf32>
    %128 = arith.truncf %127 : vector<8x512xf32> to vector<8x512xbf16>
    %c0_88 = arith.constant 0 : index
    %c0_89 = arith.constant 0 : index
    %c0_90 = arith.constant 0 : index
    %129 = vector.load %arg4[%c0_88, %c0_89, %c0_90] : memref<4x512x512xbf16, #tpu.memory_space<vmem>>, vector<1x512x512xbf16>
    %130 = vector.shape_cast %129 : vector<1x512x512xbf16> to vector<512x512xbf16>
    %cst_91 = arith.constant dense<0.000000e+00> : vector<8x512xf32>
    %131 = tpu.matmul %128, %130, %cst_91 {dimension_numbers = #tpu.dot_dimension_numbers<[1], [0], [0], [1], [0, 0, 1, 1], [], []>} : vector<8x512xbf16>, vector<512x512xbf16>, vector<8x512xf32> -> vector<8x512xf32>
    %c1_92 = arith.constant 1 : index
    %c0_93 = arith.constant 0 : index
    %132 = vector.load %arg12[%c1_92, %c0_93] : memref<10x512xf32, #tpu.memory_space<vmem>>, vector<8x512xf32>
    %133 = arith.truncf %132 : vector<8x512xf32> to vector<8x512xbf16>
    %c2_94 = arith.constant 2 : index
    %c0_95 = arith.constant 0 : index
    %c0_96 = arith.constant 0 : index
    %134 = vector.load %arg4[%c2_94, %c0_95, %c0_96] : memref<4x512x512xbf16, #tpu.memory_space<vmem>>, vector<1x512x512xbf16>
    %135 = vector.shape_cast %134 : vector<1x512x512xbf16> to vector<512x512xbf16>
    %cst_97 = arith.constant dense<0.000000e+00> : vector<8x512xf32>
    %136 = tpu.matmul %133, %135, %cst_97 {dimension_numbers = #tpu.dot_dimension_numbers<[1], [0], [0], [1], [0, 0, 1, 1], [], []>} : vector<8x512xbf16>, vector<512x512xbf16>, vector<8x512xf32> -> vector<8x512xf32>
    %137 = arith.addf %131, %136 : vector<8x512xf32>
    %c0_98 = arith.constant 0 : index
    %c0_99 = arith.constant 0 : index
    %138 = vector.load %arg8[%c0_98, %c0_99] : memref<1x512xf32, #tpu.memory_space<vmem>>, vector<1x512xf32>
    %139 = vector.broadcast %138 : vector<1x512xf32> to vector<8x512xf32>
    %140 = arith.addf %137, %139 : vector<8x512xf32>
    %141 = arith.negf %140 : vector<8x512xf32>
    %142 = math.exp %141 : vector<8x512xf32>
    %cst_100 = arith.constant 1.000000e+00 : f32
    %143 = vector.broadcast %cst_100 : f32 to vector<8x512xf32>
    %144 = arith.addf %143, %142 : vector<8x512xf32>
    %145 = arith.divf %143, %144 : vector<8x512xf32>
    %146 = arith.mulf %140, %145 : vector<8x512xf32>
    %147 = vector.extract_strided_slice %126 {offsets = [0, 0], sizes = [1, 512], strides = [1, 1]} : vector<8x512xf32> to vector<1x512xf32>
    %c1_101 = arith.constant 1 : index
    %c0_102 = arith.constant 0 : index
    %148 = vector.load %arg13[%c1_101, %c0_102] : memref<18x512xf32, #tpu.memory_space<vmem>>, vector<1x512xf32>
    tpu.vector_store %arg13[%c1_101, %c0_102], %147 {strides = array<i32>} : memref<18x512xf32, #tpu.memory_space<vmem>>, vector<1x512xf32>,
    %149 = vector.extract_strided_slice %146 {offsets = [0, 0], sizes = [1, 512], strides = [1, 1]} : vector<8x512xf32> to vector<1x512xf32>
    %c2_103 = arith.constant 2 : index
    %c0_104 = arith.constant 0 : index
    %150 = vector.load %arg13[%c2_103, %c0_104] : memref<18x512xf32, #tpu.memory_space<vmem>>, vector<1x512xf32>
    tpu.vector_store %arg13[%c2_103, %c0_104], %149 {strides = array<i32>} : memref<18x512xf32, #tpu.memory_space<vmem>>, vector<1x512xf32>,
    %151 = vector.extract_strided_slice %126 {offsets = [1, 0], sizes = [1, 512], strides = [1, 1]} : vector<8x512xf32> to vector<1x512xf32>
    %c3_105 = arith.constant 3 : index
    %c0_106 = arith.constant 0 : index
    %152 = vector.load %arg13[%c3_105, %c0_106] : memref<18x512xf32, #tpu.memory_space<vmem>>, vector<1x512xf32>
    tpu.vector_store %arg13[%c3_105, %c0_106], %151 {strides = array<i32>} : memref<18x512xf32, #tpu.memory_space<vmem>>, vector<1x512xf32>,
    %153 = vector.extract_strided_slice %146 {offsets = [1, 0], sizes = [1, 512], strides = [1, 1]} : vector<8x512xf32> to vector<1x512xf32>
    %c4_107 = arith.constant 4 : index
    %c0_108 = arith.constant 0 : index
    %154 = vector.load %arg13[%c4_107, %c0_108] : memref<18x512xf32, #tpu.memory_space<vmem>>, vector<1x512xf32>
    tpu.vector_store %arg13[%c4_107, %c0_108], %153 {strides = array<i32>} : memref<18x512xf32, #tpu.memory_space<vmem>>, vector<1x512xf32>,
    %155 = vector.extract_strided_slice %126 {offsets = [2, 0], sizes = [1, 512], strides = [1, 1]} : vector<8x512xf32> to vector<1x512xf32>
    %c5_109 = arith.constant 5 : index
    %c0_110 = arith.constant 0 : index
    %156 = vector.load %arg13[%c5_109, %c0_110] : memref<18x512xf32, #tpu.memory_space<vmem>>, vector<1x512xf32>
    tpu.vector_store %arg13[%c5_109, %c0_110], %155 {strides = array<i32>} : memref<18x512xf32, #tpu.memory_space<vmem>>, vector<1x512xf32>,
    %157 = vector.extract_strided_slice %146 {offsets = [2, 0], sizes = [1, 512], strides = [1, 1]} : vector<8x512xf32> to vector<1x512xf32>
    %c6_111 = arith.constant 6 : index
    %c0_112 = arith.constant 0 : index
    %158 = vector.load %arg13[%c6_111, %c0_112] : memref<18x512xf32, #tpu.memory_space<vmem>>, vector<1x512xf32>
    tpu.vector_store %arg13[%c6_111, %c0_112], %157 {strides = array<i32>} : memref<18x512xf32, #tpu.memory_space<vmem>>, vector<1x512xf32>,
    %159 = vector.extract_strided_slice %126 {offsets = [3, 0], sizes = [1, 512], strides = [1, 1]} : vector<8x512xf32> to vector<1x512xf32>
    %c7_113 = arith.constant 7 : index
    %c0_114 = arith.constant 0 : index
    %160 = vector.load %arg13[%c7_113, %c0_114] : memref<18x512xf32, #tpu.memory_space<vmem>>, vector<1x512xf32>
    tpu.vector_store %arg13[%c7_113, %c0_114], %159 {strides = array<i32>} : memref<18x512xf32, #tpu.memory_space<vmem>>, vector<1x512xf32>,
    %161 = vector.extract_strided_slice %146 {offsets = [3, 0], sizes = [1, 512], strides = [1, 1]} : vector<8x512xf32> to vector<1x512xf32>
    %c8_115 = arith.constant 8 : index
    %c0_116 = arith.constant 0 : index
    %162 = vector.load %arg13[%c8_115, %c0_116] : memref<18x512xf32, #tpu.memory_space<vmem>>, vector<1x512xf32>
    tpu.vector_store %arg13[%c8_115, %c0_116], %161 {strides = array<i32>} : memref<18x512xf32, #tpu.memory_space<vmem>>, vector<1x512xf32>,
    %163 = vector.extract_strided_slice %126 {offsets = [4, 0], sizes = [1, 512], strides = [1, 1]} : vector<8x512xf32> to vector<1x512xf32>
    %c9 = arith.constant 9 : index
    %c0_117 = arith.constant 0 : index
    %164 = vector.load %arg13[%c9, %c0_117] : memref<18x512xf32, #tpu.memory_space<vmem>>, vector<1x512xf32>
    tpu.vector_store %arg13[%c9, %c0_117], %163 {strides = array<i32>} : memref<18x512xf32, #tpu.memory_space<vmem>>, vector<1x512xf32>,
    %165 = vector.extract_strided_slice %146 {offsets = [4, 0], sizes = [1, 512], strides = [1, 1]} : vector<8x512xf32> to vector<1x512xf32>
    %c10 = arith.constant 10 : index
    %c0_118 = arith.constant 0 : index
    %166 = vector.load %arg13[%c10, %c0_118] : memref<18x512xf32, #tpu.memory_space<vmem>>, vector<1x512xf32>
    tpu.vector_store %arg13[%c10, %c0_118], %165 {strides = array<i32>} : memref<18x512xf32, #tpu.memory_space<vmem>>, vector<1x512xf32>,
    %167 = vector.extract_strided_slice %126 {offsets = [5, 0], sizes = [1, 512], strides = [1, 1]} : vector<8x512xf32> to vector<1x512xf32>
    %c11 = arith.constant 11 : index
    %c0_119 = arith.constant 0 : index
    %168 = vector.load %arg13[%c11, %c0_119] : memref<18x512xf32, #tpu.memory_space<vmem>>, vector<1x512xf32>
    tpu.vector_store %arg13[%c11, %c0_119], %167 {strides = array<i32>} : memref<18x512xf32, #tpu.memory_space<vmem>>, vector<1x512xf32>,
    %169 = vector.extract_strided_slice %146 {offsets = [5, 0], sizes = [1, 512], strides = [1, 1]} : vector<8x512xf32> to vector<1x512xf32>
    %c12 = arith.constant 12 : index
    %c0_120 = arith.constant 0 : index
    %170 = vector.load %arg13[%c12, %c0_120] : memref<18x512xf32, #tpu.memory_space<vmem>>, vector<1x512xf32>
    tpu.vector_store %arg13[%c12, %c0_120], %169 {strides = array<i32>} : memref<18x512xf32, #tpu.memory_space<vmem>>, vector<1x512xf32>,
    %171 = vector.extract_strided_slice %126 {offsets = [6, 0], sizes = [1, 512], strides = [1, 1]} : vector<8x512xf32> to vector<1x512xf32>
    %c13 = arith.constant 13 : index
    %c0_121 = arith.constant 0 : index
    %172 = vector.load %arg13[%c13, %c0_121] : memref<18x512xf32, #tpu.memory_space<vmem>>, vector<1x512xf32>
    tpu.vector_store %arg13[%c13, %c0_121], %171 {strides = array<i32>} : memref<18x512xf32, #tpu.memory_space<vmem>>, vector<1x512xf32>,
    %173 = vector.extract_strided_slice %146 {offsets = [6, 0], sizes = [1, 512], strides = [1, 1]} : vector<8x512xf32> to vector<1x512xf32>
    %c14 = arith.constant 14 : index
    %c0_122 = arith.constant 0 : index
    %174 = vector.load %arg13[%c14, %c0_122] : memref<18x512xf32, #tpu.memory_space<vmem>>, vector<1x512xf32>
    tpu.vector_store %arg13[%c14, %c0_122], %173 {strides = array<i32>} : memref<18x512xf32, #tpu.memory_space<vmem>>, vector<1x512xf32>,
    %175 = vector.extract_strided_slice %126 {offsets = [7, 0], sizes = [1, 512], strides = [1, 1]} : vector<8x512xf32> to vector<1x512xf32>
    %c15 = arith.constant 15 : index
    %c0_123 = arith.constant 0 : index
    %176 = vector.load %arg13[%c15, %c0_123] : memref<18x512xf32, #tpu.memory_space<vmem>>, vector<1x512xf32>
    tpu.vector_store %arg13[%c15, %c0_123], %175 {strides = array<i32>} : memref<18x512xf32, #tpu.memory_space<vmem>>, vector<1x512xf32>,
    %177 = vector.extract_strided_slice %146 {offsets = [7, 0], sizes = [1, 512], strides = [1, 1]} : vector<8x512xf32> to vector<1x512xf32>
    %c16 = arith.constant 16 : index
    %c0_124 = arith.constant 0 : index
    %178 = vector.load %arg13[%c16, %c0_124] : memref<18x512xf32, #tpu.memory_space<vmem>>, vector<1x512xf32>
    tpu.vector_store %arg13[%c16, %c0_124], %177 {strides = array<i32>} : memref<18x512xf32, #tpu.memory_space<vmem>>, vector<1x512xf32>,
    %c1_125 = arith.constant 1 : index
    %c0_126 = arith.constant 0 : index
    %179 = vector.load %arg13[%c1_125, %c0_126] : memref<18x512xf32, #tpu.memory_space<vmem>>, vector<16x512xf32>
    %180 = arith.truncf %179 : vector<16x512xf32> to vector<16x512xbf16>
    %c1_127 = arith.constant 1 : index
    %c0_128 = arith.constant 0 : index
    %c0_129 = arith.constant 0 : index
    %181 = vector.load %arg5[%c1_127, %c0_128, %c0_129] : memref<4x512x96xbf16, #tpu.memory_space<vmem>>, vector<1x512x96xbf16>
    %182 = vector.shape_cast %181 : vector<1x512x96xbf16> to vector<512x96xbf16>
    %cst_130 = arith.constant dense<0.000000e+00> : vector<16x96xf32>
    %183 = tpu.matmul %180, %182, %cst_130 {dimension_numbers = #tpu.dot_dimension_numbers<[1], [0], [0], [1], [0, 0, 1, 1], [], []>} : vector<16x512xbf16>, vector<512x96xbf16>, vector<16x96xf32> -> vector<16x96xf32>
    %c0_131 = arith.constant 0 : index
    %c0_132 = arith.constant 0 : index
    %184 = vector.load %arg13[%c0_131, %c0_132] : memref<18x512xf32, #tpu.memory_space<vmem>>, vector<16x512xf32>
    %185 = arith.truncf %184 : vector<16x512xf32> to vector<16x512xbf16>
    %c3_133 = arith.constant 3 : index
    %c0_134 = arith.constant 0 : index
    %c0_135 = arith.constant 0 : index
    %186 = vector.load %arg5[%c3_133, %c0_134, %c0_135] : memref<4x512x96xbf16, #tpu.memory_space<vmem>>, vector<1x512x96xbf16>
    %187 = vector.shape_cast %186 : vector<1x512x96xbf16> to vector<512x96xbf16>
    %cst_136 = arith.constant dense<0.000000e+00> : vector<16x96xf32>
    %188 = tpu.matmul %185, %187, %cst_136 {dimension_numbers = #tpu.dot_dimension_numbers<[1], [0], [0], [1], [0, 0, 1, 1], [], []>} : vector<16x512xbf16>, vector<512x96xbf16>, vector<16x96xf32> -> vector<16x96xf32>
    %189 = arith.addf %183, %188 : vector<16x96xf32>
    %c0_137 = arith.constant 0 : index
    %c0_138 = arith.constant 0 : index
    %190 = vector.load %arg9[%c0_137, %c0_138] : memref<1x96xf32, #tpu.memory_space<vmem>>, vector<1x96xf32>
    %191 = vector.broadcast %190 : vector<1x96xf32> to vector<16x96xf32>
    %192 = arith.addf %189, %191 : vector<16x96xf32>
    %193 = arith.negf %192 : vector<16x96xf32>
    %194 = math.exp %193 : vector<16x96xf32>
    %cst_139 = arith.constant 1.000000e+00 : f32
    %195 = vector.broadcast %cst_139 : f32 to vector<16x96xf32>
    %196 = arith.addf %195, %194 : vector<16x96xf32>
    %197 = arith.divf %195, %196 : vector<16x96xf32>
    %c2_140 = arith.constant 2 : index
    %c0_141 = arith.constant 0 : index
    %198 = vector.load %arg13[%c2_140, %c0_141] : memref<18x512xf32, #tpu.memory_space<vmem>>, vector<16x512xf32>
    %199 = arith.truncf %198 : vector<16x512xf32> to vector<16x512xbf16>
    %c0_142 = arith.constant 0 : index
    %c0_143 = arith.constant 0 : index
    %c0_144 = arith.constant 0 : index
    %200 = vector.load %arg5[%c0_142, %c0_143, %c0_144] : memref<4x512x96xbf16, #tpu.memory_space<vmem>>, vector<1x512x96xbf16>
    %201 = vector.shape_cast %200 : vector<1x512x96xbf16> to vector<512x96xbf16>
    %cst_145 = arith.constant dense<0.000000e+00> : vector<16x96xf32>
    %202 = tpu.matmul %199, %201, %cst_145 {dimension_numbers = #tpu.dot_dimension_numbers<[1], [0], [0], [1], [0, 0, 1, 1], [], []>} : vector<16x512xbf16>, vector<512x96xbf16>, vector<16x96xf32> -> vector<16x96xf32>
    %c1_146 = arith.constant 1 : index
    %c0_147 = arith.constant 0 : index
    %203 = vector.load %arg13[%c1_146, %c0_147] : memref<18x512xf32, #tpu.memory_space<vmem>>, vector<16x512xf32>
    %204 = arith.truncf %203 : vector<16x512xf32> to vector<16x512xbf16>
    %c2_148 = arith.constant 2 : index
    %c0_149 = arith.constant 0 : index
    %c0_150 = arith.constant 0 : index
    %205 = vector.load %arg5[%c2_148, %c0_149, %c0_150] : memref<4x512x96xbf16, #tpu.memory_space<vmem>>, vector<1x512x96xbf16>
    %206 = vector.shape_cast %205 : vector<1x512x96xbf16> to vector<512x96xbf16>
    %cst_151 = arith.constant dense<0.000000e+00> : vector<16x96xf32>
    %207 = tpu.matmul %204, %206, %cst_151 {dimension_numbers = #tpu.dot_dimension_numbers<[1], [0], [0], [1], [0, 0, 1, 1], [], []>} : vector<16x512xbf16>, vector<512x96xbf16>, vector<16x96xf32> -> vector<16x96xf32>
    %208 = arith.addf %202, %207 : vector<16x96xf32>
    %c0_152 = arith.constant 0 : index
    %c0_153 = arith.constant 0 : index
    %209 = vector.load %arg9[%c0_152, %c0_153] : memref<1x96xf32, #tpu.memory_space<vmem>>, vector<1x96xf32>
    %210 = vector.broadcast %209 : vector<1x96xf32> to vector<16x96xf32>
    %211 = arith.addf %208, %210 : vector<16x96xf32>
    %212 = arith.negf %211 : vector<16x96xf32>
    %213 = math.exp %212 : vector<16x96xf32>
    %cst_154 = arith.constant 1.000000e+00 : f32
    %214 = vector.broadcast %cst_154 : f32 to vector<16x96xf32>
    %215 = arith.addf %214, %213 : vector<16x96xf32>
    %216 = arith.divf %214, %215 : vector<16x96xf32>
    %c0_155 = arith.constant 0 : index
    %c0_156 = arith.constant 0 : index
    %c0_157 = arith.constant 0 : index
    %c0_158 = arith.constant 0 : index
    %217 = vector.load %arg10[%c0_155, %c0_156, %c0_157, %c0_158] : memref<1x2x16x96xf32, #tpu.memory_space<vmem>>, vector<1x1x16x96xf32>
    %218 = vector.shape_cast %217 : vector<1x1x16x96xf32> to vector<16x96xf32>
    %219 = vector.shape_cast %197 : vector<16x96xf32> to vector<1x1x16x96xf32>
    tpu.vector_store %arg10[%c0_155, %c0_156, %c0_157, %c0_158], %219 {strides = array<i32>} : memref<1x2x16x96xf32, #tpu.memory_space<vmem>>, vector<1x1x16x96xf32>,
    %c0_159 = arith.constant 0 : index
    %c1_160 = arith.constant 1 : index
    %c0_161 = arith.constant 0 : index
    %c0_162 = arith.constant 0 : index
    %220 = vector.load %arg10[%c0_159, %c1_160, %c0_161, %c0_162] : memref<1x2x16x96xf32, #tpu.memory_space<vmem>>, vector<1x1x16x96xf32>
    %221 = vector.shape_cast %220 : vector<1x1x16x96xf32> to vector<16x96xf32>
    %222 = vector.shape_cast %216 : vector<16x96xf32> to vector<1x1x16x96xf32>
    tpu.vector_store %arg10[%c0_159, %c1_160, %c0_161, %c0_162], %222 {strides = array<i32>} : memref<1x2x16x96xf32, #tpu.memory_space<vmem>>, vector<1x1x16x96xf32>,
    return
  }
  func.func @transform_0(%arg0: i32) -> (i32, i32, i32) {
    %c0_i32 = arith.constant 0 : i32
    %c0_i32_0 = arith.constant 0 : i32
    %c0_i32_1 = arith.constant 0 : i32
    return %arg0, %c0_i32, %c0_i32_0 : i32, i32, i32
  }
  func.func @transform_1(%arg0: i32) -> (i32, i32) {
    %c0_i32 = arith.constant 0 : i32
    %c0_i32_0 = arith.constant 0 : i32
    %c0_i32_1 = arith.constant 0 : i32
    return %c0_i32, %c0_i32_0 : i32, i32
  }
  func.func @transform_2(%arg0: i32) -> (i32, i32, i32) {
    %c0_i32 = arith.constant 0 : i32
    %c0_i32_0 = arith.constant 0 : i32
    %c0_i32_1 = arith.constant 0 : i32
    %c0_i32_2 = arith.constant 0 : i32
    return %c0_i32, %c0_i32_0, %c0_i32_1 : i32, i32, i32
  }
  func.func @transform_3(%arg0: i32) -> (i32, i32, i32) {
    %c0_i32 = arith.constant 0 : i32
    %c0_i32_0 = arith.constant 0 : i32
    %c0_i32_1 = arith.constant 0 : i32
    %c0_i32_2 = arith.constant 0 : i32
    return %c0_i32, %c0_i32_0, %c0_i32_1 : i32, i32, i32
  }
  func.func @transform_4(%arg0: i32) -> (i32, i32, i32) {
    %c0_i32 = arith.constant 0 : i32
    %c0_i32_0 = arith.constant 0 : i32
    %c0_i32_1 = arith.constant 0 : i32
    %c0_i32_2 = arith.constant 0 : i32
    return %c0_i32, %c0_i32_0, %c0_i32_1 : i32, i32, i32
  }
  func.func @transform_5(%arg0: i32) -> (i32, i32) {
    %c0_i32 = arith.constant 0 : i32
    %c0_i32_0 = arith.constant 0 : i32
    %c0_i32_1 = arith.constant 0 : i32
    return %c0_i32, %c0_i32_0 : i32, i32
  }
  func.func @transform_6(%arg0: i32) -> (i32, i32) {
    %c0_i32 = arith.constant 0 : i32
    %c0_i32_0 = arith.constant 0 : i32
    %c0_i32_1 = arith.constant 0 : i32
    return %c0_i32, %c0_i32_0 : i32, i32
  }
  func.func @transform_7(%arg0: i32) -> (i32, i32) {
    %c0_i32 = arith.constant 0 : i32
    %c0_i32_0 = arith.constant 0 : i32
    %c0_i32_1 = arith.constant 0 : i32
    return %c0_i32, %c0_i32_0 : i32, i32
  }
  func.func @transform_8(%arg0: i32) -> (i32, i32) {
    %c0_i32 = arith.constant 0 : i32
    %c0_i32_0 = arith.constant 0 : i32
    %c0_i32_1 = arith.constant 0 : i32
    return %c0_i32, %c0_i32_0 : i32, i32
  }
  func.func @transform_9(%arg0: i32) -> (i32, i32, i32, i32) {
    %c0_i32 = arith.constant 0 : i32
    %c0_i32_0 = arith.constant 0 : i32
    %c0_i32_1 = arith.constant 0 : i32
    %c0_i32_2 = arith.constant 0 : i32
    return %arg0, %c0_i32, %c0_i32_0, %c0_i32_1 : i32, i32, i32, i32
  }
}

</mosaic_0001>

<llo_original>
// kernel: svhn_decoder_forward.1
$region0: #{svhn_decoder_forward.1}
  #allocation0 [shape = 'u32[]', space=smem, size = 0x4, offset = 0x4, fixed_abs, tag = 'smem constant byte address 0x4 - core index']
  #allocation1 [shape = 'u32[144,128]{1,0:T(1,128)}', space=vmem, size = 0x12000, scoped, tag = 'internal scratch']
  #allocation2 [shape = 'f32[6,512]{1,0:T(8,128)}', space=vmem, size = 0x4000, scoped, tag = 'scratch operand']
  #allocation3 [shape = 'f32[10,512]{1,0:T(8,128)}', space=vmem, size = 0x8000, scoped, tag = 'scratch operand']
  #allocation4 [shape = 'f32[18,512]{1,0:T(8,128)}', space=vmem, size = 0xc000, scoped, tag = 'scratch operand']
  %s0 = inlined_call_operand.hbm [shape: f32[2,1,16], index: 0, kind: input, shape index: {}]
  %s1 = inlined_call_operand.hbm [shape: bf16[16,2048], index: 1, kind: input, shape index: {}]
  %s2 = inlined_call_operand.hbm [shape: bf16[4,512,512], index: 2, kind: input, shape index: {}]
  %s3 = inlined_call_operand.hbm [shape: bf16[4,512,512], index: 3, kind: input, shape index: {}]
  %s4 = inlined_call_operand.vmem [shape: bf16[4,512,96], index: 4, kind: input, shape index: {}]
  %s5 = inlined_call_operand.hbm [shape: f32[1,512], index: 5, kind: input, shape index: {}]
  %s6 = inlined_call_operand.hbm [shape: f32[1,512], index: 6, kind: input, shape index: {}]
  %s7 = inlined_call_operand.hbm [shape: f32[1,512], index: 7, kind: input, shape index: {}]
  %s8 = inlined_call_operand.hbm [shape: f32[1,96], index: 8, kind: input, shape index: {}]
  %s9 = inlined_call_operand.vmem [shape: f32[2,2,16,96], index: 9, kind: output, shape index: {}]
  %s10 = sld [smem:[#allocation0]]
  $region101: #{svhn_decoder_forward.1} parent=0
    _
  %s12 = ssub.s32 1, %s10
  %s13 = scalar_select 0, %s12, %s10
  $region1: #{svhn_decoder_forward.1} parent=0
    #allocation5 [shape = 'u8[1024]{0}', space=vmem, size = 0x400, scoped, tag = 'input window, operand 0']
    #allocation6 [shape = 's32[2]{0}', space=sflag, size = 0x8, scoped, tag = 'scoped memory for svhn_decoder_forward.1']
    #allocation7 [shape = 'u8[65536]{0}', space=vmem, size = 0x10000, scoped, tag = 'input window, operand 1, single buffered']
    #allocation8 [shape = 's32[1]{0}', space=sflag, size = 0x4, scoped, tag = 'scoped memory for svhn_decoder_forward.1']
    #allocation9 [shape = 'u8[2097152]{0}', space=vmem, size = 0x200000, scoped, tag = 'input window, operand 2, single buffered']
    #allocation10 [shape = 'u8[2097152]{0}', space=vmem, size = 0x200000, scoped, tag = 'input window, operand 3, single buffered']
    #allocation11 [shape = 's32[1]{0}', space=sflag, size = 0x4, scoped, tag = 'scoped memory for svhn_decoder_forward.1']
    #allocation12 [shape = 'u8[2048]{0}', space=vmem, size = 0x800, scoped, tag = 'input window, operand 5, single buffered']
    #allocation13 [shape = 'u8[2048]{0}', space=vmem, size = 0x800, scoped, tag = 'input window, operand 6, single buffered']
    #allocation14 [shape = 's32[1]{0}', space=sflag, size = 0x4, scoped, tag = 'scoped memory for svhn_decoder_forward.1']
    #allocation15 [shape = 'u8[2048]{0}', space=vmem, size = 0x800, scoped, tag = 'input window, operand 7, single buffered']
    #allocation16 [shape = 'u8[512]{0}', space=vmem, size = 0x400, scoped, tag = 'input window, operand 8, single buffered']
    #allocation17 [shape = 's32[1]{0}', space=sflag, size = 0x4, scoped, tag = 'scoped memory for svhn_decoder_forward.1']
    %14 = vsyncpa [#allocation6], 0
    %s15 = scalar_lea.sflag [#allocation6], 1
    %16 = vsyncpa %s15, 0
    %17 = vsyncpa [#allocation8], 0
    %18 = vsyncpa [#allocation11], 0
    %19 = vsyncpa [#allocation14], 0
    %20 = vsyncpa [#allocation17], 0
    loop: start=0, step=1, limit=4
    $region2: #{svhn_decoder_forward.1} parent=1 // loop_pre_header
      _
    $region3: #{svhn_decoder_forward.1} parent=1 // loop_header
      %s22 = sphi 0, %s26
      %p23 = scmp.ge.s32.totalorder %s22, 4
      %s32 = sphi 0, %s34
      %s35 = sphi 0, %s32
      %s36 = sphi 0, %s35
      %s52 = sphi 0, %s36
      %s56 = sphi 0, %s56
      %s58 = sphi 0, %s56
      %s59 = sphi 0, %s58
      %s73 = sphi 0, %s59
      %s77 = sphi 0, %s77
      %s79 = sphi 0, %s77
      %s80 = sphi 0, %s79
      %s94 = sphi 0, %s80
      %s98 = sphi 0, %s98
      %s100 = sphi 0, %s98
      %s101 = sphi 0, %s100
      %s115 = sphi 0, %s101
      %s119 = sphi 0, %s119
      %s121 = sphi 0, %s119
      %s122 = sphi 0, %s121
      %s136 = sphi 0, %s122
      %s140 = sphi 0, %s140
      %s142 = sphi 0, %s140
      %s143 = sphi 0, %s142
      %s157 = sphi 0, %s143
      %s161 = sphi 0, %s161
      %s163 = sphi 0, %s161
      %s164 = sphi 0, %s163
      %s178 = sphi 0, %s164
      %s182 = sphi 0, %s182
      %s184 = sphi 0, %s182
      %s185 = sphi 0, %s184
      %s199 = sphi 0, %s185
      %s203 = sphi 0, %s203
      %s205 = sphi 0, %s203
      %s206 = sphi 0, %s205
      %s220 = sphi 0, %s206
      %s226 = sphi 0, %s228
      %s229 = sphi 0, %s226
      %s230 = sphi 0, %s229
      %s246 = sphi 0, %s230
    $region4: #{svhn_decoder_forward.1} parent=1 // loop_header_branch
      %25 = sbr.rel (%p23) target = $region8
    $region5: #{svhn_decoder_forward.1} parent=1 // loop_body
      %s27 = ssub.s32 %s22, 1
      %s28 = ssub.s32 %s22, 2
      %s29 = sadd.s32 %s22, 1
      %s30 = ssub.s32 %s22, %s29
      %p31 = scmp.eq.s32.totalorder %s30, 0
      %s33 = sadd.s32 %s32, 1
      %s34 = scalar_select %p31, %s32, %s33
      %p37 = pneg %p31
      %p38 = scmp.eq.s32.totalorder %s22, 1
      %p39 = por %p37, %p38
      %p40 = scmp.ne.s32.totalorder %s32, %s35
      %p41 = scmp.eq.s32.totalorder %s22, 0
      %p42 = por %p40, %p41
      %p43 = scmp.ne.s32.totalorder %s32, %s35
      %p44 = scmp.eq.s32.totalorder %s27, 1
      %p45 = por %p43, %p44
      %p46 = scmp.ne.s32.totalorder %s35, %s36
      %p47 = scmp.eq.s32.totalorder %s27, 0
      %p48 = por %p46, %p47
      %p49 = scmp.ne.s32.totalorder %s35, %s36
      %p50 = scmp.eq.s32.totalorder %s28, 1
      %p51 = por %p49, %p50
      %p53 = scmp.ne.s32.totalorder %s36, %s52
      %p54 = scmp.eq.s32.totalorder %s28, 0
      %p55 = por %p53, %p54
      %s57 = sadd.s32 %s56, 1
      %p60 = scmp.eq.s32.totalorder %s22, 1
      %p61 = scmp.ne.s32.totalorder %s56, %s58
      %p62 = scmp.eq.s32.totalorder %s22, 0
      %p63 = por %p61, %p62
      %p64 = scmp.ne.s32.totalorder %s56, %s58
      %p65 = scmp.eq.s32.totalorder %s27, 1
      %p66 = por %p64, %p65
      %p67 = scmp.ne.s32.totalorder %s58, %s59
      %p68 = scmp.eq.s32.totalorder %s27, 0
      %p69 = por %p67, %p68
      %p70 = scmp.ne.s32.totalorder %s58, %s59
      %p71 = scmp.eq.s32.totalorder %s28, 1
      %p72 = por %p70, %p71
      %p74 = scmp.ne.s32.totalorder %s59, %s73
      %p75 = scmp.eq.s32.totalorder %s28, 0
      %p76 = por %p74, %p75
      %s78 = sadd.s32 %s77, 1
      %p81 = scmp.eq.s32.totalorder %s22, 1
      %p82 = scmp.ne.s32.totalorder %s77, %s79
      %p83 = scmp.eq.s32.totalorder %s22, 0
      %p84 = por %p82, %p83
      %p85 = scmp.ne.s32.totalorder %s77, %s79
      %p86 = scmp.eq.s32.totalorder %s27, 1
      %p87 = por %p85, %p86
      %p88 = scmp.ne.s32.totalorder %s79, %s80
      %p89 = scmp.eq.s32.totalorder %s27, 0
      %p90 = por %p88, %p89
      %p91 = scmp.ne.s32.totalorder %s79, %s80
      %p92 = scmp.eq.s32.totalorder %s28, 1
      %p93 = por %p91, %p92
      %p95 = scmp.ne.s32.totalorder %s80, %s94
      %p96 = scmp.eq.s32.totalorder %s28, 0
      %p97 = por %p95, %p96
      %s99 = sadd.s32 %s98, 1
      %p102 = scmp.eq.s32.totalorder %s22, 1
      %p103 = scmp.ne.s32.totalorder %s98, %s100
      %p104 = scmp.eq.s32.totalorder %s22, 0
      %p105 = por %p103, %p104
      %p106 = scmp.ne.s32.totalorder %s98, %s100
      %p107 = scmp.eq.s32.totalorder %s27, 1
      %p108 = por %p106, %p107
      %p109 = scmp.ne.s32.totalorder %s100, %s101
      %p110 = scmp.eq.s32.totalorder %s27, 0
      %p111 = por %p109, %p110
      %p112 = scmp.ne.s32.totalorder %s100, %s101
      %p113 = scmp.eq.s32.totalorder %s28, 1
      %p114 = por %p112, %p113
      %p116 = scmp.ne.s32.totalorder %s101, %s115
      %p117 = scmp.eq.s32.totalorder %s28, 0
      %p118 = por %p116, %p117
      %s120 = sadd.s32 %s119, 1
      %p123 = scmp.eq.s32.totalorder %s22, 1
      %p124 = scmp.ne.s32.totalorder %s119, %s121
      %p125 = scmp.eq.s32.totalorder %s22, 0
      %p126 = por %p124, %p125
      %p127 = scmp.ne.s32.totalorder %s119, %s121
      %p128 = scmp.eq.s32.totalorder %s27, 1
      %p129 = por %p127, %p128
      %p130 = scmp.ne.s32.totalorder %s121, %s122
      %p131 = scmp.eq.s32.totalorder %s27, 0
      %p132 = por %p130, %p131
      %p133 = scmp.ne.s32.totalorder %s121, %s122
      %p134 = scmp.eq.s32.totalorder %s28, 1
      %p135 = por %p133, %p134
      %p137 = scmp.ne.s32.totalorder %s122, %s136
      %p138 = scmp.eq.s32.totalorder %s28, 0
      %p139 = por %p137, %p138
      %s141 = sadd.s32 %s140, 1
      %p144 = scmp.eq.s32.totalorder %s22, 1
      %p145 = scmp.ne.s32.totalorder %s140, %s142
      %p146 = scmp.eq.s32.totalorder %s22, 0
      %p147 = por %p145, %p146
      %p148 = scmp.ne.s32.totalorder %s140, %s142
      %p149 = scmp.eq.s32.totalorder %s27, 1
      %p150 = por %p148, %p149
      %p151 = scmp.ne.s32.totalorder %s142, %s143
      %p152 = scmp.eq.s32.totalorder %s27, 0
      %p153 = por %p151, %p152
      %p154 = scmp.ne.s32.totalorder %s142, %s143
      %p155 = scmp.eq.s32.totalorder %s28, 1
      %p156 = por %p154, %p155
      %p158 = scmp.ne.s32.totalorder %s143, %s157
      %p159 = scmp.eq.s32.totalorder %s28, 0
      %p160 = por %p158, %p159
      %s162 = sadd.s32 %s161, 1
      %p165 = scmp.eq.s32.totalorder %s22, 1
      %p166 = scmp.ne.s32.totalorder %s161, %s163
      %p167 = scmp.eq.s32.totalorder %s22, 0
      %p168 = por %p166, %p167
      %p169 = scmp.ne.s32.totalorder %s161, %s163
      %p170 = scmp.eq.s32.totalorder %s27, 1
      %p171 = por %p169, %p170
      %p172 = scmp.ne.s32.totalorder %s163, %s164
      %p173 = scmp.eq.s32.totalorder %s27, 0
      %p174 = por %p172, %p173
      %p175 = scmp.ne.s32.totalorder %s163, %s164
      %p176 = scmp.eq.s32.totalorder %s28, 1
      %p177 = por %p175, %p176
      %p179 = scmp.ne.s32.totalorder %s164, %s178
      %p180 = scmp.eq.s32.totalorder %s28, 0
      %p181 = por %p179, %p180
      %s183 = sadd.s32 %s182, 1
      %p186 = scmp.eq.s32.totalorder %s22, 1
      %p187 = scmp.ne.s32.totalorder %s182, %s184
      %p188 = scmp.eq.s32.totalorder %s22, 0
      %p189 = por %p187, %p188
      %p190 = scmp.ne.s32.totalorder %s182, %s184
      %p191 = scmp.eq.s32.totalorder %s27, 1
      %p192 = por %p190, %p191
      %p193 = scmp.ne.s32.totalorder %s184, %s185
      %p194 = scmp.eq.s32.totalorder %s27, 0
      %p195 = por %p193, %p194
      %p196 = scmp.ne.s32.totalorder %s184, %s185
      %p197 = scmp.eq.s32.totalorder %s28, 1
      %p198 = por %p196, %p197
      %p200 = scmp.ne.s32.totalorder %s185, %s199
      %p201 = scmp.eq.s32.totalorder %s28, 0
      %p202 = por %p200, %p201
      %s204 = sadd.s32 %s203, 1
      %p207 = scmp.eq.s32.totalorder %s22, 1
      %p208 = scmp.ne.s32.totalorder %s203, %s205
      %p209 = scmp.eq.s32.totalorder %s22, 0
      %p210 = por %p208, %p209
      %p211 = scmp.ne.s32.totalorder %s203, %s205
      %p212 = scmp.eq.s32.totalorder %s27, 1
      %p213 = por %p211, %p212
      %p214 = scmp.ne.s32.totalorder %s205, %s206
      %p215 = scmp.eq.s32.totalorder %s27, 0
      %p216 = por %p214, %p215
      %p217 = scmp.ne.s32.totalorder %s205, %s206
      %p218 = scmp.eq.s32.totalorder %s28, 1
      %p219 = por %p217, %p218
      %p221 = scmp.ne.s32.totalorder %s206, %s220
      %p222 = scmp.eq.s32.totalorder %s28, 0
      %p223 = por %p221, %p222
      %s224 = ssub.s32 %s22, %s29
      %p225 = scmp.eq.s32.totalorder %s224, 0
      %s227 = sadd.s32 %s226, 1
      %s228 = scalar_select %p225, %s226, %s227
      %p231 = pneg %p225
      %p232 = scmp.eq.s32.totalorder %s22, 1
      %p233 = por %p231, %p232
      %p234 = scmp.ne.s32.totalorder %s226, %s229
      %p235 = scmp.eq.s32.totalorder %s22, 0
      %p236 = por %p234, %p235
      %p237 = scmp.ne.s32.totalorder %s226, %s229
      %p238 = scmp.eq.s32.totalorder %s27, 1
      %p239 = por %p237, %p238
      %p240 = scmp.ne.s32.totalorder %s229, %s230
      %p241 = scmp.eq.s32.totalorder %s27, 0
      %p242 = por %p240, %p241
      %p243 = scmp.ne.s32.totalorder %s229, %s230
      %p244 = scmp.eq.s32.totalorder %s28, 1
      %p245 = por %p243, %p244
      %p247 = scmp.ne.s32.totalorder %s230, %s246
      %p248 = scmp.eq.s32.totalorder %s28, 0
      %p249 = por %p247, %p248
      %p250 = scmp.le.s32.totalorder 1, %s22
      %p251 = scmp.lt.s32.totalorder %s22, 3
      %p252 = pnand %p250, %p251
      %p253 = pneg %p252
      // Predicated region
      $region9: #{svhn_decoder_forward.1} parent=5 // pred_check
        _
      $region10: #{svhn_decoder_forward.1} parent=5 // pred_check_branch
        %255 = sbr.rel (%p252) target = $region12
      $region11: #{svhn_decoder_forward.1} parent=5 // pred_region
        %s256 = ssub.s32 %s22, 1
        // Predicated region
        $region13: #{svhn_decoder_forward.1} parent=11 // pred_check
          %p257 = pneg %p69
        $region14: #{svhn_decoder_forward.1} parent=11 // pred_check_branch
          %259 = sbr.rel (%p257) target = $region16
        $region15: #{svhn_decoder_forward.1} parent=11 // pred_region
          %s261 = ssub.s32 2048, 2048
          %262 = vsyncadd [#allocation8], %s261
          %s263 = sshll.u32 [#allocation7], 4
          %s264 = int_to_ptr.vmem [resolvable:$true] %s263
          %269 = dma.hbm_to_vmem [thread:$0]  %s1, 2048, %s264, [#allocation8], 1024, 1024, 64
        $region16: #{svhn_decoder_forward.1} parent=11 // pred_fallthru
          _
        // Predicated region
        $region17: #{svhn_decoder_forward.1} parent=11 // pred_check
          %p270 = pneg %p90
        $region18: #{svhn_decoder_forward.1} parent=11 // pred_check_branch
          %272 = sbr.rel (%p270) target = $region20
        $region19: #{svhn_decoder_forward.1} parent=11 // pred_region
          %s274 = ssub.s32 65536, 65536
          %275 = vsyncadd [#allocation8], %s274
          %s276 = sshll.u32 [#allocation9], 4
          %s277 = int_to_ptr.vmem [resolvable:$true] %s276
          %282 = dma.hbm_to_vmem [thread:$0]  %s2, 65536, %s277, [#allocation8], 256, 256, 16
        $region20: #{svhn_decoder_forward.1} parent=11 // pred_fallthru
          _
        // Predicated region
        $region21: #{svhn_decoder_forward.1} parent=11 // pred_check
          %p283 = pneg %p111
        $region22: #{svhn_decoder_forward.1} parent=11 // pred_check_branch
          %285 = sbr.rel (%p283) target = $region24
        $region23: #{svhn_decoder_forward.1} parent=11 // pred_region
          %s287 = ssub.s32 65536, 65536
          %288 = vsyncadd [#allocation11], %s287
          %s289 = sshll.u32 [#allocation10], 4
          %s290 = int_to_ptr.vmem [resolvable:$true] %s289
          %295 = dma.hbm_to_vmem [thread:$0]  %s3, 65536, %s290, [#allocation11], 256, 256, 16
        $region24: #{svhn_decoder_forward.1} parent=11 // pred_fallthru
          _
        // Predicated region
        $region25: #{svhn_decoder_forward.1} parent=11 // pred_check
          %p296 = pneg %p132
        $region26: #{svhn_decoder_forward.1} parent=11 // pred_check_branch
          %298 = sbr.rel (%p296) target = $region28
        $region27: #{svhn_decoder_forward.1} parent=11 // pred_region
          _
        $region28: #{svhn_decoder_forward.1} parent=11 // pred_fallthru
          _
        // Predicated region
        $region29: #{svhn_decoder_forward.1} parent=11 // pred_check
          %p299 = pneg %p153
        $region30: #{svhn_decoder_forward.1} parent=11 // pred_check_branch
          %301 = sbr.rel (%p299) target = $region32
        $region31: #{svhn_decoder_forward.1} parent=11 // pred_region
          %s303 = ssub.s32 64, 64
          %304 = vsyncadd [#allocation11], %s303
          %s306 = sshll.u32 [#allocation12], 4
          %s307 = int_to_ptr.vmem [resolvable:$true] %s306
          %309 = dma.hbm_to_vmem [thread:$0]  %s5, 64, %s307, [#allocation11]
        $region32: #{svhn_decoder_forward.1} parent=11 // pred_fallthru
          _
        // Predicated region
        $region33: #{svhn_decoder_forward.1} parent=11 // pred_check
          %p310 = pneg %p174
        $region34: #{svhn_decoder_forward.1} parent=11 // pred_check_branch
          %312 = sbr.rel (%p310) target = $region36
        $region35: #{svhn_decoder_forward.1} parent=11 // pred_region
          %s314 = ssub.s32 64, 64
          %315 = vsyncadd [#allocation14], %s314
          %s317 = sshll.u32 [#allocation13], 4
          %s318 = int_to_ptr.vmem [resolvable:$true] %s317
          %320 = dma.hbm_to_vmem [thread:$0]  %s6, 64, %s318, [#allocation14]
        $region36: #{svhn_decoder_forward.1} parent=11 // pred_fallthru
          _
        // Predicated region
        $region37: #{svhn_decoder_forward.1} parent=11 // pred_check
          %p321 = pneg %p195
        $region38: #{svhn_decoder_forward.1} parent=11 // pred_check_branch
          %323 = sbr.rel (%p321) target = $region40
        $region39: #{svhn_decoder_forward.1} parent=11 // pred_region
          %s325 = ssub.s32 64, 64
          %326 = vsyncadd [#allocation14], %s325
          %s328 = sshll.u32 [#allocation15], 4
          %s329 = int_to_ptr.vmem [resolvable:$true] %s328
          %331 = dma.hbm_to_vmem [thread:$0]  %s7, 64, %s329, [#allocation14]
        $region40: #{svhn_decoder_forward.1} parent=11 // pred_fallthru
          _
        // Predicated region
        $region41: #{svhn_decoder_forward.1} parent=11 // pred_check
          %p332 = pneg %p216
        $region42: #{svhn_decoder_forward.1} parent=11 // pred_check_branch
          %334 = sbr.rel (%p332) target = $region44
        $region43: #{svhn_decoder_forward.1} parent=11 // pred_region
          %s336 = ssub.s32 16, 16
          %337 = vsyncadd [#allocation17], %s336
          %s339 = sshll.u32 [#allocation16], 4
          %s340 = int_to_ptr.vmem [resolvable:$true] %s339
          %342 = dma.hbm_to_vmem [thread:$0]  %s8, 16, %s340, [#allocation17]
        $region44: #{svhn_decoder_forward.1} parent=11 // pred_fallthru
          _
      $region12: #{svhn_decoder_forward.1} parent=5 // pred_fallthru
        _
      %p343 = scmp.lt.s32.totalorder %s22, 2
      // Predicated region
      $region45: #{svhn_decoder_forward.1} parent=5 // pred_check
        %p344 = pneg %p343
      $region46: #{svhn_decoder_forward.1} parent=5 // pred_check_branch
        %346 = sbr.rel (%p344) target = $region48
      $region47: #{svhn_decoder_forward.1} parent=5 // pred_region
        // Predicated region
        $region49: #{svhn_decoder_forward.1} parent=47 // pred_check
          %p347 = pneg %p42
        $region50: #{svhn_decoder_forward.1} parent=47 // pred_check_branch
          %349 = sbr.rel (%p347) target = $region52
        $region51: #{svhn_decoder_forward.1} parent=47 // pred_region
          %s350 = sand.u32 %s32, 1
          %s351 = scalar_lea.sflag [#allocation6], %s350
          %s352 = sand.u32 %s32, 1
          %s353 = scalar_lea.vmem [#allocation5], %s352
          %s355 = ssub.s32 16, 16
          %356 = vsyncadd %s351, %s355
          %s357 = smul.addr %s22, 16
          %s358 = scalar_lea.hbm %s0, %s357
          %s360 = sshll.u32 %s353, 4
          %s361 = int_to_ptr.vmem [resolvable:$true] %s360
          %363 = dma.hbm_to_vmem [thread:$0]  %s358, 16, %s361, %s351
        $region52: #{svhn_decoder_forward.1} parent=47 // pred_fallthru
          _
      $region48: #{svhn_decoder_forward.1} parent=5 // pred_fallthru
        _
      %p364 = scmp.le.s32.totalorder 1, %s22
      %p365 = scmp.lt.s32.totalorder %s22, 3
      %p366 = pnand %p364, %p365
      %p367 = pneg %p366
      // Predicated region
      $region53: #{svhn_decoder_forward.1} parent=5 // pred_check
        _
      $region54: #{svhn_decoder_forward.1} parent=5 // pred_check_branch
        %369 = sbr.rel (%p366) target = $region56
      $region55: #{svhn_decoder_forward.1} parent=5 // pred_region
        %s370 = ssub.s32 %s22, 1
        %s371 = sand.u32 %s35, 1
        %s372 = scalar_lea.sflag [#allocation6], %s371
        %s373 = sand.u32 %s35, 1
        %s374 = scalar_lea.vmem [#allocation5], %s373
        // Predicated region
        $region57: #{svhn_decoder_forward.1} parent=55 // pred_check
          %p375 = pneg %p48
        $region58: #{svhn_decoder_forward.1} parent=55 // pred_check_branch
          %377 = sbr.rel (%p375) target = $region60
        $region59: #{svhn_decoder_forward.1} parent=55 // pred_region
          %378 = dma.done %s372, 16
        $region60: #{svhn_decoder_forward.1} parent=55 // pred_fallthru
          _
        // Predicated region
        $region61: #{svhn_decoder_forward.1} parent=55 // pred_check
          %p379 = pneg %p69
        $region62: #{svhn_decoder_forward.1} parent=55 // pred_check_branch
          %381 = sbr.rel (%p379) target = $region64
        $region63: #{svhn_decoder_forward.1} parent=55 // pred_region
          %382 = dma.done [#allocation8], 2048
        $region64: #{svhn_decoder_forward.1} parent=55 // pred_fallthru
          _
        // Predicated region
        $region65: #{svhn_decoder_forward.1} parent=55 // pred_check
          %p383 = pneg %p90
        $region66: #{svhn_decoder_forward.1} parent=55 // pred_check_branch
          %385 = sbr.rel (%p383) target = $region68
        $region67: #{svhn_decoder_forward.1} parent=55 // pred_region
          %386 = dma.done [#allocation8], 65536
        $region68: #{svhn_decoder_forward.1} parent=55 // pred_fallthru
          _
        // Predicated region
        $region69: #{svhn_decoder_forward.1} parent=55 // pred_check
          %p387 = pneg %p111
        $region70: #{svhn_decoder_forward.1} parent=55 // pred_check_branch
          %389 = sbr.rel (%p387) target = $region72
        $region71: #{svhn_decoder_forward.1} parent=55 // pred_region
          %390 = dma.done [#allocation11], 65536
        $region72: #{svhn_decoder_forward.1} parent=55 // pred_fallthru
          _
        // Predicated region
        $region73: #{svhn_decoder_forward.1} parent=55 // pred_check
          %p391 = pneg %p153
        $region74: #{svhn_decoder_forward.1} parent=55 // pred_check_branch
          %393 = sbr.rel (%p391) target = $region76
        $region75: #{svhn_decoder_forward.1} parent=55 // pred_region
          %394 = dma.done [#allocation11], 64
        $region76: #{svhn_decoder_forward.1} parent=55 // pred_fallthru
          _
        // Predicated region
        $region77: #{svhn_decoder_forward.1} parent=55 // pred_check
          %p395 = pneg %p174
        $region78: #{svhn_decoder_forward.1} parent=55 // pred_check_branch
          %397 = sbr.rel (%p395) target = $region80
        $region79: #{svhn_decoder_forward.1} parent=55 // pred_region
          %398 = dma.done [#allocation14], 64
        $region80: #{svhn_decoder_forward.1} parent=55 // pred_fallthru
          _
        // Predicated region
        $region81: #{svhn_decoder_forward.1} parent=55 // pred_check
          %p399 = pneg %p195
        $region82: #{svhn_decoder_forward.1} parent=55 // pred_check_branch
          %401 = sbr.rel (%p399) target = $region84
        $region83: #{svhn_decoder_forward.1} parent=55 // pred_region
          %402 = dma.done [#allocation14], 64
        $region84: #{svhn_decoder_forward.1} parent=55 // pred_fallthru
          _
        // Predicated region
        $region85: #{svhn_decoder_forward.1} parent=55 // pred_check
          %p403 = pneg %p216
        $region86: #{svhn_decoder_forward.1} parent=55 // pred_check_branch
          %405 = sbr.rel (%p403) target = $region88
        $region87: #{svhn_decoder_forward.1} parent=55 // pred_region
          %406 = dma.done [#allocation17], 16
        $region88: #{svhn_decoder_forward.1} parent=55 // pred_fallthru
          _
        %s407 = sand.u32 %s35, 1
        %s408 = scalar_lea.sflag [#allocation6], %s407
        %s409 = sand.u32 %s35, 1
        %s410 = scalar_lea.vmem [#allocation5], %s409
        %p411 = pneg %p48
        %p412 = pneg %p45
        %p413 = pneg %p69
        %p414 = pneg %p66
        %p415 = pneg %p90
        %p416 = pneg %p87
        %p417 = pneg %p111
        %p418 = pneg %p108
        %p419 = pneg %p132
        %p420 = pneg %p129
        %p421 = pneg %p153
        %p422 = pneg %p150
        %p423 = pneg %p174
        %p424 = pneg %p171
        %p425 = pneg %p195
        %p426 = pneg %p192
        %p427 = pneg %p216
        %p428 = pneg %p213
        %p429 = pneg %p242
        %p430 = pneg %p239
        %p431 = scmp.lt.s32.totalorder %s27, 1
        %s432 = scalar_select %p431, %s27, 1
        %s433 = smul.addr %s432, 4
        %s434 = smul.addr %s433, 8
        %s435 = scalar_lea.vmem %s9, %s434
        %p436 = scmp.lt.s32.totalorder %s27, 1
        %s437 = scalar_select %p436, %s27, 1
        %s438 = smul.addr %s437, 4
        %s439 = smul.addr %s438, 8
        %s440 = scalar_lea.vmem %s9, %s439
        %442 = vst [vmem:[#allocation2] sm:$0x3f] 0.0
        %443 = vst [vmem:[#allocation2 + $0x8] sm:$0x3f] 0.0
        %444 = vst [vmem:[#allocation2 + $0x10] sm:$0x3f] 0.0
        %445 = vst [vmem:[#allocation2 + $0x18] sm:$0x3f] 0.0
        %446 = vst [vmem:[#allocation3] sm:$0xff] 0.0
        %447 = vst [vmem:[#allocation3 + $0x8] sm:$0xff] 0.0
        %448 = vst [vmem:[#allocation3 + $0x10] sm:$0xff] 0.0
        %449 = vst [vmem:[#allocation3 + $0x18] sm:$0xff] 0.0
        %450 = vst [vmem:[#allocation3 + $0x20] sm:$0x3] 0.0
        %451 = vst [vmem:[#allocation3 + $0x28] sm:$0x3] 0.0
        %452 = vst [vmem:[#allocation3 + $0x30] sm:$0x3] 0.0
        %453 = vst [vmem:[#allocation3 + $0x38] sm:$0x3] 0.0
        %454 = vst [vmem:[#allocation4] sm:$0xff] 0.0
        %455 = vst [vmem:[#allocation4 + $0x8] sm:$0xff] 0.0
        %456 = vst [vmem:[#allocation4 + $0x10] sm:$0xff] 0.0
        %457 = vst [vmem:[#allocation4 + $0x18] sm:$0xff] 0.0
        %458 = vst [vmem:[#allocation4 + $0x20] sm:$0xff] 0.0
        %459 = vst [vmem:[#allocation4 + $0x28] sm:$0xff] 0.0
        %460 = vst [vmem:[#allocation4 + $0x30] sm:$0xff] 0.0
        %461 = vst [vmem:[#allocation4 + $0x38] sm:$0xff] 0.0
        %462 = vst [vmem:[#allocation4 + $0x40] sm:$0x3] 0.0
        %463 = vst [vmem:[#allocation4 + $0x48] sm:$0x3] 0.0
        %464 = vst [vmem:[#allocation4 + $0x50] sm:$0x3] 0.0
        %465 = vst [vmem:[#allocation4 + $0x58] sm:$0x3] 0.0
        %v466 = vld [vmem:[%s374] sm:$0x1]
        %v467 = vpack.c.bf16 %v466, %v466
        %v468 = vld [vmem:[#allocation7] sm:$0xff]
        %v469 = vld [vmem:[#allocation7 + $0x8] sm:$0xff]
        %v470 = vld [vmem:[#allocation7 + $0x10] sm:$0xff]
        %v471 = vld [vmem:[#allocation7 + $0x18] sm:$0xff]
        %v472 = vld [vmem:[#allocation7 + $0x20] sm:$0xff]
        %v473 = vld [vmem:[#allocation7 + $0x28] sm:$0xff]
        %v474 = vld [vmem:[#allocation7 + $0x30] sm:$0xff]
        %v475 = vld [vmem:[#allocation7 + $0x38] sm:$0xff]
        %v476 = vld [vmem:[#allocation7 + $0x40] sm:$0xff]
        %v477 = vld [vmem:[#allocation7 + $0x48] sm:$0xff]
        %v478 = vld [vmem:[#allocation7 + $0x50] sm:$0xff]
        %v479 = vld [vmem:[#allocation7 + $0x58] sm:$0xff]
        %v480 = vld [vmem:[#allocation7 + $0x60] sm:$0xff]
        %v481 = vld [vmem:[#allocation7 + $0x68] sm:$0xff]
        %v482 = vld [vmem:[#allocation7 + $0x70] sm:$0xff]
        %v483 = vld [vmem:[#allocation7 + $0x78] sm:$0xff]
        %v500 = vunpack.c.l.b16 %v468
        %v501 = vunpack.c.h.b16 %v468
        %v502 = vunpack.c.l.b16 %v469
        %v503 = vunpack.c.h.b16 %v469
        %v504 = vunpack.c.l.b16 %v470
        %v505 = vunpack.c.h.b16 %v470
        %v506 = vunpack.c.l.b16 %v471
        %v507 = vunpack.c.h.b16 %v471
        %v508 = vunpack.c.l.b16 %v472
        %v509 = vunpack.c.h.b16 %v472
        %v510 = vunpack.c.l.b16 %v473
        %v511 = vunpack.c.h.b16 %v473
        %v512 = vunpack.c.l.b16 %v474
        %v513 = vunpack.c.h.b16 %v474
        %v514 = vunpack.c.l.b16 %v475
        %v515 = vunpack.c.h.b16 %v475
        %v516 = vunpack.c.l.b16 %v476
        %v517 = vunpack.c.h.b16 %v476
        %v518 = vunpack.c.l.b16 %v477
        %v519 = vunpack.c.h.b16 %v477
        %v520 = vunpack.c.l.b16 %v478
        %v521 = vunpack.c.h.b16 %v478
        %v522 = vunpack.c.l.b16 %v479
        %v523 = vunpack.c.h.b16 %v479
        %v524 = vunpack.c.l.b16 %v480
        %v525 = vunpack.c.h.b16 %v480
        %v526 = vunpack.c.l.b16 %v481
        %v527 = vunpack.c.h.b16 %v481
        %v528 = vunpack.c.l.b16 %v482
        %v529 = vunpack.c.h.b16 %v482
        %v530 = vunpack.c.l.b16 %v483
        %v531 = vunpack.c.h.b16 %v483
        %v532 = vpack.c.b16 %v516, %v500
        %v533 = vpack.c.b16 %v517, %v501
        %v534 = vpack.c.b16 %v518, %v502
        %v535 = vpack.c.b16 %v519, %v503
        %v536 = vpack.c.b16 %v520, %v504
        %v537 = vpack.c.b16 %v521, %v505
        %v538 = vpack.c.b16 %v522, %v506
        %v539 = vpack.c.b16 %v523, %v507
        %v540 = vpack.c.b16 %v524, %v508
        %v541 = vpack.c.b16 %v525, %v509
        %v542 = vpack.c.b16 %v526, %v510
        %v543 = vpack.c.b16 %v527, %v511
        %v544 = vpack.c.b16 %v528, %v512
        %v545 = vpack.c.b16 %v529, %v513
        %v546 = vpack.c.b16 %v530, %v514
        %v547 = vpack.c.b16 %v531, %v515
        %vm564 = vcmask 130048
        %v566 = vsel %vm564, %v467, 0
        %568 = vmatprep.subr.bf16.mxu0 %v533
        %569 = vmatpush1.bf16.msra.mxu0 %v532
        %570 = vmatprep.subr.bf16.mxu0 0
        %571 = vmatpush1.bf16.msra.mxu0 0
        %572 = vmatprep.subr.bf16.mxu0 0
        %573 = vmatpush1.bf16.msra.mxu0 0
        %574 = vmatprep.subr.bf16.mxu0 0
        %575 = vmatpush1.bf16.msra.mxu0 0
        %576 = vmatprep.subr.bf16.mxu0 0
        %577 = vmatpush1.bf16.msra.mxu0 0
        %578 = vmatprep.subr.bf16.mxu0 0
        %579 = vmatpush1.bf16.msra.mxu0 0
        %580 = vmatprep.subr.bf16.mxu0 0
        %581 = vmatpush1.bf16.msra.mxu0 0
        %582 = vmatprep.subr.bf16.mxu0 0
        %583 = vmatpush1.bf16.msra.mxu0 0
        %584 = vmatprep.subr.bf16.mxu0 0
        %585 = vmatpush1.bf16.msra.mxu0 0
        %586 = vmatprep.subr.bf16.mxu0 0
        %587 = vmatpush1.bf16.msra.mxu0 0
        %588 = vmatprep.subr.bf16.mxu0 0
        %589 = vmatpush1.bf16.msra.mxu0 0
        %590 = vmatprep.subr.bf16.mxu0 0
        %591 = vmatpush1.bf16.msra.mxu0 0
        %592 = vmatprep.subr.bf16.mxu0 0
        %593 = vmatpush1.bf16.msra.mxu0 0
        %594 = vmatprep.subr.bf16.mxu0 0
        %595 = vmatpush1.bf16.msra.mxu0 0
        %596 = vmatprep.subr.bf16.mxu0 0
        %597 = vmatpush1.bf16.msra.mxu0 0
        %598 = vmatprep.subr.bf16.mxu0 0
        %599 = vmatpush1.bf16.msra.mxu0 0
        %600 = vmatprep.mubr.bf16.mxu0 0
        %601 = vmatmul.mubr.bf16.gmra.mrb[0].mxu0 %v566
        %v602 = vpop.f32.mrb[0].mxu0
        %v603 = vadd.f32 0.0, %v602
        %v604 = vpop.f32.mrb[0].mxu0
        %v605 = vadd.f32 0.0, %v604
        %v606 = vpop.f32.mrb[0].mxu0
        %v607 = vpop.f32.mrb[0].mxu0
        %608 = vdwg.mxu0
        %609 = vmatprep.subr.bf16.mxu0 %v535
        %610 = vmatpush1.bf16.msra.mxu0 %v534
        %611 = vmatprep.subr.bf16.mxu0 0
        %612 = vmatpush1.bf16.msra.mxu0 0
        %613 = vmatprep.subr.bf16.mxu0 0
        %614 = vmatpush1.bf16.msra.mxu0 0
        %615 = vmatprep.subr.bf16.mxu0 0
        %616 = vmatpush1.bf16.msra.mxu0 0
        %617 = vmatprep.subr.bf16.mxu0 0
        %618 = vmatpush1.bf16.msra.mxu0 0
        %619 = vmatprep.subr.bf16.mxu0 0
        %620 = vmatpush1.bf16.msra.mxu0 0
        %621 = vmatprep.subr.bf16.mxu0 0
        %622 = vmatpush1.bf16.msra.mxu0 0
        %623 = vmatprep.subr.bf16.mxu0 0
        %624 = vmatpush1.bf16.msra.mxu0 0
        %625 = vmatprep.subr.bf16.mxu0 0
        %626 = vmatpush1.bf16.msra.mxu0 0
        %627 = vmatprep.subr.bf16.mxu0 0
        %628 = vmatpush1.bf16.msra.mxu0 0
        %629 = vmatprep.subr.bf16.mxu0 0
        %630 = vmatpush1.bf16.msra.mxu0 0
        %631 = vmatprep.subr.bf16.mxu0 0
        %632 = vmatpush1.bf16.msra.mxu0 0
        %633 = vmatprep.subr.bf16.mxu0 0
        %634 = vmatpush1.bf16.msra.mxu0 0
        %635 = vmatprep.subr.bf16.mxu0 0
        %636 = vmatpush1.bf16.msra.mxu0 0
        %637 = vmatprep.subr.bf16.mxu0 0
        %638 = vmatpush1.bf16.msra.mxu0 0
        %639 = vmatprep.subr.bf16.mxu0 0
        %640 = vmatpush1.bf16.msra.mxu0 0
        %641 = vmatprep.mubr.bf16.mxu0 0
        %642 = vmatmul.mubr.bf16.gmra.mrb[0].mxu0 %v566
        %v643 = vpop.f32.mrb[0].mxu0
        %v644 = vadd.f32 0.0, %v643
        %v645 = vpop.f32.mrb[0].mxu0
        %v646 = vadd.f32 0.0, %v645
        %v647 = vpop.f32.mrb[0].mxu0
        %v648 = vpop.f32.mrb[0].mxu0
        %649 = vdwg.mxu0
        %650 = vmatprep.subr.bf16.mxu0 %v537
        %651 = vmatpush1.bf16.msra.mxu0 %v536
        %652 = vmatprep.subr.bf16.mxu0 0
        %653 = vmatpush1.bf16.msra.mxu0 0
        %654 = vmatprep.subr.bf16.mxu0 0
        %655 = vmatpush1.bf16.msra.mxu0 0
        %656 = vmatprep.subr.bf16.mxu0 0
        %657 = vmatpush1.bf16.msra.mxu0 0
        %658 = vmatprep.subr.bf16.mxu0 0
        %659 = vmatpush1.bf16.msra.mxu0 0
        %660 = vmatprep.subr.bf16.mxu0 0
        %661 = vmatpush1.bf16.msra.mxu0 0
        %662 = vmatprep.subr.bf16.mxu0 0
        %663 = vmatpush1.bf16.msra.mxu0 0
        %664 = vmatprep.subr.bf16.mxu0 0
        %665 = vmatpush1.bf16.msra.mxu0 0
        %666 = vmatprep.subr.bf16.mxu0 0
        %667 = vmatpush1.bf16.msra.mxu0 0
        %668 = vmatprep.subr.bf16.mxu0 0
        %669 = vmatpush1.bf16.msra.mxu0 0
        %670 = vmatprep.subr.bf16.mxu0 0
        %671 = vmatpush1.bf16.msra.mxu0 0
        %672 = vmatprep.subr.bf16.mxu0 0
        %673 = vmatpush1.bf16.msra.mxu0 0
        %674 = vmatprep.subr.bf16.mxu0 0
        %675 = vmatpush1.bf16.msra.mxu0 0
        %676 = vmatprep.subr.bf16.mxu0 0
        %677 = vmatpush1.bf16.msra.mxu0 0
        %678 = vmatprep.subr.bf16.mxu0 0
        %679 = vmatpush1.bf16.msra.mxu0 0
        %680 = vmatprep.subr.bf16.mxu0 0
        %681 = vmatpush1.bf16.msra.mxu0 0
        %682 = vmatprep.mubr.bf16.mxu0 0
        %683 = vmatmul.mubr.bf16.gmra.mrb[0].mxu0 %v566
        %v684 = vpop.f32.mrb[0].mxu0
        %v685 = vadd.f32 0.0, %v684
        %v686 = vpop.f32.mrb[0].mxu0
        %v687 = vadd.f32 0.0, %v686
        %v688 = vpop.f32.mrb[0].mxu0
        %v689 = vpop.f32.mrb[0].mxu0
        %690 = vdwg.mxu0
        %691 = vmatprep.subr.bf16.mxu0 %v539
        %692 = vmatpush1.bf16.msra.mxu0 %v538
        %693 = vmatprep.subr.bf16.mxu0 0
        %694 = vmatpush1.bf16.msra.mxu0 0
        %695 = vmatprep.subr.bf16.mxu0 0
        %696 = vmatpush1.bf16.msra.mxu0 0
        %697 = vmatprep.subr.bf16.mxu0 0
        %698 = vmatpush1.bf16.msra.mxu0 0
        %699 = vmatprep.subr.bf16.mxu0 0
        %700 = vmatpush1.bf16.msra.mxu0 0
        %701 = vmatprep.subr.bf16.mxu0 0
        %702 = vmatpush1.bf16.msra.mxu0 0
        %703 = vmatprep.subr.bf16.mxu0 0
        %704 = vmatpush1.bf16.msra.mxu0 0
        %705 = vmatprep.subr.bf16.mxu0 0
        %706 = vmatpush1.bf16.msra.mxu0 0
        %707 = vmatprep.subr.bf16.mxu0 0
        %708 = vmatpush1.bf16.msra.mxu0 0
        %709 = vmatprep.subr.bf16.mxu0 0
        %710 = vmatpush1.bf16.msra.mxu0 0
        %711 = vmatprep.subr.bf16.mxu0 0
        %712 = vmatpush1.bf16.msra.mxu0 0
        %713 = vmatprep.subr.bf16.mxu0 0
        %714 = vmatpush1.bf16.msra.mxu0 0
        %715 = vmatprep.subr.bf16.mxu0 0
        %716 = vmatpush1.bf16.msra.mxu0 0
        %717 = vmatprep.subr.bf16.mxu0 0
        %718 = vmatpush1.bf16.msra.mxu0 0
        %719 = vmatprep.subr.bf16.mxu0 0
        %720 = vmatpush1.bf16.msra.mxu0 0
        %721 = vmatprep.subr.bf16.mxu0 0
        %722 = vmatpush1.bf16.msra.mxu0 0
        %723 = vmatprep.mubr.bf16.mxu0 0
        %724 = vmatmul.mubr.bf16.gmra.mrb[0].mxu0 %v566
        %v725 = vpop.f32.mrb[0].mxu0
        %v726 = vadd.f32 0.0, %v725
        %v727 = vpop.f32.mrb[0].mxu0
        %v728 = vadd.f32 0.0, %v727
        %v729 = vpop.f32.mrb[0].mxu0
        %v730 = vpop.f32.mrb[0].mxu0
        %731 = vdwg.mxu0
        %732 = vmatprep.subr.bf16.mxu0 %v541
        %733 = vmatpush1.bf16.msra.mxu0 %v540
        %734 = vmatprep.subr.bf16.mxu0 0
        %735 = vmatpush1.bf16.msra.mxu0 0
        %736 = vmatprep.subr.bf16.mxu0 0
        %737 = vmatpush1.bf16.msra.mxu0 0
        %738 = vmatprep.subr.bf16.mxu0 0
        %739 = vmatpush1.bf16.msra.mxu0 0
        %740 = vmatprep.subr.bf16.mxu0 0
        %741 = vmatpush1.bf16.msra.mxu0 0
        %742 = vmatprep.subr.bf16.mxu0 0
        %743 = vmatpush1.bf16.msra.mxu0 0
        %744 = vmatprep.subr.bf16.mxu0 0
        %745 = vmatpush1.bf16.msra.mxu0 0
        %746 = vmatprep.subr.bf16.mxu0 0
        %747 = vmatpush1.bf16.msra.mxu0 0
        %748 = vmatprep.subr.bf16.mxu0 0
        %749 = vmatpush1.bf16.msra.mxu0 0
        %750 = vmatprep.subr.bf16.mxu0 0
        %751 = vmatpush1.bf16.msra.mxu0 0
        %752 = vmatprep.subr.bf16.mxu0 0
        %753 = vmatpush1.bf16.msra.mxu0 0
        %754 = vmatprep.subr.bf16.mxu0 0
        %755 = vmatpush1.bf16.msra.mxu0 0
        %756 = vmatprep.subr.bf16.mxu0 0
        %757 = vmatpush1.bf16.msra.mxu0 0
        %758 = vmatprep.subr.bf16.mxu0 0
        %759 = vmatpush1.bf16.msra.mxu0 0
        %760 = vmatprep.subr.bf16.mxu0 0
        %761 = vmatpush1.bf16.msra.mxu0 0
        %762 = vmatprep.subr.bf16.mxu0 0
        %763 = vmatpush1.bf16.msra.mxu0 0
        %764 = vmatprep.mubr.bf16.mxu0 0
        %765 = vmatmul.mubr.bf16.gmra.mrb[0].mxu0 %v566
        %v766 = vpop.f32.mrb[0].mxu0
        %v767 = vadd.f32 0.0, %v766
        %v768 = vpop.f32.mrb[0].mxu0
        %v769 = vadd.f32 0.0, %v768
        %v770 = vpop.f32.mrb[0].mxu0
        %v771 = vpop.f32.mrb[0].mxu0
        %772 = vdwg.mxu0
        %773 = vmatprep.subr.bf16.mxu0 %v543
        %774 = vmatpush1.bf16.msra.mxu0 %v542
        %775 = vmatprep.subr.bf16.mxu0 0
        %776 = vmatpush1.bf16.msra.mxu0 0
        %777 = vmatprep.subr.bf16.mxu0 0
        %778 = vmatpush1.bf16.msra.mxu0 0
        %779 = vmatprep.subr.bf16.mxu0 0
        %780 = vmatpush1.bf16.msra.mxu0 0
        %781 = vmatprep.subr.bf16.mxu0 0
        %782 = vmatpush1.bf16.msra.mxu0 0
        %783 = vmatprep.subr.bf16.mxu0 0
        %784 = vmatpush1.bf16.msra.mxu0 0
        %785 = vmatprep.subr.bf16.mxu0 0
        %786 = vmatpush1.bf16.msra.mxu0 0
        %787 = vmatprep.subr.bf16.mxu0 0
        %788 = vmatpush1.bf16.msra.mxu0 0
        %789 = vmatprep.subr.bf16.mxu0 0
        %790 = vmatpush1.bf16.msra.mxu0 0
        %791 = vmatprep.subr.bf16.mxu0 0
        %792 = vmatpush1.bf16.msra.mxu0 0
        %793 = vmatprep.subr.bf16.mxu0 0
        %794 = vmatpush1.bf16.msra.mxu0 0
        %795 = vmatprep.subr.bf16.mxu0 0
        %796 = vmatpush1.bf16.msra.mxu0 0
        %797 = vmatprep.subr.bf16.mxu0 0
        %798 = vmatpush1.bf16.msra.mxu0 0
        %799 = vmatprep.subr.bf16.mxu0 0
        %800 = vmatpush1.bf16.msra.mxu0 0
        %801 = vmatprep.subr.bf16.mxu0 0
        %802 = vmatpush1.bf16.msra.mxu0 0
        %803 = vmatprep.subr.bf16.mxu0 0
        %804 = vmatpush1.bf16.msra.mxu0 0
        %805 = vmatprep.mubr.bf16.mxu0 0
        %806 = vmatmul.mubr.bf16.gmra.mrb[0].mxu0 %v566
        %v807 = vpop.f32.mrb[0].mxu0
        %v808 = vadd.f32 0.0, %v807
        %v809 = vpop.f32.mrb[0].mxu0
        %v810 = vadd.f32 0.0, %v809
        %v811 = vpop.f32.mrb[0].mxu0
        %v812 = vpop.f32.mrb[0].mxu0
        %813 = vdwg.mxu0
        %814 = vmatprep.subr.bf16.mxu0 %v545
        %815 = vmatpush1.bf16.msra.mxu0 %v544
        %816 = vmatprep.subr.bf16.mxu0 0
        %817 = vmatpush1.bf16.msra.mxu0 0
        %818 = vmatprep.subr.bf16.mxu0 0
        %819 = vmatpush1.bf16.msra.mxu0 0
        %820 = vmatprep.subr.bf16.mxu0 0
        %821 = vmatpush1.bf16.msra.mxu0 0
        %822 = vmatprep.subr.bf16.mxu0 0
        %823 = vmatpush1.bf16.msra.mxu0 0
        %824 = vmatprep.subr.bf16.mxu0 0
        %825 = vmatpush1.bf16.msra.mxu0 0
        %826 = vmatprep.subr.bf16.mxu0 0
        %827 = vmatpush1.bf16.msra.mxu0 0
        %828 = vmatprep.subr.bf16.mxu0 0
        %829 = vmatpush1.bf16.msra.mxu0 0
        %830 = vmatprep.subr.bf16.mxu0 0
        %831 = vmatpush1.bf16.msra.mxu0 0
        %832 = vmatprep.subr.bf16.mxu0 0
        %833 = vmatpush1.bf16.msra.mxu0 0
        %834 = vmatprep.subr.bf16.mxu0 0
        %835 = vmatpush1.bf16.msra.mxu0 0
        %836 = vmatprep.subr.bf16.mxu0 0
        %837 = vmatpush1.bf16.msra.mxu0 0
        %838 = vmatprep.subr.bf16.mxu0 0
        %839 = vmatpush1.bf16.msra.mxu0 0
        %840 = vmatprep.subr.bf16.mxu0 0
        %841 = vmatpush1.bf16.msra.mxu0 0
        %842 = vmatprep.subr.bf16.mxu0 0
        %843 = vmatpush1.bf16.msra.mxu0 0
        %844 = vmatprep.subr.bf16.mxu0 0
        %845 = vmatpush1.bf16.msra.mxu0 0
        %846 = vmatprep.mubr.bf16.mxu0 0
        %847 = vmatmul.mubr.bf16.gmra.mrb[0].mxu0 %v566
        %v848 = vpop.f32.mrb[0].mxu0
        %v849 = vadd.f32 0.0, %v848
        %v850 = vpop.f32.mrb[0].mxu0
        %v851 = vadd.f32 0.0, %v850
        %v852 = vpop.f32.mrb[0].mxu0
        %v853 = vpop.f32.mrb[0].mxu0
        %854 = vdwg.mxu0
        %855 = vmatprep.subr.bf16.mxu0 %v547
        %856 = vmatpush1.bf16.msra.mxu0 %v546
        %857 = vmatprep.subr.bf16.mxu0 0
        %858 = vmatpush1.bf16.msra.mxu0 0
        %859 = vmatprep.subr.bf16.mxu0 0
        %860 = vmatpush1.bf16.msra.mxu0 0
        %861 = vmatprep.subr.bf16.mxu0 0
        %862 = vmatpush1.bf16.msra.mxu0 0
        %863 = vmatprep.subr.bf16.mxu0 0
        %864 = vmatpush1.bf16.msra.mxu0 0
        %865 = vmatprep.subr.bf16.mxu0 0
        %866 = vmatpush1.bf16.msra.mxu0 0
        %867 = vmatprep.subr.bf16.mxu0 0
        %868 = vmatpush1.bf16.msra.mxu0 0
        %869 = vmatprep.subr.bf16.mxu0 0
        %870 = vmatpush1.bf16.msra.mxu0 0
        %871 = vmatprep.subr.bf16.mxu0 0
        %872 = vmatpush1.bf16.msra.mxu0 0
        %873 = vmatprep.subr.bf16.mxu0 0
        %874 = vmatpush1.bf16.msra.mxu0 0
        %875 = vmatprep.subr.bf16.mxu0 0
        %876 = vmatpush1.bf16.msra.mxu0 0
        %877 = vmatprep.subr.bf16.mxu0 0
        %878 = vmatpush1.bf16.msra.mxu0 0
        %879 = vmatprep.subr.bf16.mxu0 0
        %880 = vmatpush1.bf16.msra.mxu0 0
        %881 = vmatprep.subr.bf16.mxu0 0
        %882 = vmatpush1.bf16.msra.mxu0 0
        %883 = vmatprep.subr.bf16.mxu0 0
        %884 = vmatpush1.bf16.msra.mxu0 0
        %885 = vmatprep.subr.bf16.mxu0 0
        %886 = vmatpush1.bf16.msra.mxu0 0
        %887 = vmatprep.mubr.bf16.mxu0 0
        %888 = vmatmul.mubr.bf16.gmra.mrb[0].mxu0 %v566
        %v889 = vpop.f32.mrb[0].mxu0
        %v890 = vadd.f32 0.0, %v889
        %v891 = vpop.f32.mrb[0].mxu0
        %v892 = vadd.f32 0.0, %v891
        %v893 = vpop.f32.mrb[0].mxu0
        %v894 = vpop.f32.mrb[0].mxu0
        %895 = vdwg.mxu0
        %v896 = vld [vmem:[#allocation12] sm:$0xf]
        %v898 = vlaneseq
        %v899 = vshrl.u32 %v898, 7
        %v900 = vsub.s32 0, %v899
        %v901 = vrot.slane %v896, %v900
        %v902 = vlaneseq
        %v903 = vshrl.u32 %v902, 7
        %v904 = vsub.s32 1, %v903
        %v905 = vrot.slane %v896, %v904
        %v906 = vlaneseq
        %v907 = vshrl.u32 %v906, 7
        %v908 = vsub.s32 2, %v907
        %v909 = vrot.slane %v896, %v908
        %v910 = vlaneseq
        %v911 = vshrl.u32 %v910, 7
        %v912 = vsub.s32 3, %v911
        %v913 = vrot.slane %v896, %v912
        %v918 = vadd.f32 %v603, %v901
        %v919 = vadd.f32 %v605, %v905
        %v920 = vadd.f32 %v644, %v909
        %v921 = vadd.f32 %v646, %v913
        %v922 = vxor.u32 %v918, 2147483648
        %v923 = vxor.u32 %v919, 2147483648
        %v924 = vxor.u32 %v920, 2147483648
        %v925 = vxor.u32 %v921, 2147483648
        %v926 = vmul.f32 %v922, 1.442695
        %v927 = vpow.pop %v926
        %v928 = vmul.f32 %v923, 1.442695
        %v929 = vpow.pop %v928
        %v930 = vmul.f32 %v924, 1.442695
        %v931 = vpow.pop %v930
        %v932 = vmul.f32 %v925, 1.442695
        %v933 = vpow.pop %v932
        %v934 = vadd.f32 %v927, 1.0
        %v935 = vadd.f32 %v929, 1.0
        %v936 = vadd.f32 %v931, 1.0
        %v937 = vadd.f32 %v933, 1.0
        %v938 = vrcp.pop %v934
        %v939 = vmul.f32 1.0, %v938
        %v940 = vrcp.pop %v935
        %v941 = vmul.f32 1.0, %v940
        %v942 = vrcp.pop %v936
        %v943 = vmul.f32 1.0, %v942
        %v944 = vrcp.pop %v937
        %v945 = vmul.f32 1.0, %v944
        %v946 = vmul.f32 %v918, %v939
        %v947 = vmul.f32 %v919, %v941
        %v948 = vmul.f32 %v920, %v943
        %v949 = vmul.f32 %v921, %v945
        %v954 = vcombine.low %v946, %v947
        %v955 = vcombine.low %v948, %v949
        %v957 = vunpack.c.l.s4 1966171168
        %v958 = vunpack.c.0.s8 %v957
        %v959 = vlaneseq
        %v960 = vshrl.u32 %v959, 7
        %v961 = vsub.s32 %v958, %v960
        %v962 = vrot.slane %v954, %v961
        %v964 = vunpack.c.l.s4 1966171168
        %v965 = vunpack.c.0.s8 %v964
        %v966 = vlaneseq
        %v967 = vshrl.u32 %v966, 7
        %v968 = vsub.s32 %v965, %v967
        %v969 = vrot.slane %v955, %v968
        %v970 = vcombine.low %v962, %v969
        %v972 = vunpack.c.l.s4 1966171168
        %v973 = vunpack.c.0.s8 %v972
        %v974 = vlaneseq
        %v975 = vshrl.u32 %v974, 7
        %v976 = vsub.s32 %v973, %v975
        %v977 = vrot.slane %v970, %v976
        %v979 = vlaneseq
        %vm980 = vcmp.ge.s32.totalorder %v979, 0
        %vm981 = vcmp.lt.s32.totalorder %v979, 512
        %vm982 = vmand %vm980, %vm981
        %s983 = scalar_lea.vmem [#allocation2], 1
        %984 = vst.msk [vmem:[%s983] ss:$8 sm:$0xf] %vm982, %v977
        %985 = vst.msk [vmem:[%s983] ss:$8 sm:$0x0] %vm982, %v977
        %v986 = vld [vmem:[#allocation12] sm:$0xf]
        %v988 = vlaneseq
        %v989 = vshrl.u32 %v988, 7
        %v990 = vsub.s32 0, %v989
        %v991 = vrot.slane %v986, %v990
        %v992 = vlaneseq
        %v993 = vshrl.u32 %v992, 7
        %v994 = vsub.s32 1, %v993
        %v995 = vrot.slane %v986, %v994
        %v996 = vlaneseq
        %v997 = vshrl.u32 %v996, 7
        %v998 = vsub.s32 2, %v997
        %v999 = vrot.slane %v986, %v998
        %v1000 = vlaneseq
        %v1001 = vshrl.u32 %v1000, 7
        %v1002 = vsub.s32 3, %v1001
        %v1003 = vrot.slane %v986, %v1002
        %v1008 = vadd.f32 %v685, %v991
        %v1009 = vadd.f32 %v687, %v995
        %v1010 = vadd.f32 %v726, %v999
        %v1011 = vadd.f32 %v728, %v1003
        %v1012 = vxor.u32 %v1008, 2147483648
        %v1013 = vxor.u32 %v1009, 2147483648
        %v1014 = vxor.u32 %v1010, 2147483648
        %v1015 = vxor.u32 %v1011, 2147483648
        %v1016 = vmul.f32 %v1012, 1.442695
        %v1017 = vpow.pop %v1016
        %v1018 = vmul.f32 %v1013, 1.442695
        %v1019 = vpow.pop %v1018
        %v1020 = vmul.f32 %v1014, 1.442695
        %v1021 = vpow.pop %v1020
        %v1022 = vmul.f32 %v1015, 1.442695
        %v1023 = vpow.pop %v1022
        %v1024 = vadd.f32 %v1017, 1.0
        %v1025 = vadd.f32 %v1019, 1.0
        %v1026 = vadd.f32 %v1021, 1.0
        %v1027 = vadd.f32 %v1023, 1.0
        %v1028 = vrcp.pop %v1024
        %v1029 = vmul.f32 1.0, %v1028
        %v1030 = vrcp.pop %v1025
        %v1031 = vmul.f32 1.0, %v1030
        %v1032 = vrcp.pop %v1026
        %v1033 = vmul.f32 1.0, %v1032
        %v1034 = vrcp.pop %v1027
        %v1035 = vmul.f32 1.0, %v1034
        %v1036 = vmul.f32 %v1008, %v1029
        %v1037 = vmul.f32 %v1009, %v1031
        %v1038 = vmul.f32 %v1010, %v1033
        %v1039 = vmul.f32 %v1011, %v1035
        %v1044 = vcombine.low %v1036, %v1037
        %v1045 = vcombine.low %v1038, %v1039
        %v1047 = vunpack.c.l.s4 1966171168
        %v1048 = vunpack.c.0.s8 %v1047
        %v1049 = vlaneseq
        %v1050 = vshrl.u32 %v1049, 7
        %v1051 = vsub.s32 %v1048, %v1050
        %v1052 = vrot.slane %v1044, %v1051
        %v1054 = vunpack.c.l.s4 1966171168
        %v1055 = vunpack.c.0.s8 %v1054
        %v1056 = vlaneseq
        %v1057 = vshrl.u32 %v1056, 7
        %v1058 = vsub.s32 %v1055, %v1057
        %v1059 = vrot.slane %v1045, %v1058
        %v1060 = vcombine.low %v1052, %v1059
        %v1062 = vunpack.c.l.s4 1966171168
        %v1063 = vunpack.c.0.s8 %v1062
        %v1064 = vlaneseq
        %v1065 = vshrl.u32 %v1064, 7
        %v1066 = vsub.s32 %v1063, %v1065
        %v1067 = vrot.slane %v1060, %v1066
        %s1069 = scalar_lea.vmem [#allocation2], 2
        %1070 = vst.msk [vmem:[%s1069] ss:$8 sm:$0xf] %vm982, %v1067
        %1071 = vst.msk [vmem:[%s1069] ss:$8 sm:$0x0] %vm982, %v1067
        %v1072 = vld [vmem:[#allocation12] sm:$0xf]
        %v1074 = vlaneseq
        %v1075 = vshrl.u32 %v1074, 7
        %v1076 = vsub.s32 0, %v1075
        %v1077 = vrot.slane %v1072, %v1076
        %v1078 = vlaneseq
        %v1079 = vshrl.u32 %v1078, 7
        %v1080 = vsub.s32 1, %v1079
        %v1081 = vrot.slane %v1072, %v1080
        %v1082 = vlaneseq
        %v1083 = vshrl.u32 %v1082, 7
        %v1084 = vsub.s32 2, %v1083
        %v1085 = vrot.slane %v1072, %v1084
        %v1086 = vlaneseq
        %v1087 = vshrl.u32 %v1086, 7
        %v1088 = vsub.s32 3, %v1087
        %v1089 = vrot.slane %v1072, %v1088
        %v1094 = vadd.f32 %v767, %v1077
        %v1095 = vadd.f32 %v769, %v1081
        %v1096 = vadd.f32 %v808, %v1085
        %v1097 = vadd.f32 %v810, %v1089
        %v1098 = vxor.u32 %v1094, 2147483648
        %v1099 = vxor.u32 %v1095, 2147483648
        %v1100 = vxor.u32 %v1096, 2147483648
        %v1101 = vxor.u32 %v1097, 2147483648
        %v1102 = vmul.f32 %v1098, 1.442695
        %v1103 = vpow.pop %v1102
        %v1104 = vmul.f32 %v1099, 1.442695
        %v1105 = vpow.pop %v1104
        %v1106 = vmul.f32 %v1100, 1.442695
        %v1107 = vpow.pop %v1106
        %v1108 = vmul.f32 %v1101, 1.442695
        %v1109 = vpow.pop %v1108
        %v1110 = vadd.f32 %v1103, 1.0
        %v1111 = vadd.f32 %v1105, 1.0
        %v1112 = vadd.f32 %v1107, 1.0
        %v1113 = vadd.f32 %v1109, 1.0
        %v1114 = vrcp.pop %v1110
        %v1115 = vmul.f32 1.0, %v1114
        %v1116 = vrcp.pop %v1111
        %v1117 = vmul.f32 1.0, %v1116
        %v1118 = vrcp.pop %v1112
        %v1119 = vmul.f32 1.0, %v1118
        %v1120 = vrcp.pop %v1113
        %v1121 = vmul.f32 1.0, %v1120
        %v1122 = vmul.f32 %v1094, %v1115
        %v1123 = vmul.f32 %v1095, %v1117
        %v1124 = vmul.f32 %v1096, %v1119
        %v1125 = vmul.f32 %v1097, %v1121
        %v1130 = vcombine.low %v1122, %v1123
        %v1131 = vcombine.low %v1124, %v1125
        %v1133 = vunpack.c.l.s4 1966171168
        %v1134 = vunpack.c.0.s8 %v1133
        %v1135 = vlaneseq
        %v1136 = vshrl.u32 %v1135, 7
        %v1137 = vsub.s32 %v1134, %v1136
        %v1138 = vrot.slane %v1130, %v1137
        %v1140 = vunpack.c.l.s4 1966171168
        %v1141 = vunpack.c.0.s8 %v1140
        %v1142 = vlaneseq
        %v1143 = vshrl.u32 %v1142, 7
        %v1144 = vsub.s32 %v1141, %v1143
        %v1145 = vrot.slane %v1131, %v1144
        %v1146 = vcombine.low %v1138, %v1145
        %v1148 = vunpack.c.l.s4 1966171168
        %v1149 = vunpack.c.0.s8 %v1148
        %v1150 = vlaneseq
        %v1151 = vshrl.u32 %v1150, 7
        %v1152 = vsub.s32 %v1149, %v1151
        %v1153 = vrot.slane %v1146, %v1152
        %s1155 = scalar_lea.vmem [#allocation2], 3
        %1156 = vst.msk [vmem:[%s1155] ss:$8 sm:$0xf] %vm982, %v1153
        %1157 = vst.msk [vmem:[%s1155] ss:$8 sm:$0x0] %vm982, %v1153
        %v1158 = vld [vmem:[#allocation12] sm:$0xf]
        %v1160 = vlaneseq
        %v1161 = vshrl.u32 %v1160, 7
        %v1162 = vsub.s32 0, %v1161
        %v1163 = vrot.slane %v1158, %v1162
        %v1164 = vlaneseq
        %v1165 = vshrl.u32 %v1164, 7
        %v1166 = vsub.s32 1, %v1165
        %v1167 = vrot.slane %v1158, %v1166
        %v1168 = vlaneseq
        %v1169 = vshrl.u32 %v1168, 7
        %v1170 = vsub.s32 2, %v1169
        %v1171 = vrot.slane %v1158, %v1170
        %v1172 = vlaneseq
        %v1173 = vshrl.u32 %v1172, 7
        %v1174 = vsub.s32 3, %v1173
        %v1175 = vrot.slane %v1158, %v1174
        %v1180 = vadd.f32 %v849, %v1163
        %v1181 = vadd.f32 %v851, %v1167
        %v1182 = vadd.f32 %v890, %v1171
        %v1183 = vadd.f32 %v892, %v1175
        %v1184 = vxor.u32 %v1180, 2147483648
        %v1185 = vxor.u32 %v1181, 2147483648
        %v1186 = vxor.u32 %v1182, 2147483648
        %v1187 = vxor.u32 %v1183, 2147483648
        %v1188 = vmul.f32 %v1184, 1.442695
        %v1189 = vpow.pop %v1188
        %v1190 = vmul.f32 %v1185, 1.442695
        %v1191 = vpow.pop %v1190
        %v1192 = vmul.f32 %v1186, 1.442695
        %v1193 = vpow.pop %v1192
        %v1194 = vmul.f32 %v1187, 1.442695
        %v1195 = vpow.pop %v1194
        %v1196 = vadd.f32 %v1189, 1.0
        %v1197 = vadd.f32 %v1191, 1.0
        %v1198 = vadd.f32 %v1193, 1.0
        %v1199 = vadd.f32 %v1195, 1.0
        %v1200 = vrcp.pop %v1196
        %v1201 = vmul.f32 1.0, %v1200
        %v1202 = vrcp.pop %v1197
        %v1203 = vmul.f32 1.0, %v1202
        %v1204 = vrcp.pop %v1198
        %v1205 = vmul.f32 1.0, %v1204
        %v1206 = vrcp.pop %v1199
        %v1207 = vmul.f32 1.0, %v1206
        %v1208 = vmul.f32 %v1180, %v1201
        %v1209 = vmul.f32 %v1181, %v1203
        %v1210 = vmul.f32 %v1182, %v1205
        %v1211 = vmul.f32 %v1183, %v1207
        %v1216 = vcombine.low %v1208, %v1209
        %v1217 = vcombine.low %v1210, %v1211
        %v1219 = vunpack.c.l.s4 1966171168
        %v1220 = vunpack.c.0.s8 %v1219
        %v1221 = vlaneseq
        %v1222 = vshrl.u32 %v1221, 7
        %v1223 = vsub.s32 %v1220, %v1222
        %v1224 = vrot.slane %v1216, %v1223
        %v1226 = vunpack.c.l.s4 1966171168
        %v1227 = vunpack.c.0.s8 %v1226
        %v1228 = vlaneseq
        %v1229 = vshrl.u32 %v1228, 7
        %v1230 = vsub.s32 %v1227, %v1229
        %v1231 = vrot.slane %v1217, %v1230
        %v1232 = vcombine.low %v1224, %v1231
        %v1234 = vunpack.c.l.s4 1966171168
        %v1235 = vunpack.c.0.s8 %v1234
        %v1236 = vlaneseq
        %v1237 = vshrl.u32 %v1236, 7
        %v1238 = vsub.s32 %v1235, %v1237
        %v1239 = vrot.slane %v1232, %v1238
        %s1241 = scalar_lea.vmem [#allocation2], 4
        %1242 = vst.msk [vmem:[%s1241] ss:$8 sm:$0xf] %vm982, %v1239
        %1243 = vst.msk [vmem:[%s1241] ss:$8 sm:$0x0] %vm982, %v1239
        %v1244 = vld [vmem:[#allocation2] sm:$0x1e]
        %v1245 = vld [vmem:[#allocation2 + $0x8] sm:$0x1e]
        %v1246 = vld [vmem:[#allocation2 + $0x10] sm:$0x1e]
        %v1247 = vld [vmem:[#allocation2 + $0x18] sm:$0x1e]
        %v1248 = vpack.c.bf16 %v1244, %v1244
        %v1249 = vpack.c.bf16 %v1245, %v1245
        %v1250 = vpack.c.bf16 %v1246, %v1246
        %v1251 = vpack.c.bf16 %v1247, %v1247
        %s1252 = scalar_lea.vmem [#allocation9], 1024
        %v1253 = vld [vmem:[%s1252] sm:$0xff]
        %v1254 = vld [vmem:[%s1252 + $0x8] sm:$0xff]
        %v1255 = vld [vmem:[%s1252 + $0x10] sm:$0xff]
        %v1256 = vld [vmem:[%s1252 + $0x18] sm:$0xff]
        %v1257 = vld [vmem:[%s1252 + $0x20] sm:$0xff]
        %v1258 = vld [vmem:[%s1252 + $0x28] sm:$0xff]
        %v1259 = vld [vmem:[%s1252 + $0x30] sm:$0xff]
        %v1260 = vld [vmem:[%s1252 + $0x38] sm:$0xff]
        %v1261 = vld [vmem:[%s1252 + $0x40] sm:$0xff]
        %v1262 = vld [vmem:[%s1252 + $0x48] sm:$0xff]
        %v1263 = vld [vmem:[%s1252 + $0x50] sm:$0xff]
        %v1264 = vld [vmem:[%s1252 + $0x58] sm:$0xff]
        %v1265 = vld [vmem:[%s1252 + $0x60] sm:$0xff]
        %v1266 = vld [vmem:[%s1252 + $0x68] sm:$0xff]
        %v1267 = vld [vmem:[%s1252 + $0x70] sm:$0xff]
        %v1268 = vld [vmem:[%s1252 + $0x78] sm:$0xff]
        %v1269 = vld [vmem:[%s1252 + $0x80] sm:$0xff]
        %v1270 = vld [vmem:[%s1252 + $0x88] sm:$0xff]
        %v1271 = vld [vmem:[%s1252 + $0x90] sm:$0xff]
        %v1272 = vld [vmem:[%s1252 + $0x98] sm:$0xff]
        %v1273 = vld [vmem:[%s1252 + $0xa0] sm:$0xff]
        %v1274 = vld [vmem:[%s1252 + $0xa8] sm:$0xff]
        %v1275 = vld [vmem:[%s1252 + $0xb0] sm:$0xff]
        %v1276 = vld [vmem:[%s1252 + $0xb8] sm:$0xff]
        %v1277 = vld [vmem:[%s1252 + $0xc0] sm:$0xff]
        %v1278 = vld [vmem:[%s1252 + $0xc8] sm:$0xff]
        %v1279 = vld [vmem:[%s1252 + $0xd0] sm:$0xff]
        %v1280 = vld [vmem:[%s1252 + $0xd8] sm:$0xff]
        %v1281 = vld [vmem:[%s1252 + $0xe0] sm:$0xff]
        %v1282 = vld [vmem:[%s1252 + $0xe8] sm:$0xff]
        %v1283 = vld [vmem:[%s1252 + $0xf0] sm:$0xff]
        %v1284 = vld [vmem:[%s1252 + $0xf8] sm:$0xff]
        %v1285 = vld [vmem:[%s1252 + $0x100] sm:$0xff]
        %v1286 = vld [vmem:[%s1252 + $0x108] sm:$0xff]
        %v1287 = vld [vmem:[%s1252 + $0x110] sm:$0xff]
        %v1288 = vld [vmem:[%s1252 + $0x118] sm:$0xff]
        %v1289 = vld [vmem:[%s1252 + $0x120] sm:$0xff]
        %v1290 = vld [vmem:[%s1252 + $0x128] sm:$0xff]
        %v1291 = vld [vmem:[%s1252 + $0x130] sm:$0xff]
        %v1292 = vld [vmem:[%s1252 + $0x138] sm:$0xff]
        %v1293 = vld [vmem:[%s1252 + $0x140] sm:$0xff]
        %v1294 = vld [vmem:[%s1252 + $0x148] sm:$0xff]
        %v1295 = vld [vmem:[%s1252 + $0x150] sm:$0xff]
        %v1296 = vld [vmem:[%s1252 + $0x158] sm:$0xff]
        %v1297 = vld [vmem:[%s1252 + $0x160] sm:$0xff]
        %v1298 = vld [vmem:[%s1252 + $0x168] sm:$0xff]
        %v1299 = vld [vmem:[%s1252 + $0x170] sm:$0xff]
        %v1300 = vld [vmem:[%s1252 + $0x178] sm:$0xff]
        %v1301 = vld [vmem:[%s1252 + $0x180] sm:$0xff]
        %v1302 = vld [vmem:[%s1252 + $0x188] sm:$0xff]
        %v1303 = vld [vmem:[%s1252 + $0x190] sm:$0xff]
        %v1304 = vld [vmem:[%s1252 + $0x198] sm:$0xff]
        %v1305 = vld [vmem:[%s1252 + $0x1a0] sm:$0xff]
        %v1306 = vld [vmem:[%s1252 + $0x1a8] sm:$0xff]
        %v1307 = vld [vmem:[%s1252 + $0x1b0] sm:$0xff]
        %v1308 = vld [vmem:[%s1252 + $0x1b8] sm:$0xff]
        %v1309 = vld [vmem:[%s1252 + $0x1c0] sm:$0xff]
        %v1310 = vld [vmem:[%s1252 + $0x1c8] sm:$0xff]
        %v1311 = vld [vmem:[%s1252 + $0x1d0] sm:$0xff]
        %v1312 = vld [vmem:[%s1252 + $0x1d8] sm:$0xff]
        %v1313 = vld [vmem:[%s1252 + $0x1e0] sm:$0xff]
        %v1314 = vld [vmem:[%s1252 + $0x1e8] sm:$0xff]
        %v1315 = vld [vmem:[%s1252 + $0x1f0] sm:$0xff]
        %v1316 = vld [vmem:[%s1252 + $0x1f8] sm:$0xff]
        %v1317 = vld [vmem:[%s1252 + $0x200] sm:$0xff]
        %v1318 = vld [vmem:[%s1252 + $0x208] sm:$0xff]
        %v1319 = vld [vmem:[%s1252 + $0x210] sm:$0xff]
        %v1320 = vld [vmem:[%s1252 + $0x218] sm:$0xff]
        %v1321 = vld [vmem:[%s1252 + $0x220] sm:$0xff]
        %v1322 = vld [vmem:[%s1252 + $0x228] sm:$0xff]
        %v1323 = vld [vmem:[%s1252 + $0x230] sm:$0xff]
        %v1324 = vld [vmem:[%s1252 + $0x238] sm:$0xff]
        %v1325 = vld [vmem:[%s1252 + $0x240] sm:$0xff]
        %v1326 = vld [vmem:[%s1252 + $0x248] sm:$0xff]
        %v1327 = vld [vmem:[%s1252 + $0x250] sm:$0xff]
        %v1328 = vld [vmem:[%s1252 + $0x258] sm:$0xff]
        %v1329 = vld [vmem:[%s1252 + $0x260] sm:$0xff]
        %v1330 = vld [vmem:[%s1252 + $0x268] sm:$0xff]
        %v1331 = vld [vmem:[%s1252 + $0x270] sm:$0xff]
        %v1332 = vld [vmem:[%s1252 + $0x278] sm:$0xff]
        %v1333 = vld [vmem:[%s1252 + $0x280] sm:$0xff]
        %v1334 = vld [vmem:[%s1252 + $0x288] sm:$0xff]
        %v1335 = vld [vmem:[%s1252 + $0x290] sm:$0xff]
        %v1336 = vld [vmem:[%s1252 + $0x298] sm:$0xff]
        %v1337 = vld [vmem:[%s1252 + $0x2a0] sm:$0xff]
        %v1338 = vld [vmem:[%s1252 + $0x2a8] sm:$0xff]
        %v1339 = vld [vmem:[%s1252 + $0x2b0] sm:$0xff]
        %v1340 = vld [vmem:[%s1252 + $0x2b8] sm:$0xff]
        %v1341 = vld [vmem:[%s1252 + $0x2c0] sm:$0xff]
        %v1342 = vld [vmem:[%s1252 + $0x2c8] sm:$0xff]
        %v1343 = vld [vmem:[%s1252 + $0x2d0] sm:$0xff]
        %v1344 = vld [vmem:[%s1252 + $0x2d8] sm:$0xff]
        %v1345 = vld [vmem:[%s1252 + $0x2e0] sm:$0xff]
        %v1346 = vld [vmem:[%s1252 + $0x2e8] sm:$0xff]
        %v1347 = vld [vmem:[%s1252 + $0x2f0] sm:$0xff]
        %v1348 = vld [vmem:[%s1252 + $0x2f8] sm:$0xff]
        %v1349 = vld [vmem:[%s1252 + $0x300] sm:$0xff]
        %v1350 = vld [vmem:[%s1252 + $0x308] sm:$0xff]
        %v1351 = vld [vmem:[%s1252 + $0x310] sm:$0xff]
        %v1352 = vld [vmem:[%s1252 + $0x318] sm:$0xff]
        %v1353 = vld [vmem:[%s1252 + $0x320] sm:$0xff]
        %v1354 = vld [vmem:[%s1252 + $0x328] sm:$0xff]
        %v1355 = vld [vmem:[%s1252 + $0x330] sm:$0xff]
        %v1356 = vld [vmem:[%s1252 + $0x338] sm:$0xff]
        %v1357 = vld [vmem:[%s1252 + $0x340] sm:$0xff]
        %v1358 = vld [vmem:[%s1252 + $0x348] sm:$0xff]
        %v1359 = vld [vmem:[%s1252 + $0x350] sm:$0xff]
        %v1360 = vld [vmem:[%s1252 + $0x358] sm:$0xff]
        %v1361 = vld [vmem:[%s1252 + $0x360] sm:$0xff]
        %v1362 = vld [vmem:[%s1252 + $0x368] sm:$0xff]
        %v1363 = vld [vmem:[%s1252 + $0x370] sm:$0xff]
        %v1364 = vld [vmem:[%s1252 + $0x378] sm:$0xff]
        %v1365 = vld [vmem:[%s1252 + $0x380] sm:$0xff]
        %v1366 = vld [vmem:[%s1252 + $0x388] sm:$0xff]
        %v1367 = vld [vmem:[%s1252 + $0x390] sm:$0xff]
        %v1368 = vld [vmem:[%s1252 + $0x398] sm:$0xff]
        %v1369 = vld [vmem:[%s1252 + $0x3a0] sm:$0xff]
        %v1370 = vld [vmem:[%s1252 + $0x3a8] sm:$0xff]
        %v1371 = vld [vmem:[%s1252 + $0x3b0] sm:$0xff]
        %v1372 = vld [vmem:[%s1252 + $0x3b8] sm:$0xff]
        %v1373 = vld [vmem:[%s1252 + $0x3c0] sm:$0xff]
        %v1374 = vld [vmem:[%s1252 + $0x3c8] sm:$0xff]
        %v1375 = vld [vmem:[%s1252 + $0x3d0] sm:$0xff]
        %v1376 = vld [vmem:[%s1252 + $0x3d8] sm:$0xff]
        %v1377 = vld [vmem:[%s1252 + $0x3e0] sm:$0xff]
        %v1378 = vld [vmem:[%s1252 + $0x3e8] sm:$0xff]
        %v1379 = vld [vmem:[%s1252 + $0x3f0] sm:$0xff]
        %v1380 = vld [vmem:[%s1252 + $0x3f8] sm:$0xff]
        %v1381 = vld [vmem:[#allocation2] sm:$0xf]
        %v1382 = vld [vmem:[#allocation2 + $0x8] sm:$0xf]
        %v1383 = vld [vmem:[#allocation2 + $0x10] sm:$0xf]
        %v1384 = vld [vmem:[#allocation2 + $0x18] sm:$0xf]
        %v1385 = vpack.c.bf16 %v1381, %v1381
        %v1386 = vpack.c.bf16 %v1382, %v1382
        %v1387 = vpack.c.bf16 %v1383, %v1383
        %v1388 = vpack.c.bf16 %v1384, %v1384
        %s1389 = scalar_lea.vmem [#allocation9], 3072
        %v1390 = vld [vmem:[%s1389] sm:$0xff]
        %v1391 = vld [vmem:[%s1389 + $0x8] sm:$0xff]
        %v1392 = vld [vmem:[%s1389 + $0x10] sm:$0xff]
        %v1393 = vld [vmem:[%s1389 + $0x18] sm:$0xff]
        %v1394 = vld [vmem:[%s1389 + $0x20] sm:$0xff]
        %v1395 = vld [vmem:[%s1389 + $0x28] sm:$0xff]
        %v1396 = vld [vmem:[%s1389 + $0x30] sm:$0xff]
        %v1397 = vld [vmem:[%s1389 + $0x38] sm:$0xff]
        %v1398 = vld [vmem:[%s1389 + $0x40] sm:$0xff]
        %v1399 = vld [vmem:[%s1389 + $0x48] sm:$0xff]
        %v1400 = vld [vmem:[%s1389 + $0x50] sm:$0xff]
        %v1401 = vld [vmem:[%s1389 + $0x58] sm:$0xff]
        %v1402 = vld [vmem:[%s1389 + $0x60] sm:$0xff]
        %v1403 = vld [vmem:[%s1389 + $0x68] sm:$0xff]
        %v1404 = vld [vmem:[%s1389 + $0x70] sm:$0xff]
        %v1405 = vld [vmem:[%s1389 + $0x78] sm:$0xff]
        %v1406 = vld [vmem:[%s1389 + $0x80] sm:$0xff]
        %v1407 = vld [vmem:[%s1389 + $0x88] sm:$0xff]
        %v1408 = vld [vmem:[%s1389 + $0x90] sm:$0xff]
        %v1409 = vld [vmem:[%s1389 + $0x98] sm:$0xff]
        %v1410 = vld [vmem:[%s1389 + $0xa0] sm:$0xff]
        %v1411 = vld [vmem:[%s1389 + $0xa8] sm:$0xff]
        %v1412 = vld [vmem:[%s1389 + $0xb0] sm:$0xff]
        %v1413 = vld [vmem:[%s1389 + $0xb8] sm:$0xff]
        %v1414 = vld [vmem:[%s1389 + $0xc0] sm:$0xff]
        %v1415 = vld [vmem:[%s1389 + $0xc8] sm:$0xff]
        %v1416 = vld [vmem:[%s1389 + $0xd0] sm:$0xff]
        %v1417 = vld [vmem:[%s1389 + $0xd8] sm:$0xff]
        %v1418 = vld [vmem:[%s1389 + $0xe0] sm:$0xff]
        %v1419 = vld [vmem:[%s1389 + $0xe8] sm:$0xff]
        %v1420 = vld [vmem:[%s1389 + $0xf0] sm:$0xff]
        %v1421 = vld [vmem:[%s1389 + $0xf8] sm:$0xff]
        %v1422 = vld [vmem:[%s1389 + $0x100] sm:$0xff]
        %v1423 = vld [vmem:[%s1389 + $0x108] sm:$0xff]
        %v1424 = vld [vmem:[%s1389 + $0x110] sm:$0xff]
        %v1425 = vld [vmem:[%s1389 + $0x118] sm:$0xff]
        %v1426 = vld [vmem:[%s1389 + $0x120] sm:$0xff]
        %v1427 = vld [vmem:[%s1389 + $0x128] sm:$0xff]
        %v1428 = vld [vmem:[%s1389 + $0x130] sm:$0xff]
        %v1429 = vld [vmem:[%s1389 + $0x138] sm:$0xff]
        %v1430 = vld [vmem:[%s1389 + $0x140] sm:$0xff]
        %v1431 = vld [vmem:[%s1389 + $0x148] sm:$0xff]
        %v1432 = vld [vmem:[%s1389 + $0x150] sm:$0xff]
        %v1433 = vld [vmem:[%s1389 + $0x158] sm:$0xff]
        %v1434 = vld [vmem:[%s1389 + $0x160] sm:$0xff]
        %v1435 = vld [vmem:[%s1389 + $0x168] sm:$0xff]
        %v1436 = vld [vmem:[%s1389 + $0x170] sm:$0xff]
        %v1437 = vld [vmem:[%s1389 + $0x178] sm:$0xff]
        %v1438 = vld [vmem:[%s1389 + $0x180] sm:$0xff]
        %v1439 = vld [vmem:[%s1389 + $0x188] sm:$0xff]
        %v1440 = vld [vmem:[%s1389 + $0x190] sm:$0xff]
        %v1441 = vld [vmem:[%s1389 + $0x198] sm:$0xff]
        %v1442 = vld [vmem:[%s1389 + $0x1a0] sm:$0xff]
        %v1443 = vld [vmem:[%s1389 + $0x1a8] sm:$0xff]
        %v1444 = vld [vmem:[%s1389 + $0x1b0] sm:$0xff]
        %v1445 = vld [vmem:[%s1389 + $0x1b8] sm:$0xff]
        %v1446 = vld [vmem:[%s1389 + $0x1c0] sm:$0xff]
        %v1447 = vld [vmem:[%s1389 + $0x1c8] sm:$0xff]
        %v1448 = vld [vmem:[%s1389 + $0x1d0] sm:$0xff]
        %v1449 = vld [vmem:[%s1389 + $0x1d8] sm:$0xff]
        %v1450 = vld [vmem:[%s1389 + $0x1e0] sm:$0xff]
        %v1451 = vld [vmem:[%s1389 + $0x1e8] sm:$0xff]
        %v1452 = vld [vmem:[%s1389 + $0x1f0] sm:$0xff]
        %v1453 = vld [vmem:[%s1389 + $0x1f8] sm:$0xff]
        %v1454 = vld [vmem:[%s1389 + $0x200] sm:$0xff]
        %v1455 = vld [vmem:[%s1389 + $0x208] sm:$0xff]
        %v1456 = vld [vmem:[%s1389 + $0x210] sm:$0xff]
        %v1457 = vld [vmem:[%s1389 + $0x218] sm:$0xff]
        %v1458 = vld [vmem:[%s1389 + $0x220] sm:$0xff]
        %v1459 = vld [vmem:[%s1389 + $0x228] sm:$0xff]
        %v1460 = vld [vmem:[%s1389 + $0x230] sm:$0xff]
        %v1461 = vld [vmem:[%s1389 + $0x238] sm:$0xff]
        %v1462 = vld [vmem:[%s1389 + $0x240] sm:$0xff]
        %v1463 = vld [vmem:[%s1389 + $0x248] sm:$0xff]
        %v1464 = vld [vmem:[%s1389 + $0x250] sm:$0xff]
        %v1465 = vld [vmem:[%s1389 + $0x258] sm:$0xff]
        %v1466 = vld [vmem:[%s1389 + $0x260] sm:$0xff]
        %v1467 = vld [vmem:[%s1389 + $0x268] sm:$0xff]
        %v1468 = vld [vmem:[%s1389 + $0x270] sm:$0xff]
        %v1469 = vld [vmem:[%s1389 + $0x278] sm:$0xff]
        %v1470 = vld [vmem:[%s1389 + $0x280] sm:$0xff]
        %v1471 = vld [vmem:[%s1389 + $0x288] sm:$0xff]
        %v1472 = vld [vmem:[%s1389 + $0x290] sm:$0xff]
        %v1473 = vld [vmem:[%s1389 + $0x298] sm:$0xff]
        %v1474 = vld [vmem:[%s1389 + $0x2a0] sm:$0xff]
        %v1475 = vld [vmem:[%s1389 + $0x2a8] sm:$0xff]
        %v1476 = vld [vmem:[%s1389 + $0x2b0] sm:$0xff]
        %v1477 = vld [vmem:[%s1389 + $0x2b8] sm:$0xff]
        %v1478 = vld [vmem:[%s1389 + $0x2c0] sm:$0xff]
        %v1479 = vld [vmem:[%s1389 + $0x2c8] sm:$0xff]
        %v1480 = vld [vmem:[%s1389 + $0x2d0] sm:$0xff]
        %v1481 = vld [vmem:[%s1389 + $0x2d8] sm:$0xff]
        %v1482 = vld [vmem:[%s1389 + $0x2e0] sm:$0xff]
        %v1483 = vld [vmem:[%s1389 + $0x2e8] sm:$0xff]
        %v1484 = vld [vmem:[%s1389 + $0x2f0] sm:$0xff]
        %v1485 = vld [vmem:[%s1389 + $0x2f8] sm:$0xff]
        %v1486 = vld [vmem:[%s1389 + $0x300] sm:$0xff]
        %v1487 = vld [vmem:[%s1389 + $0x308] sm:$0xff]
        %v1488 = vld [vmem:[%s1389 + $0x310] sm:$0xff]
        %v1489 = vld [vmem:[%s1389 + $0x318] sm:$0xff]
        %v1490 = vld [vmem:[%s1389 + $0x320] sm:$0xff]
        %v1491 = vld [vmem:[%s1389 + $0x328] sm:$0xff]
        %v1492 = vld [vmem:[%s1389 + $0x330] sm:$0xff]
        %v1493 = vld [vmem:[%s1389 + $0x338] sm:$0xff]
        %v1494 = vld [vmem:[%s1389 + $0x340] sm:$0xff]
        %v1495 = vld [vmem:[%s1389 + $0x348] sm:$0xff]
        %v1496 = vld [vmem:[%s1389 + $0x350] sm:$0xff]
        %v1497 = vld [vmem:[%s1389 + $0x358] sm:$0xff]
        %v1498 = vld [vmem:[%s1389 + $0x360] sm:$0xff]
        %v1499 = vld [vmem:[%s1389 + $0x368] sm:$0xff]
        %v1500 = vld [vmem:[%s1389 + $0x370] sm:$0xff]
        %v1501 = vld [vmem:[%s1389 + $0x378] sm:$0xff]
        %v1502 = vld [vmem:[%s1389 + $0x380] sm:$0xff]
        %v1503 = vld [vmem:[%s1389 + $0x388] sm:$0xff]
        %v1504 = vld [vmem:[%s1389 + $0x390] sm:$0xff]
        %v1505 = vld [vmem:[%s1389 + $0x398] sm:$0xff]
        %v1506 = vld [vmem:[%s1389 + $0x3a0] sm:$0xff]
        %v1507 = vld [vmem:[%s1389 + $0x3a8] sm:$0xff]
        %v1508 = vld [vmem:[%s1389 + $0x3b0] sm:$0xff]
        %v1509 = vld [vmem:[%s1389 + $0x3b8] sm:$0xff]
        %v1510 = vld [vmem:[%s1389 + $0x3c0] sm:$0xff]
        %v1511 = vld [vmem:[%s1389 + $0x3c8] sm:$0xff]
        %v1512 = vld [vmem:[%s1389 + $0x3d0] sm:$0xff]
        %v1513 = vld [vmem:[%s1389 + $0x3d8] sm:$0xff]
        %v1514 = vld [vmem:[%s1389 + $0x3e0] sm:$0xff]
        %v1515 = vld [vmem:[%s1389 + $0x3e8] sm:$0xff]
        %v1516 = vld [vmem:[%s1389 + $0x3f0] sm:$0xff]
        %v1517 = vld [vmem:[%s1389 + $0x3f8] sm:$0xff]
        %v1646 = vunpack.c.l.b16 %v1390
        %v1647 = vunpack.c.h.b16 %v1390
        %v1648 = vunpack.c.l.b16 %v1391
        %v1649 = vunpack.c.h.b16 %v1391
        %v1650 = vunpack.c.l.b16 %v1392
        %v1651 = vunpack.c.h.b16 %v1392
        %v1652 = vunpack.c.l.b16 %v1393
        %v1653 = vunpack.c.h.b16 %v1393
        %v1654 = vunpack.c.l.b16 %v1394
        %v1655 = vunpack.c.h.b16 %v1394
        %v1656 = vunpack.c.l.b16 %v1395
        %v1657 = vunpack.c.h.b16 %v1395
        %v1658 = vunpack.c.l.b16 %v1396
        %v1659 = vunpack.c.h.b16 %v1396
        %v1660 = vunpack.c.l.b16 %v1397
        %v1661 = vunpack.c.h.b16 %v1397
        %v1662 = vunpack.c.l.b16 %v1398
        %v1663 = vunpack.c.h.b16 %v1398
        %v1664 = vunpack.c.l.b16 %v1399
        %v1665 = vunpack.c.h.b16 %v1399
        %v1666 = vunpack.c.l.b16 %v1400
        %v1667 = vunpack.c.h.b16 %v1400
        %v1668 = vunpack.c.l.b16 %v1401
        %v1669 = vunpack.c.h.b16 %v1401
        %v1670 = vunpack.c.l.b16 %v1402
        %v1671 = vunpack.c.h.b16 %v1402
        %v1672 = vunpack.c.l.b16 %v1403
        %v1673 = vunpack.c.h.b16 %v1403
        %v1674 = vunpack.c.l.b16 %v1404
        %v1675 = vunpack.c.h.b16 %v1404
        %v1676 = vunpack.c.l.b16 %v1405
        %v1677 = vunpack.c.h.b16 %v1405
        %v1678 = vunpack.c.l.b16 %v1406
        %v1679 = vunpack.c.h.b16 %v1406
        %v1680 = vunpack.c.l.b16 %v1407
        %v1681 = vunpack.c.h.b16 %v1407
        %v1682 = vunpack.c.l.b16 %v1408
        %v1683 = vunpack.c.h.b16 %v1408
        %v1684 = vunpack.c.l.b16 %v1409
        %v1685 = vunpack.c.h.b16 %v1409
        %v1686 = vunpack.c.l.b16 %v1410
        %v1687 = vunpack.c.h.b16 %v1410
        %v1688 = vunpack.c.l.b16 %v1411
        %v1689 = vunpack.c.h.b16 %v1411
        %v1690 = vunpack.c.l.b16 %v1412
        %v1691 = vunpack.c.h.b16 %v1412
        %v1692 = vunpack.c.l.b16 %v1413
        %v1693 = vunpack.c.h.b16 %v1413
        %v1694 = vunpack.c.l.b16 %v1414
        %v1695 = vunpack.c.h.b16 %v1414
        %v1696 = vunpack.c.l.b16 %v1415
        %v1697 = vunpack.c.h.b16 %v1415
        %v1698 = vunpack.c.l.b16 %v1416
        %v1699 = vunpack.c.h.b16 %v1416
        %v1700 = vunpack.c.l.b16 %v1417
        %v1701 = vunpack.c.h.b16 %v1417
        %v1702 = vunpack.c.l.b16 %v1418
        %v1703 = vunpack.c.h.b16 %v1418
        %v1704 = vunpack.c.l.b16 %v1419
        %v1705 = vunpack.c.h.b16 %v1419
        %v1706 = vunpack.c.l.b16 %v1420
        %v1707 = vunpack.c.h.b16 %v1420
        %v1708 = vunpack.c.l.b16 %v1421
        %v1709 = vunpack.c.h.b16 %v1421
        %v1710 = vunpack.c.l.b16 %v1422
        %v1711 = vunpack.c.h.b16 %v1422
        %v1712 = vunpack.c.l.b16 %v1423
        %v1713 = vunpack.c.h.b16 %v1423
        %v1714 = vunpack.c.l.b16 %v1424
        %v1715 = vunpack.c.h.b16 %v1424
        %v1716 = vunpack.c.l.b16 %v1425
        %v1717 = vunpack.c.h.b16 %v1425
        %v1718 = vunpack.c.l.b16 %v1426
        %v1719 = vunpack.c.h.b16 %v1426
        %v1720 = vunpack.c.l.b16 %v1427
        %v1721 = vunpack.c.h.b16 %v1427
        %v1722 = vunpack.c.l.b16 %v1428
        %v1723 = vunpack.c.h.b16 %v1428
        %v1724 = vunpack.c.l.b16 %v1429
        %v1725 = vunpack.c.h.b16 %v1429
        %v1726 = vunpack.c.l.b16 %v1430
        %v1727 = vunpack.c.h.b16 %v1430
        %v1728 = vunpack.c.l.b16 %v1431
        %v1729 = vunpack.c.h.b16 %v1431
        %v1730 = vunpack.c.l.b16 %v1432
        %v1731 = vunpack.c.h.b16 %v1432
        %v1732 = vunpack.c.l.b16 %v1433
        %v1733 = vunpack.c.h.b16 %v1433
        %v1734 = vunpack.c.l.b16 %v1434
        %v1735 = vunpack.c.h.b16 %v1434
        %v1736 = vunpack.c.l.b16 %v1435
        %v1737 = vunpack.c.h.b16 %v1435
        %v1738 = vunpack.c.l.b16 %v1436
        %v1739 = vunpack.c.h.b16 %v1436
        %v1740 = vunpack.c.l.b16 %v1437
        %v1741 = vunpack.c.h.b16 %v1437
        %v1742 = vunpack.c.l.b16 %v1438
        %v1743 = vunpack.c.h.b16 %v1438
        %v1744 = vunpack.c.l.b16 %v1439
        %v1745 = vunpack.c.h.b16 %v1439
        %v1746 = vunpack.c.l.b16 %v1440
        %v1747 = vunpack.c.h.b16 %v1440
        %v1748 = vunpack.c.l.b16 %v1441
        %v1749 = vunpack.c.h.b16 %v1441
        %v1750 = vunpack.c.l.b16 %v1442
        %v1751 = vunpack.c.h.b16 %v1442
        %v1752 = vunpack.c.l.b16 %v1443
        %v1753 = vunpack.c.h.b16 %v1443
        %v1754 = vunpack.c.l.b16 %v1444
        %v1755 = vunpack.c.h.b16 %v1444
        %v1756 = vunpack.c.l.b16 %v1445
        %v1757 = vunpack.c.h.b16 %v1445
        %v1758 = vunpack.c.l.b16 %v1446
        %v1759 = vunpack.c.h.b16 %v1446
        %v1760 = vunpack.c.l.b16 %v1447
        %v1761 = vunpack.c.h.b16 %v1447
        %v1762 = vunpack.c.l.b16 %v1448
        %v1763 = vunpack.c.h.b16 %v1448
        %v1764 = vunpack.c.l.b16 %v1449
        %v1765 = vunpack.c.h.b16 %v1449
        %v1766 = vunpack.c.l.b16 %v1450
        %v1767 = vunpack.c.h.b16 %v1450
        %v1768 = vunpack.c.l.b16 %v1451
        %v1769 = vunpack.c.h.b16 %v1451
        %v1770 = vunpack.c.l.b16 %v1452
        %v1771 = vunpack.c.h.b16 %v1452
        %v1772 = vunpack.c.l.b16 %v1453
        %v1773 = vunpack.c.h.b16 %v1453
        %v1774 = vunpack.c.l.b16 %v1454
        %v1775 = vunpack.c.h.b16 %v1454
        %v1776 = vunpack.c.l.b16 %v1455
        %v1777 = vunpack.c.h.b16 %v1455
        %v1778 = vunpack.c.l.b16 %v1456
        %v1779 = vunpack.c.h.b16 %v1456
        %v1780 = vunpack.c.l.b16 %v1457
        %v1781 = vunpack.c.h.b16 %v1457
        %v1782 = vunpack.c.l.b16 %v1458
        %v1783 = vunpack.c.h.b16 %v1458
        %v1784 = vunpack.c.l.b16 %v1459
        %v1785 = vunpack.c.h.b16 %v1459
        %v1786 = vunpack.c.l.b16 %v1460
        %v1787 = vunpack.c.h.b16 %v1460
        %v1788 = vunpack.c.l.b16 %v1461
        %v1789 = vunpack.c.h.b16 %v1461
        %v1790 = vunpack.c.l.b16 %v1462
        %v1791 = vunpack.c.h.b16 %v1462
        %v1792 = vunpack.c.l.b16 %v1463
        %v1793 = vunpack.c.h.b16 %v1463
        %v1794 = vunpack.c.l.b16 %v1464
        %v1795 = vunpack.c.h.b16 %v1464
        %v1796 = vunpack.c.l.b16 %v1465
        %v1797 = vunpack.c.h.b16 %v1465
        %v1798 = vunpack.c.l.b16 %v1466
        %v1799 = vunpack.c.h.b16 %v1466
        %v1800 = vunpack.c.l.b16 %v1467
        %v1801 = vunpack.c.h.b16 %v1467
        %v1802 = vunpack.c.l.b16 %v1468
        %v1803 = vunpack.c.h.b16 %v1468
        %v1804 = vunpack.c.l.b16 %v1469
        %v1805 = vunpack.c.h.b16 %v1469
        %v1806 = vunpack.c.l.b16 %v1470
        %v1807 = vunpack.c.h.b16 %v1470
        %v1808 = vunpack.c.l.b16 %v1471
        %v1809 = vunpack.c.h.b16 %v1471
        %v1810 = vunpack.c.l.b16 %v1472
        %v1811 = vunpack.c.h.b16 %v1472
        %v1812 = vunpack.c.l.b16 %v1473
        %v1813 = vunpack.c.h.b16 %v1473
        %v1814 = vunpack.c.l.b16 %v1474
        %v1815 = vunpack.c.h.b16 %v1474
        %v1816 = vunpack.c.l.b16 %v1475
        %v1817 = vunpack.c.h.b16 %v1475
        %v1818 = vunpack.c.l.b16 %v1476
        %v1819 = vunpack.c.h.b16 %v1476
        %v1820 = vunpack.c.l.b16 %v1477
        %v1821 = vunpack.c.h.b16 %v1477
        %v1822 = vunpack.c.l.b16 %v1478
        %v1823 = vunpack.c.h.b16 %v1478
        %v1824 = vunpack.c.l.b16 %v1479
        %v1825 = vunpack.c.h.b16 %v1479
        %v1826 = vunpack.c.l.b16 %v1480
        %v1827 = vunpack.c.h.b16 %v1480
        %v1828 = vunpack.c.l.b16 %v1481
        %v1829 = vunpack.c.h.b16 %v1481
        %v1830 = vunpack.c.l.b16 %v1482
        %v1831 = vunpack.c.h.b16 %v1482
        %v1832 = vunpack.c.l.b16 %v1483
        %v1833 = vunpack.c.h.b16 %v1483
        %v1834 = vunpack.c.l.b16 %v1484
        %v1835 = vunpack.c.h.b16 %v1484
        %v1836 = vunpack.c.l.b16 %v1485
        %v1837 = vunpack.c.h.b16 %v1485
        %v1838 = vunpack.c.l.b16 %v1486
        %v1839 = vunpack.c.h.b16 %v1486
        %v1840 = vunpack.c.l.b16 %v1487
        %v1841 = vunpack.c.h.b16 %v1487
        %v1842 = vunpack.c.l.b16 %v1488
        %v1843 = vunpack.c.h.b16 %v1488
        %v1844 = vunpack.c.l.b16 %v1489
        %v1845 = vunpack.c.h.b16 %v1489
        %v1846 = vunpack.c.l.b16 %v1490
        %v1847 = vunpack.c.h.b16 %v1490
        %v1848 = vunpack.c.l.b16 %v1491
        %v1849 = vunpack.c.h.b16 %v1491
        %v1850 = vunpack.c.l.b16 %v1492
        %v1851 = vunpack.c.h.b16 %v1492
        %v1852 = vunpack.c.l.b16 %v1493
        %v1853 = vunpack.c.h.b16 %v1493
        %v1854 = vunpack.c.l.b16 %v1494
        %v1855 = vunpack.c.h.b16 %v1494
        %v1856 = vunpack.c.l.b16 %v1495
        %v1857 = vunpack.c.h.b16 %v1495
        %v1858 = vunpack.c.l.b16 %v1496
        %v1859 = vunpack.c.h.b16 %v1496
        %v1860 = vunpack.c.l.b16 %v1497
        %v1861 = vunpack.c.h.b16 %v1497
        %v1862 = vunpack.c.l.b16 %v1498
        %v1863 = vunpack.c.h.b16 %v1498
        %v1864 = vunpack.c.l.b16 %v1499
        %v1865 = vunpack.c.h.b16 %v1499
        %v1866 = vunpack.c.l.b16 %v1500
        %v1867 = vunpack.c.h.b16 %v1500
        %v1868 = vunpack.c.l.b16 %v1501
        %v1869 = vunpack.c.h.b16 %v1501
        %v1870 = vunpack.c.l.b16 %v1502
        %v1871 = vunpack.c.h.b16 %v1502
        %v1872 = vunpack.c.l.b16 %v1503
        %v1873 = vunpack.c.h.b16 %v1503
        %v1874 = vunpack.c.l.b16 %v1504
        %v1875 = vunpack.c.h.b16 %v1504
        %v1876 = vunpack.c.l.b16 %v1505
        %v1877 = vunpack.c.h.b16 %v1505
        %v1878 = vunpack.c.l.b16 %v1506
        %v1879 = vunpack.c.h.b16 %v1506
        %v1880 = vunpack.c.l.b16 %v1507
        %v1881 = vunpack.c.h.b16 %v1507
        %v1882 = vunpack.c.l.b16 %v1508
        %v1883 = vunpack.c.h.b16 %v1508
        %v1884 = vunpack.c.l.b16 %v1509
        %v1885 = vunpack.c.h.b16 %v1509
        %v1886 = vunpack.c.l.b16 %v1510
        %v1887 = vunpack.c.h.b16 %v1510
        %v1888 = vunpack.c.l.b16 %v1511
        %v1889 = vunpack.c.h.b16 %v1511
        %v1890 = vunpack.c.l.b16 %v1512
        %v1891 = vunpack.c.h.b16 %v1512
        %v1892 = vunpack.c.l.b16 %v1513
        %v1893 = vunpack.c.h.b16 %v1513
        %v1894 = vunpack.c.l.b16 %v1514
        %v1895 = vunpack.c.h.b16 %v1514
        %v1896 = vunpack.c.l.b16 %v1515
        %v1897 = vunpack.c.h.b16 %v1515
        %v1898 = vunpack.c.l.b16 %v1516
        %v1899 = vunpack.c.h.b16 %v1516
        %v1900 = vunpack.c.l.b16 %v1517
        %v1901 = vunpack.c.h.b16 %v1517
        %v1902 = vpack.c.b16 %v1650, %v1646
        %v1903 = vpack.c.b16 %v1651, %v1647
        %v1904 = vpack.c.b16 %v1652, %v1648
        %v1905 = vpack.c.b16 %v1653, %v1649
        %v1906 = vpack.c.b16 %v1658, %v1654
        %v1907 = vpack.c.b16 %v1659, %v1655
        %v1908 = vpack.c.b16 %v1660, %v1656
        %v1909 = vpack.c.b16 %v1661, %v1657
        %v1910 = vpack.c.b16 %v1666, %v1662
        %v1911 = vpack.c.b16 %v1667, %v1663
        %v1912 = vpack.c.b16 %v1668, %v1664
        %v1913 = vpack.c.b16 %v1669, %v1665
        %v1914 = vpack.c.b16 %v1674, %v1670
        %v1915 = vpack.c.b16 %v1675, %v1671
        %v1916 = vpack.c.b16 %v1676, %v1672
        %v1917 = vpack.c.b16 %v1677, %v1673
        %v1918 = vpack.c.b16 %v1682, %v1678
        %v1919 = vpack.c.b16 %v1683, %v1679
        %v1920 = vpack.c.b16 %v1684, %v1680
        %v1921 = vpack.c.b16 %v1685, %v1681
        %v1922 = vpack.c.b16 %v1690, %v1686
        %v1923 = vpack.c.b16 %v1691, %v1687
        %v1924 = vpack.c.b16 %v1692, %v1688
        %v1925 = vpack.c.b16 %v1693, %v1689
        %v1926 = vpack.c.b16 %v1698, %v1694
        %v1927 = vpack.c.b16 %v1699, %v1695
        %v1928 = vpack.c.b16 %v1700, %v1696
        %v1929 = vpack.c.b16 %v1701, %v1697
        %v1930 = vpack.c.b16 %v1706, %v1702
        %v1931 = vpack.c.b16 %v1707, %v1703
        %v1932 = vpack.c.b16 %v1708, %v1704
        %v1933 = vpack.c.b16 %v1709, %v1705
        %v1934 = vpack.c.b16 %v1714, %v1710
        %v1935 = vpack.c.b16 %v1715, %v1711
        %v1936 = vpack.c.b16 %v1716, %v1712
        %v1937 = vpack.c.b16 %v1717, %v1713
        %v1938 = vpack.c.b16 %v1722, %v1718
        %v1939 = vpack.c.b16 %v1723, %v1719
        %v1940 = vpack.c.b16 %v1724, %v1720
        %v1941 = vpack.c.b16 %v1725, %v1721
        %v1942 = vpack.c.b16 %v1730, %v1726
        %v1943 = vpack.c.b16 %v1731, %v1727
        %v1944 = vpack.c.b16 %v1732, %v1728
        %v1945 = vpack.c.b16 %v1733, %v1729
        %v1946 = vpack.c.b16 %v1738, %v1734
        %v1947 = vpack.c.b16 %v1739, %v1735
        %v1948 = vpack.c.b16 %v1740, %v1736
        %v1949 = vpack.c.b16 %v1741, %v1737
        %v1950 = vpack.c.b16 %v1746, %v1742
        %v1951 = vpack.c.b16 %v1747, %v1743
        %v1952 = vpack.c.b16 %v1748, %v1744
        %v1953 = vpack.c.b16 %v1749, %v1745
        %v1954 = vpack.c.b16 %v1754, %v1750
        %v1955 = vpack.c.b16 %v1755, %v1751
        %v1956 = vpack.c.b16 %v1756, %v1752
        %v1957 = vpack.c.b16 %v1757, %v1753
        %v1958 = vpack.c.b16 %v1762, %v1758
        %v1959 = vpack.c.b16 %v1763, %v1759
        %v1960 = vpack.c.b16 %v1764, %v1760
        %v1961 = vpack.c.b16 %v1765, %v1761
        %v1962 = vpack.c.b16 %v1770, %v1766
        %v1963 = vpack.c.b16 %v1771, %v1767
        %v1964 = vpack.c.b16 %v1772, %v1768
        %v1965 = vpack.c.b16 %v1773, %v1769
        %v1966 = vpack.c.b16 %v1778, %v1774
        %v1967 = vpack.c.b16 %v1779, %v1775
        %v1968 = vpack.c.b16 %v1780, %v1776
        %v1969 = vpack.c.b16 %v1781, %v1777
        %v1970 = vpack.c.b16 %v1786, %v1782
        %v1971 = vpack.c.b16 %v1787, %v1783
        %v1972 = vpack.c.b16 %v1788, %v1784
        %v1973 = vpack.c.b16 %v1789, %v1785
        %v1974 = vpack.c.b16 %v1794, %v1790
        %v1975 = vpack.c.b16 %v1795, %v1791
        %v1976 = vpack.c.b16 %v1796, %v1792
        %v1977 = vpack.c.b16 %v1797, %v1793
        %v1978 = vpack.c.b16 %v1802, %v1798
        %v1979 = vpack.c.b16 %v1803, %v1799
        %v1980 = vpack.c.b16 %v1804, %v1800
        %v1981 = vpack.c.b16 %v1805, %v1801
        %v1982 = vpack.c.b16 %v1810, %v1806
        %v1983 = vpack.c.b16 %v1811, %v1807
        %v1984 = vpack.c.b16 %v1812, %v1808
        %v1985 = vpack.c.b16 %v1813, %v1809
        %v1986 = vpack.c.b16 %v1818, %v1814
        %v1987 = vpack.c.b16 %v1819, %v1815
        %v1988 = vpack.c.b16 %v1820, %v1816
        %v1989 = vpack.c.b16 %v1821, %v1817
        %v1990 = vpack.c.b16 %v1826, %v1822
        %v1991 = vpack.c.b16 %v1827, %v1823
        %v1992 = vpack.c.b16 %v1828, %v1824
        %v1993 = vpack.c.b16 %v1829, %v1825
        %v1994 = vpack.c.b16 %v1834, %v1830
        %v1995 = vpack.c.b16 %v1835, %v1831
        %v1996 = vpack.c.b16 %v1836, %v1832
        %v1997 = vpack.c.b16 %v1837, %v1833
        %v1998 = vpack.c.b16 %v1842, %v1838
        %v1999 = vpack.c.b16 %v1843, %v1839
        %v2000 = vpack.c.b16 %v1844, %v1840
        %v2001 = vpack.c.b16 %v1845, %v1841
        %v2002 = vpack.c.b16 %v1850, %v1846
        %v2003 = vpack.c.b16 %v1851, %v1847
        %v2004 = vpack.c.b16 %v1852, %v1848
        %v2005 = vpack.c.b16 %v1853, %v1849
        %v2006 = vpack.c.b16 %v1858, %v1854
        %v2007 = vpack.c.b16 %v1859, %v1855
        %v2008 = vpack.c.b16 %v1860, %v1856
        %v2009 = vpack.c.b16 %v1861, %v1857
        %v2010 = vpack.c.b16 %v1866, %v1862
        %v2011 = vpack.c.b16 %v1867, %v1863
        %v2012 = vpack.c.b16 %v1868, %v1864
        %v2013 = vpack.c.b16 %v1869, %v1865
        %v2014 = vpack.c.b16 %v1874, %v1870
        %v2015 = vpack.c.b16 %v1875, %v1871
        %v2016 = vpack.c.b16 %v1876, %v1872
        %v2017 = vpack.c.b16 %v1877, %v1873
        %v2018 = vpack.c.b16 %v1882, %v1878
        %v2019 = vpack.c.b16 %v1883, %v1879
        %v2020 = vpack.c.b16 %v1884, %v1880
        %v2021 = vpack.c.b16 %v1885, %v1881
        %v2022 = vpack.c.b16 %v1890, %v1886
        %v2023 = vpack.c.b16 %v1891, %v1887
        %v2024 = vpack.c.b16 %v1892, %v1888
        %v2025 = vpack.c.b16 %v1893, %v1889
        %v2026 = vpack.c.b16 %v1898, %v1894
        %v2027 = vpack.c.b16 %v1899, %v1895
        %v2028 = vpack.c.b16 %v1900, %v1896
        %v2029 = vpack.c.b16 %v1901, %v1897
        %2158 = vmatprep.subr.bf16.mxu0 %v1903
        %2159 = vmatpush1.bf16.msra.mxu0 %v1902
        %2160 = vmatprep.subr.bf16.mxu0 %v1907
        %2161 = vmatpush1.bf16.msra.mxu0 %v1906
        %2162 = vmatprep.subr.bf16.mxu0 %v1911
        %2163 = vmatpush1.bf16.msra.mxu0 %v1910
        %2164 = vmatprep.subr.bf16.mxu0 %v1915
        %2165 = vmatpush1.bf16.msra.mxu0 %v1914
        %2166 = vmatprep.subr.bf16.mxu0 %v1919
        %2167 = vmatpush1.bf16.msra.mxu0 %v1918
        %2168 = vmatprep.subr.bf16.mxu0 %v1923
        %2169 = vmatpush1.bf16.msra.mxu0 %v1922
        %2170 = vmatprep.subr.bf16.mxu0 %v1927
        %2171 = vmatpush1.bf16.msra.mxu0 %v1926
        %2172 = vmatprep.subr.bf16.mxu0 %v1931
        %2173 = vmatpush1.bf16.msra.mxu0 %v1930
        %2174 = vmatprep.subr.bf16.mxu0 %v1935
        %2175 = vmatpush1.bf16.msra.mxu0 %v1934
        %2176 = vmatprep.subr.bf16.mxu0 %v1939
        %2177 = vmatpush1.bf16.msra.mxu0 %v1938
        %2178 = vmatprep.subr.bf16.mxu0 %v1943
        %2179 = vmatpush1.bf16.msra.mxu0 %v1942
        %2180 = vmatprep.subr.bf16.mxu0 %v1947
        %2181 = vmatpush1.bf16.msra.mxu0 %v1946
        %2182 = vmatprep.subr.bf16.mxu0 %v1951
        %2183 = vmatpush1.bf16.msra.mxu0 %v1950
        %2184 = vmatprep.subr.bf16.mxu0 %v1955
        %2185 = vmatpush1.bf16.msra.mxu0 %v1954
        %2186 = vmatprep.subr.bf16.mxu0 %v1959
        %2187 = vmatpush1.bf16.msra.mxu0 %v1958
        %2188 = vmatprep.subr.bf16.mxu0 %v1963
        %2189 = vmatpush1.bf16.msra.mxu0 %v1962
        %2190 = vmatprep.mubr.bf16.mxu0 %v1386
        %2191 = vmatmul.mubr.bf16.gmra.mrb[0].mxu0 %v1385
        %v2192 = vpop.f32.mrb[0].mxu0
        %v2193 = vadd.f32 0.0, %v2192
        %v2194 = vpop.f32.mrb[0].mxu0
        %v2195 = vadd.f32 0.0, %v2194
        %v2196 = vpop.f32.mrb[0].mxu0
        %v2197 = vpop.f32.mrb[0].mxu0
        %2198 = vdwg.mxu0
        %2199 = vmatprep.subr.bf16.mxu0 %v1967
        %2200 = vmatpush1.bf16.msra.mxu0 %v1966
        %2201 = vmatprep.subr.bf16.mxu0 %v1971
        %2202 = vmatpush1.bf16.msra.mxu0 %v1970
        %2203 = vmatprep.subr.bf16.mxu0 %v1975
        %2204 = vmatpush1.bf16.msra.mxu0 %v1974
        %2205 = vmatprep.subr.bf16.mxu0 %v1979
        %2206 = vmatpush1.bf16.msra.mxu0 %v1978
        %2207 = vmatprep.subr.bf16.mxu0 %v1983
        %2208 = vmatpush1.bf16.msra.mxu0 %v1982
        %2209 = vmatprep.subr.bf16.mxu0 %v1987
        %2210 = vmatpush1.bf16.msra.mxu0 %v1986
        %2211 = vmatprep.subr.bf16.mxu0 %v1991
        %2212 = vmatpush1.bf16.msra.mxu0 %v1990
        %2213 = vmatprep.subr.bf16.mxu0 %v1995
        %2214 = vmatpush1.bf16.msra.mxu0 %v1994
        %2215 = vmatprep.subr.bf16.mxu0 %v1999
        %2216 = vmatpush1.bf16.msra.mxu0 %v1998
        %2217 = vmatprep.subr.bf16.mxu0 %v2003
        %2218 = vmatpush1.bf16.msra.mxu0 %v2002
        %2219 = vmatprep.subr.bf16.mxu0 %v2007
        %2220 = vmatpush1.bf16.msra.mxu0 %v2006
        %2221 = vmatprep.subr.bf16.mxu0 %v2011
        %2222 = vmatpush1.bf16.msra.mxu0 %v2010
        %2223 = vmatprep.subr.bf16.mxu0 %v2015
        %2224 = vmatpush1.bf16.msra.mxu0 %v2014
        %2225 = vmatprep.subr.bf16.mxu0 %v2019
        %2226 = vmatpush1.bf16.msra.mxu0 %v2018
        %2227 = vmatprep.subr.bf16.mxu0 %v2023
        %2228 = vmatpush1.bf16.msra.mxu0 %v2022
        %2229 = vmatprep.subr.bf16.mxu0 %v2027
        %2230 = vmatpush1.bf16.msra.mxu0 %v2026
        %2231 = vmatprep.mubr.bf16.mxu0 %v1388
        %2232 = vmatmul.mubr.bf16.gmra.mrb[0].mxu0 %v1387
        %v2233 = vpop.f32.mrb[0].mxu0
        %v2234 = vadd.f32 %v2193, %v2233
        %v2235 = vpop.f32.mrb[0].mxu0
        %v2236 = vadd.f32 %v2195, %v2235
        %v2237 = vpop.f32.mrb[0].mxu0
        %v2238 = vpop.f32.mrb[0].mxu0
        %2239 = vdwg.mxu0
        %2240 = vmatprep.subr.bf16.mxu0 %v1905
        %2241 = vmatpush1.bf16.msra.mxu0 %v1904
        %2242 = vmatprep.subr.bf16.mxu0 %v1909
        %2243 = vmatpush1.bf16.msra.mxu0 %v1908
        %2244 = vmatprep.subr.bf16.mxu0 %v1913
        %2245 = vmatpush1.bf16.msra.mxu0 %v1912
        %2246 = vmatprep.subr.bf16.mxu0 %v1917
        %2247 = vmatpush1.bf16.msra.mxu0 %v1916
        %2248 = vmatprep.subr.bf16.mxu0 %v1921
        %2249 = vmatpush1.bf16.msra.mxu0 %v1920
        %2250 = vmatprep.subr.bf16.mxu0 %v1925
        %2251 = vmatpush1.bf16.msra.mxu0 %v1924
        %2252 = vmatprep.subr.bf16.mxu0 %v1929
        %2253 = vmatpush1.bf16.msra.mxu0 %v1928
        %2254 = vmatprep.subr.bf16.mxu0 %v1933
        %2255 = vmatpush1.bf16.msra.mxu0 %v1932
        %2256 = vmatprep.subr.bf16.mxu0 %v1937
        %2257 = vmatpush1.bf16.msra.mxu0 %v1936
        %2258 = vmatprep.subr.bf16.mxu0 %v1941
        %2259 = vmatpush1.bf16.msra.mxu0 %v1940
        %2260 = vmatprep.subr.bf16.mxu0 %v1945
        %2261 = vmatpush1.bf16.msra.mxu0 %v1944
        %2262 = vmatprep.subr.bf16.mxu0 %v1949
        %2263 = vmatpush1.bf16.msra.mxu0 %v1948
        %2264 = vmatprep.subr.bf16.mxu0 %v1953
        %2265 = vmatpush1.bf16.msra.mxu0 %v1952
        %2266 = vmatprep.subr.bf16.mxu0 %v1957
        %2267 = vmatpush1.bf16.msra.mxu0 %v1956
        %2268 = vmatprep.subr.bf16.mxu0 %v1961
        %2269 = vmatpush1.bf16.msra.mxu0 %v1960
        %2270 = vmatprep.subr.bf16.mxu0 %v1965
        %2271 = vmatpush1.bf16.msra.mxu0 %v1964
        %2272 = vmatprep.mubr.bf16.mxu0 %v1386
        %2273 = vmatmul.mubr.bf16.gmra.mrb[0].mxu0 %v1385
        %v2274 = vpop.f32.mrb[0].mxu0
        %v2275 = vadd.f32 0.0, %v2274
        %v2276 = vpop.f32.mrb[0].mxu0
        %v2277 = vadd.f32 0.0, %v2276
        %v2278 = vpop.f32.mrb[0].mxu0
        %v2279 = vpop.f32.mrb[0].mxu0
        %2280 = vdwg.mxu0
        %2281 = vmatprep.subr.bf16.mxu0 %v1969
        %2282 = vmatpush1.bf16.msra.mxu0 %v1968
        %2283 = vmatprep.subr.bf16.mxu0 %v1973
        %2284 = vmatpush1.bf16.msra.mxu0 %v1972
        %2285 = vmatprep.subr.bf16.mxu0 %v1977
        %2286 = vmatpush1.bf16.msra.mxu0 %v1976
        %2287 = vmatprep.subr.bf16.mxu0 %v1981
        %2288 = vmatpush1.bf16.msra.mxu0 %v1980
        %2289 = vmatprep.subr.bf16.mxu0 %v1985
        %2290 = vmatpush1.bf16.msra.mxu0 %v1984
        %2291 = vmatprep.subr.bf16.mxu0 %v1989
        %2292 = vmatpush1.bf16.msra.mxu0 %v1988
        %2293 = vmatprep.subr.bf16.mxu0 %v1993
        %2294 = vmatpush1.bf16.msra.mxu0 %v1992
        %2295 = vmatprep.subr.bf16.mxu0 %v1997
        %2296 = vmatpush1.bf16.msra.mxu0 %v1996
        %2297 = vmatprep.subr.bf16.mxu0 %v2001
        %2298 = vmatpush1.bf16.msra.mxu0 %v2000
        %2299 = vmatprep.subr.bf16.mxu0 %v2005
        %2300 = vmatpush1.bf16.msra.mxu0 %v2004
        %2301 = vmatprep.subr.bf16.mxu0 %v2009
        %2302 = vmatpush1.bf16.msra.mxu0 %v2008
        %2303 = vmatprep.subr.bf16.mxu0 %v2013
        %2304 = vmatpush1.bf16.msra.mxu0 %v2012
        %2305 = vmatprep.subr.bf16.mxu0 %v2017
        %2306 = vmatpush1.bf16.msra.mxu0 %v2016
        %2307 = vmatprep.subr.bf16.mxu0 %v2021
        %2308 = vmatpush1.bf16.msra.mxu0 %v2020
        %2309 = vmatprep.subr.bf16.mxu0 %v2025
        %2310 = vmatpush1.bf16.msra.mxu0 %v2024
        %2311 = vmatprep.subr.bf16.mxu0 %v2029
        %2312 = vmatpush1.bf16.msra.mxu0 %v2028
        %2313 = vmatprep.mubr.bf16.mxu0 %v1388
        %2314 = vmatmul.mubr.bf16.gmra.mrb[0].mxu0 %v1387
        %v2315 = vpop.f32.mrb[0].mxu0
        %v2316 = vadd.f32 %v2275, %v2315
        %v2317 = vpop.f32.mrb[0].mxu0
        %v2318 = vadd.f32 %v2277, %v2317
        %v2319 = vpop.f32.mrb[0].mxu0
        %v2320 = vpop.f32.mrb[0].mxu0
        %2321 = vdwg.mxu0
        %v2323 = vshrl.u32 %v1248, 16
        %v2325 = vshll.u32 %v1248, 16
        %v2327 = vrot.slane %v2325, 1
        %v2328 = vor.u32 %v2323, %v2327
        %v2330 = vshrl.u32 %v1249, 16
        %v2332 = vshll.u32 %v1249, 16
        %v2334 = vrot.slane %v2332, 1
        %v2335 = vor.u32 %v2330, %v2334
        %v2337 = vshrl.u32 %v1250, 16
        %v2339 = vshll.u32 %v1250, 16
        %v2341 = vrot.slane %v2339, 1
        %v2342 = vor.u32 %v2337, %v2341
        %v2344 = vshrl.u32 %v1251, 16
        %v2346 = vshll.u32 %v1251, 16
        %v2348 = vrot.slane %v2346, 1
        %v2349 = vor.u32 %v2344, %v2348
        %v2482 = vunpack.c.l.b16 %v1253
        %v2483 = vunpack.c.h.b16 %v1253
        %v2484 = vunpack.c.l.b16 %v1254
        %v2485 = vunpack.c.h.b16 %v1254
        %v2486 = vunpack.c.l.b16 %v1255
        %v2487 = vunpack.c.h.b16 %v1255
        %v2488 = vunpack.c.l.b16 %v1256
        %v2489 = vunpack.c.h.b16 %v1256
        %v2490 = vunpack.c.l.b16 %v1257
        %v2491 = vunpack.c.h.b16 %v1257
        %v2492 = vunpack.c.l.b16 %v1258
        %v2493 = vunpack.c.h.b16 %v1258
        %v2494 = vunpack.c.l.b16 %v1259
        %v2495 = vunpack.c.h.b16 %v1259
        %v2496 = vunpack.c.l.b16 %v1260
        %v2497 = vunpack.c.h.b16 %v1260
        %v2498 = vunpack.c.l.b16 %v1261
        %v2499 = vunpack.c.h.b16 %v1261
        %v2500 = vunpack.c.l.b16 %v1262
        %v2501 = vunpack.c.h.b16 %v1262
        %v2502 = vunpack.c.l.b16 %v1263
        %v2503 = vunpack.c.h.b16 %v1263
        %v2504 = vunpack.c.l.b16 %v1264
        %v2505 = vunpack.c.h.b16 %v1264
        %v2506 = vunpack.c.l.b16 %v1265
        %v2507 = vunpack.c.h.b16 %v1265
        %v2508 = vunpack.c.l.b16 %v1266
        %v2509 = vunpack.c.h.b16 %v1266
        %v2510 = vunpack.c.l.b16 %v1267
        %v2511 = vunpack.c.h.b16 %v1267
        %v2512 = vunpack.c.l.b16 %v1268
        %v2513 = vunpack.c.h.b16 %v1268
        %v2514 = vunpack.c.l.b16 %v1269
        %v2515 = vunpack.c.h.b16 %v1269
        %v2516 = vunpack.c.l.b16 %v1270
        %v2517 = vunpack.c.h.b16 %v1270
        %v2518 = vunpack.c.l.b16 %v1271
        %v2519 = vunpack.c.h.b16 %v1271
        %v2520 = vunpack.c.l.b16 %v1272
        %v2521 = vunpack.c.h.b16 %v1272
        %v2522 = vunpack.c.l.b16 %v1273
        %v2523 = vunpack.c.h.b16 %v1273
        %v2524 = vunpack.c.l.b16 %v1274
        %v2525 = vunpack.c.h.b16 %v1274
        %v2526 = vunpack.c.l.b16 %v1275
        %v2527 = vunpack.c.h.b16 %v1275
        %v2528 = vunpack.c.l.b16 %v1276
        %v2529 = vunpack.c.h.b16 %v1276
        %v2530 = vunpack.c.l.b16 %v1277
        %v2531 = vunpack.c.h.b16 %v1277
        %v2532 = vunpack.c.l.b16 %v1278
        %v2533 = vunpack.c.h.b16 %v1278
        %v2534 = vunpack.c.l.b16 %v1279
        %v2535 = vunpack.c.h.b16 %v1279
        %v2536 = vunpack.c.l.b16 %v1280
        %v2537 = vunpack.c.h.b16 %v1280
        %v2538 = vunpack.c.l.b16 %v1281
        %v2539 = vunpack.c.h.b16 %v1281
        %v2540 = vunpack.c.l.b16 %v1282
        %v2541 = vunpack.c.h.b16 %v1282
        %v2542 = vunpack.c.l.b16 %v1283
        %v2543 = vunpack.c.h.b16 %v1283
        %v2544 = vunpack.c.l.b16 %v1284
        %v2545 = vunpack.c.h.b16 %v1284
        %v2546 = vunpack.c.l.b16 %v1285
        %v2547 = vunpack.c.h.b16 %v1285
        %v2548 = vunpack.c.l.b16 %v1286
        %v2549 = vunpack.c.h.b16 %v1286
        %v2550 = vunpack.c.l.b16 %v1287
        %v2551 = vunpack.c.h.b16 %v1287
        %v2552 = vunpack.c.l.b16 %v1288
        %v2553 = vunpack.c.h.b16 %v1288
        %v2554 = vunpack.c.l.b16 %v1289
        %v2555 = vunpack.c.h.b16 %v1289
        %v2556 = vunpack.c.l.b16 %v1290
        %v2557 = vunpack.c.h.b16 %v1290
        %v2558 = vunpack.c.l.b16 %v1291
        %v2559 = vunpack.c.h.b16 %v1291
        %v2560 = vunpack.c.l.b16 %v1292
        %v2561 = vunpack.c.h.b16 %v1292
        %v2562 = vunpack.c.l.b16 %v1293
        %v2563 = vunpack.c.h.b16 %v1293
        %v2564 = vunpack.c.l.b16 %v1294
        %v2565 = vunpack.c.h.b16 %v1294
        %v2566 = vunpack.c.l.b16 %v1295
        %v2567 = vunpack.c.h.b16 %v1295
        %v2568 = vunpack.c.l.b16 %v1296
        %v2569 = vunpack.c.h.b16 %v1296
        %v2570 = vunpack.c.l.b16 %v1297
        %v2571 = vunpack.c.h.b16 %v1297
        %v2572 = vunpack.c.l.b16 %v1298
        %v2573 = vunpack.c.h.b16 %v1298
        %v2574 = vunpack.c.l.b16 %v1299
        %v2575 = vunpack.c.h.b16 %v1299
        %v2576 = vunpack.c.l.b16 %v1300
        %v2577 = vunpack.c.h.b16 %v1300
        %v2578 = vunpack.c.l.b16 %v1301
        %v2579 = vunpack.c.h.b16 %v1301
        %v2580 = vunpack.c.l.b16 %v1302
        %v2581 = vunpack.c.h.b16 %v1302
        %v2582 = vunpack.c.l.b16 %v1303
        %v2583 = vunpack.c.h.b16 %v1303
        %v2584 = vunpack.c.l.b16 %v1304
        %v2585 = vunpack.c.h.b16 %v1304
        %v2586 = vunpack.c.l.b16 %v1305
        %v2587 = vunpack.c.h.b16 %v1305
        %v2588 = vunpack.c.l.b16 %v1306
        %v2589 = vunpack.c.h.b16 %v1306
        %v2590 = vunpack.c.l.b16 %v1307
        %v2591 = vunpack.c.h.b16 %v1307
        %v2592 = vunpack.c.l.b16 %v1308
        %v2593 = vunpack.c.h.b16 %v1308
        %v2594 = vunpack.c.l.b16 %v1309
        %v2595 = vunpack.c.h.b16 %v1309
        %v2596 = vunpack.c.l.b16 %v1310
        %v2597 = vunpack.c.h.b16 %v1310
        %v2598 = vunpack.c.l.b16 %v1311
        %v2599 = vunpack.c.h.b16 %v1311
        %v2600 = vunpack.c.l.b16 %v1312
        %v2601 = vunpack.c.h.b16 %v1312
        %v2602 = vunpack.c.l.b16 %v1313
        %v2603 = vunpack.c.h.b16 %v1313
        %v2604 = vunpack.c.l.b16 %v1314
        %v2605 = vunpack.c.h.b16 %v1314
        %v2606 = vunpack.c.l.b16 %v1315
        %v2607 = vunpack.c.h.b16 %v1315
        %v2608 = vunpack.c.l.b16 %v1316
        %v2609 = vunpack.c.h.b16 %v1316
        %v2610 = vunpack.c.l.b16 %v1317
        %v2611 = vunpack.c.h.b16 %v1317
        %v2612 = vunpack.c.l.b16 %v1318
        %v2613 = vunpack.c.h.b16 %v1318
        %v2614 = vunpack.c.l.b16 %v1319
        %v2615 = vunpack.c.h.b16 %v1319
        %v2616 = vunpack.c.l.b16 %v1320
        %v2617 = vunpack.c.h.b16 %v1320
        %v2618 = vunpack.c.l.b16 %v1321
        %v2619 = vunpack.c.h.b16 %v1321
        %v2620 = vunpack.c.l.b16 %v1322
        %v2621 = vunpack.c.h.b16 %v1322
        %v2622 = vunpack.c.l.b16 %v1323
        %v2623 = vunpack.c.h.b16 %v1323
        %v2624 = vunpack.c.l.b16 %v1324
        %v2625 = vunpack.c.h.b16 %v1324
        %v2626 = vunpack.c.l.b16 %v1325
        %v2627 = vunpack.c.h.b16 %v1325
        %v2628 = vunpack.c.l.b16 %v1326
        %v2629 = vunpack.c.h.b16 %v1326
        %v2630 = vunpack.c.l.b16 %v1327
        %v2631 = vunpack.c.h.b16 %v1327
        %v2632 = vunpack.c.l.b16 %v1328
        %v2633 = vunpack.c.h.b16 %v1328
        %v2634 = vunpack.c.l.b16 %v1329
        %v2635 = vunpack.c.h.b16 %v1329
        %v2636 = vunpack.c.l.b16 %v1330
        %v2637 = vunpack.c.h.b16 %v1330
        %v2638 = vunpack.c.l.b16 %v1331
        %v2639 = vunpack.c.h.b16 %v1331
        %v2640 = vunpack.c.l.b16 %v1332
        %v2641 = vunpack.c.h.b16 %v1332
        %v2642 = vunpack.c.l.b16 %v1333
        %v2643 = vunpack.c.h.b16 %v1333
        %v2644 = vunpack.c.l.b16 %v1334
        %v2645 = vunpack.c.h.b16 %v1334
        %v2646 = vunpack.c.l.b16 %v1335
        %v2647 = vunpack.c.h.b16 %v1335
        %v2648 = vunpack.c.l.b16 %v1336
        %v2649 = vunpack.c.h.b16 %v1336
        %v2650 = vunpack.c.l.b16 %v1337
        %v2651 = vunpack.c.h.b16 %v1337
        %v2652 = vunpack.c.l.b16 %v1338
        %v2653 = vunpack.c.h.b16 %v1338
        %v2654 = vunpack.c.l.b16 %v1339
        %v2655 = vunpack.c.h.b16 %v1339
        %v2656 = vunpack.c.l.b16 %v1340
        %v2657 = vunpack.c.h.b16 %v1340
        %v2658 = vunpack.c.l.b16 %v1341
        %v2659 = vunpack.c.h.b16 %v1341
        %v2660 = vunpack.c.l.b16 %v1342
        %v2661 = vunpack.c.h.b16 %v1342
        %v2662 = vunpack.c.l.b16 %v1343
        %v2663 = vunpack.c.h.b16 %v1343
        %v2664 = vunpack.c.l.b16 %v1344
        %v2665 = vunpack.c.h.b16 %v1344
        %v2666 = vunpack.c.l.b16 %v1345
        %v2667 = vunpack.c.h.b16 %v1345
        %v2668 = vunpack.c.l.b16 %v1346
        %v2669 = vunpack.c.h.b16 %v1346
        %v2670 = vunpack.c.l.b16 %v1347
        %v2671 = vunpack.c.h.b16 %v1347
        %v2672 = vunpack.c.l.b16 %v1348
        %v2673 = vunpack.c.h.b16 %v1348
        %v2674 = vunpack.c.l.b16 %v1349
        %v2675 = vunpack.c.h.b16 %v1349
        %v2676 = vunpack.c.l.b16 %v1350
        %v2677 = vunpack.c.h.b16 %v1350
        %v2678 = vunpack.c.l.b16 %v1351
        %v2679 = vunpack.c.h.b16 %v1351
        %v2680 = vunpack.c.l.b16 %v1352
        %v2681 = vunpack.c.h.b16 %v1352
        %v2682 = vunpack.c.l.b16 %v1353
        %v2683 = vunpack.c.h.b16 %v1353
        %v2684 = vunpack.c.l.b16 %v1354
        %v2685 = vunpack.c.h.b16 %v1354
        %v2686 = vunpack.c.l.b16 %v1355
        %v2687 = vunpack.c.h.b16 %v1355
        %v2688 = vunpack.c.l.b16 %v1356
        %v2689 = vunpack.c.h.b16 %v1356
        %v2690 = vunpack.c.l.b16 %v1357
        %v2691 = vunpack.c.h.b16 %v1357
        %v2692 = vunpack.c.l.b16 %v1358
        %v2693 = vunpack.c.h.b16 %v1358
        %v2694 = vunpack.c.l.b16 %v1359
        %v2695 = vunpack.c.h.b16 %v1359
        %v2696 = vunpack.c.l.b16 %v1360
        %v2697 = vunpack.c.h.b16 %v1360
        %v2698 = vunpack.c.l.b16 %v1361
        %v2699 = vunpack.c.h.b16 %v1361
        %v2700 = vunpack.c.l.b16 %v1362
        %v2701 = vunpack.c.h.b16 %v1362
        %v2702 = vunpack.c.l.b16 %v1363
        %v2703 = vunpack.c.h.b16 %v1363
        %v2704 = vunpack.c.l.b16 %v1364
        %v2705 = vunpack.c.h.b16 %v1364
        %v2706 = vunpack.c.l.b16 %v1365
        %v2707 = vunpack.c.h.b16 %v1365
        %v2708 = vunpack.c.l.b16 %v1366
        %v2709 = vunpack.c.h.b16 %v1366
        %v2710 = vunpack.c.l.b16 %v1367
        %v2711 = vunpack.c.h.b16 %v1367
        %v2712 = vunpack.c.l.b16 %v1368
        %v2713 = vunpack.c.h.b16 %v1368
        %v2714 = vunpack.c.l.b16 %v1369
        %v2715 = vunpack.c.h.b16 %v1369
        %v2716 = vunpack.c.l.b16 %v1370
        %v2717 = vunpack.c.h.b16 %v1370
        %v2718 = vunpack.c.l.b16 %v1371
        %v2719 = vunpack.c.h.b16 %v1371
        %v2720 = vunpack.c.l.b16 %v1372
        %v2721 = vunpack.c.h.b16 %v1372
        %v2722 = vunpack.c.l.b16 %v1373
        %v2723 = vunpack.c.h.b16 %v1373
        %v2724 = vunpack.c.l.b16 %v1374
        %v2725 = vunpack.c.h.b16 %v1374
        %v2726 = vunpack.c.l.b16 %v1375
        %v2727 = vunpack.c.h.b16 %v1375
        %v2728 = vunpack.c.l.b16 %v1376
        %v2729 = vunpack.c.h.b16 %v1376
        %v2730 = vunpack.c.l.b16 %v1377
        %v2731 = vunpack.c.h.b16 %v1377
        %v2732 = vunpack.c.l.b16 %v1378
        %v2733 = vunpack.c.h.b16 %v1378
        %v2734 = vunpack.c.l.b16 %v1379
        %v2735 = vunpack.c.h.b16 %v1379
        %v2736 = vunpack.c.l.b16 %v1380
        %v2737 = vunpack.c.h.b16 %v1380
        %v2738 = vpack.c.b16 %v2486, %v2482
        %v2739 = vpack.c.b16 %v2487, %v2483
        %v2740 = vpack.c.b16 %v2488, %v2484
        %v2741 = vpack.c.b16 %v2489, %v2485
        %v2742 = vpack.c.b16 %v2494, %v2490
        %v2743 = vpack.c.b16 %v2495, %v2491
        %v2744 = vpack.c.b16 %v2496, %v2492
        %v2745 = vpack.c.b16 %v2497, %v2493
        %v2746 = vpack.c.b16 %v2502, %v2498
        %v2747 = vpack.c.b16 %v2503, %v2499
        %v2748 = vpack.c.b16 %v2504, %v2500
        %v2749 = vpack.c.b16 %v2505, %v2501
        %v2750 = vpack.c.b16 %v2510, %v2506
        %v2751 = vpack.c.b16 %v2511, %v2507
        %v2752 = vpack.c.b16 %v2512, %v2508
        %v2753 = vpack.c.b16 %v2513, %v2509
        %v2754 = vpack.c.b16 %v2518, %v2514
        %v2755 = vpack.c.b16 %v2519, %v2515
        %v2756 = vpack.c.b16 %v2520, %v2516
        %v2757 = vpack.c.b16 %v2521, %v2517
        %v2758 = vpack.c.b16 %v2526, %v2522
        %v2759 = vpack.c.b16 %v2527, %v2523
        %v2760 = vpack.c.b16 %v2528, %v2524
        %v2761 = vpack.c.b16 %v2529, %v2525
        %v2762 = vpack.c.b16 %v2534, %v2530
        %v2763 = vpack.c.b16 %v2535, %v2531
        %v2764 = vpack.c.b16 %v2536, %v2532
        %v2765 = vpack.c.b16 %v2537, %v2533
        %v2766 = vpack.c.b16 %v2542, %v2538
        %v2767 = vpack.c.b16 %v2543, %v2539
        %v2768 = vpack.c.b16 %v2544, %v2540
        %v2769 = vpack.c.b16 %v2545, %v2541
        %v2770 = vpack.c.b16 %v2550, %v2546
        %v2771 = vpack.c.b16 %v2551, %v2547
        %v2772 = vpack.c.b16 %v2552, %v2548
        %v2773 = vpack.c.b16 %v2553, %v2549
        %v2774 = vpack.c.b16 %v2558, %v2554
        %v2775 = vpack.c.b16 %v2559, %v2555
        %v2776 = vpack.c.b16 %v2560, %v2556
        %v2777 = vpack.c.b16 %v2561, %v2557
        %v2778 = vpack.c.b16 %v2566, %v2562
        %v2779 = vpack.c.b16 %v2567, %v2563
        %v2780 = vpack.c.b16 %v2568, %v2564
        %v2781 = vpack.c.b16 %v2569, %v2565
        %v2782 = vpack.c.b16 %v2574, %v2570
        %v2783 = vpack.c.b16 %v2575, %v2571
        %v2784 = vpack.c.b16 %v2576, %v2572
        %v2785 = vpack.c.b16 %v2577, %v2573
        %v2786 = vpack.c.b16 %v2582, %v2578
        %v2787 = vpack.c.b16 %v2583, %v2579
        %v2788 = vpack.c.b16 %v2584, %v2580
        %v2789 = vpack.c.b16 %v2585, %v2581
        %v2790 = vpack.c.b16 %v2590, %v2586
        %v2791 = vpack.c.b16 %v2591, %v2587
        %v2792 = vpack.c.b16 %v2592, %v2588
        %v2793 = vpack.c.b16 %v2593, %v2589
        %v2794 = vpack.c.b16 %v2598, %v2594
        %v2795 = vpack.c.b16 %v2599, %v2595
        %v2796 = vpack.c.b16 %v2600, %v2596
        %v2797 = vpack.c.b16 %v2601, %v2597
        %v2798 = vpack.c.b16 %v2606, %v2602
        %v2799 = vpack.c.b16 %v2607, %v2603
        %v2800 = vpack.c.b16 %v2608, %v2604
        %v2801 = vpack.c.b16 %v2609, %v2605
        %v2802 = vpack.c.b16 %v2614, %v2610
        %v2803 = vpack.c.b16 %v2615, %v2611
        %v2804 = vpack.c.b16 %v2616, %v2612
        %v2805 = vpack.c.b16 %v2617, %v2613
        %v2806 = vpack.c.b16 %v2622, %v2618
        %v2807 = vpack.c.b16 %v2623, %v2619
        %v2808 = vpack.c.b16 %v2624, %v2620
        %v2809 = vpack.c.b16 %v2625, %v2621
        %v2810 = vpack.c.b16 %v2630, %v2626
        %v2811 = vpack.c.b16 %v2631, %v2627
        %v2812 = vpack.c.b16 %v2632, %v2628
        %v2813 = vpack.c.b16 %v2633, %v2629
        %v2814 = vpack.c.b16 %v2638, %v2634
        %v2815 = vpack.c.b16 %v2639, %v2635
        %v2816 = vpack.c.b16 %v2640, %v2636
        %v2817 = vpack.c.b16 %v2641, %v2637
        %v2818 = vpack.c.b16 %v2646, %v2642
        %v2819 = vpack.c.b16 %v2647, %v2643
        %v2820 = vpack.c.b16 %v2648, %v2644
        %v2821 = vpack.c.b16 %v2649, %v2645
        %v2822 = vpack.c.b16 %v2654, %v2650
        %v2823 = vpack.c.b16 %v2655, %v2651
        %v2824 = vpack.c.b16 %v2656, %v2652
        %v2825 = vpack.c.b16 %v2657, %v2653
        %v2826 = vpack.c.b16 %v2662, %v2658
        %v2827 = vpack.c.b16 %v2663, %v2659
        %v2828 = vpack.c.b16 %v2664, %v2660
        %v2829 = vpack.c.b16 %v2665, %v2661
        %v2830 = vpack.c.b16 %v2670, %v2666
        %v2831 = vpack.c.b16 %v2671, %v2667
        %v2832 = vpack.c.b16 %v2672, %v2668
        %v2833 = vpack.c.b16 %v2673, %v2669
        %v2834 = vpack.c.b16 %v2678, %v2674
        %v2835 = vpack.c.b16 %v2679, %v2675
        %v2836 = vpack.c.b16 %v2680, %v2676
        %v2837 = vpack.c.b16 %v2681, %v2677
        %v2838 = vpack.c.b16 %v2686, %v2682
        %v2839 = vpack.c.b16 %v2687, %v2683
        %v2840 = vpack.c.b16 %v2688, %v2684
        %v2841 = vpack.c.b16 %v2689, %v2685
        %v2842 = vpack.c.b16 %v2694, %v2690
        %v2843 = vpack.c.b16 %v2695, %v2691
        %v2844 = vpack.c.b16 %v2696, %v2692
        %v2845 = vpack.c.b16 %v2697, %v2693
        %v2846 = vpack.c.b16 %v2702, %v2698
        %v2847 = vpack.c.b16 %v2703, %v2699
        %v2848 = vpack.c.b16 %v2704, %v2700
        %v2849 = vpack.c.b16 %v2705, %v2701
        %v2850 = vpack.c.b16 %v2710, %v2706
        %v2851 = vpack.c.b16 %v2711, %v2707
        %v2852 = vpack.c.b16 %v2712, %v2708
        %v2853 = vpack.c.b16 %v2713, %v2709
        %v2854 = vpack.c.b16 %v2718, %v2714
        %v2855 = vpack.c.b16 %v2719, %v2715
        %v2856 = vpack.c.b16 %v2720, %v2716
        %v2857 = vpack.c.b16 %v2721, %v2717
        %v2858 = vpack.c.b16 %v2726, %v2722
        %v2859 = vpack.c.b16 %v2727, %v2723
        %v2860 = vpack.c.b16 %v2728, %v2724
        %v2861 = vpack.c.b16 %v2729, %v2725
        %v2862 = vpack.c.b16 %v2734, %v2730
        %v2863 = vpack.c.b16 %v2735, %v2731
        %v2864 = vpack.c.b16 %v2736, %v2732
        %v2865 = vpack.c.b16 %v2737, %v2733
        %2994 = vmatprep.subr.bf16.mxu0 %v2739
        %2995 = vmatpush1.bf16.msra.mxu0 %v2738
        %2996 = vmatprep.subr.bf16.mxu0 %v2743
        %2997 = vmatpush1.bf16.msra.mxu0 %v2742
        %2998 = vmatprep.subr.bf16.mxu0 %v2747
        %2999 = vmatpush1.bf16.msra.mxu0 %v2746
        %3000 = vmatprep.subr.bf16.mxu0 %v2751
        %3001 = vmatpush1.bf16.msra.mxu0 %v2750
        %3002 = vmatprep.subr.bf16.mxu0 %v2755
        %3003 = vmatpush1.bf16.msra.mxu0 %v2754
        %3004 = vmatprep.subr.bf16.mxu0 %v2759
        %3005 = vmatpush1.bf16.msra.mxu0 %v2758
        %3006 = vmatprep.subr.bf16.mxu0 %v2763
        %3007 = vmatpush1.bf16.msra.mxu0 %v2762
        %3008 = vmatprep.subr.bf16.mxu0 %v2767
        %3009 = vmatpush1.bf16.msra.mxu0 %v2766
        %3010 = vmatprep.subr.bf16.mxu0 %v2771
        %3011 = vmatpush1.bf16.msra.mxu0 %v2770
        %3012 = vmatprep.subr.bf16.mxu0 %v2775
        %3013 = vmatpush1.bf16.msra.mxu0 %v2774
        %3014 = vmatprep.subr.bf16.mxu0 %v2779
        %3015 = vmatpush1.bf16.msra.mxu0 %v2778
        %3016 = vmatprep.subr.bf16.mxu0 %v2783
        %3017 = vmatpush1.bf16.msra.mxu0 %v2782
        %3018 = vmatprep.subr.bf16.mxu0 %v2787
        %3019 = vmatpush1.bf16.msra.mxu0 %v2786
        %3020 = vmatprep.subr.bf16.mxu0 %v2791
        %3021 = vmatpush1.bf16.msra.mxu0 %v2790
        %3022 = vmatprep.subr.bf16.mxu0 %v2795
        %3023 = vmatpush1.bf16.msra.mxu0 %v2794
        %3024 = vmatprep.subr.bf16.mxu0 %v2799
        %3025 = vmatpush1.bf16.msra.mxu0 %v2798
        %3026 = vmatprep.mubr.bf16.mxu0 %v2335
        %3027 = vmatmul.mubr.bf16.gmra.mrb[0].mxu0 %v2328
        %v3028 = vpop.f32.mrb[0].mxu0
        %v3029 = vadd.f32 %v2234, %v3028
        %v3030 = vpop.f32.mrb[0].mxu0
        %v3031 = vadd.f32 %v2236, %v3030
        %v3032 = vpop.f32.mrb[0].mxu0
        %v3033 = vpop.f32.mrb[0].mxu0
        %3034 = vdwg.mxu0
        %3035 = vmatprep.subr.bf16.mxu0 %v2803
        %3036 = vmatpush1.bf16.msra.mxu0 %v2802
        %3037 = vmatprep.subr.bf16.mxu0 %v2807
        %3038 = vmatpush1.bf16.msra.mxu0 %v2806
        %3039 = vmatprep.subr.bf16.mxu0 %v2811
        %3040 = vmatpush1.bf16.msra.mxu0 %v2810
        %3041 = vmatprep.subr.bf16.mxu0 %v2815
        %3042 = vmatpush1.bf16.msra.mxu0 %v2814
        %3043 = vmatprep.subr.bf16.mxu0 %v2819
        %3044 = vmatpush1.bf16.msra.mxu0 %v2818
        %3045 = vmatprep.subr.bf16.mxu0 %v2823
        %3046 = vmatpush1.bf16.msra.mxu0 %v2822
        %3047 = vmatprep.subr.bf16.mxu0 %v2827
        %3048 = vmatpush1.bf16.msra.mxu0 %v2826
        %3049 = vmatprep.subr.bf16.mxu0 %v2831
        %3050 = vmatpush1.bf16.msra.mxu0 %v2830
        %3051 = vmatprep.subr.bf16.mxu0 %v2835
        %3052 = vmatpush1.bf16.msra.mxu0 %v2834
        %3053 = vmatprep.subr.bf16.mxu0 %v2839
        %3054 = vmatpush1.bf16.msra.mxu0 %v2838
        %3055 = vmatprep.subr.bf16.mxu0 %v2843
        %3056 = vmatpush1.bf16.msra.mxu0 %v2842
        %3057 = vmatprep.subr.bf16.mxu0 %v2847
        %3058 = vmatpush1.bf16.msra.mxu0 %v2846
        %3059 = vmatprep.subr.bf16.mxu0 %v2851
        %3060 = vmatpush1.bf16.msra.mxu0 %v2850
        %3061 = vmatprep.subr.bf16.mxu0 %v2855
        %3062 = vmatpush1.bf16.msra.mxu0 %v2854
        %3063 = vmatprep.subr.bf16.mxu0 %v2859
        %3064 = vmatpush1.bf16.msra.mxu0 %v2858
        %3065 = vmatprep.subr.bf16.mxu0 %v2863
        %3066 = vmatpush1.bf16.msra.mxu0 %v2862
        %3067 = vmatprep.mubr.bf16.mxu0 %v2349
        %3068 = vmatmul.mubr.bf16.gmra.mrb[0].mxu0 %v2342
        %v3069 = vpop.f32.mrb[0].mxu0
        %v3070 = vadd.f32 %v3029, %v3069
        %v3071 = vpop.f32.mrb[0].mxu0
        %v3072 = vadd.f32 %v3031, %v3071
        %v3073 = vpop.f32.mrb[0].mxu0
        %v3074 = vpop.f32.mrb[0].mxu0
        %3075 = vdwg.mxu0
        %3076 = vmatprep.subr.bf16.mxu0 %v2741
        %3077 = vmatpush1.bf16.msra.mxu0 %v2740
        %3078 = vmatprep.subr.bf16.mxu0 %v2745
        %3079 = vmatpush1.bf16.msra.mxu0 %v2744
        %3080 = vmatprep.subr.bf16.mxu0 %v2749
        %3081 = vmatpush1.bf16.msra.mxu0 %v2748
        %3082 = vmatprep.subr.bf16.mxu0 %v2753
        %3083 = vmatpush1.bf16.msra.mxu0 %v2752
        %3084 = vmatprep.subr.bf16.mxu0 %v2757
        %3085 = vmatpush1.bf16.msra.mxu0 %v2756
        %3086 = vmatprep.subr.bf16.mxu0 %v2761
        %3087 = vmatpush1.bf16.msra.mxu0 %v2760
        %3088 = vmatprep.subr.bf16.mxu0 %v2765
        %3089 = vmatpush1.bf16.msra.mxu0 %v2764
        %3090 = vmatprep.subr.bf16.mxu0 %v2769
        %3091 = vmatpush1.bf16.msra.mxu0 %v2768
        %3092 = vmatprep.subr.bf16.mxu0 %v2773
        %3093 = vmatpush1.bf16.msra.mxu0 %v2772
        %3094 = vmatprep.subr.bf16.mxu0 %v2777
        %3095 = vmatpush1.bf16.msra.mxu0 %v2776
        %3096 = vmatprep.subr.bf16.mxu0 %v2781
        %3097 = vmatpush1.bf16.msra.mxu0 %v2780
        %3098 = vmatprep.subr.bf16.mxu0 %v2785
        %3099 = vmatpush1.bf16.msra.mxu0 %v2784
        %3100 = vmatprep.subr.bf16.mxu0 %v2789
        %3101 = vmatpush1.bf16.msra.mxu0 %v2788
        %3102 = vmatprep.subr.bf16.mxu0 %v2793
        %3103 = vmatpush1.bf16.msra.mxu0 %v2792
        %3104 = vmatprep.subr.bf16.mxu0 %v2797
        %3105 = vmatpush1.bf16.msra.mxu0 %v2796
        %3106 = vmatprep.subr.bf16.mxu0 %v2801
        %3107 = vmatpush1.bf16.msra.mxu0 %v2800
        %3108 = vmatprep.mubr.bf16.mxu0 %v2335
        %3109 = vmatmul.mubr.bf16.gmra.mrb[0].mxu0 %v2328
        %v3110 = vpop.f32.mrb[0].mxu0
        %v3111 = vadd.f32 %v2316, %v3110
        %v3112 = vpop.f32.mrb[0].mxu0
        %v3113 = vadd.f32 %v2318, %v3112
        %v3114 = vpop.f32.mrb[0].mxu0
        %v3115 = vpop.f32.mrb[0].mxu0
        %3116 = vdwg.mxu0
        %3117 = vmatprep.subr.bf16.mxu0 %v2805
        %3118 = vmatpush1.bf16.msra.mxu0 %v2804
        %3119 = vmatprep.subr.bf16.mxu0 %v2809
        %3120 = vmatpush1.bf16.msra.mxu0 %v2808
        %3121 = vmatprep.subr.bf16.mxu0 %v2813
        %3122 = vmatpush1.bf16.msra.mxu0 %v2812
        %3123 = vmatprep.subr.bf16.mxu0 %v2817
        %3124 = vmatpush1.bf16.msra.mxu0 %v2816
        %3125 = vmatprep.subr.bf16.mxu0 %v2821
        %3126 = vmatpush1.bf16.msra.mxu0 %v2820
        %3127 = vmatprep.subr.bf16.mxu0 %v2825
        %3128 = vmatpush1.bf16.msra.mxu0 %v2824
        %3129 = vmatprep.subr.bf16.mxu0 %v2829
        %3130 = vmatpush1.bf16.msra.mxu0 %v2828
        %3131 = vmatprep.subr.bf16.mxu0 %v2833
        %3132 = vmatpush1.bf16.msra.mxu0 %v2832
        %3133 = vmatprep.subr.bf16.mxu0 %v2837
        %3134 = vmatpush1.bf16.msra.mxu0 %v2836
        %3135 = vmatprep.subr.bf16.mxu0 %v2841
        %3136 = vmatpush1.bf16.msra.mxu0 %v2840
        %3137 = vmatprep.subr.bf16.mxu0 %v2845
        %3138 = vmatpush1.bf16.msra.mxu0 %v2844
        %3139 = vmatprep.subr.bf16.mxu0 %v2849
        %3140 = vmatpush1.bf16.msra.mxu0 %v2848
        %3141 = vmatprep.subr.bf16.mxu0 %v2853
        %3142 = vmatpush1.bf16.msra.mxu0 %v2852
        %3143 = vmatprep.subr.bf16.mxu0 %v2857
        %3144 = vmatpush1.bf16.msra.mxu0 %v2856
        %3145 = vmatprep.subr.bf16.mxu0 %v2861
        %3146 = vmatpush1.bf16.msra.mxu0 %v2860
        %3147 = vmatprep.subr.bf16.mxu0 %v2865
        %3148 = vmatpush1.bf16.msra.mxu0 %v2864
        %3149 = vmatprep.mubr.bf16.mxu0 %v2349
        %3150 = vmatmul.mubr.bf16.gmra.mrb[0].mxu0 %v2342
        %v3151 = vpop.f32.mrb[0].mxu0
        %v3152 = vadd.f32 %v3111, %v3151
        %v3153 = vpop.f32.mrb[0].mxu0
        %v3154 = vadd.f32 %v3113, %v3153
        %v3155 = vpop.f32.mrb[0].mxu0
        %v3156 = vpop.f32.mrb[0].mxu0
        %3157 = vdwg.mxu0
        %v3158 = vld [vmem:[#allocation13] sm:$0xf]
        %v3160 = vlaneseq
        %v3161 = vshrl.u32 %v3160, 7
        %v3162 = vsub.s32 0, %v3161
        %v3163 = vrot.slane %v3158, %v3162
        %v3164 = vlaneseq
        %v3165 = vshrl.u32 %v3164, 7
        %v3166 = vsub.s32 1, %v3165
        %v3167 = vrot.slane %v3158, %v3166
        %v3168 = vlaneseq
        %v3169 = vshrl.u32 %v3168, 7
        %v3170 = vsub.s32 2, %v3169
        %v3171 = vrot.slane %v3158, %v3170
        %v3172 = vlaneseq
        %v3173 = vshrl.u32 %v3172, 7
        %v3174 = vsub.s32 3, %v3173
        %v3175 = vrot.slane %v3158, %v3174
        %v3180 = vadd.f32 %v3070, %v3163
        %v3181 = vadd.f32 %v3072, %v3167
        %v3182 = vadd.f32 %v3152, %v3171
        %v3183 = vadd.f32 %v3154, %v3175
        %v3184 = vxor.u32 %v3180, 2147483648
        %v3185 = vxor.u32 %v3181, 2147483648
        %v3186 = vxor.u32 %v3182, 2147483648
        %v3187 = vxor.u32 %v3183, 2147483648
        %v3188 = vmul.f32 %v3184, 1.442695
        %v3189 = vpow.pop %v3188
        %v3190 = vmul.f32 %v3185, 1.442695
        %v3191 = vpow.pop %v3190
        %v3192 = vmul.f32 %v3186, 1.442695
        %v3193 = vpow.pop %v3192
        %v3194 = vmul.f32 %v3187, 1.442695
        %v3195 = vpow.pop %v3194
        %v3196 = vadd.f32 %v3189, 1.0
        %v3197 = vadd.f32 %v3191, 1.0
        %v3198 = vadd.f32 %v3193, 1.0
        %v3199 = vadd.f32 %v3195, 1.0
        %v3200 = vrcp.pop %v3196
        %v3201 = vmul.f32 1.0, %v3200
        %v3202 = vrcp.pop %v3197
        %v3203 = vmul.f32 1.0, %v3202
        %v3204 = vrcp.pop %v3198
        %v3205 = vmul.f32 1.0, %v3204
        %v3206 = vrcp.pop %v3199
        %v3207 = vmul.f32 1.0, %v3206
        %v3208 = vmul.f32 %v3180, %v3201
        %v3209 = vmul.f32 %v3181, %v3203
        %v3210 = vmul.f32 %v3182, %v3205
        %v3211 = vmul.f32 %v3183, %v3207
        %v3212 = vld [vmem:[#allocation2] sm:$0x3c]
        %v3213 = vld [vmem:[#allocation2 + $0x8] sm:$0x3c]
        %v3214 = vld [vmem:[#allocation2 + $0x10] sm:$0x3c]
        %v3215 = vld [vmem:[#allocation2 + $0x18] sm:$0x3c]
        %v3216 = vpack.c.bf16 %v3212, %v3212
        %v3217 = vpack.c.bf16 %v3213, %v3213
        %v3218 = vpack.c.bf16 %v3214, %v3214
        %v3219 = vpack.c.bf16 %v3215, %v3215
        %v3220 = vld [vmem:[#allocation9] sm:$0xff]
        %v3221 = vld [vmem:[#allocation9 + $0x8] sm:$0xff]
        %v3222 = vld [vmem:[#allocation9 + $0x10] sm:$0xff]
        %v3223 = vld [vmem:[#allocation9 + $0x18] sm:$0xff]
        %v3224 = vld [vmem:[#allocation9 + $0x20] sm:$0xff]
        %v3225 = vld [vmem:[#allocation9 + $0x28] sm:$0xff]
        %v3226 = vld [vmem:[#allocation9 + $0x30] sm:$0xff]
        %v3227 = vld [vmem:[#allocation9 + $0x38] sm:$0xff]
        %v3228 = vld [vmem:[#allocation9 + $0x40] sm:$0xff]
        %v3229 = vld [vmem:[#allocation9 + $0x48] sm:$0xff]
        %v3230 = vld [vmem:[#allocation9 + $0x50] sm:$0xff]
        %v3231 = vld [vmem:[#allocation9 + $0x58] sm:$0xff]
        %v3232 = vld [vmem:[#allocation9 + $0x60] sm:$0xff]
        %v3233 = vld [vmem:[#allocation9 + $0x68] sm:$0xff]
        %v3234 = vld [vmem:[#allocation9 + $0x70] sm:$0xff]
        %v3235 = vld [vmem:[#allocation9 + $0x78] sm:$0xff]
        %v3236 = vld [vmem:[#allocation9 + $0x80] sm:$0xff]
        %v3237 = vld [vmem:[#allocation9 + $0x88] sm:$0xff]
        %v3238 = vld [vmem:[#allocation9 + $0x90] sm:$0xff]
        %v3239 = vld [vmem:[#allocation9 + $0x98] sm:$0xff]
        %v3240 = vld [vmem:[#allocation9 + $0xa0] sm:$0xff]
        %v3241 = vld [vmem:[#allocation9 + $0xa8] sm:$0xff]
        %v3242 = vld [vmem:[#allocation9 + $0xb0] sm:$0xff]
        %v3243 = vld [vmem:[#allocation9 + $0xb8] sm:$0xff]
        %v3244 = vld [vmem:[#allocation9 + $0xc0] sm:$0xff]
        %v3245 = vld [vmem:[#allocation9 + $0xc8] sm:$0xff]
        %v3246 = vld [vmem:[#allocation9 + $0xd0] sm:$0xff]
        %v3247 = vld [vmem:[#allocation9 + $0xd8] sm:$0xff]
        %v3248 = vld [vmem:[#allocation9 + $0xe0] sm:$0xff]
        %v3249 = vld [vmem:[#allocation9 + $0xe8] sm:$0xff]
        %v3250 = vld [vmem:[#allocation9 + $0xf0] sm:$0xff]
        %v3251 = vld [vmem:[#allocation9 + $0xf8] sm:$0xff]
        %v3252 = vld [vmem:[#allocation9 + $0x100] sm:$0xff]
        %v3253 = vld [vmem:[#allocation9 + $0x108] sm:$0xff]
        %v3254 = vld [vmem:[#allocation9 + $0x110] sm:$0xff]
        %v3255 = vld [vmem:[#allocation9 + $0x118] sm:$0xff]
        %v3256 = vld [vmem:[#allocation9 + $0x120] sm:$0xff]
        %v3257 = vld [vmem:[#allocation9 + $0x128] sm:$0xff]
        %v3258 = vld [vmem:[#allocation9 + $0x130] sm:$0xff]
        %v3259 = vld [vmem:[#allocation9 + $0x138] sm:$0xff]
        %v3260 = vld [vmem:[#allocation9 + $0x140] sm:$0xff]
        %v3261 = vld [vmem:[#allocation9 + $0x148] sm:$0xff]
        %v3262 = vld [vmem:[#allocation9 + $0x150] sm:$0xff]
        %v3263 = vld [vmem:[#allocation9 + $0x158] sm:$0xff]
        %v3264 = vld [vmem:[#allocation9 + $0x160] sm:$0xff]
        %v3265 = vld [vmem:[#allocation9 + $0x168] sm:$0xff]
        %v3266 = vld [vmem:[#allocation9 + $0x170] sm:$0xff]
        %v3267 = vld [vmem:[#allocation9 + $0x178] sm:$0xff]
        %v3268 = vld [vmem:[#allocation9 + $0x180] sm:$0xff]
        %v3269 = vld [vmem:[#allocation9 + $0x188] sm:$0xff]
        %v3270 = vld [vmem:[#allocation9 + $0x190] sm:$0xff]
        %v3271 = vld [vmem:[#allocation9 + $0x198] sm:$0xff]
        %v3272 = vld [vmem:[#allocation9 + $0x1a0] sm:$0xff]
        %v3273 = vld [vmem:[#allocation9 + $0x1a8] sm:$0xff]
        %v3274 = vld [vmem:[#allocation9 + $0x1b0] sm:$0xff]
        %v3275 = vld [vmem:[#allocation9 + $0x1b8] sm:$0xff]
        %v3276 = vld [vmem:[#allocation9 + $0x1c0] sm:$0xff]
        %v3277 = vld [vmem:[#allocation9 + $0x1c8] sm:$0xff]
        %v3278 = vld [vmem:[#allocation9 + $0x1d0] sm:$0xff]
        %v3279 = vld [vmem:[#allocation9 + $0x1d8] sm:$0xff]
        %v3280 = vld [vmem:[#allocation9 + $0x1e0] sm:$0xff]
        %v3281 = vld [vmem:[#allocation9 + $0x1e8] sm:$0xff]
        %v3282 = vld [vmem:[#allocation9 + $0x1f0] sm:$0xff]
        %v3283 = vld [vmem:[#allocation9 + $0x1f8] sm:$0xff]
        %v3284 = vld [vmem:[#allocation9 + $0x200] sm:$0xff]
        %v3285 = vld [vmem:[#allocation9 + $0x208] sm:$0xff]
        %v3286 = vld [vmem:[#allocation9 + $0x210] sm:$0xff]
        %v3287 = vld [vmem:[#allocation9 + $0x218] sm:$0xff]
        %v3288 = vld [vmem:[#allocation9 + $0x220] sm:$0xff]
        %v3289 = vld [vmem:[#allocation9 + $0x228] sm:$0xff]
        %v3290 = vld [vmem:[#allocation9 + $0x230] sm:$0xff]
        %v3291 = vld [vmem:[#allocation9 + $0x238] sm:$0xff]
        %v3292 = vld [vmem:[#allocation9 + $0x240] sm:$0xff]
        %v3293 = vld [vmem:[#allocation9 + $0x248] sm:$0xff]
        %v3294 = vld [vmem:[#allocation9 + $0x250] sm:$0xff]
        %v3295 = vld [vmem:[#allocation9 + $0x258] sm:$0xff]
        %v3296 = vld [vmem:[#allocation9 + $0x260] sm:$0xff]
        %v3297 = vld [vmem:[#allocation9 + $0x268] sm:$0xff]
        %v3298 = vld [vmem:[#allocation9 + $0x270] sm:$0xff]
        %v3299 = vld [vmem:[#allocation9 + $0x278] sm:$0xff]
        %v3300 = vld [vmem:[#allocation9 + $0x280] sm:$0xff]
        %v3301 = vld [vmem:[#allocation9 + $0x288] sm:$0xff]
        %v3302 = vld [vmem:[#allocation9 + $0x290] sm:$0xff]
        %v3303 = vld [vmem:[#allocation9 + $0x298] sm:$0xff]
        %v3304 = vld [vmem:[#allocation9 + $0x2a0] sm:$0xff]
        %v3305 = vld [vmem:[#allocation9 + $0x2a8] sm:$0xff]
        %v3306 = vld [vmem:[#allocation9 + $0x2b0] sm:$0xff]
        %v3307 = vld [vmem:[#allocation9 + $0x2b8] sm:$0xff]
        %v3308 = vld [vmem:[#allocation9 + $0x2c0] sm:$0xff]
        %v3309 = vld [vmem:[#allocation9 + $0x2c8] sm:$0xff]
        %v3310 = vld [vmem:[#allocation9 + $0x2d0] sm:$0xff]
        %v3311 = vld [vmem:[#allocation9 + $0x2d8] sm:$0xff]
        %v3312 = vld [vmem:[#allocation9 + $0x2e0] sm:$0xff]
        %v3313 = vld [vmem:[#allocation9 + $0x2e8] sm:$0xff]
        %v3314 = vld [vmem:[#allocation9 + $0x2f0] sm:$0xff]
        %v3315 = vld [vmem:[#allocation9 + $0x2f8] sm:$0xff]
        %v3316 = vld [vmem:[#allocation9 + $0x300] sm:$0xff]
        %v3317 = vld [vmem:[#allocation9 + $0x308] sm:$0xff]
        %v3318 = vld [vmem:[#allocation9 + $0x310] sm:$0xff]
        %v3319 = vld [vmem:[#allocation9 + $0x318] sm:$0xff]
        %v3320 = vld [vmem:[#allocation9 + $0x320] sm:$0xff]
        %v3321 = vld [vmem:[#allocation9 + $0x328] sm:$0xff]
        %v3322 = vld [vmem:[#allocation9 + $0x330] sm:$0xff]
        %v3323 = vld [vmem:[#allocation9 + $0x338] sm:$0xff]
        %v3324 = vld [vmem:[#allocation9 + $0x340] sm:$0xff]
        %v3325 = vld [vmem:[#allocation9 + $0x348] sm:$0xff]
        %v3326 = vld [vmem:[#allocation9 + $0x350] sm:$0xff]
        %v3327 = vld [vmem:[#allocation9 + $0x358] sm:$0xff]
        %v3328 = vld [vmem:[#allocation9 + $0x360] sm:$0xff]
        %v3329 = vld [vmem:[#allocation9 + $0x368] sm:$0xff]
        %v3330 = vld [vmem:[#allocation9 + $0x370] sm:$0xff]
        %v3331 = vld [vmem:[#allocation9 + $0x378] sm:$0xff]
        %v3332 = vld [vmem:[#allocation9 + $0x380] sm:$0xff]
        %v3333 = vld [vmem:[#allocation9 + $0x388] sm:$0xff]
        %v3334 = vld [vmem:[#allocation9 + $0x390] sm:$0xff]
        %v3335 = vld [vmem:[#allocation9 + $0x398] sm:$0xff]
        %v3336 = vld [vmem:[#allocation9 + $0x3a0] sm:$0xff]
        %v3337 = vld [vmem:[#allocation9 + $0x3a8] sm:$0xff]
        %v3338 = vld [vmem:[#allocation9 + $0x3b0] sm:$0xff]
        %v3339 = vld [vmem:[#allocation9 + $0x3b8] sm:$0xff]
        %v3340 = vld [vmem:[#allocation9 + $0x3c0] sm:$0xff]
        %v3341 = vld [vmem:[#allocation9 + $0x3c8] sm:$0xff]
        %v3342 = vld [vmem:[#allocation9 + $0x3d0] sm:$0xff]
        %v3343 = vld [vmem:[#allocation9 + $0x3d8] sm:$0xff]
        %v3344 = vld [vmem:[#allocation9 + $0x3e0] sm:$0xff]
        %v3345 = vld [vmem:[#allocation9 + $0x3e8] sm:$0xff]
        %v3346 = vld [vmem:[#allocation9 + $0x3f0] sm:$0xff]
        %v3347 = vld [vmem:[#allocation9 + $0x3f8] sm:$0xff]
        %s3348 = scalar_lea.vmem [#allocation9], 2048
        %v3349 = vld [vmem:[%s3348] sm:$0xff]
        %v3350 = vld [vmem:[%s3348 + $0x8] sm:$0xff]
        %v3351 = vld [vmem:[%s3348 + $0x10] sm:$0xff]
        %v3352 = vld [vmem:[%s3348 + $0x18] sm:$0xff]
        %v3353 = vld [vmem:[%s3348 + $0x20] sm:$0xff]
        %v3354 = vld [vmem:[%s3348 + $0x28] sm:$0xff]
        %v3355 = vld [vmem:[%s3348 + $0x30] sm:$0xff]
        %v3356 = vld [vmem:[%s3348 + $0x38] sm:$0xff]
        %v3357 = vld [vmem:[%s3348 + $0x40] sm:$0xff]
        %v3358 = vld [vmem:[%s3348 + $0x48] sm:$0xff]
        %v3359 = vld [vmem:[%s3348 + $0x50] sm:$0xff]
        %v3360 = vld [vmem:[%s3348 + $0x58] sm:$0xff]
        %v3361 = vld [vmem:[%s3348 + $0x60] sm:$0xff]
        %v3362 = vld [vmem:[%s3348 + $0x68] sm:$0xff]
        %v3363 = vld [vmem:[%s3348 + $0x70] sm:$0xff]
        %v3364 = vld [vmem:[%s3348 + $0x78] sm:$0xff]
        %v3365 = vld [vmem:[%s3348 + $0x80] sm:$0xff]
        %v3366 = vld [vmem:[%s3348 + $0x88] sm:$0xff]
        %v3367 = vld [vmem:[%s3348 + $0x90] sm:$0xff]
        %v3368 = vld [vmem:[%s3348 + $0x98] sm:$0xff]
        %v3369 = vld [vmem:[%s3348 + $0xa0] sm:$0xff]
        %v3370 = vld [vmem:[%s3348 + $0xa8] sm:$0xff]
        %v3371 = vld [vmem:[%s3348 + $0xb0] sm:$0xff]
        %v3372 = vld [vmem:[%s3348 + $0xb8] sm:$0xff]
        %v3373 = vld [vmem:[%s3348 + $0xc0] sm:$0xff]
        %v3374 = vld [vmem:[%s3348 + $0xc8] sm:$0xff]
        %v3375 = vld [vmem:[%s3348 + $0xd0] sm:$0xff]
        %v3376 = vld [vmem:[%s3348 + $0xd8] sm:$0xff]
        %v3377 = vld [vmem:[%s3348 + $0xe0] sm:$0xff]
        %v3378 = vld [vmem:[%s3348 + $0xe8] sm:$0xff]
        %v3379 = vld [vmem:[%s3348 + $0xf0] sm:$0xff]
        %v3380 = vld [vmem:[%s3348 + $0xf8] sm:$0xff]
        %v3381 = vld [vmem:[%s3348 + $0x100] sm:$0xff]
        %v3382 = vld [vmem:[%s3348 + $0x108] sm:$0xff]
        %v3383 = vld [vmem:[%s3348 + $0x110] sm:$0xff]
        %v3384 = vld [vmem:[%s3348 + $0x118] sm:$0xff]
        %v3385 = vld [vmem:[%s3348 + $0x120] sm:$0xff]
        %v3386 = vld [vmem:[%s3348 + $0x128] sm:$0xff]
        %v3387 = vld [vmem:[%s3348 + $0x130] sm:$0xff]
        %v3388 = vld [vmem:[%s3348 + $0x138] sm:$0xff]
        %v3389 = vld [vmem:[%s3348 + $0x140] sm:$0xff]
        %v3390 = vld [vmem:[%s3348 + $0x148] sm:$0xff]
        %v3391 = vld [vmem:[%s3348 + $0x150] sm:$0xff]
        %v3392 = vld [vmem:[%s3348 + $0x158] sm:$0xff]
        %v3393 = vld [vmem:[%s3348 + $0x160] sm:$0xff]
        %v3394 = vld [vmem:[%s3348 + $0x168] sm:$0xff]
        %v3395 = vld [vmem:[%s3348 + $0x170] sm:$0xff]
        %v3396 = vld [vmem:[%s3348 + $0x178] sm:$0xff]
        %v3397 = vld [vmem:[%s3348 + $0x180] sm:$0xff]
        %v3398 = vld [vmem:[%s3348 + $0x188] sm:$0xff]
        %v3399 = vld [vmem:[%s3348 + $0x190] sm:$0xff]
        %v3400 = vld [vmem:[%s3348 + $0x198] sm:$0xff]
        %v3401 = vld [vmem:[%s3348 + $0x1a0] sm:$0xff]
        %v3402 = vld [vmem:[%s3348 + $0x1a8] sm:$0xff]
        %v3403 = vld [vmem:[%s3348 + $0x1b0] sm:$0xff]
        %v3404 = vld [vmem:[%s3348 + $0x1b8] sm:$0xff]
        %v3405 = vld [vmem:[%s3348 + $0x1c0] sm:$0xff]
        %v3406 = vld [vmem:[%s3348 + $0x1c8] sm:$0xff]
        %v3407 = vld [vmem:[%s3348 + $0x1d0] sm:$0xff]
        %v3408 = vld [vmem:[%s3348 + $0x1d8] sm:$0xff]
        %v3409 = vld [vmem:[%s3348 + $0x1e0] sm:$0xff]
        %v3410 = vld [vmem:[%s3348 + $0x1e8] sm:$0xff]
        %v3411 = vld [vmem:[%s3348 + $0x1f0] sm:$0xff]
        %v3412 = vld [vmem:[%s3348 + $0x1f8] sm:$0xff]
        %v3413 = vld [vmem:[%s3348 + $0x200] sm:$0xff]
        %v3414 = vld [vmem:[%s3348 + $0x208] sm:$0xff]
        %v3415 = vld [vmem:[%s3348 + $0x210] sm:$0xff]
        %v3416 = vld [vmem:[%s3348 + $0x218] sm:$0xff]
        %v3417 = vld [vmem:[%s3348 + $0x220] sm:$0xff]
        %v3418 = vld [vmem:[%s3348 + $0x228] sm:$0xff]
        %v3419 = vld [vmem:[%s3348 + $0x230] sm:$0xff]
        %v3420 = vld [vmem:[%s3348 + $0x238] sm:$0xff]
        %v3421 = vld [vmem:[%s3348 + $0x240] sm:$0xff]
        %v3422 = vld [vmem:[%s3348 + $0x248] sm:$0xff]
        %v3423 = vld [vmem:[%s3348 + $0x250] sm:$0xff]
        %v3424 = vld [vmem:[%s3348 + $0x258] sm:$0xff]
        %v3425 = vld [vmem:[%s3348 + $0x260] sm:$0xff]
        %v3426 = vld [vmem:[%s3348 + $0x268] sm:$0xff]
        %v3427 = vld [vmem:[%s3348 + $0x270] sm:$0xff]
        %v3428 = vld [vmem:[%s3348 + $0x278] sm:$0xff]
        %v3429 = vld [vmem:[%s3348 + $0x280] sm:$0xff]
        %v3430 = vld [vmem:[%s3348 + $0x288] sm:$0xff]
        %v3431 = vld [vmem:[%s3348 + $0x290] sm:$0xff]
        %v3432 = vld [vmem:[%s3348 + $0x298] sm:$0xff]
        %v3433 = vld [vmem:[%s3348 + $0x2a0] sm:$0xff]
        %v3434 = vld [vmem:[%s3348 + $0x2a8] sm:$0xff]
        %v3435 = vld [vmem:[%s3348 + $0x2b0] sm:$0xff]
        %v3436 = vld [vmem:[%s3348 + $0x2b8] sm:$0xff]
        %v3437 = vld [vmem:[%s3348 + $0x2c0] sm:$0xff]
        %v3438 = vld [vmem:[%s3348 + $0x2c8] sm:$0xff]
        %v3439 = vld [vmem:[%s3348 + $0x2d0] sm:$0xff]
        %v3440 = vld [vmem:[%s3348 + $0x2d8] sm:$0xff]
        %v3441 = vld [vmem:[%s3348 + $0x2e0] sm:$0xff]
        %v3442 = vld [vmem:[%s3348 + $0x2e8] sm:$0xff]
        %v3443 = vld [vmem:[%s3348 + $0x2f0] sm:$0xff]
        %v3444 = vld [vmem:[%s3348 + $0x2f8] sm:$0xff]
        %v3445 = vld [vmem:[%s3348 + $0x300] sm:$0xff]
        %v3446 = vld [vmem:[%s3348 + $0x308] sm:$0xff]
        %v3447 = vld [vmem:[%s3348 + $0x310] sm:$0xff]
        %v3448 = vld [vmem:[%s3348 + $0x318] sm:$0xff]
        %v3449 = vld [vmem:[%s3348 + $0x320] sm:$0xff]
        %v3450 = vld [vmem:[%s3348 + $0x328] sm:$0xff]
        %v3451 = vld [vmem:[%s3348 + $0x330] sm:$0xff]
        %v3452 = vld [vmem:[%s3348 + $0x338] sm:$0xff]
        %v3453 = vld [vmem:[%s3348 + $0x340] sm:$0xff]
        %v3454 = vld [vmem:[%s3348 + $0x348] sm:$0xff]
        %v3455 = vld [vmem:[%s3348 + $0x350] sm:$0xff]
        %v3456 = vld [vmem:[%s3348 + $0x358] sm:$0xff]
        %v3457 = vld [vmem:[%s3348 + $0x360] sm:$0xff]
        %v3458 = vld [vmem:[%s3348 + $0x368] sm:$0xff]
        %v3459 = vld [vmem:[%s3348 + $0x370] sm:$0xff]
        %v3460 = vld [vmem:[%s3348 + $0x378] sm:$0xff]
        %v3461 = vld [vmem:[%s3348 + $0x380] sm:$0xff]
        %v3462 = vld [vmem:[%s3348 + $0x388] sm:$0xff]
        %v3463 = vld [vmem:[%s3348 + $0x390] sm:$0xff]
        %v3464 = vld [vmem:[%s3348 + $0x398] sm:$0xff]
        %v3465 = vld [vmem:[%s3348 + $0x3a0] sm:$0xff]
        %v3466 = vld [vmem:[%s3348 + $0x3a8] sm:$0xff]
        %v3467 = vld [vmem:[%s3348 + $0x3b0] sm:$0xff]
        %v3468 = vld [vmem:[%s3348 + $0x3b8] sm:$0xff]
        %v3469 = vld [vmem:[%s3348 + $0x3c0] sm:$0xff]
        %v3470 = vld [vmem:[%s3348 + $0x3c8] sm:$0xff]
        %v3471 = vld [vmem:[%s3348 + $0x3d0] sm:$0xff]
        %v3472 = vld [vmem:[%s3348 + $0x3d8] sm:$0xff]
        %v3473 = vld [vmem:[%s3348 + $0x3e0] sm:$0xff]
        %v3474 = vld [vmem:[%s3348 + $0x3e8] sm:$0xff]
        %v3475 = vld [vmem:[%s3348 + $0x3f0] sm:$0xff]
        %v3476 = vld [vmem:[%s3348 + $0x3f8] sm:$0xff]
        %v3605 = vunpack.c.l.b16 %v3349
        %v3606 = vunpack.c.h.b16 %v3349
        %v3607 = vunpack.c.l.b16 %v3350
        %v3608 = vunpack.c.h.b16 %v3350
        %v3609 = vunpack.c.l.b16 %v3351
        %v3610 = vunpack.c.h.b16 %v3351
        %v3611 = vunpack.c.l.b16 %v3352
        %v3612 = vunpack.c.h.b16 %v3352
        %v3613 = vunpack.c.l.b16 %v3353
        %v3614 = vunpack.c.h.b16 %v3353
        %v3615 = vunpack.c.l.b16 %v3354
        %v3616 = vunpack.c.h.b16 %v3354
        %v3617 = vunpack.c.l.b16 %v3355
        %v3618 = vunpack.c.h.b16 %v3355
        %v3619 = vunpack.c.l.b16 %v3356
        %v3620 = vunpack.c.h.b16 %v3356
        %v3621 = vunpack.c.l.b16 %v3357
        %v3622 = vunpack.c.h.b16 %v3357
        %v3623 = vunpack.c.l.b16 %v3358
        %v3624 = vunpack.c.h.b16 %v3358
        %v3625 = vunpack.c.l.b16 %v3359
        %v3626 = vunpack.c.h.b16 %v3359
        %v3627 = vunpack.c.l.b16 %v3360
        %v3628 = vunpack.c.h.b16 %v3360
        %v3629 = vunpack.c.l.b16 %v3361
        %v3630 = vunpack.c.h.b16 %v3361
        %v3631 = vunpack.c.l.b16 %v3362
        %v3632 = vunpack.c.h.b16 %v3362
        %v3633 = vunpack.c.l.b16 %v3363
        %v3634 = vunpack.c.h.b16 %v3363
        %v3635 = vunpack.c.l.b16 %v3364
        %v3636 = vunpack.c.h.b16 %v3364
        %v3637 = vunpack.c.l.b16 %v3365
        %v3638 = vunpack.c.h.b16 %v3365
        %v3639 = vunpack.c.l.b16 %v3366
        %v3640 = vunpack.c.h.b16 %v3366
        %v3641 = vunpack.c.l.b16 %v3367
        %v3642 = vunpack.c.h.b16 %v3367
        %v3643 = vunpack.c.l.b16 %v3368
        %v3644 = vunpack.c.h.b16 %v3368
        %v3645 = vunpack.c.l.b16 %v3369
        %v3646 = vunpack.c.h.b16 %v3369
        %v3647 = vunpack.c.l.b16 %v3370
        %v3648 = vunpack.c.h.b16 %v3370
        %v3649 = vunpack.c.l.b16 %v3371
        %v3650 = vunpack.c.h.b16 %v3371
        %v3651 = vunpack.c.l.b16 %v3372
        %v3652 = vunpack.c.h.b16 %v3372
        %v3653 = vunpack.c.l.b16 %v3373
        %v3654 = vunpack.c.h.b16 %v3373
        %v3655 = vunpack.c.l.b16 %v3374
        %v3656 = vunpack.c.h.b16 %v3374
        %v3657 = vunpack.c.l.b16 %v3375
        %v3658 = vunpack.c.h.b16 %v3375
        %v3659 = vunpack.c.l.b16 %v3376
        %v3660 = vunpack.c.h.b16 %v3376
        %v3661 = vunpack.c.l.b16 %v3377
        %v3662 = vunpack.c.h.b16 %v3377
        %v3663 = vunpack.c.l.b16 %v3378
        %v3664 = vunpack.c.h.b16 %v3378
        %v3665 = vunpack.c.l.b16 %v3379
        %v3666 = vunpack.c.h.b16 %v3379
        %v3667 = vunpack.c.l.b16 %v3380
        %v3668 = vunpack.c.h.b16 %v3380
        %v3669 = vunpack.c.l.b16 %v3381
        %v3670 = vunpack.c.h.b16 %v3381
        %v3671 = vunpack.c.l.b16 %v3382
        %v3672 = vunpack.c.h.b16 %v3382
        %v3673 = vunpack.c.l.b16 %v3383
        %v3674 = vunpack.c.h.b16 %v3383
        %v3675 = vunpack.c.l.b16 %v3384
        %v3676 = vunpack.c.h.b16 %v3384
        %v3677 = vunpack.c.l.b16 %v3385
        %v3678 = vunpack.c.h.b16 %v3385
        %v3679 = vunpack.c.l.b16 %v3386
        %v3680 = vunpack.c.h.b16 %v3386
        %v3681 = vunpack.c.l.b16 %v3387
        %v3682 = vunpack.c.h.b16 %v3387
        %v3683 = vunpack.c.l.b16 %v3388
        %v3684 = vunpack.c.h.b16 %v3388
        %v3685 = vunpack.c.l.b16 %v3389
        %v3686 = vunpack.c.h.b16 %v3389
        %v3687 = vunpack.c.l.b16 %v3390
        %v3688 = vunpack.c.h.b16 %v3390
        %v3689 = vunpack.c.l.b16 %v3391
        %v3690 = vunpack.c.h.b16 %v3391
        %v3691 = vunpack.c.l.b16 %v3392
        %v3692 = vunpack.c.h.b16 %v3392
        %v3693 = vunpack.c.l.b16 %v3393
        %v3694 = vunpack.c.h.b16 %v3393
        %v3695 = vunpack.c.l.b16 %v3394
        %v3696 = vunpack.c.h.b16 %v3394
        %v3697 = vunpack.c.l.b16 %v3395
        %v3698 = vunpack.c.h.b16 %v3395
        %v3699 = vunpack.c.l.b16 %v3396
        %v3700 = vunpack.c.h.b16 %v3396
        %v3701 = vunpack.c.l.b16 %v3397
        %v3702 = vunpack.c.h.b16 %v3397
        %v3703 = vunpack.c.l.b16 %v3398
        %v3704 = vunpack.c.h.b16 %v3398
        %v3705 = vunpack.c.l.b16 %v3399
        %v3706 = vunpack.c.h.b16 %v3399
        %v3707 = vunpack.c.l.b16 %v3400
        %v3708 = vunpack.c.h.b16 %v3400
        %v3709 = vunpack.c.l.b16 %v3401
        %v3710 = vunpack.c.h.b16 %v3401
        %v3711 = vunpack.c.l.b16 %v3402
        %v3712 = vunpack.c.h.b16 %v3402
        %v3713 = vunpack.c.l.b16 %v3403
        %v3714 = vunpack.c.h.b16 %v3403
        %v3715 = vunpack.c.l.b16 %v3404
        %v3716 = vunpack.c.h.b16 %v3404
        %v3717 = vunpack.c.l.b16 %v3405
        %v3718 = vunpack.c.h.b16 %v3405
        %v3719 = vunpack.c.l.b16 %v3406
        %v3720 = vunpack.c.h.b16 %v3406
        %v3721 = vunpack.c.l.b16 %v3407
        %v3722 = vunpack.c.h.b16 %v3407
        %v3723 = vunpack.c.l.b16 %v3408
        %v3724 = vunpack.c.h.b16 %v3408
        %v3725 = vunpack.c.l.b16 %v3409
        %v3726 = vunpack.c.h.b16 %v3409
        %v3727 = vunpack.c.l.b16 %v3410
        %v3728 = vunpack.c.h.b16 %v3410
        %v3729 = vunpack.c.l.b16 %v3411
        %v3730 = vunpack.c.h.b16 %v3411
        %v3731 = vunpack.c.l.b16 %v3412
        %v3732 = vunpack.c.h.b16 %v3412
        %v3733 = vunpack.c.l.b16 %v3413
        %v3734 = vunpack.c.h.b16 %v3413
        %v3735 = vunpack.c.l.b16 %v3414
        %v3736 = vunpack.c.h.b16 %v3414
        %v3737 = vunpack.c.l.b16 %v3415
        %v3738 = vunpack.c.h.b16 %v3415
        %v3739 = vunpack.c.l.b16 %v3416
        %v3740 = vunpack.c.h.b16 %v3416
        %v3741 = vunpack.c.l.b16 %v3417
        %v3742 = vunpack.c.h.b16 %v3417
        %v3743 = vunpack.c.l.b16 %v3418
        %v3744 = vunpack.c.h.b16 %v3418
        %v3745 = vunpack.c.l.b16 %v3419
        %v3746 = vunpack.c.h.b16 %v3419
        %v3747 = vunpack.c.l.b16 %v3420
        %v3748 = vunpack.c.h.b16 %v3420
        %v3749 = vunpack.c.l.b16 %v3421
        %v3750 = vunpack.c.h.b16 %v3421
        %v3751 = vunpack.c.l.b16 %v3422
        %v3752 = vunpack.c.h.b16 %v3422
        %v3753 = vunpack.c.l.b16 %v3423
        %v3754 = vunpack.c.h.b16 %v3423
        %v3755 = vunpack.c.l.b16 %v3424
        %v3756 = vunpack.c.h.b16 %v3424
        %v3757 = vunpack.c.l.b16 %v3425
        %v3758 = vunpack.c.h.b16 %v3425
        %v3759 = vunpack.c.l.b16 %v3426
        %v3760 = vunpack.c.h.b16 %v3426
        %v3761 = vunpack.c.l.b16 %v3427
        %v3762 = vunpack.c.h.b16 %v3427
        %v3763 = vunpack.c.l.b16 %v3428
        %v3764 = vunpack.c.h.b16 %v3428
        %v3765 = vunpack.c.l.b16 %v3429
        %v3766 = vunpack.c.h.b16 %v3429
        %v3767 = vunpack.c.l.b16 %v3430
        %v3768 = vunpack.c.h.b16 %v3430
        %v3769 = vunpack.c.l.b16 %v3431
        %v3770 = vunpack.c.h.b16 %v3431
        %v3771 = vunpack.c.l.b16 %v3432
        %v3772 = vunpack.c.h.b16 %v3432
        %v3773 = vunpack.c.l.b16 %v3433
        %v3774 = vunpack.c.h.b16 %v3433
        %v3775 = vunpack.c.l.b16 %v3434
        %v3776 = vunpack.c.h.b16 %v3434
        %v3777 = vunpack.c.l.b16 %v3435
        %v3778 = vunpack.c.h.b16 %v3435
        %v3779 = vunpack.c.l.b16 %v3436
        %v3780 = vunpack.c.h.b16 %v3436
        %v3781 = vunpack.c.l.b16 %v3437
        %v3782 = vunpack.c.h.b16 %v3437
        %v3783 = vunpack.c.l.b16 %v3438
        %v3784 = vunpack.c.h.b16 %v3438
        %v3785 = vunpack.c.l.b16 %v3439
        %v3786 = vunpack.c.h.b16 %v3439
        %v3787 = vunpack.c.l.b16 %v3440
        %v3788 = vunpack.c.h.b16 %v3440
        %v3789 = vunpack.c.l.b16 %v3441
        %v3790 = vunpack.c.h.b16 %v3441
        %v3791 = vunpack.c.l.b16 %v3442
        %v3792 = vunpack.c.h.b16 %v3442
        %v3793 = vunpack.c.l.b16 %v3443
        %v3794 = vunpack.c.h.b16 %v3443
        %v3795 = vunpack.c.l.b16 %v3444
        %v3796 = vunpack.c.h.b16 %v3444
        %v3797 = vunpack.c.l.b16 %v3445
        %v3798 = vunpack.c.h.b16 %v3445
        %v3799 = vunpack.c.l.b16 %v3446
        %v3800 = vunpack.c.h.b16 %v3446
        %v3801 = vunpack.c.l.b16 %v3447
        %v3802 = vunpack.c.h.b16 %v3447
        %v3803 = vunpack.c.l.b16 %v3448
        %v3804 = vunpack.c.h.b16 %v3448
        %v3805 = vunpack.c.l.b16 %v3449
        %v3806 = vunpack.c.h.b16 %v3449
        %v3807 = vunpack.c.l.b16 %v3450
        %v3808 = vunpack.c.h.b16 %v3450
        %v3809 = vunpack.c.l.b16 %v3451
        %v3810 = vunpack.c.h.b16 %v3451
        %v3811 = vunpack.c.l.b16 %v3452
        %v3812 = vunpack.c.h.b16 %v3452
        %v3813 = vunpack.c.l.b16 %v3453
        %v3814 = vunpack.c.h.b16 %v3453
        %v3815 = vunpack.c.l.b16 %v3454
        %v3816 = vunpack.c.h.b16 %v3454
        %v3817 = vunpack.c.l.b16 %v3455
        %v3818 = vunpack.c.h.b16 %v3455
        %v3819 = vunpack.c.l.b16 %v3456
        %v3820 = vunpack.c.h.b16 %v3456
        %v3821 = vunpack.c.l.b16 %v3457
        %v3822 = vunpack.c.h.b16 %v3457
        %v3823 = vunpack.c.l.b16 %v3458
        %v3824 = vunpack.c.h.b16 %v3458
        %v3825 = vunpack.c.l.b16 %v3459
        %v3826 = vunpack.c.h.b16 %v3459
        %v3827 = vunpack.c.l.b16 %v3460
        %v3828 = vunpack.c.h.b16 %v3460
        %v3829 = vunpack.c.l.b16 %v3461
        %v3830 = vunpack.c.h.b16 %v3461
        %v3831 = vunpack.c.l.b16 %v3462
        %v3832 = vunpack.c.h.b16 %v3462
        %v3833 = vunpack.c.l.b16 %v3463
        %v3834 = vunpack.c.h.b16 %v3463
        %v3835 = vunpack.c.l.b16 %v3464
        %v3836 = vunpack.c.h.b16 %v3464
        %v3837 = vunpack.c.l.b16 %v3465
        %v3838 = vunpack.c.h.b16 %v3465
        %v3839 = vunpack.c.l.b16 %v3466
        %v3840 = vunpack.c.h.b16 %v3466
        %v3841 = vunpack.c.l.b16 %v3467
        %v3842 = vunpack.c.h.b16 %v3467
        %v3843 = vunpack.c.l.b16 %v3468
        %v3844 = vunpack.c.h.b16 %v3468
        %v3845 = vunpack.c.l.b16 %v3469
        %v3846 = vunpack.c.h.b16 %v3469
        %v3847 = vunpack.c.l.b16 %v3470
        %v3848 = vunpack.c.h.b16 %v3470
        %v3849 = vunpack.c.l.b16 %v3471
        %v3850 = vunpack.c.h.b16 %v3471
        %v3851 = vunpack.c.l.b16 %v3472
        %v3852 = vunpack.c.h.b16 %v3472
        %v3853 = vunpack.c.l.b16 %v3473
        %v3854 = vunpack.c.h.b16 %v3473
        %v3855 = vunpack.c.l.b16 %v3474
        %v3856 = vunpack.c.h.b16 %v3474
        %v3857 = vunpack.c.l.b16 %v3475
        %v3858 = vunpack.c.h.b16 %v3475
        %v3859 = vunpack.c.l.b16 %v3476
        %v3860 = vunpack.c.h.b16 %v3476
        %v3861 = vpack.c.b16 %v3609, %v3605
        %v3862 = vpack.c.b16 %v3610, %v3606
        %v3863 = vpack.c.b16 %v3611, %v3607
        %v3864 = vpack.c.b16 %v3612, %v3608
        %v3865 = vpack.c.b16 %v3617, %v3613
        %v3866 = vpack.c.b16 %v3618, %v3614
        %v3867 = vpack.c.b16 %v3619, %v3615
        %v3868 = vpack.c.b16 %v3620, %v3616
        %v3869 = vpack.c.b16 %v3625, %v3621
        %v3870 = vpack.c.b16 %v3626, %v3622
        %v3871 = vpack.c.b16 %v3627, %v3623
        %v3872 = vpack.c.b16 %v3628, %v3624
        %v3873 = vpack.c.b16 %v3633, %v3629
        %v3874 = vpack.c.b16 %v3634, %v3630
        %v3875 = vpack.c.b16 %v3635, %v3631
        %v3876 = vpack.c.b16 %v3636, %v3632
        %v3877 = vpack.c.b16 %v3641, %v3637
        %v3878 = vpack.c.b16 %v3642, %v3638
        %v3879 = vpack.c.b16 %v3643, %v3639
        %v3880 = vpack.c.b16 %v3644, %v3640
        %v3881 = vpack.c.b16 %v3649, %v3645
        %v3882 = vpack.c.b16 %v3650, %v3646
        %v3883 = vpack.c.b16 %v3651, %v3647
        %v3884 = vpack.c.b16 %v3652, %v3648
        %v3885 = vpack.c.b16 %v3657, %v3653
        %v3886 = vpack.c.b16 %v3658, %v3654
        %v3887 = vpack.c.b16 %v3659, %v3655
        %v3888 = vpack.c.b16 %v3660, %v3656
        %v3889 = vpack.c.b16 %v3665, %v3661
        %v3890 = vpack.c.b16 %v3666, %v3662
        %v3891 = vpack.c.b16 %v3667, %v3663
        %v3892 = vpack.c.b16 %v3668, %v3664
        %v3893 = vpack.c.b16 %v3673, %v3669
        %v3894 = vpack.c.b16 %v3674, %v3670
        %v3895 = vpack.c.b16 %v3675, %v3671
        %v3896 = vpack.c.b16 %v3676, %v3672
        %v3897 = vpack.c.b16 %v3681, %v3677
        %v3898 = vpack.c.b16 %v3682, %v3678
        %v3899 = vpack.c.b16 %v3683, %v3679
        %v3900 = vpack.c.b16 %v3684, %v3680
        %v3901 = vpack.c.b16 %v3689, %v3685
        %v3902 = vpack.c.b16 %v3690, %v3686
        %v3903 = vpack.c.b16 %v3691, %v3687
        %v3904 = vpack.c.b16 %v3692, %v3688
        %v3905 = vpack.c.b16 %v3697, %v3693
        %v3906 = vpack.c.b16 %v3698, %v3694
        %v3907 = vpack.c.b16 %v3699, %v3695
        %v3908 = vpack.c.b16 %v3700, %v3696
        %v3909 = vpack.c.b16 %v3705, %v3701
        %v3910 = vpack.c.b16 %v3706, %v3702
        %v3911 = vpack.c.b16 %v3707, %v3703
        %v3912 = vpack.c.b16 %v3708, %v3704
        %v3913 = vpack.c.b16 %v3713, %v3709
        %v3914 = vpack.c.b16 %v3714, %v3710
        %v3915 = vpack.c.b16 %v3715, %v3711
        %v3916 = vpack.c.b16 %v3716, %v3712
        %v3917 = vpack.c.b16 %v3721, %v3717
        %v3918 = vpack.c.b16 %v3722, %v3718
        %v3919 = vpack.c.b16 %v3723, %v3719
        %v3920 = vpack.c.b16 %v3724, %v3720
        %v3921 = vpack.c.b16 %v3729, %v3725
        %v3922 = vpack.c.b16 %v3730, %v3726
        %v3923 = vpack.c.b16 %v3731, %v3727
        %v3924 = vpack.c.b16 %v3732, %v3728
        %v3925 = vpack.c.b16 %v3737, %v3733
        %v3926 = vpack.c.b16 %v3738, %v3734
        %v3927 = vpack.c.b16 %v3739, %v3735
        %v3928 = vpack.c.b16 %v3740, %v3736
        %v3929 = vpack.c.b16 %v3745, %v3741
        %v3930 = vpack.c.b16 %v3746, %v3742
        %v3931 = vpack.c.b16 %v3747, %v3743
        %v3932 = vpack.c.b16 %v3748, %v3744
        %v3933 = vpack.c.b16 %v3753, %v3749
        %v3934 = vpack.c.b16 %v3754, %v3750
        %v3935 = vpack.c.b16 %v3755, %v3751
        %v3936 = vpack.c.b16 %v3756, %v3752
        %v3937 = vpack.c.b16 %v3761, %v3757
        %v3938 = vpack.c.b16 %v3762, %v3758
        %v3939 = vpack.c.b16 %v3763, %v3759
        %v3940 = vpack.c.b16 %v3764, %v3760
        %v3941 = vpack.c.b16 %v3769, %v3765
        %v3942 = vpack.c.b16 %v3770, %v3766
        %v3943 = vpack.c.b16 %v3771, %v3767
        %v3944 = vpack.c.b16 %v3772, %v3768
        %v3945 = vpack.c.b16 %v3777, %v3773
        %v3946 = vpack.c.b16 %v3778, %v3774
        %v3947 = vpack.c.b16 %v3779, %v3775
        %v3948 = vpack.c.b16 %v3780, %v3776
        %v3949 = vpack.c.b16 %v3785, %v3781
        %v3950 = vpack.c.b16 %v3786, %v3782
        %v3951 = vpack.c.b16 %v3787, %v3783
        %v3952 = vpack.c.b16 %v3788, %v3784
        %v3953 = vpack.c.b16 %v3793, %v3789
        %v3954 = vpack.c.b16 %v3794, %v3790
        %v3955 = vpack.c.b16 %v3795, %v3791
        %v3956 = vpack.c.b16 %v3796, %v3792
        %v3957 = vpack.c.b16 %v3801, %v3797
        %v3958 = vpack.c.b16 %v3802, %v3798
        %v3959 = vpack.c.b16 %v3803, %v3799
        %v3960 = vpack.c.b16 %v3804, %v3800
        %v3961 = vpack.c.b16 %v3809, %v3805
        %v3962 = vpack.c.b16 %v3810, %v3806
        %v3963 = vpack.c.b16 %v3811, %v3807
        %v3964 = vpack.c.b16 %v3812, %v3808
        %v3965 = vpack.c.b16 %v3817, %v3813
        %v3966 = vpack.c.b16 %v3818, %v3814
        %v3967 = vpack.c.b16 %v3819, %v3815
        %v3968 = vpack.c.b16 %v3820, %v3816
        %v3969 = vpack.c.b16 %v3825, %v3821
        %v3970 = vpack.c.b16 %v3826, %v3822
        %v3971 = vpack.c.b16 %v3827, %v3823
        %v3972 = vpack.c.b16 %v3828, %v3824
        %v3973 = vpack.c.b16 %v3833, %v3829
        %v3974 = vpack.c.b16 %v3834, %v3830
        %v3975 = vpack.c.b16 %v3835, %v3831
        %v3976 = vpack.c.b16 %v3836, %v3832
        %v3977 = vpack.c.b16 %v3841, %v3837
        %v3978 = vpack.c.b16 %v3842, %v3838
        %v3979 = vpack.c.b16 %v3843, %v3839
        %v3980 = vpack.c.b16 %v3844, %v3840
        %v3981 = vpack.c.b16 %v3849, %v3845
        %v3982 = vpack.c.b16 %v3850, %v3846
        %v3983 = vpack.c.b16 %v3851, %v3847
        %v3984 = vpack.c.b16 %v3852, %v3848
        %v3985 = vpack.c.b16 %v3857, %v3853
        %v3986 = vpack.c.b16 %v3858, %v3854
        %v3987 = vpack.c.b16 %v3859, %v3855
        %v3988 = vpack.c.b16 %v3860, %v3856
        %4117 = vmatprep.subr.bf16.mxu0 %v3862
        %4118 = vmatpush1.bf16.msra.mxu0 %v3861
        %4119 = vmatprep.subr.bf16.mxu0 %v3866
        %4120 = vmatpush1.bf16.msra.mxu0 %v3865
        %4121 = vmatprep.subr.bf16.mxu0 %v3870
        %4122 = vmatpush1.bf16.msra.mxu0 %v3869
        %4123 = vmatprep.subr.bf16.mxu0 %v3874
        %4124 = vmatpush1.bf16.msra.mxu0 %v3873
        %4125 = vmatprep.subr.bf16.mxu0 %v3878
        %4126 = vmatpush1.bf16.msra.mxu0 %v3877
        %4127 = vmatprep.subr.bf16.mxu0 %v3882
        %4128 = vmatpush1.bf16.msra.mxu0 %v3881
        %4129 = vmatprep.subr.bf16.mxu0 %v3886
        %4130 = vmatpush1.bf16.msra.mxu0 %v3885
        %4131 = vmatprep.subr.bf16.mxu0 %v3890
        %4132 = vmatpush1.bf16.msra.mxu0 %v3889
        %4133 = vmatprep.subr.bf16.mxu0 %v3894
        %4134 = vmatpush1.bf16.msra.mxu0 %v3893
        %4135 = vmatprep.subr.bf16.mxu0 %v3898
        %4136 = vmatpush1.bf16.msra.mxu0 %v3897
        %4137 = vmatprep.subr.bf16.mxu0 %v3902
        %4138 = vmatpush1.bf16.msra.mxu0 %v3901
        %4139 = vmatprep.subr.bf16.mxu0 %v3906
        %4140 = vmatpush1.bf16.msra.mxu0 %v3905
        %4141 = vmatprep.subr.bf16.mxu0 %v3910
        %4142 = vmatpush1.bf16.msra.mxu0 %v3909
        %4143 = vmatprep.subr.bf16.mxu0 %v3914
        %4144 = vmatpush1.bf16.msra.mxu0 %v3913
        %4145 = vmatprep.subr.bf16.mxu0 %v3918
        %4146 = vmatpush1.bf16.msra.mxu0 %v3917
        %4147 = vmatprep.subr.bf16.mxu0 %v3922
        %4148 = vmatpush1.bf16.msra.mxu0 %v3921
        %4149 = vmatprep.mubr.bf16.mxu0 %v2335
        %4150 = vmatmul.mubr.bf16.gmra.mrb[0].mxu0 %v2328
        %v4151 = vpop.f32.mrb[0].mxu0
        %v4152 = vadd.f32 0.0, %v4151
        %v4153 = vpop.f32.mrb[0].mxu0
        %v4154 = vadd.f32 0.0, %v4153
        %v4155 = vpop.f32.mrb[0].mxu0
        %v4156 = vpop.f32.mrb[0].mxu0
        %4157 = vdwg.mxu0
        %4158 = vmatprep.subr.bf16.mxu0 %v3926
        %4159 = vmatpush1.bf16.msra.mxu0 %v3925
        %4160 = vmatprep.subr.bf16.mxu0 %v3930
        %4161 = vmatpush1.bf16.msra.mxu0 %v3929
        %4162 = vmatprep.subr.bf16.mxu0 %v3934
        %4163 = vmatpush1.bf16.msra.mxu0 %v3933
        %4164 = vmatprep.subr.bf16.mxu0 %v3938
        %4165 = vmatpush1.bf16.msra.mxu0 %v3937
        %4166 = vmatprep.subr.bf16.mxu0 %v3942
        %4167 = vmatpush1.bf16.msra.mxu0 %v3941
        %4168 = vmatprep.subr.bf16.mxu0 %v3946
        %4169 = vmatpush1.bf16.msra.mxu0 %v3945
        %4170 = vmatprep.subr.bf16.mxu0 %v3950
        %4171 = vmatpush1.bf16.msra.mxu0 %v3949
        %4172 = vmatprep.subr.bf16.mxu0 %v3954
        %4173 = vmatpush1.bf16.msra.mxu0 %v3953
        %4174 = vmatprep.subr.bf16.mxu0 %v3958
        %4175 = vmatpush1.bf16.msra.mxu0 %v3957
        %4176 = vmatprep.subr.bf16.mxu0 %v3962
        %4177 = vmatpush1.bf16.msra.mxu0 %v3961
        %4178 = vmatprep.subr.bf16.mxu0 %v3966
        %4179 = vmatpush1.bf16.msra.mxu0 %v3965
        %4180 = vmatprep.subr.bf16.mxu0 %v3970
        %4181 = vmatpush1.bf16.msra.mxu0 %v3969
        %4182 = vmatprep.subr.bf16.mxu0 %v3974
        %4183 = vmatpush1.bf16.msra.mxu0 %v3973
        %4184 = vmatprep.subr.bf16.mxu0 %v3978
        %4185 = vmatpush1.bf16.msra.mxu0 %v3977
        %4186 = vmatprep.subr.bf16.mxu0 %v3982
        %4187 = vmatpush1.bf16.msra.mxu0 %v3981
        %4188 = vmatprep.subr.bf16.mxu0 %v3986
        %4189 = vmatpush1.bf16.msra.mxu0 %v3985
        %4190 = vmatprep.mubr.bf16.mxu0 %v2349
        %4191 = vmatmul.mubr.bf16.gmra.mrb[0].mxu0 %v2342
        %v4192 = vpop.f32.mrb[0].mxu0
        %v4193 = vadd.f32 %v4152, %v4192
        %v4194 = vpop.f32.mrb[0].mxu0
        %v4195 = vadd.f32 %v4154, %v4194
        %v4196 = vpop.f32.mrb[0].mxu0
        %v4197 = vpop.f32.mrb[0].mxu0
        %4198 = vdwg.mxu0
        %4199 = vmatprep.subr.bf16.mxu0 %v3864
        %4200 = vmatpush1.bf16.msra.mxu0 %v3863
        %4201 = vmatprep.subr.bf16.mxu0 %v3868
        %4202 = vmatpush1.bf16.msra.mxu0 %v3867
        %4203 = vmatprep.subr.bf16.mxu0 %v3872
        %4204 = vmatpush1.bf16.msra.mxu0 %v3871
        %4205 = vmatprep.subr.bf16.mxu0 %v3876
        %4206 = vmatpush1.bf16.msra.mxu0 %v3875
        %4207 = vmatprep.subr.bf16.mxu0 %v3880
        %4208 = vmatpush1.bf16.msra.mxu0 %v3879
        %4209 = vmatprep.subr.bf16.mxu0 %v3884
        %4210 = vmatpush1.bf16.msra.mxu0 %v3883
        %4211 = vmatprep.subr.bf16.mxu0 %v3888
        %4212 = vmatpush1.bf16.msra.mxu0 %v3887
        %4213 = vmatprep.subr.bf16.mxu0 %v3892
        %4214 = vmatpush1.bf16.msra.mxu0 %v3891
        %4215 = vmatprep.subr.bf16.mxu0 %v3896
        %4216 = vmatpush1.bf16.msra.mxu0 %v3895
        %4217 = vmatprep.subr.bf16.mxu0 %v3900
        %4218 = vmatpush1.bf16.msra.mxu0 %v3899
        %4219 = vmatprep.subr.bf16.mxu0 %v3904
        %4220 = vmatpush1.bf16.msra.mxu0 %v3903
        %4221 = vmatprep.subr.bf16.mxu0 %v3908
        %4222 = vmatpush1.bf16.msra.mxu0 %v3907
        %4223 = vmatprep.subr.bf16.mxu0 %v3912
        %4224 = vmatpush1.bf16.msra.mxu0 %v3911
        %4225 = vmatprep.subr.bf16.mxu0 %v3916
        %4226 = vmatpush1.bf16.msra.mxu0 %v3915
        %4227 = vmatprep.subr.bf16.mxu0 %v3920
        %4228 = vmatpush1.bf16.msra.mxu0 %v3919
        %4229 = vmatprep.subr.bf16.mxu0 %v3924
        %4230 = vmatpush1.bf16.msra.mxu0 %v3923
        %4231 = vmatprep.mubr.bf16.mxu0 %v2335
        %4232 = vmatmul.mubr.bf16.gmra.mrb[0].mxu0 %v2328
        %v4233 = vpop.f32.mrb[0].mxu0
        %v4234 = vadd.f32 0.0, %v4233
        %v4235 = vpop.f32.mrb[0].mxu0
        %v4236 = vadd.f32 0.0, %v4235
        %v4237 = vpop.f32.mrb[0].mxu0
        %v4238 = vpop.f32.mrb[0].mxu0
        %4239 = vdwg.mxu0
        %4240 = vmatprep.subr.bf16.mxu0 %v3928
        %4241 = vmatpush1.bf16.msra.mxu0 %v3927
        %4242 = vmatprep.subr.bf16.mxu0 %v3932
        %4243 = vmatpush1.bf16.msra.mxu0 %v3931
        %4244 = vmatprep.subr.bf16.mxu0 %v3936
        %4245 = vmatpush1.bf16.msra.mxu0 %v3935
        %4246 = vmatprep.subr.bf16.mxu0 %v3940
        %4247 = vmatpush1.bf16.msra.mxu0 %v3939
        %4248 = vmatprep.subr.bf16.mxu0 %v3944
        %4249 = vmatpush1.bf16.msra.mxu0 %v3943
        %4250 = vmatprep.subr.bf16.mxu0 %v3948
        %4251 = vmatpush1.bf16.msra.mxu0 %v3947
        %4252 = vmatprep.subr.bf16.mxu0 %v3952
        %4253 = vmatpush1.bf16.msra.mxu0 %v3951
        %4254 = vmatprep.subr.bf16.mxu0 %v3956
        %4255 = vmatpush1.bf16.msra.mxu0 %v3955
        %4256 = vmatprep.subr.bf16.mxu0 %v3960
        %4257 = vmatpush1.bf16.msra.mxu0 %v3959
        %4258 = vmatprep.subr.bf16.mxu0 %v3964
        %4259 = vmatpush1.bf16.msra.mxu0 %v3963
        %4260 = vmatprep.subr.bf16.mxu0 %v3968
        %4261 = vmatpush1.bf16.msra.mxu0 %v3967
        %4262 = vmatprep.subr.bf16.mxu0 %v3972
        %4263 = vmatpush1.bf16.msra.mxu0 %v3971
        %4264 = vmatprep.subr.bf16.mxu0 %v3976
        %4265 = vmatpush1.bf16.msra.mxu0 %v3975
        %4266 = vmatprep.subr.bf16.mxu0 %v3980
        %4267 = vmatpush1.bf16.msra.mxu0 %v3979
        %4268 = vmatprep.subr.bf16.mxu0 %v3984
        %4269 = vmatpush1.bf16.msra.mxu0 %v3983
        %4270 = vmatprep.subr.bf16.mxu0 %v3988
        %4271 = vmatpush1.bf16.msra.mxu0 %v3987
        %4272 = vmatprep.mubr.bf16.mxu0 %v2349
        %4273 = vmatmul.mubr.bf16.gmra.mrb[0].mxu0 %v2342
        %v4274 = vpop.f32.mrb[0].mxu0
        %v4275 = vadd.f32 %v4234, %v4274
        %v4276 = vpop.f32.mrb[0].mxu0
        %v4277 = vadd.f32 %v4236, %v4276
        %v4278 = vpop.f32.mrb[0].mxu0
        %v4279 = vpop.f32.mrb[0].mxu0
        %4280 = vdwg.mxu0
        %v4285 = vrot.slane %v3216, 1
        %v4286 = vrot.slane %v3217, 1
        %v4287 = vrot.slane %v3218, 1
        %v4288 = vrot.slane %v3219, 1
        %v4421 = vunpack.c.l.b16 %v3220
        %v4422 = vunpack.c.h.b16 %v3220
        %v4423 = vunpack.c.l.b16 %v3221
        %v4424 = vunpack.c.h.b16 %v3221
        %v4425 = vunpack.c.l.b16 %v3222
        %v4426 = vunpack.c.h.b16 %v3222
        %v4427 = vunpack.c.l.b16 %v3223
        %v4428 = vunpack.c.h.b16 %v3223
        %v4429 = vunpack.c.l.b16 %v3224
        %v4430 = vunpack.c.h.b16 %v3224
        %v4431 = vunpack.c.l.b16 %v3225
        %v4432 = vunpack.c.h.b16 %v3225
        %v4433 = vunpack.c.l.b16 %v3226
        %v4434 = vunpack.c.h.b16 %v3226
        %v4435 = vunpack.c.l.b16 %v3227
        %v4436 = vunpack.c.h.b16 %v3227
        %v4437 = vunpack.c.l.b16 %v3228
        %v4438 = vunpack.c.h.b16 %v3228
        %v4439 = vunpack.c.l.b16 %v3229
        %v4440 = vunpack.c.h.b16 %v3229
        %v4441 = vunpack.c.l.b16 %v3230
        %v4442 = vunpack.c.h.b16 %v3230
        %v4443 = vunpack.c.l.b16 %v3231
        %v4444 = vunpack.c.h.b16 %v3231
        %v4445 = vunpack.c.l.b16 %v3232
        %v4446 = vunpack.c.h.b16 %v3232
        %v4447 = vunpack.c.l.b16 %v3233
        %v4448 = vunpack.c.h.b16 %v3233
        %v4449 = vunpack.c.l.b16 %v3234
        %v4450 = vunpack.c.h.b16 %v3234
        %v4451 = vunpack.c.l.b16 %v3235
        %v4452 = vunpack.c.h.b16 %v3235
        %v4453 = vunpack.c.l.b16 %v3236
        %v4454 = vunpack.c.h.b16 %v3236
        %v4455 = vunpack.c.l.b16 %v3237
        %v4456 = vunpack.c.h.b16 %v3237
        %v4457 = vunpack.c.l.b16 %v3238
        %v4458 = vunpack.c.h.b16 %v3238
        %v4459 = vunpack.c.l.b16 %v3239
        %v4460 = vunpack.c.h.b16 %v3239
        %v4461 = vunpack.c.l.b16 %v3240
        %v4462 = vunpack.c.h.b16 %v3240
        %v4463 = vunpack.c.l.b16 %v3241
        %v4464 = vunpack.c.h.b16 %v3241
        %v4465 = vunpack.c.l.b16 %v3242
        %v4466 = vunpack.c.h.b16 %v3242
        %v4467 = vunpack.c.l.b16 %v3243
        %v4468 = vunpack.c.h.b16 %v3243
        %v4469 = vunpack.c.l.b16 %v3244
        %v4470 = vunpack.c.h.b16 %v3244
        %v4471 = vunpack.c.l.b16 %v3245
        %v4472 = vunpack.c.h.b16 %v3245
        %v4473 = vunpack.c.l.b16 %v3246
        %v4474 = vunpack.c.h.b16 %v3246
        %v4475 = vunpack.c.l.b16 %v3247
        %v4476 = vunpack.c.h.b16 %v3247
        %v4477 = vunpack.c.l.b16 %v3248
        %v4478 = vunpack.c.h.b16 %v3248
        %v4479 = vunpack.c.l.b16 %v3249
        %v4480 = vunpack.c.h.b16 %v3249
        %v4481 = vunpack.c.l.b16 %v3250
        %v4482 = vunpack.c.h.b16 %v3250
        %v4483 = vunpack.c.l.b16 %v3251
        %v4484 = vunpack.c.h.b16 %v3251
        %v4485 = vunpack.c.l.b16 %v3252
        %v4486 = vunpack.c.h.b16 %v3252
        %v4487 = vunpack.c.l.b16 %v3253
        %v4488 = vunpack.c.h.b16 %v3253
        %v4489 = vunpack.c.l.b16 %v3254
        %v4490 = vunpack.c.h.b16 %v3254
        %v4491 = vunpack.c.l.b16 %v3255
        %v4492 = vunpack.c.h.b16 %v3255
        %v4493 = vunpack.c.l.b16 %v3256
        %v4494 = vunpack.c.h.b16 %v3256
        %v4495 = vunpack.c.l.b16 %v3257
        %v4496 = vunpack.c.h.b16 %v3257
        %v4497 = vunpack.c.l.b16 %v3258
        %v4498 = vunpack.c.h.b16 %v3258
        %v4499 = vunpack.c.l.b16 %v3259
        %v4500 = vunpack.c.h.b16 %v3259
        %v4501 = vunpack.c.l.b16 %v3260
        %v4502 = vunpack.c.h.b16 %v3260
        %v4503 = vunpack.c.l.b16 %v3261
        %v4504 = vunpack.c.h.b16 %v3261
        %v4505 = vunpack.c.l.b16 %v3262
        %v4506 = vunpack.c.h.b16 %v3262
        %v4507 = vunpack.c.l.b16 %v3263
        %v4508 = vunpack.c.h.b16 %v3263
        %v4509 = vunpack.c.l.b16 %v3264
        %v4510 = vunpack.c.h.b16 %v3264
        %v4511 = vunpack.c.l.b16 %v3265
        %v4512 = vunpack.c.h.b16 %v3265
        %v4513 = vunpack.c.l.b16 %v3266
        %v4514 = vunpack.c.h.b16 %v3266
        %v4515 = vunpack.c.l.b16 %v3267
        %v4516 = vunpack.c.h.b16 %v3267
        %v4517 = vunpack.c.l.b16 %v3268
        %v4518 = vunpack.c.h.b16 %v3268
        %v4519 = vunpack.c.l.b16 %v3269
        %v4520 = vunpack.c.h.b16 %v3269
        %v4521 = vunpack.c.l.b16 %v3270
        %v4522 = vunpack.c.h.b16 %v3270
        %v4523 = vunpack.c.l.b16 %v3271
        %v4524 = vunpack.c.h.b16 %v3271
        %v4525 = vunpack.c.l.b16 %v3272
        %v4526 = vunpack.c.h.b16 %v3272
        %v4527 = vunpack.c.l.b16 %v3273
        %v4528 = vunpack.c.h.b16 %v3273
        %v4529 = vunpack.c.l.b16 %v3274
        %v4530 = vunpack.c.h.b16 %v3274
        %v4531 = vunpack.c.l.b16 %v3275
        %v4532 = vunpack.c.h.b16 %v3275
        %v4533 = vunpack.c.l.b16 %v3276
        %v4534 = vunpack.c.h.b16 %v3276
        %v4535 = vunpack.c.l.b16 %v3277
        %v4536 = vunpack.c.h.b16 %v3277
        %v4537 = vunpack.c.l.b16 %v3278
        %v4538 = vunpack.c.h.b16 %v3278
        %v4539 = vunpack.c.l.b16 %v3279
        %v4540 = vunpack.c.h.b16 %v3279
        %v4541 = vunpack.c.l.b16 %v3280
        %v4542 = vunpack.c.h.b16 %v3280
        %v4543 = vunpack.c.l.b16 %v3281
        %v4544 = vunpack.c.h.b16 %v3281
        %v4545 = vunpack.c.l.b16 %v3282
        %v4546 = vunpack.c.h.b16 %v3282
        %v4547 = vunpack.c.l.b16 %v3283
        %v4548 = vunpack.c.h.b16 %v3283
        %v4549 = vunpack.c.l.b16 %v3284
        %v4550 = vunpack.c.h.b16 %v3284
        %v4551 = vunpack.c.l.b16 %v3285
        %v4552 = vunpack.c.h.b16 %v3285
        %v4553 = vunpack.c.l.b16 %v3286
        %v4554 = vunpack.c.h.b16 %v3286
        %v4555 = vunpack.c.l.b16 %v3287
        %v4556 = vunpack.c.h.b16 %v3287
        %v4557 = vunpack.c.l.b16 %v3288
        %v4558 = vunpack.c.h.b16 %v3288
        %v4559 = vunpack.c.l.b16 %v3289
        %v4560 = vunpack.c.h.b16 %v3289
        %v4561 = vunpack.c.l.b16 %v3290
        %v4562 = vunpack.c.h.b16 %v3290
        %v4563 = vunpack.c.l.b16 %v3291
        %v4564 = vunpack.c.h.b16 %v3291
        %v4565 = vunpack.c.l.b16 %v3292
        %v4566 = vunpack.c.h.b16 %v3292
        %v4567 = vunpack.c.l.b16 %v3293
        %v4568 = vunpack.c.h.b16 %v3293
        %v4569 = vunpack.c.l.b16 %v3294
        %v4570 = vunpack.c.h.b16 %v3294
        %v4571 = vunpack.c.l.b16 %v3295
        %v4572 = vunpack.c.h.b16 %v3295
        %v4573 = vunpack.c.l.b16 %v3296
        %v4574 = vunpack.c.h.b16 %v3296
        %v4575 = vunpack.c.l.b16 %v3297
        %v4576 = vunpack.c.h.b16 %v3297
        %v4577 = vunpack.c.l.b16 %v3298
        %v4578 = vunpack.c.h.b16 %v3298
        %v4579 = vunpack.c.l.b16 %v3299
        %v4580 = vunpack.c.h.b16 %v3299
        %v4581 = vunpack.c.l.b16 %v3300
        %v4582 = vunpack.c.h.b16 %v3300
        %v4583 = vunpack.c.l.b16 %v3301
        %v4584 = vunpack.c.h.b16 %v3301
        %v4585 = vunpack.c.l.b16 %v3302
        %v4586 = vunpack.c.h.b16 %v3302
        %v4587 = vunpack.c.l.b16 %v3303
        %v4588 = vunpack.c.h.b16 %v3303
        %v4589 = vunpack.c.l.b16 %v3304
        %v4590 = vunpack.c.h.b16 %v3304
        %v4591 = vunpack.c.l.b16 %v3305
        %v4592 = vunpack.c.h.b16 %v3305
        %v4593 = vunpack.c.l.b16 %v3306
        %v4594 = vunpack.c.h.b16 %v3306
        %v4595 = vunpack.c.l.b16 %v3307
        %v4596 = vunpack.c.h.b16 %v3307
        %v4597 = vunpack.c.l.b16 %v3308
        %v4598 = vunpack.c.h.b16 %v3308
        %v4599 = vunpack.c.l.b16 %v3309
        %v4600 = vunpack.c.h.b16 %v3309
        %v4601 = vunpack.c.l.b16 %v3310
        %v4602 = vunpack.c.h.b16 %v3310
        %v4603 = vunpack.c.l.b16 %v3311
        %v4604 = vunpack.c.h.b16 %v3311
        %v4605 = vunpack.c.l.b16 %v3312
        %v4606 = vunpack.c.h.b16 %v3312
        %v4607 = vunpack.c.l.b16 %v3313
        %v4608 = vunpack.c.h.b16 %v3313
        %v4609 = vunpack.c.l.b16 %v3314
        %v4610 = vunpack.c.h.b16 %v3314
        %v4611 = vunpack.c.l.b16 %v3315
        %v4612 = vunpack.c.h.b16 %v3315
        %v4613 = vunpack.c.l.b16 %v3316
        %v4614 = vunpack.c.h.b16 %v3316
        %v4615 = vunpack.c.l.b16 %v3317
        %v4616 = vunpack.c.h.b16 %v3317
        %v4617 = vunpack.c.l.b16 %v3318
        %v4618 = vunpack.c.h.b16 %v3318
        %v4619 = vunpack.c.l.b16 %v3319
        %v4620 = vunpack.c.h.b16 %v3319
        %v4621 = vunpack.c.l.b16 %v3320
        %v4622 = vunpack.c.h.b16 %v3320
        %v4623 = vunpack.c.l.b16 %v3321
        %v4624 = vunpack.c.h.b16 %v3321
        %v4625 = vunpack.c.l.b16 %v3322
        %v4626 = vunpack.c.h.b16 %v3322
        %v4627 = vunpack.c.l.b16 %v3323
        %v4628 = vunpack.c.h.b16 %v3323
        %v4629 = vunpack.c.l.b16 %v3324
        %v4630 = vunpack.c.h.b16 %v3324
        %v4631 = vunpack.c.l.b16 %v3325
        %v4632 = vunpack.c.h.b16 %v3325
        %v4633 = vunpack.c.l.b16 %v3326
        %v4634 = vunpack.c.h.b16 %v3326
        %v4635 = vunpack.c.l.b16 %v3327
        %v4636 = vunpack.c.h.b16 %v3327
        %v4637 = vunpack.c.l.b16 %v3328
        %v4638 = vunpack.c.h.b16 %v3328
        %v4639 = vunpack.c.l.b16 %v3329
        %v4640 = vunpack.c.h.b16 %v3329
        %v4641 = vunpack.c.l.b16 %v3330
        %v4642 = vunpack.c.h.b16 %v3330
        %v4643 = vunpack.c.l.b16 %v3331
        %v4644 = vunpack.c.h.b16 %v3331
        %v4645 = vunpack.c.l.b16 %v3332
        %v4646 = vunpack.c.h.b16 %v3332
        %v4647 = vunpack.c.l.b16 %v3333
        %v4648 = vunpack.c.h.b16 %v3333
        %v4649 = vunpack.c.l.b16 %v3334
        %v4650 = vunpack.c.h.b16 %v3334
        %v4651 = vunpack.c.l.b16 %v3335
        %v4652 = vunpack.c.h.b16 %v3335
        %v4653 = vunpack.c.l.b16 %v3336
        %v4654 = vunpack.c.h.b16 %v3336
        %v4655 = vunpack.c.l.b16 %v3337
        %v4656 = vunpack.c.h.b16 %v3337
        %v4657 = vunpack.c.l.b16 %v3338
        %v4658 = vunpack.c.h.b16 %v3338
        %v4659 = vunpack.c.l.b16 %v3339
        %v4660 = vunpack.c.h.b16 %v3339
        %v4661 = vunpack.c.l.b16 %v3340
        %v4662 = vunpack.c.h.b16 %v3340
        %v4663 = vunpack.c.l.b16 %v3341
        %v4664 = vunpack.c.h.b16 %v3341
        %v4665 = vunpack.c.l.b16 %v3342
        %v4666 = vunpack.c.h.b16 %v3342
        %v4667 = vunpack.c.l.b16 %v3343
        %v4668 = vunpack.c.h.b16 %v3343
        %v4669 = vunpack.c.l.b16 %v3344
        %v4670 = vunpack.c.h.b16 %v3344
        %v4671 = vunpack.c.l.b16 %v3345
        %v4672 = vunpack.c.h.b16 %v3345
        %v4673 = vunpack.c.l.b16 %v3346
        %v4674 = vunpack.c.h.b16 %v3346
        %v4675 = vunpack.c.l.b16 %v3347
        %v4676 = vunpack.c.h.b16 %v3347
        %v4677 = vpack.c.b16 %v4425, %v4421
        %v4678 = vpack.c.b16 %v4426, %v4422
        %v4679 = vpack.c.b16 %v4427, %v4423
        %v4680 = vpack.c.b16 %v4428, %v4424
        %v4681 = vpack.c.b16 %v4433, %v4429
        %v4682 = vpack.c.b16 %v4434, %v4430
        %v4683 = vpack.c.b16 %v4435, %v4431
        %v4684 = vpack.c.b16 %v4436, %v4432
        %v4685 = vpack.c.b16 %v4441, %v4437
        %v4686 = vpack.c.b16 %v4442, %v4438
        %v4687 = vpack.c.b16 %v4443, %v4439
        %v4688 = vpack.c.b16 %v4444, %v4440
        %v4689 = vpack.c.b16 %v4449, %v4445
        %v4690 = vpack.c.b16 %v4450, %v4446
        %v4691 = vpack.c.b16 %v4451, %v4447
        %v4692 = vpack.c.b16 %v4452, %v4448
        %v4693 = vpack.c.b16 %v4457, %v4453
        %v4694 = vpack.c.b16 %v4458, %v4454
        %v4695 = vpack.c.b16 %v4459, %v4455
        %v4696 = vpack.c.b16 %v4460, %v4456
        %v4697 = vpack.c.b16 %v4465, %v4461
        %v4698 = vpack.c.b16 %v4466, %v4462
        %v4699 = vpack.c.b16 %v4467, %v4463
        %v4700 = vpack.c.b16 %v4468, %v4464
        %v4701 = vpack.c.b16 %v4473, %v4469
        %v4702 = vpack.c.b16 %v4474, %v4470
        %v4703 = vpack.c.b16 %v4475, %v4471
        %v4704 = vpack.c.b16 %v4476, %v4472
        %v4705 = vpack.c.b16 %v4481, %v4477
        %v4706 = vpack.c.b16 %v4482, %v4478
        %v4707 = vpack.c.b16 %v4483, %v4479
        %v4708 = vpack.c.b16 %v4484, %v4480
        %v4709 = vpack.c.b16 %v4489, %v4485
        %v4710 = vpack.c.b16 %v4490, %v4486
        %v4711 = vpack.c.b16 %v4491, %v4487
        %v4712 = vpack.c.b16 %v4492, %v4488
        %v4713 = vpack.c.b16 %v4497, %v4493
        %v4714 = vpack.c.b16 %v4498, %v4494
        %v4715 = vpack.c.b16 %v4499, %v4495
        %v4716 = vpack.c.b16 %v4500, %v4496
        %v4717 = vpack.c.b16 %v4505, %v4501
        %v4718 = vpack.c.b16 %v4506, %v4502
        %v4719 = vpack.c.b16 %v4507, %v4503
        %v4720 = vpack.c.b16 %v4508, %v4504
        %v4721 = vpack.c.b16 %v4513, %v4509
        %v4722 = vpack.c.b16 %v4514, %v4510
        %v4723 = vpack.c.b16 %v4515, %v4511
        %v4724 = vpack.c.b16 %v4516, %v4512
        %v4725 = vpack.c.b16 %v4521, %v4517
        %v4726 = vpack.c.b16 %v4522, %v4518
        %v4727 = vpack.c.b16 %v4523, %v4519
        %v4728 = vpack.c.b16 %v4524, %v4520
        %v4729 = vpack.c.b16 %v4529, %v4525
        %v4730 = vpack.c.b16 %v4530, %v4526
        %v4731 = vpack.c.b16 %v4531, %v4527
        %v4732 = vpack.c.b16 %v4532, %v4528
        %v4733 = vpack.c.b16 %v4537, %v4533
        %v4734 = vpack.c.b16 %v4538, %v4534
        %v4735 = vpack.c.b16 %v4539, %v4535
        %v4736 = vpack.c.b16 %v4540, %v4536
        %v4737 = vpack.c.b16 %v4545, %v4541
        %v4738 = vpack.c.b16 %v4546, %v4542
        %v4739 = vpack.c.b16 %v4547, %v4543
        %v4740 = vpack.c.b16 %v4548, %v4544
        %v4741 = vpack.c.b16 %v4553, %v4549
        %v4742 = vpack.c.b16 %v4554, %v4550
        %v4743 = vpack.c.b16 %v4555, %v4551
        %v4744 = vpack.c.b16 %v4556, %v4552
        %v4745 = vpack.c.b16 %v4561, %v4557
        %v4746 = vpack.c.b16 %v4562, %v4558
        %v4747 = vpack.c.b16 %v4563, %v4559
        %v4748 = vpack.c.b16 %v4564, %v4560
        %v4749 = vpack.c.b16 %v4569, %v4565
        %v4750 = vpack.c.b16 %v4570, %v4566
        %v4751 = vpack.c.b16 %v4571, %v4567
        %v4752 = vpack.c.b16 %v4572, %v4568
        %v4753 = vpack.c.b16 %v4577, %v4573
        %v4754 = vpack.c.b16 %v4578, %v4574
        %v4755 = vpack.c.b16 %v4579, %v4575
        %v4756 = vpack.c.b16 %v4580, %v4576
        %v4757 = vpack.c.b16 %v4585, %v4581
        %v4758 = vpack.c.b16 %v4586, %v4582
        %v4759 = vpack.c.b16 %v4587, %v4583
        %v4760 = vpack.c.b16 %v4588, %v4584
        %v4761 = vpack.c.b16 %v4593, %v4589
        %v4762 = vpack.c.b16 %v4594, %v4590
        %v4763 = vpack.c.b16 %v4595, %v4591
        %v4764 = vpack.c.b16 %v4596, %v4592
        %v4765 = vpack.c.b16 %v4601, %v4597
        %v4766 = vpack.c.b16 %v4602, %v4598
        %v4767 = vpack.c.b16 %v4603, %v4599
        %v4768 = vpack.c.b16 %v4604, %v4600
        %v4769 = vpack.c.b16 %v4609, %v4605
        %v4770 = vpack.c.b16 %v4610, %v4606
        %v4771 = vpack.c.b16 %v4611, %v4607
        %v4772 = vpack.c.b16 %v4612, %v4608
        %v4773 = vpack.c.b16 %v4617, %v4613
        %v4774 = vpack.c.b16 %v4618, %v4614
        %v4775 = vpack.c.b16 %v4619, %v4615
        %v4776 = vpack.c.b16 %v4620, %v4616
        %v4777 = vpack.c.b16 %v4625, %v4621
        %v4778 = vpack.c.b16 %v4626, %v4622
        %v4779 = vpack.c.b16 %v4627, %v4623
        %v4780 = vpack.c.b16 %v4628, %v4624
        %v4781 = vpack.c.b16 %v4633, %v4629
        %v4782 = vpack.c.b16 %v4634, %v4630
        %v4783 = vpack.c.b16 %v4635, %v4631
        %v4784 = vpack.c.b16 %v4636, %v4632
        %v4785 = vpack.c.b16 %v4641, %v4637
        %v4786 = vpack.c.b16 %v4642, %v4638
        %v4787 = vpack.c.b16 %v4643, %v4639
        %v4788 = vpack.c.b16 %v4644, %v4640
        %v4789 = vpack.c.b16 %v4649, %v4645
        %v4790 = vpack.c.b16 %v4650, %v4646
        %v4791 = vpack.c.b16 %v4651, %v4647
        %v4792 = vpack.c.b16 %v4652, %v4648
        %v4793 = vpack.c.b16 %v4657, %v4653
        %v4794 = vpack.c.b16 %v4658, %v4654
        %v4795 = vpack.c.b16 %v4659, %v4655
        %v4796 = vpack.c.b16 %v4660, %v4656
        %v4797 = vpack.c.b16 %v4665, %v4661
        %v4798 = vpack.c.b16 %v4666, %v4662
        %v4799 = vpack.c.b16 %v4667, %v4663
        %v4800 = vpack.c.b16 %v4668, %v4664
        %v4801 = vpack.c.b16 %v4673, %v4669
        %v4802 = vpack.c.b16 %v4674, %v4670
        %v4803 = vpack.c.b16 %v4675, %v4671
        %v4804 = vpack.c.b16 %v4676, %v4672
        %4933 = vmatprep.subr.bf16.mxu0 %v4678
        %4934 = vmatpush1.bf16.msra.mxu0 %v4677
        %4935 = vmatprep.subr.bf16.mxu0 %v4682
        %4936 = vmatpush1.bf16.msra.mxu0 %v4681
        %4937 = vmatprep.subr.bf16.mxu0 %v4686
        %4938 = vmatpush1.bf16.msra.mxu0 %v4685
        %4939 = vmatprep.subr.bf16.mxu0 %v4690
        %4940 = vmatpush1.bf16.msra.mxu0 %v4689
        %4941 = vmatprep.subr.bf16.mxu0 %v4694
        %4942 = vmatpush1.bf16.msra.mxu0 %v4693
        %4943 = vmatprep.subr.bf16.mxu0 %v4698
        %4944 = vmatpush1.bf16.msra.mxu0 %v4697
        %4945 = vmatprep.subr.bf16.mxu0 %v4702
        %4946 = vmatpush1.bf16.msra.mxu0 %v4701
        %4947 = vmatprep.subr.bf16.mxu0 %v4706
        %4948 = vmatpush1.bf16.msra.mxu0 %v4705
        %4949 = vmatprep.subr.bf16.mxu0 %v4710
        %4950 = vmatpush1.bf16.msra.mxu0 %v4709
        %4951 = vmatprep.subr.bf16.mxu0 %v4714
        %4952 = vmatpush1.bf16.msra.mxu0 %v4713
        %4953 = vmatprep.subr.bf16.mxu0 %v4718
        %4954 = vmatpush1.bf16.msra.mxu0 %v4717
        %4955 = vmatprep.subr.bf16.mxu0 %v4722
        %4956 = vmatpush1.bf16.msra.mxu0 %v4721
        %4957 = vmatprep.subr.bf16.mxu0 %v4726
        %4958 = vmatpush1.bf16.msra.mxu0 %v4725
        %4959 = vmatprep.subr.bf16.mxu0 %v4730
        %4960 = vmatpush1.bf16.msra.mxu0 %v4729
        %4961 = vmatprep.subr.bf16.mxu0 %v4734
        %4962 = vmatpush1.bf16.msra.mxu0 %v4733
        %4963 = vmatprep.subr.bf16.mxu0 %v4738
        %4964 = vmatpush1.bf16.msra.mxu0 %v4737
        %4965 = vmatprep.mubr.bf16.mxu0 %v4286
        %4966 = vmatmul.mubr.bf16.gmra.mrb[0].mxu0 %v4285
        %v4967 = vpop.f32.mrb[0].mxu0
        %v4968 = vadd.f32 %v4193, %v4967
        %v4969 = vpop.f32.mrb[0].mxu0
        %v4970 = vadd.f32 %v4195, %v4969
        %v4971 = vpop.f32.mrb[0].mxu0
        %v4972 = vpop.f32.mrb[0].mxu0
        %4973 = vdwg.mxu0
        %4974 = vmatprep.subr.bf16.mxu0 %v4742
        %4975 = vmatpush1.bf16.msra.mxu0 %v4741
        %4976 = vmatprep.subr.bf16.mxu0 %v4746
        %4977 = vmatpush1.bf16.msra.mxu0 %v4745
        %4978 = vmatprep.subr.bf16.mxu0 %v4750
        %4979 = vmatpush1.bf16.msra.mxu0 %v4749
        %4980 = vmatprep.subr.bf16.mxu0 %v4754
        %4981 = vmatpush1.bf16.msra.mxu0 %v4753
        %4982 = vmatprep.subr.bf16.mxu0 %v4758
        %4983 = vmatpush1.bf16.msra.mxu0 %v4757
        %4984 = vmatprep.subr.bf16.mxu0 %v4762
        %4985 = vmatpush1.bf16.msra.mxu0 %v4761
        %4986 = vmatprep.subr.bf16.mxu0 %v4766
        %4987 = vmatpush1.bf16.msra.mxu0 %v4765
        %4988 = vmatprep.subr.bf16.mxu0 %v4770
        %4989 = vmatpush1.bf16.msra.mxu0 %v4769
        %4990 = vmatprep.subr.bf16.mxu0 %v4774
        %4991 = vmatpush1.bf16.msra.mxu0 %v4773
        %4992 = vmatprep.subr.bf16.mxu0 %v4778
        %4993 = vmatpush1.bf16.msra.mxu0 %v4777
        %4994 = vmatprep.subr.bf16.mxu0 %v4782
        %4995 = vmatpush1.bf16.msra.mxu0 %v4781
        %4996 = vmatprep.subr.bf16.mxu0 %v4786
        %4997 = vmatpush1.bf16.msra.mxu0 %v4785
        %4998 = vmatprep.subr.bf16.mxu0 %v4790
        %4999 = vmatpush1.bf16.msra.mxu0 %v4789
        %5000 = vmatprep.subr.bf16.mxu0 %v4794
        %5001 = vmatpush1.bf16.msra.mxu0 %v4793
        %5002 = vmatprep.subr.bf16.mxu0 %v4798
        %5003 = vmatpush1.bf16.msra.mxu0 %v4797
        %5004 = vmatprep.subr.bf16.mxu0 %v4802
        %5005 = vmatpush1.bf16.msra.mxu0 %v4801
        %5006 = vmatprep.mubr.bf16.mxu0 %v4288
        %5007 = vmatmul.mubr.bf16.gmra.mrb[0].mxu0 %v4287
        %v5008 = vpop.f32.mrb[0].mxu0
        %v5009 = vadd.f32 %v4968, %v5008
        %v5010 = vpop.f32.mrb[0].mxu0
        %v5011 = vadd.f32 %v4970, %v5010
        %v5012 = vpop.f32.mrb[0].mxu0
        %v5013 = vpop.f32.mrb[0].mxu0
        %5014 = vdwg.mxu0
        %5015 = vmatprep.subr.bf16.mxu0 %v4680
        %5016 = vmatpush1.bf16.msra.mxu0 %v4679
        %5017 = vmatprep.subr.bf16.mxu0 %v4684
        %5018 = vmatpush1.bf16.msra.mxu0 %v4683
        %5019 = vmatprep.subr.bf16.mxu0 %v4688
        %5020 = vmatpush1.bf16.msra.mxu0 %v4687
        %5021 = vmatprep.subr.bf16.mxu0 %v4692
        %5022 = vmatpush1.bf16.msra.mxu0 %v4691
        %5023 = vmatprep.subr.bf16.mxu0 %v4696
        %5024 = vmatpush1.bf16.msra.mxu0 %v4695
        %5025 = vmatprep.subr.bf16.mxu0 %v4700
        %5026 = vmatpush1.bf16.msra.mxu0 %v4699
        %5027 = vmatprep.subr.bf16.mxu0 %v4704
        %5028 = vmatpush1.bf16.msra.mxu0 %v4703
        %5029 = vmatprep.subr.bf16.mxu0 %v4708
        %5030 = vmatpush1.bf16.msra.mxu0 %v4707
        %5031 = vmatprep.subr.bf16.mxu0 %v4712
        %5032 = vmatpush1.bf16.msra.mxu0 %v4711
        %5033 = vmatprep.subr.bf16.mxu0 %v4716
        %5034 = vmatpush1.bf16.msra.mxu0 %v4715
        %5035 = vmatprep.subr.bf16.mxu0 %v4720
        %5036 = vmatpush1.bf16.msra.mxu0 %v4719
        %5037 = vmatprep.subr.bf16.mxu0 %v4724
        %5038 = vmatpush1.bf16.msra.mxu0 %v4723
        %5039 = vmatprep.subr.bf16.mxu0 %v4728
        %5040 = vmatpush1.bf16.msra.mxu0 %v4727
        %5041 = vmatprep.subr.bf16.mxu0 %v4732
        %5042 = vmatpush1.bf16.msra.mxu0 %v4731
        %5043 = vmatprep.subr.bf16.mxu0 %v4736
        %5044 = vmatpush1.bf16.msra.mxu0 %v4735
        %5045 = vmatprep.subr.bf16.mxu0 %v4740
        %5046 = vmatpush1.bf16.msra.mxu0 %v4739
        %5047 = vmatprep.mubr.bf16.mxu0 %v4286
        %5048 = vmatmul.mubr.bf16.gmra.mrb[0].mxu0 %v4285
        %v5049 = vpop.f32.mrb[0].mxu0
        %v5050 = vadd.f32 %v4275, %v5049
        %v5051 = vpop.f32.mrb[0].mxu0
        %v5052 = vadd.f32 %v4277, %v5051
        %v5053 = vpop.f32.mrb[0].mxu0
        %v5054 = vpop.f32.mrb[0].mxu0
        %5055 = vdwg.mxu0
        %5056 = vmatprep.subr.bf16.mxu0 %v4744
        %5057 = vmatpush1.bf16.msra.mxu0 %v4743
        %5058 = vmatprep.subr.bf16.mxu0 %v4748
        %5059 = vmatpush1.bf16.msra.mxu0 %v4747
        %5060 = vmatprep.subr.bf16.mxu0 %v4752
        %5061 = vmatpush1.bf16.msra.mxu0 %v4751
        %5062 = vmatprep.subr.bf16.mxu0 %v4756
        %5063 = vmatpush1.bf16.msra.mxu0 %v4755
        %5064 = vmatprep.subr.bf16.mxu0 %v4760
        %5065 = vmatpush1.bf16.msra.mxu0 %v4759
        %5066 = vmatprep.subr.bf16.mxu0 %v4764
        %5067 = vmatpush1.bf16.msra.mxu0 %v4763
        %5068 = vmatprep.subr.bf16.mxu0 %v4768
        %5069 = vmatpush1.bf16.msra.mxu0 %v4767
        %5070 = vmatprep.subr.bf16.mxu0 %v4772
        %5071 = vmatpush1.bf16.msra.mxu0 %v4771
        %5072 = vmatprep.subr.bf16.mxu0 %v4776
        %5073 = vmatpush1.bf16.msra.mxu0 %v4775
        %5074 = vmatprep.subr.bf16.mxu0 %v4780
        %5075 = vmatpush1.bf16.msra.mxu0 %v4779
        %5076 = vmatprep.subr.bf16.mxu0 %v4784
        %5077 = vmatpush1.bf16.msra.mxu0 %v4783
        %5078 = vmatprep.subr.bf16.mxu0 %v4788
        %5079 = vmatpush1.bf16.msra.mxu0 %v4787
        %5080 = vmatprep.subr.bf16.mxu0 %v4792
        %5081 = vmatpush1.bf16.msra.mxu0 %v4791
        %5082 = vmatprep.subr.bf16.mxu0 %v4796
        %5083 = vmatpush1.bf16.msra.mxu0 %v4795
        %5084 = vmatprep.subr.bf16.mxu0 %v4800
        %5085 = vmatpush1.bf16.msra.mxu0 %v4799
        %5086 = vmatprep.subr.bf16.mxu0 %v4804
        %5087 = vmatpush1.bf16.msra.mxu0 %v4803
        %5088 = vmatprep.mubr.bf16.mxu0 %v4288
        %5089 = vmatmul.mubr.bf16.gmra.mrb[0].mxu0 %v4287
        %v5090 = vpop.f32.mrb[0].mxu0
        %v5091 = vadd.f32 %v5050, %v5090
        %v5092 = vpop.f32.mrb[0].mxu0
        %v5093 = vadd.f32 %v5052, %v5092
        %v5094 = vpop.f32.mrb[0].mxu0
        %v5095 = vpop.f32.mrb[0].mxu0
        %5096 = vdwg.mxu0
        %v5097 = vadd.f32 %v5009, %v3163
        %v5098 = vadd.f32 %v5011, %v3167
        %v5099 = vadd.f32 %v5091, %v3171
        %v5100 = vadd.f32 %v5093, %v3175
        %v5101 = vxor.u32 %v5097, 2147483648
        %v5102 = vxor.u32 %v5098, 2147483648
        %v5103 = vxor.u32 %v5099, 2147483648
        %v5104 = vxor.u32 %v5100, 2147483648
        %v5105 = vmul.f32 %v5101, 1.442695
        %v5106 = vpow.pop %v5105
        %v5107 = vmul.f32 %v5102, 1.442695
        %v5108 = vpow.pop %v5107
        %v5109 = vmul.f32 %v5103, 1.442695
        %v5110 = vpow.pop %v5109
        %v5111 = vmul.f32 %v5104, 1.442695
        %v5112 = vpow.pop %v5111
        %v5113 = vadd.f32 %v5106, 1.0
        %v5114 = vadd.f32 %v5108, 1.0
        %v5115 = vadd.f32 %v5110, 1.0
        %v5116 = vadd.f32 %v5112, 1.0
        %v5117 = vrcp.pop %v5113
        %v5118 = vmul.f32 1.0, %v5117
        %v5119 = vrcp.pop %v5114
        %v5120 = vmul.f32 1.0, %v5119
        %v5121 = vrcp.pop %v5115
        %v5122 = vmul.f32 1.0, %v5121
        %v5123 = vrcp.pop %v5116
        %v5124 = vmul.f32 1.0, %v5123
        %v5125 = vmul.f32 %v5097, %v5118
        %v5126 = vmul.f32 %v5098, %v5120
        %v5127 = vmul.f32 %v5099, %v5122
        %v5128 = vmul.f32 %v5100, %v5124
        %v5133 = vcombine.low %v3208, %v3209
        %v5134 = vcombine.low %v3210, %v3211
        %v5136 = vunpack.c.l.s4 1966171168
        %v5137 = vunpack.c.0.s8 %v5136
        %v5138 = vlaneseq
        %v5139 = vshrl.u32 %v5138, 7
        %v5140 = vsub.s32 %v5137, %v5139
        %v5141 = vrot.slane %v5133, %v5140
        %v5143 = vunpack.c.l.s4 1966171168
        %v5144 = vunpack.c.0.s8 %v5143
        %v5145 = vlaneseq
        %v5146 = vshrl.u32 %v5145, 7
        %v5147 = vsub.s32 %v5144, %v5146
        %v5148 = vrot.slane %v5134, %v5147
        %v5149 = vcombine.low %v5141, %v5148
        %v5151 = vunpack.c.l.s4 1966171168
        %v5152 = vunpack.c.0.s8 %v5151
        %v5153 = vlaneseq
        %v5154 = vshrl.u32 %v5153, 7
        %v5155 = vsub.s32 %v5152, %v5154
        %v5156 = vrot.slane %v5149, %v5155
        %s5158 = scalar_lea.vmem [#allocation3], 1
        %5159 = vst.msk [vmem:[%s5158] ss:$8 sm:$0xf] %vm982, %v5156
        %5160 = vst.msk [vmem:[%s5158] ss:$8 sm:$0x0] %vm982, %v5156
        %v5165 = vcombine.low %v5125, %v5126
        %v5166 = vcombine.low %v5127, %v5128
        %v5168 = vunpack.c.l.s4 1966171168
        %v5169 = vunpack.c.0.s8 %v5168
        %v5170 = vlaneseq
        %v5171 = vshrl.u32 %v5170, 7
        %v5172 = vsub.s32 %v5169, %v5171
        %v5173 = vrot.slane %v5165, %v5172
        %v5175 = vunpack.c.l.s4 1966171168
        %v5176 = vunpack.c.0.s8 %v5175
        %v5177 = vlaneseq
        %v5178 = vshrl.u32 %v5177, 7
        %v5179 = vsub.s32 %v5176, %v5178
        %v5180 = vrot.slane %v5166, %v5179
        %v5181 = vcombine.low %v5173, %v5180
        %v5183 = vunpack.c.l.s4 1966171168
        %v5184 = vunpack.c.0.s8 %v5183
        %v5185 = vlaneseq
        %v5186 = vshrl.u32 %v5185, 7
        %v5187 = vsub.s32 %v5184, %v5186
        %v5188 = vrot.slane %v5181, %v5187
        %s5190 = scalar_lea.vmem [#allocation3], 2
        %5191 = vst.msk [vmem:[%s5190] ss:$8 sm:$0xf] %vm982, %v5188
        %5192 = vst.msk [vmem:[%s5190] ss:$8 sm:$0x0] %vm982, %v5188
        %v5193 = vcombine.high %v5141, %v5148
        %v5195 = vunpack.c.l.s4 1966171168
        %v5196 = vunpack.c.0.s8 %v5195
        %v5197 = vlaneseq
        %v5198 = vshrl.u32 %v5197, 7
        %v5199 = vsub.s32 %v5196, %v5198
        %v5200 = vrot.slane %v5193, %v5199
        %s5202 = scalar_lea.vmem [#allocation3], 3
        %5203 = vst.msk [vmem:[%s5202] ss:$8 sm:$0xf] %vm982, %v5200
        %5204 = vst.msk [vmem:[%s5202] ss:$8 sm:$0x0] %vm982, %v5200
        %v5205 = vcombine.high %v5173, %v5180
        %v5207 = vunpack.c.l.s4 1966171168
        %v5208 = vunpack.c.0.s8 %v5207
        %v5209 = vlaneseq
        %v5210 = vshrl.u32 %v5209, 7
        %v5211 = vsub.s32 %v5208, %v5210
        %v5212 = vrot.slane %v5205, %v5211
        %s5214 = scalar_lea.vmem [#allocation3], 4
        %5215 = vst.msk [vmem:[%s5214] ss:$8 sm:$0xf] %vm982, %v5212
        %5216 = vst.msk [vmem:[%s5214] ss:$8 sm:$0x0] %vm982, %v5212
        %v5217 = vcombine.high %v5156, %v5156
        %s5219 = scalar_lea.vmem [#allocation3], 5
        %5220 = vst.msk [vmem:[%s5219] ss:$8 sm:$0xf] %vm982, %v5217
        %5221 = vst.msk [vmem:[%s5219] ss:$8 sm:$0x0] %vm982, %v5217
        %v5222 = vcombine.high %v5188, %v5188
        %s5224 = scalar_lea.vmem [#allocation3], 6
        %5225 = vst.msk [vmem:[%s5224] ss:$8 sm:$0xf] %vm982, %v5222
        %5226 = vst.msk [vmem:[%s5224] ss:$8 sm:$0x0] %vm982, %v5222
        %v5227 = vcombine.high %v5200, %v5200
        %s5229 = scalar_lea.vmem [#allocation3], 7
        %5230 = vst.msk [vmem:[%s5229] ss:$8 sm:$0xf] %vm982, %v5227
        %5231 = vst.msk [vmem:[%s5229] ss:$8 sm:$0x0] %vm982, %v5227
        %v5232 = vcombine.high %v5212, %v5212
        %s5234 = scalar_lea.vmem [#allocation3], 32
        %5235 = vst.msk [vmem:[%s5234] ss:$8 sm:$0xf] %vm982, %v5232
        %5236 = vst.msk [vmem:[%s5234] ss:$8 sm:$0x0] %vm982, %v5232
        %v5237 = vld [vmem:[#allocation3] sm:$0xfe]
        %v5238 = vld [vmem:[#allocation3 + $0x8] sm:$0xfe]
        %v5239 = vld [vmem:[#allocation3 + $0x10] sm:$0xfe]
        %v5240 = vld [vmem:[#allocation3 + $0x18] sm:$0xfe]
        %v5241 = vld [vmem:[#allocation3 + $0x20] sm:$0x1]
        %v5242 = vld [vmem:[#allocation3 + $0x28] sm:$0x1]
        %v5243 = vld [vmem:[#allocation3 + $0x30] sm:$0x1]
        %v5244 = vld [vmem:[#allocation3 + $0x38] sm:$0x1]
        %v5245 = vpack.c.bf16 %v5241, %v5237
        %v5246 = vpack.c.bf16 %v5242, %v5238
        %v5247 = vpack.c.bf16 %v5243, %v5239
        %v5248 = vpack.c.bf16 %v5244, %v5240
        %s5249 = scalar_lea.vmem [#allocation10], 1024
        %v5250 = vld [vmem:[%s5249] sm:$0xff]
        %v5251 = vld [vmem:[%s5249 + $0x8] sm:$0xff]
        %v5252 = vld [vmem:[%s5249 + $0x10] sm:$0xff]
        %v5253 = vld [vmem:[%s5249 + $0x18] sm:$0xff]
        %v5254 = vld [vmem:[%s5249 + $0x20] sm:$0xff]
        %v5255 = vld [vmem:[%s5249 + $0x28] sm:$0xff]
        %v5256 = vld [vmem:[%s5249 + $0x30] sm:$0xff]
        %v5257 = vld [vmem:[%s5249 + $0x38] sm:$0xff]
        %v5258 = vld [vmem:[%s5249 + $0x40] sm:$0xff]
        %v5259 = vld [vmem:[%s5249 + $0x48] sm:$0xff]
        %v5260 = vld [vmem:[%s5249 + $0x50] sm:$0xff]
        %v5261 = vld [vmem:[%s5249 + $0x58] sm:$0xff]
        %v5262 = vld [vmem:[%s5249 + $0x60] sm:$0xff]
        %v5263 = vld [vmem:[%s5249 + $0x68] sm:$0xff]
        %v5264 = vld [vmem:[%s5249 + $0x70] sm:$0xff]
        %v5265 = vld [vmem:[%s5249 + $0x78] sm:$0xff]
        %v5266 = vld [vmem:[%s5249 + $0x80] sm:$0xff]
        %v5267 = vld [vmem:[%s5249 + $0x88] sm:$0xff]
        %v5268 = vld [vmem:[%s5249 + $0x90] sm:$0xff]
        %v5269 = vld [vmem:[%s5249 + $0x98] sm:$0xff]
        %v5270 = vld [vmem:[%s5249 + $0xa0] sm:$0xff]
        %v5271 = vld [vmem:[%s5249 + $0xa8] sm:$0xff]
        %v5272 = vld [vmem:[%s5249 + $0xb0] sm:$0xff]
        %v5273 = vld [vmem:[%s5249 + $0xb8] sm:$0xff]
        %v5274 = vld [vmem:[%s5249 + $0xc0] sm:$0xff]
        %v5275 = vld [vmem:[%s5249 + $0xc8] sm:$0xff]
        %v5276 = vld [vmem:[%s5249 + $0xd0] sm:$0xff]
        %v5277 = vld [vmem:[%s5249 + $0xd8] sm:$0xff]
        %v5278 = vld [vmem:[%s5249 + $0xe0] sm:$0xff]
        %v5279 = vld [vmem:[%s5249 + $0xe8] sm:$0xff]
        %v5280 = vld [vmem:[%s5249 + $0xf0] sm:$0xff]
        %v5281 = vld [vmem:[%s5249 + $0xf8] sm:$0xff]
        %v5282 = vld [vmem:[%s5249 + $0x100] sm:$0xff]
        %v5283 = vld [vmem:[%s5249 + $0x108] sm:$0xff]
        %v5284 = vld [vmem:[%s5249 + $0x110] sm:$0xff]
        %v5285 = vld [vmem:[%s5249 + $0x118] sm:$0xff]
        %v5286 = vld [vmem:[%s5249 + $0x120] sm:$0xff]
        %v5287 = vld [vmem:[%s5249 + $0x128] sm:$0xff]
        %v5288 = vld [vmem:[%s5249 + $0x130] sm:$0xff]
        %v5289 = vld [vmem:[%s5249 + $0x138] sm:$0xff]
        %v5290 = vld [vmem:[%s5249 + $0x140] sm:$0xff]
        %v5291 = vld [vmem:[%s5249 + $0x148] sm:$0xff]
        %v5292 = vld [vmem:[%s5249 + $0x150] sm:$0xff]
        %v5293 = vld [vmem:[%s5249 + $0x158] sm:$0xff]
        %v5294 = vld [vmem:[%s5249 + $0x160] sm:$0xff]
        %v5295 = vld [vmem:[%s5249 + $0x168] sm:$0xff]
        %v5296 = vld [vmem:[%s5249 + $0x170] sm:$0xff]
        %v5297 = vld [vmem:[%s5249 + $0x178] sm:$0xff]
        %v5298 = vld [vmem:[%s5249 + $0x180] sm:$0xff]
        %v5299 = vld [vmem:[%s5249 + $0x188] sm:$0xff]
        %v5300 = vld [vmem:[%s5249 + $0x190] sm:$0xff]
        %v5301 = vld [vmem:[%s5249 + $0x198] sm:$0xff]
        %v5302 = vld [vmem:[%s5249 + $0x1a0] sm:$0xff]
        %v5303 = vld [vmem:[%s5249 + $0x1a8] sm:$0xff]
        %v5304 = vld [vmem:[%s5249 + $0x1b0] sm:$0xff]
        %v5305 = vld [vmem:[%s5249 + $0x1b8] sm:$0xff]
        %v5306 = vld [vmem:[%s5249 + $0x1c0] sm:$0xff]
        %v5307 = vld [vmem:[%s5249 + $0x1c8] sm:$0xff]
        %v5308 = vld [vmem:[%s5249 + $0x1d0] sm:$0xff]
        %v5309 = vld [vmem:[%s5249 + $0x1d8] sm:$0xff]
        %v5310 = vld [vmem:[%s5249 + $0x1e0] sm:$0xff]
        %v5311 = vld [vmem:[%s5249 + $0x1e8] sm:$0xff]
        %v5312 = vld [vmem:[%s5249 + $0x1f0] sm:$0xff]
        %v5313 = vld [vmem:[%s5249 + $0x1f8] sm:$0xff]
        %v5314 = vld [vmem:[%s5249 + $0x200] sm:$0xff]
        %v5315 = vld [vmem:[%s5249 + $0x208] sm:$0xff]
        %v5316 = vld [vmem:[%s5249 + $0x210] sm:$0xff]
        %v5317 = vld [vmem:[%s5249 + $0x218] sm:$0xff]
        %v5318 = vld [vmem:[%s5249 + $0x220] sm:$0xff]
        %v5319 = vld [vmem:[%s5249 + $0x228] sm:$0xff]
        %v5320 = vld [vmem:[%s5249 + $0x230] sm:$0xff]
        %v5321 = vld [vmem:[%s5249 + $0x238] sm:$0xff]
        %v5322 = vld [vmem:[%s5249 + $0x240] sm:$0xff]
        %v5323 = vld [vmem:[%s5249 + $0x248] sm:$0xff]
        %v5324 = vld [vmem:[%s5249 + $0x250] sm:$0xff]
        %v5325 = vld [vmem:[%s5249 + $0x258] sm:$0xff]
        %v5326 = vld [vmem:[%s5249 + $0x260] sm:$0xff]
        %v5327 = vld [vmem:[%s5249 + $0x268] sm:$0xff]
        %v5328 = vld [vmem:[%s5249 + $0x270] sm:$0xff]
        %v5329 = vld [vmem:[%s5249 + $0x278] sm:$0xff]
        %v5330 = vld [vmem:[%s5249 + $0x280] sm:$0xff]
        %v5331 = vld [vmem:[%s5249 + $0x288] sm:$0xff]
        %v5332 = vld [vmem:[%s5249 + $0x290] sm:$0xff]
        %v5333 = vld [vmem:[%s5249 + $0x298] sm:$0xff]
        %v5334 = vld [vmem:[%s5249 + $0x2a0] sm:$0xff]
        %v5335 = vld [vmem:[%s5249 + $0x2a8] sm:$0xff]
        %v5336 = vld [vmem:[%s5249 + $0x2b0] sm:$0xff]
        %v5337 = vld [vmem:[%s5249 + $0x2b8] sm:$0xff]
        %v5338 = vld [vmem:[%s5249 + $0x2c0] sm:$0xff]
        %v5339 = vld [vmem:[%s5249 + $0x2c8] sm:$0xff]
        %v5340 = vld [vmem:[%s5249 + $0x2d0] sm:$0xff]
        %v5341 = vld [vmem:[%s5249 + $0x2d8] sm:$0xff]
        %v5342 = vld [vmem:[%s5249 + $0x2e0] sm:$0xff]
        %v5343 = vld [vmem:[%s5249 + $0x2e8] sm:$0xff]
        %v5344 = vld [vmem:[%s5249 + $0x2f0] sm:$0xff]
        %v5345 = vld [vmem:[%s5249 + $0x2f8] sm:$0xff]
        %v5346 = vld [vmem:[%s5249 + $0x300] sm:$0xff]
        %v5347 = vld [vmem:[%s5249 + $0x308] sm:$0xff]
        %v5348 = vld [vmem:[%s5249 + $0x310] sm:$0xff]
        %v5349 = vld [vmem:[%s5249 + $0x318] sm:$0xff]
        %v5350 = vld [vmem:[%s5249 + $0x320] sm:$0xff]
        %v5351 = vld [vmem:[%s5249 + $0x328] sm:$0xff]
        %v5352 = vld [vmem:[%s5249 + $0x330] sm:$0xff]
        %v5353 = vld [vmem:[%s5249 + $0x338] sm:$0xff]
        %v5354 = vld [vmem:[%s5249 + $0x340] sm:$0xff]
        %v5355 = vld [vmem:[%s5249 + $0x348] sm:$0xff]
        %v5356 = vld [vmem:[%s5249 + $0x350] sm:$0xff]
        %v5357 = vld [vmem:[%s5249 + $0x358] sm:$0xff]
        %v5358 = vld [vmem:[%s5249 + $0x360] sm:$0xff]
        %v5359 = vld [vmem:[%s5249 + $0x368] sm:$0xff]
        %v5360 = vld [vmem:[%s5249 + $0x370] sm:$0xff]
        %v5361 = vld [vmem:[%s5249 + $0x378] sm:$0xff]
        %v5362 = vld [vmem:[%s5249 + $0x380] sm:$0xff]
        %v5363 = vld [vmem:[%s5249 + $0x388] sm:$0xff]
        %v5364 = vld [vmem:[%s5249 + $0x390] sm:$0xff]
        %v5365 = vld [vmem:[%s5249 + $0x398] sm:$0xff]
        %v5366 = vld [vmem:[%s5249 + $0x3a0] sm:$0xff]
        %v5367 = vld [vmem:[%s5249 + $0x3a8] sm:$0xff]
        %v5368 = vld [vmem:[%s5249 + $0x3b0] sm:$0xff]
        %v5369 = vld [vmem:[%s5249 + $0x3b8] sm:$0xff]
        %v5370 = vld [vmem:[%s5249 + $0x3c0] sm:$0xff]
        %v5371 = vld [vmem:[%s5249 + $0x3c8] sm:$0xff]
        %v5372 = vld [vmem:[%s5249 + $0x3d0] sm:$0xff]
        %v5373 = vld [vmem:[%s5249 + $0x3d8] sm:$0xff]
        %v5374 = vld [vmem:[%s5249 + $0x3e0] sm:$0xff]
        %v5375 = vld [vmem:[%s5249 + $0x3e8] sm:$0xff]
        %v5376 = vld [vmem:[%s5249 + $0x3f0] sm:$0xff]
        %v5377 = vld [vmem:[%s5249 + $0x3f8] sm:$0xff]
        %v5378 = vld [vmem:[#allocation3] sm:$0xff]
        %v5379 = vld [vmem:[#allocation3 + $0x8] sm:$0xff]
        %v5380 = vld [vmem:[#allocation3 + $0x10] sm:$0xff]
        %v5381 = vld [vmem:[#allocation3 + $0x18] sm:$0xff]
        %v5382 = vpack.c.bf16 %v5378, %v5378
        %v5383 = vpack.c.bf16 %v5379, %v5379
        %v5384 = vpack.c.bf16 %v5380, %v5380
        %v5385 = vpack.c.bf16 %v5381, %v5381
        %s5386 = scalar_lea.vmem [#allocation10], 3072
        %v5387 = vld [vmem:[%s5386] sm:$0xff]
        %v5388 = vld [vmem:[%s5386 + $0x8] sm:$0xff]
        %v5389 = vld [vmem:[%s5386 + $0x10] sm:$0xff]
        %v5390 = vld [vmem:[%s5386 + $0x18] sm:$0xff]
        %v5391 = vld [vmem:[%s5386 + $0x20] sm:$0xff]
        %v5392 = vld [vmem:[%s5386 + $0x28] sm:$0xff]
        %v5393 = vld [vmem:[%s5386 + $0x30] sm:$0xff]
        %v5394 = vld [vmem:[%s5386 + $0x38] sm:$0xff]
        %v5395 = vld [vmem:[%s5386 + $0x40] sm:$0xff]
        %v5396 = vld [vmem:[%s5386 + $0x48] sm:$0xff]
        %v5397 = vld [vmem:[%s5386 + $0x50] sm:$0xff]
        %v5398 = vld [vmem:[%s5386 + $0x58] sm:$0xff]
        %v5399 = vld [vmem:[%s5386 + $0x60] sm:$0xff]
        %v5400 = vld [vmem:[%s5386 + $0x68] sm:$0xff]
        %v5401 = vld [vmem:[%s5386 + $0x70] sm:$0xff]
        %v5402 = vld [vmem:[%s5386 + $0x78] sm:$0xff]
        %v5403 = vld [vmem:[%s5386 + $0x80] sm:$0xff]
        %v5404 = vld [vmem:[%s5386 + $0x88] sm:$0xff]
        %v5405 = vld [vmem:[%s5386 + $0x90] sm:$0xff]
        %v5406 = vld [vmem:[%s5386 + $0x98] sm:$0xff]
        %v5407 = vld [vmem:[%s5386 + $0xa0] sm:$0xff]
        %v5408 = vld [vmem:[%s5386 + $0xa8] sm:$0xff]
        %v5409 = vld [vmem:[%s5386 + $0xb0] sm:$0xff]
        %v5410 = vld [vmem:[%s5386 + $0xb8] sm:$0xff]
        %v5411 = vld [vmem:[%s5386 + $0xc0] sm:$0xff]
        %v5412 = vld [vmem:[%s5386 + $0xc8] sm:$0xff]
        %v5413 = vld [vmem:[%s5386 + $0xd0] sm:$0xff]
        %v5414 = vld [vmem:[%s5386 + $0xd8] sm:$0xff]
        %v5415 = vld [vmem:[%s5386 + $0xe0] sm:$0xff]
        %v5416 = vld [vmem:[%s5386 + $0xe8] sm:$0xff]
        %v5417 = vld [vmem:[%s5386 + $0xf0] sm:$0xff]
        %v5418 = vld [vmem:[%s5386 + $0xf8] sm:$0xff]
        %v5419 = vld [vmem:[%s5386 + $0x100] sm:$0xff]
        %v5420 = vld [vmem:[%s5386 + $0x108] sm:$0xff]
        %v5421 = vld [vmem:[%s5386 + $0x110] sm:$0xff]
        %v5422 = vld [vmem:[%s5386 + $0x118] sm:$0xff]
        %v5423 = vld [vmem:[%s5386 + $0x120] sm:$0xff]
        %v5424 = vld [vmem:[%s5386 + $0x128] sm:$0xff]
        %v5425 = vld [vmem:[%s5386 + $0x130] sm:$0xff]
        %v5426 = vld [vmem:[%s5386 + $0x138] sm:$0xff]
        %v5427 = vld [vmem:[%s5386 + $0x140] sm:$0xff]
        %v5428 = vld [vmem:[%s5386 + $0x148] sm:$0xff]
        %v5429 = vld [vmem:[%s5386 + $0x150] sm:$0xff]
        %v5430 = vld [vmem:[%s5386 + $0x158] sm:$0xff]
        %v5431 = vld [vmem:[%s5386 + $0x160] sm:$0xff]
        %v5432 = vld [vmem:[%s5386 + $0x168] sm:$0xff]
        %v5433 = vld [vmem:[%s5386 + $0x170] sm:$0xff]
        %v5434 = vld [vmem:[%s5386 + $0x178] sm:$0xff]
        %v5435 = vld [vmem:[%s5386 + $0x180] sm:$0xff]
        %v5436 = vld [vmem:[%s5386 + $0x188] sm:$0xff]
        %v5437 = vld [vmem:[%s5386 + $0x190] sm:$0xff]
        %v5438 = vld [vmem:[%s5386 + $0x198] sm:$0xff]
        %v5439 = vld [vmem:[%s5386 + $0x1a0] sm:$0xff]
        %v5440 = vld [vmem:[%s5386 + $0x1a8] sm:$0xff]
        %v5441 = vld [vmem:[%s5386 + $0x1b0] sm:$0xff]
        %v5442 = vld [vmem:[%s5386 + $0x1b8] sm:$0xff]
        %v5443 = vld [vmem:[%s5386 + $0x1c0] sm:$0xff]
        %v5444 = vld [vmem:[%s5386 + $0x1c8] sm:$0xff]
        %v5445 = vld [vmem:[%s5386 + $0x1d0] sm:$0xff]
        %v5446 = vld [vmem:[%s5386 + $0x1d8] sm:$0xff]
        %v5447 = vld [vmem:[%s5386 + $0x1e0] sm:$0xff]
        %v5448 = vld [vmem:[%s5386 + $0x1e8] sm:$0xff]
        %v5449 = vld [vmem:[%s5386 + $0x1f0] sm:$0xff]
        %v5450 = vld [vmem:[%s5386 + $0x1f8] sm:$0xff]
        %v5451 = vld [vmem:[%s5386 + $0x200] sm:$0xff]
        %v5452 = vld [vmem:[%s5386 + $0x208] sm:$0xff]
        %v5453 = vld [vmem:[%s5386 + $0x210] sm:$0xff]
        %v5454 = vld [vmem:[%s5386 + $0x218] sm:$0xff]
        %v5455 = vld [vmem:[%s5386 + $0x220] sm:$0xff]
        %v5456 = vld [vmem:[%s5386 + $0x228] sm:$0xff]
        %v5457 = vld [vmem:[%s5386 + $0x230] sm:$0xff]
        %v5458 = vld [vmem:[%s5386 + $0x238] sm:$0xff]
        %v5459 = vld [vmem:[%s5386 + $0x240] sm:$0xff]
        %v5460 = vld [vmem:[%s5386 + $0x248] sm:$0xff]
        %v5461 = vld [vmem:[%s5386 + $0x250] sm:$0xff]
        %v5462 = vld [vmem:[%s5386 + $0x258] sm:$0xff]
        %v5463 = vld [vmem:[%s5386 + $0x260] sm:$0xff]
        %v5464 = vld [vmem:[%s5386 + $0x268] sm:$0xff]
        %v5465 = vld [vmem:[%s5386 + $0x270] sm:$0xff]
        %v5466 = vld [vmem:[%s5386 + $0x278] sm:$0xff]
        %v5467 = vld [vmem:[%s5386 + $0x280] sm:$0xff]
        %v5468 = vld [vmem:[%s5386 + $0x288] sm:$0xff]
        %v5469 = vld [vmem:[%s5386 + $0x290] sm:$0xff]
        %v5470 = vld [vmem:[%s5386 + $0x298] sm:$0xff]
        %v5471 = vld [vmem:[%s5386 + $0x2a0] sm:$0xff]
        %v5472 = vld [vmem:[%s5386 + $0x2a8] sm:$0xff]
        %v5473 = vld [vmem:[%s5386 + $0x2b0] sm:$0xff]
        %v5474 = vld [vmem:[%s5386 + $0x2b8] sm:$0xff]
        %v5475 = vld [vmem:[%s5386 + $0x2c0] sm:$0xff]
        %v5476 = vld [vmem:[%s5386 + $0x2c8] sm:$0xff]
        %v5477 = vld [vmem:[%s5386 + $0x2d0] sm:$0xff]
        %v5478 = vld [vmem:[%s5386 + $0x2d8] sm:$0xff]
        %v5479 = vld [vmem:[%s5386 + $0x2e0] sm:$0xff]
        %v5480 = vld [vmem:[%s5386 + $0x2e8] sm:$0xff]
        %v5481 = vld [vmem:[%s5386 + $0x2f0] sm:$0xff]
        %v5482 = vld [vmem:[%s5386 + $0x2f8] sm:$0xff]
        %v5483 = vld [vmem:[%s5386 + $0x300] sm:$0xff]
        %v5484 = vld [vmem:[%s5386 + $0x308] sm:$0xff]
        %v5485 = vld [vmem:[%s5386 + $0x310] sm:$0xff]
        %v5486 = vld [vmem:[%s5386 + $0x318] sm:$0xff]
        %v5487 = vld [vmem:[%s5386 + $0x320] sm:$0xff]
        %v5488 = vld [vmem:[%s5386 + $0x328] sm:$0xff]
        %v5489 = vld [vmem:[%s5386 + $0x330] sm:$0xff]
        %v5490 = vld [vmem:[%s5386 + $0x338] sm:$0xff]
        %v5491 = vld [vmem:[%s5386 + $0x340] sm:$0xff]
        %v5492 = vld [vmem:[%s5386 + $0x348] sm:$0xff]
        %v5493 = vld [vmem:[%s5386 + $0x350] sm:$0xff]
        %v5494 = vld [vmem:[%s5386 + $0x358] sm:$0xff]
        %v5495 = vld [vmem:[%s5386 + $0x360] sm:$0xff]
        %v5496 = vld [vmem:[%s5386 + $0x368] sm:$0xff]
        %v5497 = vld [vmem:[%s5386 + $0x370] sm:$0xff]
        %v5498 = vld [vmem:[%s5386 + $0x378] sm:$0xff]
        %v5499 = vld [vmem:[%s5386 + $0x380] sm:$0xff]
        %v5500 = vld [vmem:[%s5386 + $0x388] sm:$0xff]
        %v5501 = vld [vmem:[%s5386 + $0x390] sm:$0xff]
        %v5502 = vld [vmem:[%s5386 + $0x398] sm:$0xff]
        %v5503 = vld [vmem:[%s5386 + $0x3a0] sm:$0xff]
        %v5504 = vld [vmem:[%s5386 + $0x3a8] sm:$0xff]
        %v5505 = vld [vmem:[%s5386 + $0x3b0] sm:$0xff]
        %v5506 = vld [vmem:[%s5386 + $0x3b8] sm:$0xff]
        %v5507 = vld [vmem:[%s5386 + $0x3c0] sm:$0xff]
        %v5508 = vld [vmem:[%s5386 + $0x3c8] sm:$0xff]
        %v5509 = vld [vmem:[%s5386 + $0x3d0] sm:$0xff]
        %v5510 = vld [vmem:[%s5386 + $0x3d8] sm:$0xff]
        %v5511 = vld [vmem:[%s5386 + $0x3e0] sm:$0xff]
        %v5512 = vld [vmem:[%s5386 + $0x3e8] sm:$0xff]
        %v5513 = vld [vmem:[%s5386 + $0x3f0] sm:$0xff]
        %v5514 = vld [vmem:[%s5386 + $0x3f8] sm:$0xff]
        %v5643 = vunpack.c.l.b16 %v5387
        %v5644 = vunpack.c.h.b16 %v5387
        %v5645 = vunpack.c.l.b16 %v5388
        %v5646 = vunpack.c.h.b16 %v5388
        %v5647 = vunpack.c.l.b16 %v5389
        %v5648 = vunpack.c.h.b16 %v5389
        %v5649 = vunpack.c.l.b16 %v5390
        %v5650 = vunpack.c.h.b16 %v5390
        %v5651 = vunpack.c.l.b16 %v5391
        %v5652 = vunpack.c.h.b16 %v5391
        %v5653 = vunpack.c.l.b16 %v5392
        %v5654 = vunpack.c.h.b16 %v5392
        %v5655 = vunpack.c.l.b16 %v5393
        %v5656 = vunpack.c.h.b16 %v5393
        %v5657 = vunpack.c.l.b16 %v5394
        %v5658 = vunpack.c.h.b16 %v5394
        %v5659 = vunpack.c.l.b16 %v5395
        %v5660 = vunpack.c.h.b16 %v5395
        %v5661 = vunpack.c.l.b16 %v5396
        %v5662 = vunpack.c.h.b16 %v5396
        %v5663 = vunpack.c.l.b16 %v5397
        %v5664 = vunpack.c.h.b16 %v5397
        %v5665 = vunpack.c.l.b16 %v5398
        %v5666 = vunpack.c.h.b16 %v5398
        %v5667 = vunpack.c.l.b16 %v5399
        %v5668 = vunpack.c.h.b16 %v5399
        %v5669 = vunpack.c.l.b16 %v5400
        %v5670 = vunpack.c.h.b16 %v5400
        %v5671 = vunpack.c.l.b16 %v5401
        %v5672 = vunpack.c.h.b16 %v5401
        %v5673 = vunpack.c.l.b16 %v5402
        %v5674 = vunpack.c.h.b16 %v5402
        %v5675 = vunpack.c.l.b16 %v5403
        %v5676 = vunpack.c.h.b16 %v5403
        %v5677 = vunpack.c.l.b16 %v5404
        %v5678 = vunpack.c.h.b16 %v5404
        %v5679 = vunpack.c.l.b16 %v5405
        %v5680 = vunpack.c.h.b16 %v5405
        %v5681 = vunpack.c.l.b16 %v5406
        %v5682 = vunpack.c.h.b16 %v5406
        %v5683 = vunpack.c.l.b16 %v5407
        %v5684 = vunpack.c.h.b16 %v5407
        %v5685 = vunpack.c.l.b16 %v5408
        %v5686 = vunpack.c.h.b16 %v5408
        %v5687 = vunpack.c.l.b16 %v5409
        %v5688 = vunpack.c.h.b16 %v5409
        %v5689 = vunpack.c.l.b16 %v5410
        %v5690 = vunpack.c.h.b16 %v5410
        %v5691 = vunpack.c.l.b16 %v5411
        %v5692 = vunpack.c.h.b16 %v5411
        %v5693 = vunpack.c.l.b16 %v5412
        %v5694 = vunpack.c.h.b16 %v5412
        %v5695 = vunpack.c.l.b16 %v5413
        %v5696 = vunpack.c.h.b16 %v5413
        %v5697 = vunpack.c.l.b16 %v5414
        %v5698 = vunpack.c.h.b16 %v5414
        %v5699 = vunpack.c.l.b16 %v5415
        %v5700 = vunpack.c.h.b16 %v5415
        %v5701 = vunpack.c.l.b16 %v5416
        %v5702 = vunpack.c.h.b16 %v5416
        %v5703 = vunpack.c.l.b16 %v5417
        %v5704 = vunpack.c.h.b16 %v5417
        %v5705 = vunpack.c.l.b16 %v5418
        %v5706 = vunpack.c.h.b16 %v5418
        %v5707 = vunpack.c.l.b16 %v5419
        %v5708 = vunpack.c.h.b16 %v5419
        %v5709 = vunpack.c.l.b16 %v5420
        %v5710 = vunpack.c.h.b16 %v5420
        %v5711 = vunpack.c.l.b16 %v5421
        %v5712 = vunpack.c.h.b16 %v5421
        %v5713 = vunpack.c.l.b16 %v5422
        %v5714 = vunpack.c.h.b16 %v5422
        %v5715 = vunpack.c.l.b16 %v5423
        %v5716 = vunpack.c.h.b16 %v5423
        %v5717 = vunpack.c.l.b16 %v5424
        %v5718 = vunpack.c.h.b16 %v5424
        %v5719 = vunpack.c.l.b16 %v5425
        %v5720 = vunpack.c.h.b16 %v5425
        %v5721 = vunpack.c.l.b16 %v5426
        %v5722 = vunpack.c.h.b16 %v5426
        %v5723 = vunpack.c.l.b16 %v5427
        %v5724 = vunpack.c.h.b16 %v5427
        %v5725 = vunpack.c.l.b16 %v5428
        %v5726 = vunpack.c.h.b16 %v5428
        %v5727 = vunpack.c.l.b16 %v5429
        %v5728 = vunpack.c.h.b16 %v5429
        %v5729 = vunpack.c.l.b16 %v5430
        %v5730 = vunpack.c.h.b16 %v5430
        %v5731 = vunpack.c.l.b16 %v5431
        %v5732 = vunpack.c.h.b16 %v5431
        %v5733 = vunpack.c.l.b16 %v5432
        %v5734 = vunpack.c.h.b16 %v5432
        %v5735 = vunpack.c.l.b16 %v5433
        %v5736 = vunpack.c.h.b16 %v5433
        %v5737 = vunpack.c.l.b16 %v5434
        %v5738 = vunpack.c.h.b16 %v5434
        %v5739 = vunpack.c.l.b16 %v5435
        %v5740 = vunpack.c.h.b16 %v5435
        %v5741 = vunpack.c.l.b16 %v5436
        %v5742 = vunpack.c.h.b16 %v5436
        %v5743 = vunpack.c.l.b16 %v5437
        %v5744 = vunpack.c.h.b16 %v5437
        %v5745 = vunpack.c.l.b16 %v5438
        %v5746 = vunpack.c.h.b16 %v5438
        %v5747 = vunpack.c.l.b16 %v5439
        %v5748 = vunpack.c.h.b16 %v5439
        %v5749 = vunpack.c.l.b16 %v5440
        %v5750 = vunpack.c.h.b16 %v5440
        %v5751 = vunpack.c.l.b16 %v5441
        %v5752 = vunpack.c.h.b16 %v5441
        %v5753 = vunpack.c.l.b16 %v5442
        %v5754 = vunpack.c.h.b16 %v5442
        %v5755 = vunpack.c.l.b16 %v5443
        %v5756 = vunpack.c.h.b16 %v5443
        %v5757 = vunpack.c.l.b16 %v5444
        %v5758 = vunpack.c.h.b16 %v5444
        %v5759 = vunpack.c.l.b16 %v5445
        %v5760 = vunpack.c.h.b16 %v5445
        %v5761 = vunpack.c.l.b16 %v5446
        %v5762 = vunpack.c.h.b16 %v5446
        %v5763 = vunpack.c.l.b16 %v5447
        %v5764 = vunpack.c.h.b16 %v5447
        %v5765 = vunpack.c.l.b16 %v5448
        %v5766 = vunpack.c.h.b16 %v5448
        %v5767 = vunpack.c.l.b16 %v5449
        %v5768 = vunpack.c.h.b16 %v5449
        %v5769 = vunpack.c.l.b16 %v5450
        %v5770 = vunpack.c.h.b16 %v5450
        %v5771 = vunpack.c.l.b16 %v5451
        %v5772 = vunpack.c.h.b16 %v5451
        %v5773 = vunpack.c.l.b16 %v5452
        %v5774 = vunpack.c.h.b16 %v5452
        %v5775 = vunpack.c.l.b16 %v5453
        %v5776 = vunpack.c.h.b16 %v5453
        %v5777 = vunpack.c.l.b16 %v5454
        %v5778 = vunpack.c.h.b16 %v5454
        %v5779 = vunpack.c.l.b16 %v5455
        %v5780 = vunpack.c.h.b16 %v5455
        %v5781 = vunpack.c.l.b16 %v5456
        %v5782 = vunpack.c.h.b16 %v5456
        %v5783 = vunpack.c.l.b16 %v5457
        %v5784 = vunpack.c.h.b16 %v5457
        %v5785 = vunpack.c.l.b16 %v5458
        %v5786 = vunpack.c.h.b16 %v5458
        %v5787 = vunpack.c.l.b16 %v5459
        %v5788 = vunpack.c.h.b16 %v5459
        %v5789 = vunpack.c.l.b16 %v5460
        %v5790 = vunpack.c.h.b16 %v5460
        %v5791 = vunpack.c.l.b16 %v5461
        %v5792 = vunpack.c.h.b16 %v5461
        %v5793 = vunpack.c.l.b16 %v5462
        %v5794 = vunpack.c.h.b16 %v5462
        %v5795 = vunpack.c.l.b16 %v5463
        %v5796 = vunpack.c.h.b16 %v5463
        %v5797 = vunpack.c.l.b16 %v5464
        %v5798 = vunpack.c.h.b16 %v5464
        %v5799 = vunpack.c.l.b16 %v5465
        %v5800 = vunpack.c.h.b16 %v5465
        %v5801 = vunpack.c.l.b16 %v5466
        %v5802 = vunpack.c.h.b16 %v5466
        %v5803 = vunpack.c.l.b16 %v5467
        %v5804 = vunpack.c.h.b16 %v5467
        %v5805 = vunpack.c.l.b16 %v5468
        %v5806 = vunpack.c.h.b16 %v5468
        %v5807 = vunpack.c.l.b16 %v5469
        %v5808 = vunpack.c.h.b16 %v5469
        %v5809 = vunpack.c.l.b16 %v5470
        %v5810 = vunpack.c.h.b16 %v5470
        %v5811 = vunpack.c.l.b16 %v5471
        %v5812 = vunpack.c.h.b16 %v5471
        %v5813 = vunpack.c.l.b16 %v5472
        %v5814 = vunpack.c.h.b16 %v5472
        %v5815 = vunpack.c.l.b16 %v5473
        %v5816 = vunpack.c.h.b16 %v5473
        %v5817 = vunpack.c.l.b16 %v5474
        %v5818 = vunpack.c.h.b16 %v5474
        %v5819 = vunpack.c.l.b16 %v5475
        %v5820 = vunpack.c.h.b16 %v5475
        %v5821 = vunpack.c.l.b16 %v5476
        %v5822 = vunpack.c.h.b16 %v5476
        %v5823 = vunpack.c.l.b16 %v5477
        %v5824 = vunpack.c.h.b16 %v5477
        %v5825 = vunpack.c.l.b16 %v5478
        %v5826 = vunpack.c.h.b16 %v5478
        %v5827 = vunpack.c.l.b16 %v5479
        %v5828 = vunpack.c.h.b16 %v5479
        %v5829 = vunpack.c.l.b16 %v5480
        %v5830 = vunpack.c.h.b16 %v5480
        %v5831 = vunpack.c.l.b16 %v5481
        %v5832 = vunpack.c.h.b16 %v5481
        %v5833 = vunpack.c.l.b16 %v5482
        %v5834 = vunpack.c.h.b16 %v5482
        %v5835 = vunpack.c.l.b16 %v5483
        %v5836 = vunpack.c.h.b16 %v5483
        %v5837 = vunpack.c.l.b16 %v5484
        %v5838 = vunpack.c.h.b16 %v5484
        %v5839 = vunpack.c.l.b16 %v5485
        %v5840 = vunpack.c.h.b16 %v5485
        %v5841 = vunpack.c.l.b16 %v5486
        %v5842 = vunpack.c.h.b16 %v5486
        %v5843 = vunpack.c.l.b16 %v5487
        %v5844 = vunpack.c.h.b16 %v5487
        %v5845 = vunpack.c.l.b16 %v5488
        %v5846 = vunpack.c.h.b16 %v5488
        %v5847 = vunpack.c.l.b16 %v5489
        %v5848 = vunpack.c.h.b16 %v5489
        %v5849 = vunpack.c.l.b16 %v5490
        %v5850 = vunpack.c.h.b16 %v5490
        %v5851 = vunpack.c.l.b16 %v5491
        %v5852 = vunpack.c.h.b16 %v5491
        %v5853 = vunpack.c.l.b16 %v5492
        %v5854 = vunpack.c.h.b16 %v5492
        %v5855 = vunpack.c.l.b16 %v5493
        %v5856 = vunpack.c.h.b16 %v5493
        %v5857 = vunpack.c.l.b16 %v5494
        %v5858 = vunpack.c.h.b16 %v5494
        %v5859 = vunpack.c.l.b16 %v5495
        %v5860 = vunpack.c.h.b16 %v5495
        %v5861 = vunpack.c.l.b16 %v5496
        %v5862 = vunpack.c.h.b16 %v5496
        %v5863 = vunpack.c.l.b16 %v5497
        %v5864 = vunpack.c.h.b16 %v5497
        %v5865 = vunpack.c.l.b16 %v5498
        %v5866 = vunpack.c.h.b16 %v5498
        %v5867 = vunpack.c.l.b16 %v5499
        %v5868 = vunpack.c.h.b16 %v5499
        %v5869 = vunpack.c.l.b16 %v5500
        %v5870 = vunpack.c.h.b16 %v5500
        %v5871 = vunpack.c.l.b16 %v5501
        %v5872 = vunpack.c.h.b16 %v5501
        %v5873 = vunpack.c.l.b16 %v5502
        %v5874 = vunpack.c.h.b16 %v5502
        %v5875 = vunpack.c.l.b16 %v5503
        %v5876 = vunpack.c.h.b16 %v5503
        %v5877 = vunpack.c.l.b16 %v5504
        %v5878 = vunpack.c.h.b16 %v5504
        %v5879 = vunpack.c.l.b16 %v5505
        %v5880 = vunpack.c.h.b16 %v5505
        %v5881 = vunpack.c.l.b16 %v5506
        %v5882 = vunpack.c.h.b16 %v5506
        %v5883 = vunpack.c.l.b16 %v5507
        %v5884 = vunpack.c.h.b16 %v5507
        %v5885 = vunpack.c.l.b16 %v5508
        %v5886 = vunpack.c.h.b16 %v5508
        %v5887 = vunpack.c.l.b16 %v5509
        %v5888 = vunpack.c.h.b16 %v5509
        %v5889 = vunpack.c.l.b16 %v5510
        %v5890 = vunpack.c.h.b16 %v5510
        %v5891 = vunpack.c.l.b16 %v5511
        %v5892 = vunpack.c.h.b16 %v5511
        %v5893 = vunpack.c.l.b16 %v5512
        %v5894 = vunpack.c.h.b16 %v5512
        %v5895 = vunpack.c.l.b16 %v5513
        %v5896 = vunpack.c.h.b16 %v5513
        %v5897 = vunpack.c.l.b16 %v5514
        %v5898 = vunpack.c.h.b16 %v5514
        %v5899 = vpack.c.b16 %v5647, %v5643
        %v5900 = vpack.c.b16 %v5648, %v5644
        %v5901 = vpack.c.b16 %v5649, %v5645
        %v5902 = vpack.c.b16 %v5650, %v5646
        %v5903 = vpack.c.b16 %v5655, %v5651
        %v5904 = vpack.c.b16 %v5656, %v5652
        %v5905 = vpack.c.b16 %v5657, %v5653
        %v5906 = vpack.c.b16 %v5658, %v5654
        %v5907 = vpack.c.b16 %v5663, %v5659
        %v5908 = vpack.c.b16 %v5664, %v5660
        %v5909 = vpack.c.b16 %v5665, %v5661
        %v5910 = vpack.c.b16 %v5666, %v5662
        %v5911 = vpack.c.b16 %v5671, %v5667
        %v5912 = vpack.c.b16 %v5672, %v5668
        %v5913 = vpack.c.b16 %v5673, %v5669
        %v5914 = vpack.c.b16 %v5674, %v5670
        %v5915 = vpack.c.b16 %v5679, %v5675
        %v5916 = vpack.c.b16 %v5680, %v5676
        %v5917 = vpack.c.b16 %v5681, %v5677
        %v5918 = vpack.c.b16 %v5682, %v5678
        %v5919 = vpack.c.b16 %v5687, %v5683
        %v5920 = vpack.c.b16 %v5688, %v5684
        %v5921 = vpack.c.b16 %v5689, %v5685
        %v5922 = vpack.c.b16 %v5690, %v5686
        %v5923 = vpack.c.b16 %v5695, %v5691
        %v5924 = vpack.c.b16 %v5696, %v5692
        %v5925 = vpack.c.b16 %v5697, %v5693
        %v5926 = vpack.c.b16 %v5698, %v5694
        %v5927 = vpack.c.b16 %v5703, %v5699
        %v5928 = vpack.c.b16 %v5704, %v5700
        %v5929 = vpack.c.b16 %v5705, %v5701
        %v5930 = vpack.c.b16 %v5706, %v5702
        %v5931 = vpack.c.b16 %v5711, %v5707
        %v5932 = vpack.c.b16 %v5712, %v5708
        %v5933 = vpack.c.b16 %v5713, %v5709
        %v5934 = vpack.c.b16 %v5714, %v5710
        %v5935 = vpack.c.b16 %v5719, %v5715
        %v5936 = vpack.c.b16 %v5720, %v5716
        %v5937 = vpack.c.b16 %v5721, %v5717
        %v5938 = vpack.c.b16 %v5722, %v5718
        %v5939 = vpack.c.b16 %v5727, %v5723
        %v5940 = vpack.c.b16 %v5728, %v5724
        %v5941 = vpack.c.b16 %v5729, %v5725
        %v5942 = vpack.c.b16 %v5730, %v5726
        %v5943 = vpack.c.b16 %v5735, %v5731
        %v5944 = vpack.c.b16 %v5736, %v5732
        %v5945 = vpack.c.b16 %v5737, %v5733
        %v5946 = vpack.c.b16 %v5738, %v5734
        %v5947 = vpack.c.b16 %v5743, %v5739
        %v5948 = vpack.c.b16 %v5744, %v5740
        %v5949 = vpack.c.b16 %v5745, %v5741
        %v5950 = vpack.c.b16 %v5746, %v5742
        %v5951 = vpack.c.b16 %v5751, %v5747
        %v5952 = vpack.c.b16 %v5752, %v5748
        %v5953 = vpack.c.b16 %v5753, %v5749
        %v5954 = vpack.c.b16 %v5754, %v5750
        %v5955 = vpack.c.b16 %v5759, %v5755
        %v5956 = vpack.c.b16 %v5760, %v5756
        %v5957 = vpack.c.b16 %v5761, %v5757
        %v5958 = vpack.c.b16 %v5762, %v5758
        %v5959 = vpack.c.b16 %v5767, %v5763
        %v5960 = vpack.c.b16 %v5768, %v5764
        %v5961 = vpack.c.b16 %v5769, %v5765
        %v5962 = vpack.c.b16 %v5770, %v5766
        %v5963 = vpack.c.b16 %v5775, %v5771
        %v5964 = vpack.c.b16 %v5776, %v5772
        %v5965 = vpack.c.b16 %v5777, %v5773
        %v5966 = vpack.c.b16 %v5778, %v5774
        %v5967 = vpack.c.b16 %v5783, %v5779
        %v5968 = vpack.c.b16 %v5784, %v5780
        %v5969 = vpack.c.b16 %v5785, %v5781
        %v5970 = vpack.c.b16 %v5786, %v5782
        %v5971 = vpack.c.b16 %v5791, %v5787
        %v5972 = vpack.c.b16 %v5792, %v5788
        %v5973 = vpack.c.b16 %v5793, %v5789
        %v5974 = vpack.c.b16 %v5794, %v5790
        %v5975 = vpack.c.b16 %v5799, %v5795
        %v5976 = vpack.c.b16 %v5800, %v5796
        %v5977 = vpack.c.b16 %v5801, %v5797
        %v5978 = vpack.c.b16 %v5802, %v5798
        %v5979 = vpack.c.b16 %v5807, %v5803
        %v5980 = vpack.c.b16 %v5808, %v5804
        %v5981 = vpack.c.b16 %v5809, %v5805
        %v5982 = vpack.c.b16 %v5810, %v5806
        %v5983 = vpack.c.b16 %v5815, %v5811
        %v5984 = vpack.c.b16 %v5816, %v5812
        %v5985 = vpack.c.b16 %v5817, %v5813
        %v5986 = vpack.c.b16 %v5818, %v5814
        %v5987 = vpack.c.b16 %v5823, %v5819
        %v5988 = vpack.c.b16 %v5824, %v5820
        %v5989 = vpack.c.b16 %v5825, %v5821
        %v5990 = vpack.c.b16 %v5826, %v5822
        %v5991 = vpack.c.b16 %v5831, %v5827
        %v5992 = vpack.c.b16 %v5832, %v5828
        %v5993 = vpack.c.b16 %v5833, %v5829
        %v5994 = vpack.c.b16 %v5834, %v5830
        %v5995 = vpack.c.b16 %v5839, %v5835
        %v5996 = vpack.c.b16 %v5840, %v5836
        %v5997 = vpack.c.b16 %v5841, %v5837
        %v5998 = vpack.c.b16 %v5842, %v5838
        %v5999 = vpack.c.b16 %v5847, %v5843
        %v6000 = vpack.c.b16 %v5848, %v5844
        %v6001 = vpack.c.b16 %v5849, %v5845
        %v6002 = vpack.c.b16 %v5850, %v5846
        %v6003 = vpack.c.b16 %v5855, %v5851
        %v6004 = vpack.c.b16 %v5856, %v5852
        %v6005 = vpack.c.b16 %v5857, %v5853
        %v6006 = vpack.c.b16 %v5858, %v5854
        %v6007 = vpack.c.b16 %v5863, %v5859
        %v6008 = vpack.c.b16 %v5864, %v5860
        %v6009 = vpack.c.b16 %v5865, %v5861
        %v6010 = vpack.c.b16 %v5866, %v5862
        %v6011 = vpack.c.b16 %v5871, %v5867
        %v6012 = vpack.c.b16 %v5872, %v5868
        %v6013 = vpack.c.b16 %v5873, %v5869
        %v6014 = vpack.c.b16 %v5874, %v5870
        %v6015 = vpack.c.b16 %v5879, %v5875
        %v6016 = vpack.c.b16 %v5880, %v5876
        %v6017 = vpack.c.b16 %v5881, %v5877
        %v6018 = vpack.c.b16 %v5882, %v5878
        %v6019 = vpack.c.b16 %v5887, %v5883
        %v6020 = vpack.c.b16 %v5888, %v5884
        %v6021 = vpack.c.b16 %v5889, %v5885
        %v6022 = vpack.c.b16 %v5890, %v5886
        %v6023 = vpack.c.b16 %v5895, %v5891
        %v6024 = vpack.c.b16 %v5896, %v5892
        %v6025 = vpack.c.b16 %v5897, %v5893
        %v6026 = vpack.c.b16 %v5898, %v5894
        %6155 = vmatprep.subr.bf16.mxu0 %v5900
        %6156 = vmatpush1.bf16.msra.mxu0 %v5899
        %6157 = vmatprep.subr.bf16.mxu0 %v5904
        %6158 = vmatpush1.bf16.msra.mxu0 %v5903
        %6159 = vmatprep.subr.bf16.mxu0 %v5908
        %6160 = vmatpush1.bf16.msra.mxu0 %v5907
        %6161 = vmatprep.subr.bf16.mxu0 %v5912
        %6162 = vmatpush1.bf16.msra.mxu0 %v5911
        %6163 = vmatprep.subr.bf16.mxu0 %v5916
        %6164 = vmatpush1.bf16.msra.mxu0 %v5915
        %6165 = vmatprep.subr.bf16.mxu0 %v5920
        %6166 = vmatpush1.bf16.msra.mxu0 %v5919
        %6167 = vmatprep.subr.bf16.mxu0 %v5924
        %6168 = vmatpush1.bf16.msra.mxu0 %v5923
        %6169 = vmatprep.subr.bf16.mxu0 %v5928
        %6170 = vmatpush1.bf16.msra.mxu0 %v5927
        %6171 = vmatprep.subr.bf16.mxu0 %v5932
        %6172 = vmatpush1.bf16.msra.mxu0 %v5931
        %6173 = vmatprep.subr.bf16.mxu0 %v5936
        %6174 = vmatpush1.bf16.msra.mxu0 %v5935
        %6175 = vmatprep.subr.bf16.mxu0 %v5940
        %6176 = vmatpush1.bf16.msra.mxu0 %v5939
        %6177 = vmatprep.subr.bf16.mxu0 %v5944
        %6178 = vmatpush1.bf16.msra.mxu0 %v5943
        %6179 = vmatprep.subr.bf16.mxu0 %v5948
        %6180 = vmatpush1.bf16.msra.mxu0 %v5947
        %6181 = vmatprep.subr.bf16.mxu0 %v5952
        %6182 = vmatpush1.bf16.msra.mxu0 %v5951
        %6183 = vmatprep.subr.bf16.mxu0 %v5956
        %6184 = vmatpush1.bf16.msra.mxu0 %v5955
        %6185 = vmatprep.subr.bf16.mxu0 %v5960
        %6186 = vmatpush1.bf16.msra.mxu0 %v5959
        %6187 = vmatprep.mubr.bf16.mxu0 %v5383
        %6188 = vmatmul.mubr.bf16.gmra.mrb[0].mxu0 %v5382
        %v6189 = vpop.f32.mrb[0].mxu0
        %v6190 = vadd.f32 0.0, %v6189
        %v6191 = vpop.f32.mrb[0].mxu0
        %v6192 = vadd.f32 0.0, %v6191
        %v6193 = vpop.f32.mrb[0].mxu0
        %v6194 = vpop.f32.mrb[0].mxu0
        %6195 = vdwg.mxu0
        %6196 = vmatprep.subr.bf16.mxu0 %v5964
        %6197 = vmatpush1.bf16.msra.mxu0 %v5963
        %6198 = vmatprep.subr.bf16.mxu0 %v5968
        %6199 = vmatpush1.bf16.msra.mxu0 %v5967
        %6200 = vmatprep.subr.bf16.mxu0 %v5972
        %6201 = vmatpush1.bf16.msra.mxu0 %v5971
        %6202 = vmatprep.subr.bf16.mxu0 %v5976
        %6203 = vmatpush1.bf16.msra.mxu0 %v5975
        %6204 = vmatprep.subr.bf16.mxu0 %v5980
        %6205 = vmatpush1.bf16.msra.mxu0 %v5979
        %6206 = vmatprep.subr.bf16.mxu0 %v5984
        %6207 = vmatpush1.bf16.msra.mxu0 %v5983
        %6208 = vmatprep.subr.bf16.mxu0 %v5988
        %6209 = vmatpush1.bf16.msra.mxu0 %v5987
        %6210 = vmatprep.subr.bf16.mxu0 %v5992
        %6211 = vmatpush1.bf16.msra.mxu0 %v5991
        %6212 = vmatprep.subr.bf16.mxu0 %v5996
        %6213 = vmatpush1.bf16.msra.mxu0 %v5995
        %6214 = vmatprep.subr.bf16.mxu0 %v6000
        %6215 = vmatpush1.bf16.msra.mxu0 %v5999
        %6216 = vmatprep.subr.bf16.mxu0 %v6004
        %6217 = vmatpush1.bf16.msra.mxu0 %v6003
        %6218 = vmatprep.subr.bf16.mxu0 %v6008
        %6219 = vmatpush1.bf16.msra.mxu0 %v6007
        %6220 = vmatprep.subr.bf16.mxu0 %v6012
        %6221 = vmatpush1.bf16.msra.mxu0 %v6011
        %6222 = vmatprep.subr.bf16.mxu0 %v6016
        %6223 = vmatpush1.bf16.msra.mxu0 %v6015
        %6224 = vmatprep.subr.bf16.mxu0 %v6020
        %6225 = vmatpush1.bf16.msra.mxu0 %v6019
        %6226 = vmatprep.subr.bf16.mxu0 %v6024
        %6227 = vmatpush1.bf16.msra.mxu0 %v6023
        %6228 = vmatprep.mubr.bf16.mxu0 %v5385
        %6229 = vmatmul.mubr.bf16.gmra.mrb[0].mxu0 %v5384
        %v6230 = vpop.f32.mrb[0].mxu0
        %v6231 = vadd.f32 %v6190, %v6230
        %v6232 = vpop.f32.mrb[0].mxu0
        %v6233 = vadd.f32 %v6192, %v6232
        %v6234 = vpop.f32.mrb[0].mxu0
        %v6235 = vpop.f32.mrb[0].mxu0
        %6236 = vdwg.mxu0
        %6237 = vmatprep.subr.bf16.mxu0 %v5902
        %6238 = vmatpush1.bf16.msra.mxu0 %v5901
        %6239 = vmatprep.subr.bf16.mxu0 %v5906
        %6240 = vmatpush1.bf16.msra.mxu0 %v5905
        %6241 = vmatprep.subr.bf16.mxu0 %v5910
        %6242 = vmatpush1.bf16.msra.mxu0 %v5909
        %6243 = vmatprep.subr.bf16.mxu0 %v5914
        %6244 = vmatpush1.bf16.msra.mxu0 %v5913
        %6245 = vmatprep.subr.bf16.mxu0 %v5918
        %6246 = vmatpush1.bf16.msra.mxu0 %v5917
        %6247 = vmatprep.subr.bf16.mxu0 %v5922
        %6248 = vmatpush1.bf16.msra.mxu0 %v5921
        %6249 = vmatprep.subr.bf16.mxu0 %v5926
        %6250 = vmatpush1.bf16.msra.mxu0 %v5925
        %6251 = vmatprep.subr.bf16.mxu0 %v5930
        %6252 = vmatpush1.bf16.msra.mxu0 %v5929
        %6253 = vmatprep.subr.bf16.mxu0 %v5934
        %6254 = vmatpush1.bf16.msra.mxu0 %v5933
        %6255 = vmatprep.subr.bf16.mxu0 %v5938
        %6256 = vmatpush1.bf16.msra.mxu0 %v5937
        %6257 = vmatprep.subr.bf16.mxu0 %v5942
        %6258 = vmatpush1.bf16.msra.mxu0 %v5941
        %6259 = vmatprep.subr.bf16.mxu0 %v5946
        %6260 = vmatpush1.bf16.msra.mxu0 %v5945
        %6261 = vmatprep.subr.bf16.mxu0 %v5950
        %6262 = vmatpush1.bf16.msra.mxu0 %v5949
        %6263 = vmatprep.subr.bf16.mxu0 %v5954
        %6264 = vmatpush1.bf16.msra.mxu0 %v5953
        %6265 = vmatprep.subr.bf16.mxu0 %v5958
        %6266 = vmatpush1.bf16.msra.mxu0 %v5957
        %6267 = vmatprep.subr.bf16.mxu0 %v5962
        %6268 = vmatpush1.bf16.msra.mxu0 %v5961
        %6269 = vmatprep.mubr.bf16.mxu0 %v5383
        %6270 = vmatmul.mubr.bf16.gmra.mrb[0].mxu0 %v5382
        %v6271 = vpop.f32.mrb[0].mxu0
        %v6272 = vadd.f32 0.0, %v6271
        %v6273 = vpop.f32.mrb[0].mxu0
        %v6274 = vadd.f32 0.0, %v6273
        %v6275 = vpop.f32.mrb[0].mxu0
        %v6276 = vpop.f32.mrb[0].mxu0
        %6277 = vdwg.mxu0
        %6278 = vmatprep.subr.bf16.mxu0 %v5966
        %6279 = vmatpush1.bf16.msra.mxu0 %v5965
        %6280 = vmatprep.subr.bf16.mxu0 %v5970
        %6281 = vmatpush1.bf16.msra.mxu0 %v5969
        %6282 = vmatprep.subr.bf16.mxu0 %v5974
        %6283 = vmatpush1.bf16.msra.mxu0 %v5973
        %6284 = vmatprep.subr.bf16.mxu0 %v5978
        %6285 = vmatpush1.bf16.msra.mxu0 %v5977
        %6286 = vmatprep.subr.bf16.mxu0 %v5982
        %6287 = vmatpush1.bf16.msra.mxu0 %v5981
        %6288 = vmatprep.subr.bf16.mxu0 %v5986
        %6289 = vmatpush1.bf16.msra.mxu0 %v5985
        %6290 = vmatprep.subr.bf16.mxu0 %v5990
        %6291 = vmatpush1.bf16.msra.mxu0 %v5989
        %6292 = vmatprep.subr.bf16.mxu0 %v5994
        %6293 = vmatpush1.bf16.msra.mxu0 %v5993
        %6294 = vmatprep.subr.bf16.mxu0 %v5998
        %6295 = vmatpush1.bf16.msra.mxu0 %v5997
        %6296 = vmatprep.subr.bf16.mxu0 %v6002
        %6297 = vmatpush1.bf16.msra.mxu0 %v6001
        %6298 = vmatprep.subr.bf16.mxu0 %v6006
        %6299 = vmatpush1.bf16.msra.mxu0 %v6005
        %6300 = vmatprep.subr.bf16.mxu0 %v6010
        %6301 = vmatpush1.bf16.msra.mxu0 %v6009
        %6302 = vmatprep.subr.bf16.mxu0 %v6014
        %6303 = vmatpush1.bf16.msra.mxu0 %v6013
        %6304 = vmatprep.subr.bf16.mxu0 %v6018
        %6305 = vmatpush1.bf16.msra.mxu0 %v6017
        %6306 = vmatprep.subr.bf16.mxu0 %v6022
        %6307 = vmatpush1.bf16.msra.mxu0 %v6021
        %6308 = vmatprep.subr.bf16.mxu0 %v6026
        %6309 = vmatpush1.bf16.msra.mxu0 %v6025
        %6310 = vmatprep.mubr.bf16.mxu0 %v5385
        %6311 = vmatmul.mubr.bf16.gmra.mrb[0].mxu0 %v5384
        %v6312 = vpop.f32.mrb[0].mxu0
        %v6313 = vadd.f32 %v6272, %v6312
        %v6314 = vpop.f32.mrb[0].mxu0
        %v6315 = vadd.f32 %v6274, %v6314
        %v6316 = vpop.f32.mrb[0].mxu0
        %v6317 = vpop.f32.mrb[0].mxu0
        %6318 = vdwg.mxu0
        %v6320 = vshrl.u32 %v5245, 16
        %v6322 = vshll.u32 %v5245, 16
        %v6324 = vrot.slane %v6322, 1
        %v6325 = vor.u32 %v6320, %v6324
        %v6327 = vshrl.u32 %v5246, 16
        %v6329 = vshll.u32 %v5246, 16
        %v6331 = vrot.slane %v6329, 1
        %v6332 = vor.u32 %v6327, %v6331
        %v6334 = vshrl.u32 %v5247, 16
        %v6336 = vshll.u32 %v5247, 16
        %v6338 = vrot.slane %v6336, 1
        %v6339 = vor.u32 %v6334, %v6338
        %v6341 = vshrl.u32 %v5248, 16
        %v6343 = vshll.u32 %v5248, 16
        %v6345 = vrot.slane %v6343, 1
        %v6346 = vor.u32 %v6341, %v6345
        %v6479 = vunpack.c.l.b16 %v5250
        %v6480 = vunpack.c.h.b16 %v5250
        %v6481 = vunpack.c.l.b16 %v5251
        %v6482 = vunpack.c.h.b16 %v5251
        %v6483 = vunpack.c.l.b16 %v5252
        %v6484 = vunpack.c.h.b16 %v5252
        %v6485 = vunpack.c.l.b16 %v5253
        %v6486 = vunpack.c.h.b16 %v5253
        %v6487 = vunpack.c.l.b16 %v5254
        %v6488 = vunpack.c.h.b16 %v5254
        %v6489 = vunpack.c.l.b16 %v5255
        %v6490 = vunpack.c.h.b16 %v5255
        %v6491 = vunpack.c.l.b16 %v5256
        %v6492 = vunpack.c.h.b16 %v5256
        %v6493 = vunpack.c.l.b16 %v5257
        %v6494 = vunpack.c.h.b16 %v5257
        %v6495 = vunpack.c.l.b16 %v5258
        %v6496 = vunpack.c.h.b16 %v5258
        %v6497 = vunpack.c.l.b16 %v5259
        %v6498 = vunpack.c.h.b16 %v5259
        %v6499 = vunpack.c.l.b16 %v5260
        %v6500 = vunpack.c.h.b16 %v5260
        %v6501 = vunpack.c.l.b16 %v5261
        %v6502 = vunpack.c.h.b16 %v5261
        %v6503 = vunpack.c.l.b16 %v5262
        %v6504 = vunpack.c.h.b16 %v5262
        %v6505 = vunpack.c.l.b16 %v5263
        %v6506 = vunpack.c.h.b16 %v5263
        %v6507 = vunpack.c.l.b16 %v5264
        %v6508 = vunpack.c.h.b16 %v5264
        %v6509 = vunpack.c.l.b16 %v5265
        %v6510 = vunpack.c.h.b16 %v5265
        %v6511 = vunpack.c.l.b16 %v5266
        %v6512 = vunpack.c.h.b16 %v5266
        %v6513 = vunpack.c.l.b16 %v5267
        %v6514 = vunpack.c.h.b16 %v5267
        %v6515 = vunpack.c.l.b16 %v5268
        %v6516 = vunpack.c.h.b16 %v5268
        %v6517 = vunpack.c.l.b16 %v5269
        %v6518 = vunpack.c.h.b16 %v5269
        %v6519 = vunpack.c.l.b16 %v5270
        %v6520 = vunpack.c.h.b16 %v5270
        %v6521 = vunpack.c.l.b16 %v5271
        %v6522 = vunpack.c.h.b16 %v5271
        %v6523 = vunpack.c.l.b16 %v5272
        %v6524 = vunpack.c.h.b16 %v5272
        %v6525 = vunpack.c.l.b16 %v5273
        %v6526 = vunpack.c.h.b16 %v5273
        %v6527 = vunpack.c.l.b16 %v5274
        %v6528 = vunpack.c.h.b16 %v5274
        %v6529 = vunpack.c.l.b16 %v5275
        %v6530 = vunpack.c.h.b16 %v5275
        %v6531 = vunpack.c.l.b16 %v5276
        %v6532 = vunpack.c.h.b16 %v5276
        %v6533 = vunpack.c.l.b16 %v5277
        %v6534 = vunpack.c.h.b16 %v5277
        %v6535 = vunpack.c.l.b16 %v5278
        %v6536 = vunpack.c.h.b16 %v5278
        %v6537 = vunpack.c.l.b16 %v5279
        %v6538 = vunpack.c.h.b16 %v5279
        %v6539 = vunpack.c.l.b16 %v5280
        %v6540 = vunpack.c.h.b16 %v5280
        %v6541 = vunpack.c.l.b16 %v5281
        %v6542 = vunpack.c.h.b16 %v5281
        %v6543 = vunpack.c.l.b16 %v5282
        %v6544 = vunpack.c.h.b16 %v5282
        %v6545 = vunpack.c.l.b16 %v5283
        %v6546 = vunpack.c.h.b16 %v5283
        %v6547 = vunpack.c.l.b16 %v5284
        %v6548 = vunpack.c.h.b16 %v5284
        %v6549 = vunpack.c.l.b16 %v5285
        %v6550 = vunpack.c.h.b16 %v5285
        %v6551 = vunpack.c.l.b16 %v5286
        %v6552 = vunpack.c.h.b16 %v5286
        %v6553 = vunpack.c.l.b16 %v5287
        %v6554 = vunpack.c.h.b16 %v5287
        %v6555 = vunpack.c.l.b16 %v5288
        %v6556 = vunpack.c.h.b16 %v5288
        %v6557 = vunpack.c.l.b16 %v5289
        %v6558 = vunpack.c.h.b16 %v5289
        %v6559 = vunpack.c.l.b16 %v5290
        %v6560 = vunpack.c.h.b16 %v5290
        %v6561 = vunpack.c.l.b16 %v5291
        %v6562 = vunpack.c.h.b16 %v5291
        %v6563 = vunpack.c.l.b16 %v5292
        %v6564 = vunpack.c.h.b16 %v5292
        %v6565 = vunpack.c.l.b16 %v5293
        %v6566 = vunpack.c.h.b16 %v5293
        %v6567 = vunpack.c.l.b16 %v5294
        %v6568 = vunpack.c.h.b16 %v5294
        %v6569 = vunpack.c.l.b16 %v5295
        %v6570 = vunpack.c.h.b16 %v5295
        %v6571 = vunpack.c.l.b16 %v5296
        %v6572 = vunpack.c.h.b16 %v5296
        %v6573 = vunpack.c.l.b16 %v5297
        %v6574 = vunpack.c.h.b16 %v5297
        %v6575 = vunpack.c.l.b16 %v5298
        %v6576 = vunpack.c.h.b16 %v5298
        %v6577 = vunpack.c.l.b16 %v5299
        %v6578 = vunpack.c.h.b16 %v5299
        %v6579 = vunpack.c.l.b16 %v5300
        %v6580 = vunpack.c.h.b16 %v5300
        %v6581 = vunpack.c.l.b16 %v5301
        %v6582 = vunpack.c.h.b16 %v5301
        %v6583 = vunpack.c.l.b16 %v5302
        %v6584 = vunpack.c.h.b16 %v5302
        %v6585 = vunpack.c.l.b16 %v5303
        %v6586 = vunpack.c.h.b16 %v5303
        %v6587 = vunpack.c.l.b16 %v5304
        %v6588 = vunpack.c.h.b16 %v5304
        %v6589 = vunpack.c.l.b16 %v5305
        %v6590 = vunpack.c.h.b16 %v5305
        %v6591 = vunpack.c.l.b16 %v5306
        %v6592 = vunpack.c.h.b16 %v5306
        %v6593 = vunpack.c.l.b16 %v5307
        %v6594 = vunpack.c.h.b16 %v5307
        %v6595 = vunpack.c.l.b16 %v5308
        %v6596 = vunpack.c.h.b16 %v5308
        %v6597 = vunpack.c.l.b16 %v5309
        %v6598 = vunpack.c.h.b16 %v5309
        %v6599 = vunpack.c.l.b16 %v5310
        %v6600 = vunpack.c.h.b16 %v5310
        %v6601 = vunpack.c.l.b16 %v5311
        %v6602 = vunpack.c.h.b16 %v5311
        %v6603 = vunpack.c.l.b16 %v5312
        %v6604 = vunpack.c.h.b16 %v5312
        %v6605 = vunpack.c.l.b16 %v5313
        %v6606 = vunpack.c.h.b16 %v5313
        %v6607 = vunpack.c.l.b16 %v5314
        %v6608 = vunpack.c.h.b16 %v5314
        %v6609 = vunpack.c.l.b16 %v5315
        %v6610 = vunpack.c.h.b16 %v5315
        %v6611 = vunpack.c.l.b16 %v5316
        %v6612 = vunpack.c.h.b16 %v5316
        %v6613 = vunpack.c.l.b16 %v5317
        %v6614 = vunpack.c.h.b16 %v5317
        %v6615 = vunpack.c.l.b16 %v5318
        %v6616 = vunpack.c.h.b16 %v5318
        %v6617 = vunpack.c.l.b16 %v5319
        %v6618 = vunpack.c.h.b16 %v5319
        %v6619 = vunpack.c.l.b16 %v5320
        %v6620 = vunpack.c.h.b16 %v5320
        %v6621 = vunpack.c.l.b16 %v5321
        %v6622 = vunpack.c.h.b16 %v5321
        %v6623 = vunpack.c.l.b16 %v5322
        %v6624 = vunpack.c.h.b16 %v5322
        %v6625 = vunpack.c.l.b16 %v5323
        %v6626 = vunpack.c.h.b16 %v5323
        %v6627 = vunpack.c.l.b16 %v5324
        %v6628 = vunpack.c.h.b16 %v5324
        %v6629 = vunpack.c.l.b16 %v5325
        %v6630 = vunpack.c.h.b16 %v5325
        %v6631 = vunpack.c.l.b16 %v5326
        %v6632 = vunpack.c.h.b16 %v5326
        %v6633 = vunpack.c.l.b16 %v5327
        %v6634 = vunpack.c.h.b16 %v5327
        %v6635 = vunpack.c.l.b16 %v5328
        %v6636 = vunpack.c.h.b16 %v5328
        %v6637 = vunpack.c.l.b16 %v5329
        %v6638 = vunpack.c.h.b16 %v5329
        %v6639 = vunpack.c.l.b16 %v5330
        %v6640 = vunpack.c.h.b16 %v5330
        %v6641 = vunpack.c.l.b16 %v5331
        %v6642 = vunpack.c.h.b16 %v5331
        %v6643 = vunpack.c.l.b16 %v5332
        %v6644 = vunpack.c.h.b16 %v5332
        %v6645 = vunpack.c.l.b16 %v5333
        %v6646 = vunpack.c.h.b16 %v5333
        %v6647 = vunpack.c.l.b16 %v5334
        %v6648 = vunpack.c.h.b16 %v5334
        %v6649 = vunpack.c.l.b16 %v5335
        %v6650 = vunpack.c.h.b16 %v5335
        %v6651 = vunpack.c.l.b16 %v5336
        %v6652 = vunpack.c.h.b16 %v5336
        %v6653 = vunpack.c.l.b16 %v5337
        %v6654 = vunpack.c.h.b16 %v5337
        %v6655 = vunpack.c.l.b16 %v5338
        %v6656 = vunpack.c.h.b16 %v5338
        %v6657 = vunpack.c.l.b16 %v5339
        %v6658 = vunpack.c.h.b16 %v5339
        %v6659 = vunpack.c.l.b16 %v5340
        %v6660 = vunpack.c.h.b16 %v5340
        %v6661 = vunpack.c.l.b16 %v5341
        %v6662 = vunpack.c.h.b16 %v5341
        %v6663 = vunpack.c.l.b16 %v5342
        %v6664 = vunpack.c.h.b16 %v5342
        %v6665 = vunpack.c.l.b16 %v5343
        %v6666 = vunpack.c.h.b16 %v5343
        %v6667 = vunpack.c.l.b16 %v5344
        %v6668 = vunpack.c.h.b16 %v5344
        %v6669 = vunpack.c.l.b16 %v5345
        %v6670 = vunpack.c.h.b16 %v5345
        %v6671 = vunpack.c.l.b16 %v5346
        %v6672 = vunpack.c.h.b16 %v5346
        %v6673 = vunpack.c.l.b16 %v5347
        %v6674 = vunpack.c.h.b16 %v5347
        %v6675 = vunpack.c.l.b16 %v5348
        %v6676 = vunpack.c.h.b16 %v5348
        %v6677 = vunpack.c.l.b16 %v5349
        %v6678 = vunpack.c.h.b16 %v5349
        %v6679 = vunpack.c.l.b16 %v5350
        %v6680 = vunpack.c.h.b16 %v5350
        %v6681 = vunpack.c.l.b16 %v5351
        %v6682 = vunpack.c.h.b16 %v5351
        %v6683 = vunpack.c.l.b16 %v5352
        %v6684 = vunpack.c.h.b16 %v5352
        %v6685 = vunpack.c.l.b16 %v5353
        %v6686 = vunpack.c.h.b16 %v5353
        %v6687 = vunpack.c.l.b16 %v5354
        %v6688 = vunpack.c.h.b16 %v5354
        %v6689 = vunpack.c.l.b16 %v5355
        %v6690 = vunpack.c.h.b16 %v5355
        %v6691 = vunpack.c.l.b16 %v5356
        %v6692 = vunpack.c.h.b16 %v5356
        %v6693 = vunpack.c.l.b16 %v5357
        %v6694 = vunpack.c.h.b16 %v5357
        %v6695 = vunpack.c.l.b16 %v5358
        %v6696 = vunpack.c.h.b16 %v5358
        %v6697 = vunpack.c.l.b16 %v5359
        %v6698 = vunpack.c.h.b16 %v5359
        %v6699 = vunpack.c.l.b16 %v5360
        %v6700 = vunpack.c.h.b16 %v5360
        %v6701 = vunpack.c.l.b16 %v5361
        %v6702 = vunpack.c.h.b16 %v5361
        %v6703 = vunpack.c.l.b16 %v5362
        %v6704 = vunpack.c.h.b16 %v5362
        %v6705 = vunpack.c.l.b16 %v5363
        %v6706 = vunpack.c.h.b16 %v5363
        %v6707 = vunpack.c.l.b16 %v5364
        %v6708 = vunpack.c.h.b16 %v5364
        %v6709 = vunpack.c.l.b16 %v5365
        %v6710 = vunpack.c.h.b16 %v5365
        %v6711 = vunpack.c.l.b16 %v5366
        %v6712 = vunpack.c.h.b16 %v5366
        %v6713 = vunpack.c.l.b16 %v5367
        %v6714 = vunpack.c.h.b16 %v5367
        %v6715 = vunpack.c.l.b16 %v5368
        %v6716 = vunpack.c.h.b16 %v5368
        %v6717 = vunpack.c.l.b16 %v5369
        %v6718 = vunpack.c.h.b16 %v5369
        %v6719 = vunpack.c.l.b16 %v5370
        %v6720 = vunpack.c.h.b16 %v5370
        %v6721 = vunpack.c.l.b16 %v5371
        %v6722 = vunpack.c.h.b16 %v5371
        %v6723 = vunpack.c.l.b16 %v5372
        %v6724 = vunpack.c.h.b16 %v5372
        %v6725 = vunpack.c.l.b16 %v5373
        %v6726 = vunpack.c.h.b16 %v5373
        %v6727 = vunpack.c.l.b16 %v5374
        %v6728 = vunpack.c.h.b16 %v5374
        %v6729 = vunpack.c.l.b16 %v5375
        %v6730 = vunpack.c.h.b16 %v5375
        %v6731 = vunpack.c.l.b16 %v5376
        %v6732 = vunpack.c.h.b16 %v5376
        %v6733 = vunpack.c.l.b16 %v5377
        %v6734 = vunpack.c.h.b16 %v5377
        %v6735 = vpack.c.b16 %v6483, %v6479
        %v6736 = vpack.c.b16 %v6484, %v6480
        %v6737 = vpack.c.b16 %v6485, %v6481
        %v6738 = vpack.c.b16 %v6486, %v6482
        %v6739 = vpack.c.b16 %v6491, %v6487
        %v6740 = vpack.c.b16 %v6492, %v6488
        %v6741 = vpack.c.b16 %v6493, %v6489
        %v6742 = vpack.c.b16 %v6494, %v6490
        %v6743 = vpack.c.b16 %v6499, %v6495
        %v6744 = vpack.c.b16 %v6500, %v6496
        %v6745 = vpack.c.b16 %v6501, %v6497
        %v6746 = vpack.c.b16 %v6502, %v6498
        %v6747 = vpack.c.b16 %v6507, %v6503
        %v6748 = vpack.c.b16 %v6508, %v6504
        %v6749 = vpack.c.b16 %v6509, %v6505
        %v6750 = vpack.c.b16 %v6510, %v6506
        %v6751 = vpack.c.b16 %v6515, %v6511
        %v6752 = vpack.c.b16 %v6516, %v6512
        %v6753 = vpack.c.b16 %v6517, %v6513
        %v6754 = vpack.c.b16 %v6518, %v6514
        %v6755 = vpack.c.b16 %v6523, %v6519
        %v6756 = vpack.c.b16 %v6524, %v6520
        %v6757 = vpack.c.b16 %v6525, %v6521
        %v6758 = vpack.c.b16 %v6526, %v6522
        %v6759 = vpack.c.b16 %v6531, %v6527
        %v6760 = vpack.c.b16 %v6532, %v6528
        %v6761 = vpack.c.b16 %v6533, %v6529
        %v6762 = vpack.c.b16 %v6534, %v6530
        %v6763 = vpack.c.b16 %v6539, %v6535
        %v6764 = vpack.c.b16 %v6540, %v6536
        %v6765 = vpack.c.b16 %v6541, %v6537
        %v6766 = vpack.c.b16 %v6542, %v6538
        %v6767 = vpack.c.b16 %v6547, %v6543
        %v6768 = vpack.c.b16 %v6548, %v6544
        %v6769 = vpack.c.b16 %v6549, %v6545
        %v6770 = vpack.c.b16 %v6550, %v6546
        %v6771 = vpack.c.b16 %v6555, %v6551
        %v6772 = vpack.c.b16 %v6556, %v6552
        %v6773 = vpack.c.b16 %v6557, %v6553
        %v6774 = vpack.c.b16 %v6558, %v6554
        %v6775 = vpack.c.b16 %v6563, %v6559
        %v6776 = vpack.c.b16 %v6564, %v6560
        %v6777 = vpack.c.b16 %v6565, %v6561
        %v6778 = vpack.c.b16 %v6566, %v6562
        %v6779 = vpack.c.b16 %v6571, %v6567
        %v6780 = vpack.c.b16 %v6572, %v6568
        %v6781 = vpack.c.b16 %v6573, %v6569
        %v6782 = vpack.c.b16 %v6574, %v6570
        %v6783 = vpack.c.b16 %v6579, %v6575
        %v6784 = vpack.c.b16 %v6580, %v6576
        %v6785 = vpack.c.b16 %v6581, %v6577
        %v6786 = vpack.c.b16 %v6582, %v6578
        %v6787 = vpack.c.b16 %v6587, %v6583
        %v6788 = vpack.c.b16 %v6588, %v6584
        %v6789 = vpack.c.b16 %v6589, %v6585
        %v6790 = vpack.c.b16 %v6590, %v6586
        %v6791 = vpack.c.b16 %v6595, %v6591
        %v6792 = vpack.c.b16 %v6596, %v6592
        %v6793 = vpack.c.b16 %v6597, %v6593
        %v6794 = vpack.c.b16 %v6598, %v6594
        %v6795 = vpack.c.b16 %v6603, %v6599
        %v6796 = vpack.c.b16 %v6604, %v6600
        %v6797 = vpack.c.b16 %v6605, %v6601
        %v6798 = vpack.c.b16 %v6606, %v6602
        %v6799 = vpack.c.b16 %v6611, %v6607
        %v6800 = vpack.c.b16 %v6612, %v6608
        %v6801 = vpack.c.b16 %v6613, %v6609
        %v6802 = vpack.c.b16 %v6614, %v6610
        %v6803 = vpack.c.b16 %v6619, %v6615
        %v6804 = vpack.c.b16 %v6620, %v6616
        %v6805 = vpack.c.b16 %v6621, %v6617
        %v6806 = vpack.c.b16 %v6622, %v6618
        %v6807 = vpack.c.b16 %v6627, %v6623
        %v6808 = vpack.c.b16 %v6628, %v6624
        %v6809 = vpack.c.b16 %v6629, %v6625
        %v6810 = vpack.c.b16 %v6630, %v6626
        %v6811 = vpack.c.b16 %v6635, %v6631
        %v6812 = vpack.c.b16 %v6636, %v6632
        %v6813 = vpack.c.b16 %v6637, %v6633
        %v6814 = vpack.c.b16 %v6638, %v6634
        %v6815 = vpack.c.b16 %v6643, %v6639
        %v6816 = vpack.c.b16 %v6644, %v6640
        %v6817 = vpack.c.b16 %v6645, %v6641
        %v6818 = vpack.c.b16 %v6646, %v6642
        %v6819 = vpack.c.b16 %v6651, %v6647
        %v6820 = vpack.c.b16 %v6652, %v6648
        %v6821 = vpack.c.b16 %v6653, %v6649
        %v6822 = vpack.c.b16 %v6654, %v6650
        %v6823 = vpack.c.b16 %v6659, %v6655
        %v6824 = vpack.c.b16 %v6660, %v6656
        %v6825 = vpack.c.b16 %v6661, %v6657
        %v6826 = vpack.c.b16 %v6662, %v6658
        %v6827 = vpack.c.b16 %v6667, %v6663
        %v6828 = vpack.c.b16 %v6668, %v6664
        %v6829 = vpack.c.b16 %v6669, %v6665
        %v6830 = vpack.c.b16 %v6670, %v6666
        %v6831 = vpack.c.b16 %v6675, %v6671
        %v6832 = vpack.c.b16 %v6676, %v6672
        %v6833 = vpack.c.b16 %v6677, %v6673
        %v6834 = vpack.c.b16 %v6678, %v6674
        %v6835 = vpack.c.b16 %v6683, %v6679
        %v6836 = vpack.c.b16 %v6684, %v6680
        %v6837 = vpack.c.b16 %v6685, %v6681
        %v6838 = vpack.c.b16 %v6686, %v6682
        %v6839 = vpack.c.b16 %v6691, %v6687
        %v6840 = vpack.c.b16 %v6692, %v6688
        %v6841 = vpack.c.b16 %v6693, %v6689
        %v6842 = vpack.c.b16 %v6694, %v6690
        %v6843 = vpack.c.b16 %v6699, %v6695
        %v6844 = vpack.c.b16 %v6700, %v6696
        %v6845 = vpack.c.b16 %v6701, %v6697
        %v6846 = vpack.c.b16 %v6702, %v6698
        %v6847 = vpack.c.b16 %v6707, %v6703
        %v6848 = vpack.c.b16 %v6708, %v6704
        %v6849 = vpack.c.b16 %v6709, %v6705
        %v6850 = vpack.c.b16 %v6710, %v6706
        %v6851 = vpack.c.b16 %v6715, %v6711
        %v6852 = vpack.c.b16 %v6716, %v6712
        %v6853 = vpack.c.b16 %v6717, %v6713
        %v6854 = vpack.c.b16 %v6718, %v6714
        %v6855 = vpack.c.b16 %v6723, %v6719
        %v6856 = vpack.c.b16 %v6724, %v6720
        %v6857 = vpack.c.b16 %v6725, %v6721
        %v6858 = vpack.c.b16 %v6726, %v6722
        %v6859 = vpack.c.b16 %v6731, %v6727
        %v6860 = vpack.c.b16 %v6732, %v6728
        %v6861 = vpack.c.b16 %v6733, %v6729
        %v6862 = vpack.c.b16 %v6734, %v6730
        %6991 = vmatprep.subr.bf16.mxu0 %v6736
        %6992 = vmatpush1.bf16.msra.mxu0 %v6735
        %6993 = vmatprep.subr.bf16.mxu0 %v6740
        %6994 = vmatpush1.bf16.msra.mxu0 %v6739
        %6995 = vmatprep.subr.bf16.mxu0 %v6744
        %6996 = vmatpush1.bf16.msra.mxu0 %v6743
        %6997 = vmatprep.subr.bf16.mxu0 %v6748
        %6998 = vmatpush1.bf16.msra.mxu0 %v6747
        %6999 = vmatprep.subr.bf16.mxu0 %v6752
        %7000 = vmatpush1.bf16.msra.mxu0 %v6751
        %7001 = vmatprep.subr.bf16.mxu0 %v6756
        %7002 = vmatpush1.bf16.msra.mxu0 %v6755
        %7003 = vmatprep.subr.bf16.mxu0 %v6760
        %7004 = vmatpush1.bf16.msra.mxu0 %v6759
        %7005 = vmatprep.subr.bf16.mxu0 %v6764
        %7006 = vmatpush1.bf16.msra.mxu0 %v6763
        %7007 = vmatprep.subr.bf16.mxu0 %v6768
        %7008 = vmatpush1.bf16.msra.mxu0 %v6767
        %7009 = vmatprep.subr.bf16.mxu0 %v6772
        %7010 = vmatpush1.bf16.msra.mxu0 %v6771
        %7011 = vmatprep.subr.bf16.mxu0 %v6776
        %7012 = vmatpush1.bf16.msra.mxu0 %v6775
        %7013 = vmatprep.subr.bf16.mxu0 %v6780
        %7014 = vmatpush1.bf16.msra.mxu0 %v6779
        %7015 = vmatprep.subr.bf16.mxu0 %v6784
        %7016 = vmatpush1.bf16.msra.mxu0 %v6783
        %7017 = vmatprep.subr.bf16.mxu0 %v6788
        %7018 = vmatpush1.bf16.msra.mxu0 %v6787
        %7019 = vmatprep.subr.bf16.mxu0 %v6792
        %7020 = vmatpush1.bf16.msra.mxu0 %v6791
        %7021 = vmatprep.subr.bf16.mxu0 %v6796
        %7022 = vmatpush1.bf16.msra.mxu0 %v6795
        %7023 = vmatprep.mubr.bf16.mxu0 %v6332
        %7024 = vmatmul.mubr.bf16.gmra.mrb[0].mxu0 %v6325
        %v7025 = vpop.f32.mrb[0].mxu0
        %v7026 = vadd.f32 %v6231, %v7025
        %v7027 = vpop.f32.mrb[0].mxu0
        %v7028 = vadd.f32 %v6233, %v7027
        %v7029 = vpop.f32.mrb[0].mxu0
        %v7030 = vpop.f32.mrb[0].mxu0
        %7031 = vdwg.mxu0
        %7032 = vmatprep.subr.bf16.mxu0 %v6800
        %7033 = vmatpush1.bf16.msra.mxu0 %v6799
        %7034 = vmatprep.subr.bf16.mxu0 %v6804
        %7035 = vmatpush1.bf16.msra.mxu0 %v6803
        %7036 = vmatprep.subr.bf16.mxu0 %v6808
        %7037 = vmatpush1.bf16.msra.mxu0 %v6807
        %7038 = vmatprep.subr.bf16.mxu0 %v6812
        %7039 = vmatpush1.bf16.msra.mxu0 %v6811
        %7040 = vmatprep.subr.bf16.mxu0 %v6816
        %7041 = vmatpush1.bf16.msra.mxu0 %v6815
        %7042 = vmatprep.subr.bf16.mxu0 %v6820
        %7043 = vmatpush1.bf16.msra.mxu0 %v6819
        %7044 = vmatprep.subr.bf16.mxu0 %v6824
        %7045 = vmatpush1.bf16.msra.mxu0 %v6823
        %7046 = vmatprep.subr.bf16.mxu0 %v6828
        %7047 = vmatpush1.bf16.msra.mxu0 %v6827
        %7048 = vmatprep.subr.bf16.mxu0 %v6832
        %7049 = vmatpush1.bf16.msra.mxu0 %v6831
        %7050 = vmatprep.subr.bf16.mxu0 %v6836
        %7051 = vmatpush1.bf16.msra.mxu0 %v6835
        %7052 = vmatprep.subr.bf16.mxu0 %v6840
        %7053 = vmatpush1.bf16.msra.mxu0 %v6839
        %7054 = vmatprep.subr.bf16.mxu0 %v6844
        %7055 = vmatpush1.bf16.msra.mxu0 %v6843
        %7056 = vmatprep.subr.bf16.mxu0 %v6848
        %7057 = vmatpush1.bf16.msra.mxu0 %v6847
        %7058 = vmatprep.subr.bf16.mxu0 %v6852
        %7059 = vmatpush1.bf16.msra.mxu0 %v6851
        %7060 = vmatprep.subr.bf16.mxu0 %v6856
        %7061 = vmatpush1.bf16.msra.mxu0 %v6855
        %7062 = vmatprep.subr.bf16.mxu0 %v6860
        %7063 = vmatpush1.bf16.msra.mxu0 %v6859
        %7064 = vmatprep.mubr.bf16.mxu0 %v6346
        %7065 = vmatmul.mubr.bf16.gmra.mrb[0].mxu0 %v6339
        %v7066 = vpop.f32.mrb[0].mxu0
        %v7067 = vadd.f32 %v7026, %v7066
        %v7068 = vpop.f32.mrb[0].mxu0
        %v7069 = vadd.f32 %v7028, %v7068
        %v7070 = vpop.f32.mrb[0].mxu0
        %v7071 = vpop.f32.mrb[0].mxu0
        %7072 = vdwg.mxu0
        %7073 = vmatprep.subr.bf16.mxu0 %v6738
        %7074 = vmatpush1.bf16.msra.mxu0 %v6737
        %7075 = vmatprep.subr.bf16.mxu0 %v6742
        %7076 = vmatpush1.bf16.msra.mxu0 %v6741
        %7077 = vmatprep.subr.bf16.mxu0 %v6746
        %7078 = vmatpush1.bf16.msra.mxu0 %v6745
        %7079 = vmatprep.subr.bf16.mxu0 %v6750
        %7080 = vmatpush1.bf16.msra.mxu0 %v6749
        %7081 = vmatprep.subr.bf16.mxu0 %v6754
        %7082 = vmatpush1.bf16.msra.mxu0 %v6753
        %7083 = vmatprep.subr.bf16.mxu0 %v6758
        %7084 = vmatpush1.bf16.msra.mxu0 %v6757
        %7085 = vmatprep.subr.bf16.mxu0 %v6762
        %7086 = vmatpush1.bf16.msra.mxu0 %v6761
        %7087 = vmatprep.subr.bf16.mxu0 %v6766
        %7088 = vmatpush1.bf16.msra.mxu0 %v6765
        %7089 = vmatprep.subr.bf16.mxu0 %v6770
        %7090 = vmatpush1.bf16.msra.mxu0 %v6769
        %7091 = vmatprep.subr.bf16.mxu0 %v6774
        %7092 = vmatpush1.bf16.msra.mxu0 %v6773
        %7093 = vmatprep.subr.bf16.mxu0 %v6778
        %7094 = vmatpush1.bf16.msra.mxu0 %v6777
        %7095 = vmatprep.subr.bf16.mxu0 %v6782
        %7096 = vmatpush1.bf16.msra.mxu0 %v6781
        %7097 = vmatprep.subr.bf16.mxu0 %v6786
        %7098 = vmatpush1.bf16.msra.mxu0 %v6785
        %7099 = vmatprep.subr.bf16.mxu0 %v6790
        %7100 = vmatpush1.bf16.msra.mxu0 %v6789
        %7101 = vmatprep.subr.bf16.mxu0 %v6794
        %7102 = vmatpush1.bf16.msra.mxu0 %v6793
        %7103 = vmatprep.subr.bf16.mxu0 %v6798
        %7104 = vmatpush1.bf16.msra.mxu0 %v6797
        %7105 = vmatprep.mubr.bf16.mxu0 %v6332
        %7106 = vmatmul.mubr.bf16.gmra.mrb[0].mxu0 %v6325
        %v7107 = vpop.f32.mrb[0].mxu0
        %v7108 = vadd.f32 %v6313, %v7107
        %v7109 = vpop.f32.mrb[0].mxu0
        %v7110 = vadd.f32 %v6315, %v7109
        %v7111 = vpop.f32.mrb[0].mxu0
        %v7112 = vpop.f32.mrb[0].mxu0
        %7113 = vdwg.mxu0
        %7114 = vmatprep.subr.bf16.mxu0 %v6802
        %7115 = vmatpush1.bf16.msra.mxu0 %v6801
        %7116 = vmatprep.subr.bf16.mxu0 %v6806
        %7117 = vmatpush1.bf16.msra.mxu0 %v6805
        %7118 = vmatprep.subr.bf16.mxu0 %v6810
        %7119 = vmatpush1.bf16.msra.mxu0 %v6809
        %7120 = vmatprep.subr.bf16.mxu0 %v6814
        %7121 = vmatpush1.bf16.msra.mxu0 %v6813
        %7122 = vmatprep.subr.bf16.mxu0 %v6818
        %7123 = vmatpush1.bf16.msra.mxu0 %v6817
        %7124 = vmatprep.subr.bf16.mxu0 %v6822
        %7125 = vmatpush1.bf16.msra.mxu0 %v6821
        %7126 = vmatprep.subr.bf16.mxu0 %v6826
        %7127 = vmatpush1.bf16.msra.mxu0 %v6825
        %7128 = vmatprep.subr.bf16.mxu0 %v6830
        %7129 = vmatpush1.bf16.msra.mxu0 %v6829
        %7130 = vmatprep.subr.bf16.mxu0 %v6834
        %7131 = vmatpush1.bf16.msra.mxu0 %v6833
        %7132 = vmatprep.subr.bf16.mxu0 %v6838
        %7133 = vmatpush1.bf16.msra.mxu0 %v6837
        %7134 = vmatprep.subr.bf16.mxu0 %v6842
        %7135 = vmatpush1.bf16.msra.mxu0 %v6841
        %7136 = vmatprep.subr.bf16.mxu0 %v6846
        %7137 = vmatpush1.bf16.msra.mxu0 %v6845
        %7138 = vmatprep.subr.bf16.mxu0 %v6850
        %7139 = vmatpush1.bf16.msra.mxu0 %v6849
        %7140 = vmatprep.subr.bf16.mxu0 %v6854
        %7141 = vmatpush1.bf16.msra.mxu0 %v6853
        %7142 = vmatprep.subr.bf16.mxu0 %v6858
        %7143 = vmatpush1.bf16.msra.mxu0 %v6857
        %7144 = vmatprep.subr.bf16.mxu0 %v6862
        %7145 = vmatpush1.bf16.msra.mxu0 %v6861
        %7146 = vmatprep.mubr.bf16.mxu0 %v6346
        %7147 = vmatmul.mubr.bf16.gmra.mrb[0].mxu0 %v6339
        %v7148 = vpop.f32.mrb[0].mxu0
        %v7149 = vadd.f32 %v7108, %v7148
        %v7150 = vpop.f32.mrb[0].mxu0
        %v7151 = vadd.f32 %v7110, %v7150
        %v7152 = vpop.f32.mrb[0].mxu0
        %v7153 = vpop.f32.mrb[0].mxu0
        %7154 = vdwg.mxu0
        %v7155 = vld [vmem:[#allocation15] sm:$0xf]
        %v7157 = vlaneseq
        %v7158 = vshrl.u32 %v7157, 7
        %v7159 = vsub.s32 0, %v7158
        %v7160 = vrot.slane %v7155, %v7159
        %v7161 = vlaneseq
        %v7162 = vshrl.u32 %v7161, 7
        %v7163 = vsub.s32 1, %v7162
        %v7164 = vrot.slane %v7155, %v7163
        %v7165 = vlaneseq
        %v7166 = vshrl.u32 %v7165, 7
        %v7167 = vsub.s32 2, %v7166
        %v7168 = vrot.slane %v7155, %v7167
        %v7169 = vlaneseq
        %v7170 = vshrl.u32 %v7169, 7
        %v7171 = vsub.s32 3, %v7170
        %v7172 = vrot.slane %v7155, %v7171
        %v7177 = vadd.f32 %v7067, %v7160
        %v7178 = vadd.f32 %v7069, %v7164
        %v7179 = vadd.f32 %v7149, %v7168
        %v7180 = vadd.f32 %v7151, %v7172
        %v7181 = vxor.u32 %v7177, 2147483648
        %v7182 = vxor.u32 %v7178, 2147483648
        %v7183 = vxor.u32 %v7179, 2147483648
        %v7184 = vxor.u32 %v7180, 2147483648
        %v7185 = vmul.f32 %v7181, 1.442695
        %v7186 = vpow.pop %v7185
        %v7187 = vmul.f32 %v7182, 1.442695
        %v7188 = vpow.pop %v7187
        %v7189 = vmul.f32 %v7183, 1.442695
        %v7190 = vpow.pop %v7189
        %v7191 = vmul.f32 %v7184, 1.442695
        %v7192 = vpow.pop %v7191
        %v7193 = vadd.f32 %v7186, 1.0
        %v7194 = vadd.f32 %v7188, 1.0
        %v7195 = vadd.f32 %v7190, 1.0
        %v7196 = vadd.f32 %v7192, 1.0
        %v7197 = vrcp.pop %v7193
        %v7198 = vmul.f32 1.0, %v7197
        %v7199 = vrcp.pop %v7194
        %v7200 = vmul.f32 1.0, %v7199
        %v7201 = vrcp.pop %v7195
        %v7202 = vmul.f32 1.0, %v7201
        %v7203 = vrcp.pop %v7196
        %v7204 = vmul.f32 1.0, %v7203
        %v7205 = vmul.f32 %v7177, %v7198
        %v7206 = vmul.f32 %v7178, %v7200
        %v7207 = vmul.f32 %v7179, %v7202
        %v7208 = vmul.f32 %v7180, %v7204
        %v7209 = vld [vmem:[#allocation3] sm:$0xfc]
        %v7210 = vld [vmem:[#allocation3 + $0x8] sm:$0xfc]
        %v7211 = vld [vmem:[#allocation3 + $0x10] sm:$0xfc]
        %v7212 = vld [vmem:[#allocation3 + $0x18] sm:$0xfc]
        %v7213 = vld [vmem:[#allocation3 + $0x20] sm:$0x3]
        %v7214 = vld [vmem:[#allocation3 + $0x28] sm:$0x3]
        %v7215 = vld [vmem:[#allocation3 + $0x30] sm:$0x3]
        %v7216 = vld [vmem:[#allocation3 + $0x38] sm:$0x3]
        %v7217 = vpack.c.bf16 %v7213, %v7209
        %v7218 = vpack.c.bf16 %v7214, %v7210
        %v7219 = vpack.c.bf16 %v7215, %v7211
        %v7220 = vpack.c.bf16 %v7216, %v7212
        %v7221 = vld [vmem:[#allocation10] sm:$0xff]
        %v7222 = vld [vmem:[#allocation10 + $0x8] sm:$0xff]
        %v7223 = vld [vmem:[#allocation10 + $0x10] sm:$0xff]
        %v7224 = vld [vmem:[#allocation10 + $0x18] sm:$0xff]
        %v7225 = vld [vmem:[#allocation10 + $0x20] sm:$0xff]
        %v7226 = vld [vmem:[#allocation10 + $0x28] sm:$0xff]
        %v7227 = vld [vmem:[#allocation10 + $0x30] sm:$0xff]
        %v7228 = vld [vmem:[#allocation10 + $0x38] sm:$0xff]
        %v7229 = vld [vmem:[#allocation10 + $0x40] sm:$0xff]
        %v7230 = vld [vmem:[#allocation10 + $0x48] sm:$0xff]
        %v7231 = vld [vmem:[#allocation10 + $0x50] sm:$0xff]
        %v7232 = vld [vmem:[#allocation10 + $0x58] sm:$0xff]
        %v7233 = vld [vmem:[#allocation10 + $0x60] sm:$0xff]
        %v7234 = vld [vmem:[#allocation10 + $0x68] sm:$0xff]
        %v7235 = vld [vmem:[#allocation10 + $0x70] sm:$0xff]
        %v7236 = vld [vmem:[#allocation10 + $0x78] sm:$0xff]
        %v7237 = vld [vmem:[#allocation10 + $0x80] sm:$0xff]
        %v7238 = vld [vmem:[#allocation10 + $0x88] sm:$0xff]
        %v7239 = vld [vmem:[#allocation10 + $0x90] sm:$0xff]
        %v7240 = vld [vmem:[#allocation10 + $0x98] sm:$0xff]
        %v7241 = vld [vmem:[#allocation10 + $0xa0] sm:$0xff]
        %v7242 = vld [vmem:[#allocation10 + $0xa8] sm:$0xff]
        %v7243 = vld [vmem:[#allocation10 + $0xb0] sm:$0xff]
        %v7244 = vld [vmem:[#allocation10 + $0xb8] sm:$0xff]
        %v7245 = vld [vmem:[#allocation10 + $0xc0] sm:$0xff]
        %v7246 = vld [vmem:[#allocation10 + $0xc8] sm:$0xff]
        %v7247 = vld [vmem:[#allocation10 + $0xd0] sm:$0xff]
        %v7248 = vld [vmem:[#allocation10 + $0xd8] sm:$0xff]
        %v7249 = vld [vmem:[#allocation10 + $0xe0] sm:$0xff]
        %v7250 = vld [vmem:[#allocation10 + $0xe8] sm:$0xff]
        %v7251 = vld [vmem:[#allocation10 + $0xf0] sm:$0xff]
        %v7252 = vld [vmem:[#allocation10 + $0xf8] sm:$0xff]
        %v7253 = vld [vmem:[#allocation10 + $0x100] sm:$0xff]
        %v7254 = vld [vmem:[#allocation10 + $0x108] sm:$0xff]
        %v7255 = vld [vmem:[#allocation10 + $0x110] sm:$0xff]
        %v7256 = vld [vmem:[#allocation10 + $0x118] sm:$0xff]
        %v7257 = vld [vmem:[#allocation10 + $0x120] sm:$0xff]
        %v7258 = vld [vmem:[#allocation10 + $0x128] sm:$0xff]
        %v7259 = vld [vmem:[#allocation10 + $0x130] sm:$0xff]
        %v7260 = vld [vmem:[#allocation10 + $0x138] sm:$0xff]
        %v7261 = vld [vmem:[#allocation10 + $0x140] sm:$0xff]
        %v7262 = vld [vmem:[#allocation10 + $0x148] sm:$0xff]
        %v7263 = vld [vmem:[#allocation10 + $0x150] sm:$0xff]
        %v7264 = vld [vmem:[#allocation10 + $0x158] sm:$0xff]
        %v7265 = vld [vmem:[#allocation10 + $0x160] sm:$0xff]
        %v7266 = vld [vmem:[#allocation10 + $0x168] sm:$0xff]
        %v7267 = vld [vmem:[#allocation10 + $0x170] sm:$0xff]
        %v7268 = vld [vmem:[#allocation10 + $0x178] sm:$0xff]
        %v7269 = vld [vmem:[#allocation10 + $0x180] sm:$0xff]
        %v7270 = vld [vmem:[#allocation10 + $0x188] sm:$0xff]
        %v7271 = vld [vmem:[#allocation10 + $0x190] sm:$0xff]
        %v7272 = vld [vmem:[#allocation10 + $0x198] sm:$0xff]
        %v7273 = vld [vmem:[#allocation10 + $0x1a0] sm:$0xff]
        %v7274 = vld [vmem:[#allocation10 + $0x1a8] sm:$0xff]
        %v7275 = vld [vmem:[#allocation10 + $0x1b0] sm:$0xff]
        %v7276 = vld [vmem:[#allocation10 + $0x1b8] sm:$0xff]
        %v7277 = vld [vmem:[#allocation10 + $0x1c0] sm:$0xff]
        %v7278 = vld [vmem:[#allocation10 + $0x1c8] sm:$0xff]
        %v7279 = vld [vmem:[#allocation10 + $0x1d0] sm:$0xff]
        %v7280 = vld [vmem:[#allocation10 + $0x1d8] sm:$0xff]
        %v7281 = vld [vmem:[#allocation10 + $0x1e0] sm:$0xff]
        %v7282 = vld [vmem:[#allocation10 + $0x1e8] sm:$0xff]
        %v7283 = vld [vmem:[#allocation10 + $0x1f0] sm:$0xff]
        %v7284 = vld [vmem:[#allocation10 + $0x1f8] sm:$0xff]
        %v7285 = vld [vmem:[#allocation10 + $0x200] sm:$0xff]
        %v7286 = vld [vmem:[#allocation10 + $0x208] sm:$0xff]
        %v7287 = vld [vmem:[#allocation10 + $0x210] sm:$0xff]
        %v7288 = vld [vmem:[#allocation10 + $0x218] sm:$0xff]
        %v7289 = vld [vmem:[#allocation10 + $0x220] sm:$0xff]
        %v7290 = vld [vmem:[#allocation10 + $0x228] sm:$0xff]
        %v7291 = vld [vmem:[#allocation10 + $0x230] sm:$0xff]
        %v7292 = vld [vmem:[#allocation10 + $0x238] sm:$0xff]
        %v7293 = vld [vmem:[#allocation10 + $0x240] sm:$0xff]
        %v7294 = vld [vmem:[#allocation10 + $0x248] sm:$0xff]
        %v7295 = vld [vmem:[#allocation10 + $0x250] sm:$0xff]
        %v7296 = vld [vmem:[#allocation10 + $0x258] sm:$0xff]
        %v7297 = vld [vmem:[#allocation10 + $0x260] sm:$0xff]
        %v7298 = vld [vmem:[#allocation10 + $0x268] sm:$0xff]
        %v7299 = vld [vmem:[#allocation10 + $0x270] sm:$0xff]
        %v7300 = vld [vmem:[#allocation10 + $0x278] sm:$0xff]
        %v7301 = vld [vmem:[#allocation10 + $0x280] sm:$0xff]
        %v7302 = vld [vmem:[#allocation10 + $0x288] sm:$0xff]
        %v7303 = vld [vmem:[#allocation10 + $0x290] sm:$0xff]
        %v7304 = vld [vmem:[#allocation10 + $0x298] sm:$0xff]
        %v7305 = vld [vmem:[#allocation10 + $0x2a0] sm:$0xff]
        %v7306 = vld [vmem:[#allocation10 + $0x2a8] sm:$0xff]
        %v7307 = vld [vmem:[#allocation10 + $0x2b0] sm:$0xff]
        %v7308 = vld [vmem:[#allocation10 + $0x2b8] sm:$0xff]
        %v7309 = vld [vmem:[#allocation10 + $0x2c0] sm:$0xff]
        %v7310 = vld [vmem:[#allocation10 + $0x2c8] sm:$0xff]
        %v7311 = vld [vmem:[#allocation10 + $0x2d0] sm:$0xff]
        %v7312 = vld [vmem:[#allocation10 + $0x2d8] sm:$0xff]
        %v7313 = vld [vmem:[#allocation10 + $0x2e0] sm:$0xff]
        %v7314 = vld [vmem:[#allocation10 + $0x2e8] sm:$0xff]
        %v7315 = vld [vmem:[#allocation10 + $0x2f0] sm:$0xff]
        %v7316 = vld [vmem:[#allocation10 + $0x2f8] sm:$0xff]
        %v7317 = vld [vmem:[#allocation10 + $0x300] sm:$0xff]
        %v7318 = vld [vmem:[#allocation10 + $0x308] sm:$0xff]
        %v7319 = vld [vmem:[#allocation10 + $0x310] sm:$0xff]
        %v7320 = vld [vmem:[#allocation10 + $0x318] sm:$0xff]
        %v7321 = vld [vmem:[#allocation10 + $0x320] sm:$0xff]
        %v7322 = vld [vmem:[#allocation10 + $0x328] sm:$0xff]
        %v7323 = vld [vmem:[#allocation10 + $0x330] sm:$0xff]
        %v7324 = vld [vmem:[#allocation10 + $0x338] sm:$0xff]
        %v7325 = vld [vmem:[#allocation10 + $0x340] sm:$0xff]
        %v7326 = vld [vmem:[#allocation10 + $0x348] sm:$0xff]
        %v7327 = vld [vmem:[#allocation10 + $0x350] sm:$0xff]
        %v7328 = vld [vmem:[#allocation10 + $0x358] sm:$0xff]
        %v7329 = vld [vmem:[#allocation10 + $0x360] sm:$0xff]
        %v7330 = vld [vmem:[#allocation10 + $0x368] sm:$0xff]
        %v7331 = vld [vmem:[#allocation10 + $0x370] sm:$0xff]
        %v7332 = vld [vmem:[#allocation10 + $0x378] sm:$0xff]
        %v7333 = vld [vmem:[#allocation10 + $0x380] sm:$0xff]
        %v7334 = vld [vmem:[#allocation10 + $0x388] sm:$0xff]
        %v7335 = vld [vmem:[#allocation10 + $0x390] sm:$0xff]
        %v7336 = vld [vmem:[#allocation10 + $0x398] sm:$0xff]
        %v7337 = vld [vmem:[#allocation10 + $0x3a0] sm:$0xff]
        %v7338 = vld [vmem:[#allocation10 + $0x3a8] sm:$0xff]
        %v7339 = vld [vmem:[#allocation10 + $0x3b0] sm:$0xff]
        %v7340 = vld [vmem:[#allocation10 + $0x3b8] sm:$0xff]
        %v7341 = vld [vmem:[#allocation10 + $0x3c0] sm:$0xff]
        %v7342 = vld [vmem:[#allocation10 + $0x3c8] sm:$0xff]
        %v7343 = vld [vmem:[#allocation10 + $0x3d0] sm:$0xff]
        %v7344 = vld [vmem:[#allocation10 + $0x3d8] sm:$0xff]
        %v7345 = vld [vmem:[#allocation10 + $0x3e0] sm:$0xff]
        %v7346 = vld [vmem:[#allocation10 + $0x3e8] sm:$0xff]
        %v7347 = vld [vmem:[#allocation10 + $0x3f0] sm:$0xff]
        %v7348 = vld [vmem:[#allocation10 + $0x3f8] sm:$0xff]
        %s7349 = scalar_lea.vmem [#allocation10], 2048
        %v7350 = vld [vmem:[%s7349] sm:$0xff]
        %v7351 = vld [vmem:[%s7349 + $0x8] sm:$0xff]
        %v7352 = vld [vmem:[%s7349 + $0x10] sm:$0xff]
        %v7353 = vld [vmem:[%s7349 + $0x18] sm:$0xff]
        %v7354 = vld [vmem:[%s7349 + $0x20] sm:$0xff]
        %v7355 = vld [vmem:[%s7349 + $0x28] sm:$0xff]
        %v7356 = vld [vmem:[%s7349 + $0x30] sm:$0xff]
        %v7357 = vld [vmem:[%s7349 + $0x38] sm:$0xff]
        %v7358 = vld [vmem:[%s7349 + $0x40] sm:$0xff]
        %v7359 = vld [vmem:[%s7349 + $0x48] sm:$0xff]
        %v7360 = vld [vmem:[%s7349 + $0x50] sm:$0xff]
        %v7361 = vld [vmem:[%s7349 + $0x58] sm:$0xff]
        %v7362 = vld [vmem:[%s7349 + $0x60] sm:$0xff]
        %v7363 = vld [vmem:[%s7349 + $0x68] sm:$0xff]
        %v7364 = vld [vmem:[%s7349 + $0x70] sm:$0xff]
        %v7365 = vld [vmem:[%s7349 + $0x78] sm:$0xff]
        %v7366 = vld [vmem:[%s7349 + $0x80] sm:$0xff]
        %v7367 = vld [vmem:[%s7349 + $0x88] sm:$0xff]
        %v7368 = vld [vmem:[%s7349 + $0x90] sm:$0xff]
        %v7369 = vld [vmem:[%s7349 + $0x98] sm:$0xff]
        %v7370 = vld [vmem:[%s7349 + $0xa0] sm:$0xff]
        %v7371 = vld [vmem:[%s7349 + $0xa8] sm:$0xff]
        %v7372 = vld [vmem:[%s7349 + $0xb0] sm:$0xff]
        %v7373 = vld [vmem:[%s7349 + $0xb8] sm:$0xff]
        %v7374 = vld [vmem:[%s7349 + $0xc0] sm:$0xff]
        %v7375 = vld [vmem:[%s7349 + $0xc8] sm:$0xff]
        %v7376 = vld [vmem:[%s7349 + $0xd0] sm:$0xff]
        %v7377 = vld [vmem:[%s7349 + $0xd8] sm:$0xff]
        %v7378 = vld [vmem:[%s7349 + $0xe0] sm:$0xff]
        %v7379 = vld [vmem:[%s7349 + $0xe8] sm:$0xff]
        %v7380 = vld [vmem:[%s7349 + $0xf0] sm:$0xff]
        %v7381 = vld [vmem:[%s7349 + $0xf8] sm:$0xff]
        %v7382 = vld [vmem:[%s7349 + $0x100] sm:$0xff]
        %v7383 = vld [vmem:[%s7349 + $0x108] sm:$0xff]
        %v7384 = vld [vmem:[%s7349 + $0x110] sm:$0xff]
        %v7385 = vld [vmem:[%s7349 + $0x118] sm:$0xff]
        %v7386 = vld [vmem:[%s7349 + $0x120] sm:$0xff]
        %v7387 = vld [vmem:[%s7349 + $0x128] sm:$0xff]
        %v7388 = vld [vmem:[%s7349 + $0x130] sm:$0xff]
        %v7389 = vld [vmem:[%s7349 + $0x138] sm:$0xff]
        %v7390 = vld [vmem:[%s7349 + $0x140] sm:$0xff]
        %v7391 = vld [vmem:[%s7349 + $0x148] sm:$0xff]
        %v7392 = vld [vmem:[%s7349 + $0x150] sm:$0xff]
        %v7393 = vld [vmem:[%s7349 + $0x158] sm:$0xff]
        %v7394 = vld [vmem:[%s7349 + $0x160] sm:$0xff]
        %v7395 = vld [vmem:[%s7349 + $0x168] sm:$0xff]
        %v7396 = vld [vmem:[%s7349 + $0x170] sm:$0xff]
        %v7397 = vld [vmem:[%s7349 + $0x178] sm:$0xff]
        %v7398 = vld [vmem:[%s7349 + $0x180] sm:$0xff]
        %v7399 = vld [vmem:[%s7349 + $0x188] sm:$0xff]
        %v7400 = vld [vmem:[%s7349 + $0x190] sm:$0xff]
        %v7401 = vld [vmem:[%s7349 + $0x198] sm:$0xff]
        %v7402 = vld [vmem:[%s7349 + $0x1a0] sm:$0xff]
        %v7403 = vld [vmem:[%s7349 + $0x1a8] sm:$0xff]
        %v7404 = vld [vmem:[%s7349 + $0x1b0] sm:$0xff]
        %v7405 = vld [vmem:[%s7349 + $0x1b8] sm:$0xff]
        %v7406 = vld [vmem:[%s7349 + $0x1c0] sm:$0xff]
        %v7407 = vld [vmem:[%s7349 + $0x1c8] sm:$0xff]
        %v7408 = vld [vmem:[%s7349 + $0x1d0] sm:$0xff]
        %v7409 = vld [vmem:[%s7349 + $0x1d8] sm:$0xff]
        %v7410 = vld [vmem:[%s7349 + $0x1e0] sm:$0xff]
        %v7411 = vld [vmem:[%s7349 + $0x1e8] sm:$0xff]
        %v7412 = vld [vmem:[%s7349 + $0x1f0] sm:$0xff]
        %v7413 = vld [vmem:[%s7349 + $0x1f8] sm:$0xff]
        %v7414 = vld [vmem:[%s7349 + $0x200] sm:$0xff]
        %v7415 = vld [vmem:[%s7349 + $0x208] sm:$0xff]
        %v7416 = vld [vmem:[%s7349 + $0x210] sm:$0xff]
        %v7417 = vld [vmem:[%s7349 + $0x218] sm:$0xff]
        %v7418 = vld [vmem:[%s7349 + $0x220] sm:$0xff]
        %v7419 = vld [vmem:[%s7349 + $0x228] sm:$0xff]
        %v7420 = vld [vmem:[%s7349 + $0x230] sm:$0xff]
        %v7421 = vld [vmem:[%s7349 + $0x238] sm:$0xff]
        %v7422 = vld [vmem:[%s7349 + $0x240] sm:$0xff]
        %v7423 = vld [vmem:[%s7349 + $0x248] sm:$0xff]
        %v7424 = vld [vmem:[%s7349 + $0x250] sm:$0xff]
        %v7425 = vld [vmem:[%s7349 + $0x258] sm:$0xff]
        %v7426 = vld [vmem:[%s7349 + $0x260] sm:$0xff]
        %v7427 = vld [vmem:[%s7349 + $0x268] sm:$0xff]
        %v7428 = vld [vmem:[%s7349 + $0x270] sm:$0xff]
        %v7429 = vld [vmem:[%s7349 + $0x278] sm:$0xff]
        %v7430 = vld [vmem:[%s7349 + $0x280] sm:$0xff]
        %v7431 = vld [vmem:[%s7349 + $0x288] sm:$0xff]
        %v7432 = vld [vmem:[%s7349 + $0x290] sm:$0xff]
        %v7433 = vld [vmem:[%s7349 + $0x298] sm:$0xff]
        %v7434 = vld [vmem:[%s7349 + $0x2a0] sm:$0xff]
        %v7435 = vld [vmem:[%s7349 + $0x2a8] sm:$0xff]
        %v7436 = vld [vmem:[%s7349 + $0x2b0] sm:$0xff]
        %v7437 = vld [vmem:[%s7349 + $0x2b8] sm:$0xff]
        %v7438 = vld [vmem:[%s7349 + $0x2c0] sm:$0xff]
        %v7439 = vld [vmem:[%s7349 + $0x2c8] sm:$0xff]
        %v7440 = vld [vmem:[%s7349 + $0x2d0] sm:$0xff]
        %v7441 = vld [vmem:[%s7349 + $0x2d8] sm:$0xff]
        %v7442 = vld [vmem:[%s7349 + $0x2e0] sm:$0xff]
        %v7443 = vld [vmem:[%s7349 + $0x2e8] sm:$0xff]
        %v7444 = vld [vmem:[%s7349 + $0x2f0] sm:$0xff]
        %v7445 = vld [vmem:[%s7349 + $0x2f8] sm:$0xff]
        %v7446 = vld [vmem:[%s7349 + $0x300] sm:$0xff]
        %v7447 = vld [vmem:[%s7349 + $0x308] sm:$0xff]
        %v7448 = vld [vmem:[%s7349 + $0x310] sm:$0xff]
        %v7449 = vld [vmem:[%s7349 + $0x318] sm:$0xff]
        %v7450 = vld [vmem:[%s7349 + $0x320] sm:$0xff]
        %v7451 = vld [vmem:[%s7349 + $0x328] sm:$0xff]
        %v7452 = vld [vmem:[%s7349 + $0x330] sm:$0xff]
        %v7453 = vld [vmem:[%s7349 + $0x338] sm:$0xff]
        %v7454 = vld [vmem:[%s7349 + $0x340] sm:$0xff]
        %v7455 = vld [vmem:[%s7349 + $0x348] sm:$0xff]
        %v7456 = vld [vmem:[%s7349 + $0x350] sm:$0xff]
        %v7457 = vld [vmem:[%s7349 + $0x358] sm:$0xff]
        %v7458 = vld [vmem:[%s7349 + $0x360] sm:$0xff]
        %v7459 = vld [vmem:[%s7349 + $0x368] sm:$0xff]
        %v7460 = vld [vmem:[%s7349 + $0x370] sm:$0xff]
        %v7461 = vld [vmem:[%s7349 + $0x378] sm:$0xff]
        %v7462 = vld [vmem:[%s7349 + $0x380] sm:$0xff]
        %v7463 = vld [vmem:[%s7349 + $0x388] sm:$0xff]
        %v7464 = vld [vmem:[%s7349 + $0x390] sm:$0xff]
        %v7465 = vld [vmem:[%s7349 + $0x398] sm:$0xff]
        %v7466 = vld [vmem:[%s7349 + $0x3a0] sm:$0xff]
        %v7467 = vld [vmem:[%s7349 + $0x3a8] sm:$0xff]
        %v7468 = vld [vmem:[%s7349 + $0x3b0] sm:$0xff]
        %v7469 = vld [vmem:[%s7349 + $0x3b8] sm:$0xff]
        %v7470 = vld [vmem:[%s7349 + $0x3c0] sm:$0xff]
        %v7471 = vld [vmem:[%s7349 + $0x3c8] sm:$0xff]
        %v7472 = vld [vmem:[%s7349 + $0x3d0] sm:$0xff]
        %v7473 = vld [vmem:[%s7349 + $0x3d8] sm:$0xff]
        %v7474 = vld [vmem:[%s7349 + $0x3e0] sm:$0xff]
        %v7475 = vld [vmem:[%s7349 + $0x3e8] sm:$0xff]
        %v7476 = vld [vmem:[%s7349 + $0x3f0] sm:$0xff]
        %v7477 = vld [vmem:[%s7349 + $0x3f8] sm:$0xff]
        %v7606 = vunpack.c.l.b16 %v7350
        %v7607 = vunpack.c.h.b16 %v7350
        %v7608 = vunpack.c.l.b16 %v7351
        %v7609 = vunpack.c.h.b16 %v7351
        %v7610 = vunpack.c.l.b16 %v7352
        %v7611 = vunpack.c.h.b16 %v7352
        %v7612 = vunpack.c.l.b16 %v7353
        %v7613 = vunpack.c.h.b16 %v7353
        %v7614 = vunpack.c.l.b16 %v7354
        %v7615 = vunpack.c.h.b16 %v7354
        %v7616 = vunpack.c.l.b16 %v7355
        %v7617 = vunpack.c.h.b16 %v7355
        %v7618 = vunpack.c.l.b16 %v7356
        %v7619 = vunpack.c.h.b16 %v7356
        %v7620 = vunpack.c.l.b16 %v7357
        %v7621 = vunpack.c.h.b16 %v7357
        %v7622 = vunpack.c.l.b16 %v7358
        %v7623 = vunpack.c.h.b16 %v7358
        %v7624 = vunpack.c.l.b16 %v7359
        %v7625 = vunpack.c.h.b16 %v7359
        %v7626 = vunpack.c.l.b16 %v7360
        %v7627 = vunpack.c.h.b16 %v7360
        %v7628 = vunpack.c.l.b16 %v7361
        %v7629 = vunpack.c.h.b16 %v7361
        %v7630 = vunpack.c.l.b16 %v7362
        %v7631 = vunpack.c.h.b16 %v7362
        %v7632 = vunpack.c.l.b16 %v7363
        %v7633 = vunpack.c.h.b16 %v7363
        %v7634 = vunpack.c.l.b16 %v7364
        %v7635 = vunpack.c.h.b16 %v7364
        %v7636 = vunpack.c.l.b16 %v7365
        %v7637 = vunpack.c.h.b16 %v7365
        %v7638 = vunpack.c.l.b16 %v7366
        %v7639 = vunpack.c.h.b16 %v7366
        %v7640 = vunpack.c.l.b16 %v7367
        %v7641 = vunpack.c.h.b16 %v7367
        %v7642 = vunpack.c.l.b16 %v7368
        %v7643 = vunpack.c.h.b16 %v7368
        %v7644 = vunpack.c.l.b16 %v7369
        %v7645 = vunpack.c.h.b16 %v7369
        %v7646 = vunpack.c.l.b16 %v7370
        %v7647 = vunpack.c.h.b16 %v7370
        %v7648 = vunpack.c.l.b16 %v7371
        %v7649 = vunpack.c.h.b16 %v7371
        %v7650 = vunpack.c.l.b16 %v7372
        %v7651 = vunpack.c.h.b16 %v7372
        %v7652 = vunpack.c.l.b16 %v7373
        %v7653 = vunpack.c.h.b16 %v7373
        %v7654 = vunpack.c.l.b16 %v7374
        %v7655 = vunpack.c.h.b16 %v7374
        %v7656 = vunpack.c.l.b16 %v7375
        %v7657 = vunpack.c.h.b16 %v7375
        %v7658 = vunpack.c.l.b16 %v7376
        %v7659 = vunpack.c.h.b16 %v7376
        %v7660 = vunpack.c.l.b16 %v7377
        %v7661 = vunpack.c.h.b16 %v7377
        %v7662 = vunpack.c.l.b16 %v7378
        %v7663 = vunpack.c.h.b16 %v7378
        %v7664 = vunpack.c.l.b16 %v7379
        %v7665 = vunpack.c.h.b16 %v7379
        %v7666 = vunpack.c.l.b16 %v7380
        %v7667 = vunpack.c.h.b16 %v7380
        %v7668 = vunpack.c.l.b16 %v7381
        %v7669 = vunpack.c.h.b16 %v7381
        %v7670 = vunpack.c.l.b16 %v7382
        %v7671 = vunpack.c.h.b16 %v7382
        %v7672 = vunpack.c.l.b16 %v7383
        %v7673 = vunpack.c.h.b16 %v7383
        %v7674 = vunpack.c.l.b16 %v7384
        %v7675 = vunpack.c.h.b16 %v7384
        %v7676 = vunpack.c.l.b16 %v7385
        %v7677 = vunpack.c.h.b16 %v7385
        %v7678 = vunpack.c.l.b16 %v7386
        %v7679 = vunpack.c.h.b16 %v7386
        %v7680 = vunpack.c.l.b16 %v7387
        %v7681 = vunpack.c.h.b16 %v7387
        %v7682 = vunpack.c.l.b16 %v7388
        %v7683 = vunpack.c.h.b16 %v7388
        %v7684 = vunpack.c.l.b16 %v7389
        %v7685 = vunpack.c.h.b16 %v7389
        %v7686 = vunpack.c.l.b16 %v7390
        %v7687 = vunpack.c.h.b16 %v7390
        %v7688 = vunpack.c.l.b16 %v7391
        %v7689 = vunpack.c.h.b16 %v7391
        %v7690 = vunpack.c.l.b16 %v7392
        %v7691 = vunpack.c.h.b16 %v7392
        %v7692 = vunpack.c.l.b16 %v7393
        %v7693 = vunpack.c.h.b16 %v7393
        %v7694 = vunpack.c.l.b16 %v7394
        %v7695 = vunpack.c.h.b16 %v7394
        %v7696 = vunpack.c.l.b16 %v7395
        %v7697 = vunpack.c.h.b16 %v7395
        %v7698 = vunpack.c.l.b16 %v7396
        %v7699 = vunpack.c.h.b16 %v7396
        %v7700 = vunpack.c.l.b16 %v7397
        %v7701 = vunpack.c.h.b16 %v7397
        %v7702 = vunpack.c.l.b16 %v7398
        %v7703 = vunpack.c.h.b16 %v7398
        %v7704 = vunpack.c.l.b16 %v7399
        %v7705 = vunpack.c.h.b16 %v7399
        %v7706 = vunpack.c.l.b16 %v7400
        %v7707 = vunpack.c.h.b16 %v7400
        %v7708 = vunpack.c.l.b16 %v7401
        %v7709 = vunpack.c.h.b16 %v7401
        %v7710 = vunpack.c.l.b16 %v7402
        %v7711 = vunpack.c.h.b16 %v7402
        %v7712 = vunpack.c.l.b16 %v7403
        %v7713 = vunpack.c.h.b16 %v7403
        %v7714 = vunpack.c.l.b16 %v7404
        %v7715 = vunpack.c.h.b16 %v7404
        %v7716 = vunpack.c.l.b16 %v7405
        %v7717 = vunpack.c.h.b16 %v7405
        %v7718 = vunpack.c.l.b16 %v7406
        %v7719 = vunpack.c.h.b16 %v7406
        %v7720 = vunpack.c.l.b16 %v7407
        %v7721 = vunpack.c.h.b16 %v7407
        %v7722 = vunpack.c.l.b16 %v7408
        %v7723 = vunpack.c.h.b16 %v7408
        %v7724 = vunpack.c.l.b16 %v7409
        %v7725 = vunpack.c.h.b16 %v7409
        %v7726 = vunpack.c.l.b16 %v7410
        %v7727 = vunpack.c.h.b16 %v7410
        %v7728 = vunpack.c.l.b16 %v7411
        %v7729 = vunpack.c.h.b16 %v7411
        %v7730 = vunpack.c.l.b16 %v7412
        %v7731 = vunpack.c.h.b16 %v7412
        %v7732 = vunpack.c.l.b16 %v7413
        %v7733 = vunpack.c.h.b16 %v7413
        %v7734 = vunpack.c.l.b16 %v7414
        %v7735 = vunpack.c.h.b16 %v7414
        %v7736 = vunpack.c.l.b16 %v7415
        %v7737 = vunpack.c.h.b16 %v7415
        %v7738 = vunpack.c.l.b16 %v7416
        %v7739 = vunpack.c.h.b16 %v7416
        %v7740 = vunpack.c.l.b16 %v7417
        %v7741 = vunpack.c.h.b16 %v7417
        %v7742 = vunpack.c.l.b16 %v7418
        %v7743 = vunpack.c.h.b16 %v7418
        %v7744 = vunpack.c.l.b16 %v7419
        %v7745 = vunpack.c.h.b16 %v7419
        %v7746 = vunpack.c.l.b16 %v7420
        %v7747 = vunpack.c.h.b16 %v7420
        %v7748 = vunpack.c.l.b16 %v7421
        %v7749 = vunpack.c.h.b16 %v7421
        %v7750 = vunpack.c.l.b16 %v7422
        %v7751 = vunpack.c.h.b16 %v7422
        %v7752 = vunpack.c.l.b16 %v7423
        %v7753 = vunpack.c.h.b16 %v7423
        %v7754 = vunpack.c.l.b16 %v7424
        %v7755 = vunpack.c.h.b16 %v7424
        %v7756 = vunpack.c.l.b16 %v7425
        %v7757 = vunpack.c.h.b16 %v7425
        %v7758 = vunpack.c.l.b16 %v7426
        %v7759 = vunpack.c.h.b16 %v7426
        %v7760 = vunpack.c.l.b16 %v7427
        %v7761 = vunpack.c.h.b16 %v7427
        %v7762 = vunpack.c.l.b16 %v7428
        %v7763 = vunpack.c.h.b16 %v7428
        %v7764 = vunpack.c.l.b16 %v7429
        %v7765 = vunpack.c.h.b16 %v7429
        %v7766 = vunpack.c.l.b16 %v7430
        %v7767 = vunpack.c.h.b16 %v7430
        %v7768 = vunpack.c.l.b16 %v7431
        %v7769 = vunpack.c.h.b16 %v7431
        %v7770 = vunpack.c.l.b16 %v7432
        %v7771 = vunpack.c.h.b16 %v7432
        %v7772 = vunpack.c.l.b16 %v7433
        %v7773 = vunpack.c.h.b16 %v7433
        %v7774 = vunpack.c.l.b16 %v7434
        %v7775 = vunpack.c.h.b16 %v7434
        %v7776 = vunpack.c.l.b16 %v7435
        %v7777 = vunpack.c.h.b16 %v7435
        %v7778 = vunpack.c.l.b16 %v7436
        %v7779 = vunpack.c.h.b16 %v7436
        %v7780 = vunpack.c.l.b16 %v7437
        %v7781 = vunpack.c.h.b16 %v7437
        %v7782 = vunpack.c.l.b16 %v7438
        %v7783 = vunpack.c.h.b16 %v7438
        %v7784 = vunpack.c.l.b16 %v7439
        %v7785 = vunpack.c.h.b16 %v7439
        %v7786 = vunpack.c.l.b16 %v7440
        %v7787 = vunpack.c.h.b16 %v7440
        %v7788 = vunpack.c.l.b16 %v7441
        %v7789 = vunpack.c.h.b16 %v7441
        %v7790 = vunpack.c.l.b16 %v7442
        %v7791 = vunpack.c.h.b16 %v7442
        %v7792 = vunpack.c.l.b16 %v7443
        %v7793 = vunpack.c.h.b16 %v7443
        %v7794 = vunpack.c.l.b16 %v7444
        %v7795 = vunpack.c.h.b16 %v7444
        %v7796 = vunpack.c.l.b16 %v7445
        %v7797 = vunpack.c.h.b16 %v7445
        %v7798 = vunpack.c.l.b16 %v7446
        %v7799 = vunpack.c.h.b16 %v7446
        %v7800 = vunpack.c.l.b16 %v7447
        %v7801 = vunpack.c.h.b16 %v7447
        %v7802 = vunpack.c.l.b16 %v7448
        %v7803 = vunpack.c.h.b16 %v7448
        %v7804 = vunpack.c.l.b16 %v7449
        %v7805 = vunpack.c.h.b16 %v7449
        %v7806 = vunpack.c.l.b16 %v7450
        %v7807 = vunpack.c.h.b16 %v7450
        %v7808 = vunpack.c.l.b16 %v7451
        %v7809 = vunpack.c.h.b16 %v7451
        %v7810 = vunpack.c.l.b16 %v7452
        %v7811 = vunpack.c.h.b16 %v7452
        %v7812 = vunpack.c.l.b16 %v7453
        %v7813 = vunpack.c.h.b16 %v7453
        %v7814 = vunpack.c.l.b16 %v7454
        %v7815 = vunpack.c.h.b16 %v7454
        %v7816 = vunpack.c.l.b16 %v7455
        %v7817 = vunpack.c.h.b16 %v7455
        %v7818 = vunpack.c.l.b16 %v7456
        %v7819 = vunpack.c.h.b16 %v7456
        %v7820 = vunpack.c.l.b16 %v7457
        %v7821 = vunpack.c.h.b16 %v7457
        %v7822 = vunpack.c.l.b16 %v7458
        %v7823 = vunpack.c.h.b16 %v7458
        %v7824 = vunpack.c.l.b16 %v7459
        %v7825 = vunpack.c.h.b16 %v7459
        %v7826 = vunpack.c.l.b16 %v7460
        %v7827 = vunpack.c.h.b16 %v7460
        %v7828 = vunpack.c.l.b16 %v7461
        %v7829 = vunpack.c.h.b16 %v7461
        %v7830 = vunpack.c.l.b16 %v7462
        %v7831 = vunpack.c.h.b16 %v7462
        %v7832 = vunpack.c.l.b16 %v7463
        %v7833 = vunpack.c.h.b16 %v7463
        %v7834 = vunpack.c.l.b16 %v7464
        %v7835 = vunpack.c.h.b16 %v7464
        %v7836 = vunpack.c.l.b16 %v7465
        %v7837 = vunpack.c.h.b16 %v7465
        %v7838 = vunpack.c.l.b16 %v7466
        %v7839 = vunpack.c.h.b16 %v7466
        %v7840 = vunpack.c.l.b16 %v7467
        %v7841 = vunpack.c.h.b16 %v7467
        %v7842 = vunpack.c.l.b16 %v7468
        %v7843 = vunpack.c.h.b16 %v7468
        %v7844 = vunpack.c.l.b16 %v7469
        %v7845 = vunpack.c.h.b16 %v7469
        %v7846 = vunpack.c.l.b16 %v7470
        %v7847 = vunpack.c.h.b16 %v7470
        %v7848 = vunpack.c.l.b16 %v7471
        %v7849 = vunpack.c.h.b16 %v7471
        %v7850 = vunpack.c.l.b16 %v7472
        %v7851 = vunpack.c.h.b16 %v7472
        %v7852 = vunpack.c.l.b16 %v7473
        %v7853 = vunpack.c.h.b16 %v7473
        %v7854 = vunpack.c.l.b16 %v7474
        %v7855 = vunpack.c.h.b16 %v7474
        %v7856 = vunpack.c.l.b16 %v7475
        %v7857 = vunpack.c.h.b16 %v7475
        %v7858 = vunpack.c.l.b16 %v7476
        %v7859 = vunpack.c.h.b16 %v7476
        %v7860 = vunpack.c.l.b16 %v7477
        %v7861 = vunpack.c.h.b16 %v7477
        %v7862 = vpack.c.b16 %v7610, %v7606
        %v7863 = vpack.c.b16 %v7611, %v7607
        %v7864 = vpack.c.b16 %v7612, %v7608
        %v7865 = vpack.c.b16 %v7613, %v7609
        %v7866 = vpack.c.b16 %v7618, %v7614
        %v7867 = vpack.c.b16 %v7619, %v7615
        %v7868 = vpack.c.b16 %v7620, %v7616
        %v7869 = vpack.c.b16 %v7621, %v7617
        %v7870 = vpack.c.b16 %v7626, %v7622
        %v7871 = vpack.c.b16 %v7627, %v7623
        %v7872 = vpack.c.b16 %v7628, %v7624
        %v7873 = vpack.c.b16 %v7629, %v7625
        %v7874 = vpack.c.b16 %v7634, %v7630
        %v7875 = vpack.c.b16 %v7635, %v7631
        %v7876 = vpack.c.b16 %v7636, %v7632
        %v7877 = vpack.c.b16 %v7637, %v7633
        %v7878 = vpack.c.b16 %v7642, %v7638
        %v7879 = vpack.c.b16 %v7643, %v7639
        %v7880 = vpack.c.b16 %v7644, %v7640
        %v7881 = vpack.c.b16 %v7645, %v7641
        %v7882 = vpack.c.b16 %v7650, %v7646
        %v7883 = vpack.c.b16 %v7651, %v7647
        %v7884 = vpack.c.b16 %v7652, %v7648
        %v7885 = vpack.c.b16 %v7653, %v7649
        %v7886 = vpack.c.b16 %v7658, %v7654
        %v7887 = vpack.c.b16 %v7659, %v7655
        %v7888 = vpack.c.b16 %v7660, %v7656
        %v7889 = vpack.c.b16 %v7661, %v7657
        %v7890 = vpack.c.b16 %v7666, %v7662
        %v7891 = vpack.c.b16 %v7667, %v7663
        %v7892 = vpack.c.b16 %v7668, %v7664
        %v7893 = vpack.c.b16 %v7669, %v7665
        %v7894 = vpack.c.b16 %v7674, %v7670
        %v7895 = vpack.c.b16 %v7675, %v7671
        %v7896 = vpack.c.b16 %v7676, %v7672
        %v7897 = vpack.c.b16 %v7677, %v7673
        %v7898 = vpack.c.b16 %v7682, %v7678
        %v7899 = vpack.c.b16 %v7683, %v7679
        %v7900 = vpack.c.b16 %v7684, %v7680
        %v7901 = vpack.c.b16 %v7685, %v7681
        %v7902 = vpack.c.b16 %v7690, %v7686
        %v7903 = vpack.c.b16 %v7691, %v7687
        %v7904 = vpack.c.b16 %v7692, %v7688
        %v7905 = vpack.c.b16 %v7693, %v7689
        %v7906 = vpack.c.b16 %v7698, %v7694
        %v7907 = vpack.c.b16 %v7699, %v7695
        %v7908 = vpack.c.b16 %v7700, %v7696
        %v7909 = vpack.c.b16 %v7701, %v7697
        %v7910 = vpack.c.b16 %v7706, %v7702
        %v7911 = vpack.c.b16 %v7707, %v7703
        %v7912 = vpack.c.b16 %v7708, %v7704
        %v7913 = vpack.c.b16 %v7709, %v7705
        %v7914 = vpack.c.b16 %v7714, %v7710
        %v7915 = vpack.c.b16 %v7715, %v7711
        %v7916 = vpack.c.b16 %v7716, %v7712
        %v7917 = vpack.c.b16 %v7717, %v7713
        %v7918 = vpack.c.b16 %v7722, %v7718
        %v7919 = vpack.c.b16 %v7723, %v7719
        %v7920 = vpack.c.b16 %v7724, %v7720
        %v7921 = vpack.c.b16 %v7725, %v7721
        %v7922 = vpack.c.b16 %v7730, %v7726
        %v7923 = vpack.c.b16 %v7731, %v7727
        %v7924 = vpack.c.b16 %v7732, %v7728
        %v7925 = vpack.c.b16 %v7733, %v7729
        %v7926 = vpack.c.b16 %v7738, %v7734
        %v7927 = vpack.c.b16 %v7739, %v7735
        %v7928 = vpack.c.b16 %v7740, %v7736
        %v7929 = vpack.c.b16 %v7741, %v7737
        %v7930 = vpack.c.b16 %v7746, %v7742
        %v7931 = vpack.c.b16 %v7747, %v7743
        %v7932 = vpack.c.b16 %v7748, %v7744
        %v7933 = vpack.c.b16 %v7749, %v7745
        %v7934 = vpack.c.b16 %v7754, %v7750
        %v7935 = vpack.c.b16 %v7755, %v7751
        %v7936 = vpack.c.b16 %v7756, %v7752
        %v7937 = vpack.c.b16 %v7757, %v7753
        %v7938 = vpack.c.b16 %v7762, %v7758
        %v7939 = vpack.c.b16 %v7763, %v7759
        %v7940 = vpack.c.b16 %v7764, %v7760
        %v7941 = vpack.c.b16 %v7765, %v7761
        %v7942 = vpack.c.b16 %v7770, %v7766
        %v7943 = vpack.c.b16 %v7771, %v7767
        %v7944 = vpack.c.b16 %v7772, %v7768
        %v7945 = vpack.c.b16 %v7773, %v7769
        %v7946 = vpack.c.b16 %v7778, %v7774
        %v7947 = vpack.c.b16 %v7779, %v7775
        %v7948 = vpack.c.b16 %v7780, %v7776
        %v7949 = vpack.c.b16 %v7781, %v7777
        %v7950 = vpack.c.b16 %v7786, %v7782
        %v7951 = vpack.c.b16 %v7787, %v7783
        %v7952 = vpack.c.b16 %v7788, %v7784
        %v7953 = vpack.c.b16 %v7789, %v7785
        %v7954 = vpack.c.b16 %v7794, %v7790
        %v7955 = vpack.c.b16 %v7795, %v7791
        %v7956 = vpack.c.b16 %v7796, %v7792
        %v7957 = vpack.c.b16 %v7797, %v7793
        %v7958 = vpack.c.b16 %v7802, %v7798
        %v7959 = vpack.c.b16 %v7803, %v7799
        %v7960 = vpack.c.b16 %v7804, %v7800
        %v7961 = vpack.c.b16 %v7805, %v7801
        %v7962 = vpack.c.b16 %v7810, %v7806
        %v7963 = vpack.c.b16 %v7811, %v7807
        %v7964 = vpack.c.b16 %v7812, %v7808
        %v7965 = vpack.c.b16 %v7813, %v7809
        %v7966 = vpack.c.b16 %v7818, %v7814
        %v7967 = vpack.c.b16 %v7819, %v7815
        %v7968 = vpack.c.b16 %v7820, %v7816
        %v7969 = vpack.c.b16 %v7821, %v7817
        %v7970 = vpack.c.b16 %v7826, %v7822
        %v7971 = vpack.c.b16 %v7827, %v7823
        %v7972 = vpack.c.b16 %v7828, %v7824
        %v7973 = vpack.c.b16 %v7829, %v7825
        %v7974 = vpack.c.b16 %v7834, %v7830
        %v7975 = vpack.c.b16 %v7835, %v7831
        %v7976 = vpack.c.b16 %v7836, %v7832
        %v7977 = vpack.c.b16 %v7837, %v7833
        %v7978 = vpack.c.b16 %v7842, %v7838
        %v7979 = vpack.c.b16 %v7843, %v7839
        %v7980 = vpack.c.b16 %v7844, %v7840
        %v7981 = vpack.c.b16 %v7845, %v7841
        %v7982 = vpack.c.b16 %v7850, %v7846
        %v7983 = vpack.c.b16 %v7851, %v7847
        %v7984 = vpack.c.b16 %v7852, %v7848
        %v7985 = vpack.c.b16 %v7853, %v7849
        %v7986 = vpack.c.b16 %v7858, %v7854
        %v7987 = vpack.c.b16 %v7859, %v7855
        %v7988 = vpack.c.b16 %v7860, %v7856
        %v7989 = vpack.c.b16 %v7861, %v7857
        %8118 = vmatprep.subr.bf16.mxu0 %v7863
        %8119 = vmatpush1.bf16.msra.mxu0 %v7862
        %8120 = vmatprep.subr.bf16.mxu0 %v7867
        %8121 = vmatpush1.bf16.msra.mxu0 %v7866
        %8122 = vmatprep.subr.bf16.mxu0 %v7871
        %8123 = vmatpush1.bf16.msra.mxu0 %v7870
        %8124 = vmatprep.subr.bf16.mxu0 %v7875
        %8125 = vmatpush1.bf16.msra.mxu0 %v7874
        %8126 = vmatprep.subr.bf16.mxu0 %v7879
        %8127 = vmatpush1.bf16.msra.mxu0 %v7878
        %8128 = vmatprep.subr.bf16.mxu0 %v7883
        %8129 = vmatpush1.bf16.msra.mxu0 %v7882
        %8130 = vmatprep.subr.bf16.mxu0 %v7887
        %8131 = vmatpush1.bf16.msra.mxu0 %v7886
        %8132 = vmatprep.subr.bf16.mxu0 %v7891
        %8133 = vmatpush1.bf16.msra.mxu0 %v7890
        %8134 = vmatprep.subr.bf16.mxu0 %v7895
        %8135 = vmatpush1.bf16.msra.mxu0 %v7894
        %8136 = vmatprep.subr.bf16.mxu0 %v7899
        %8137 = vmatpush1.bf16.msra.mxu0 %v7898
        %8138 = vmatprep.subr.bf16.mxu0 %v7903
        %8139 = vmatpush1.bf16.msra.mxu0 %v7902
        %8140 = vmatprep.subr.bf16.mxu0 %v7907
        %8141 = vmatpush1.bf16.msra.mxu0 %v7906
        %8142 = vmatprep.subr.bf16.mxu0 %v7911
        %8143 = vmatpush1.bf16.msra.mxu0 %v7910
        %8144 = vmatprep.subr.bf16.mxu0 %v7915
        %8145 = vmatpush1.bf16.msra.mxu0 %v7914
        %8146 = vmatprep.subr.bf16.mxu0 %v7919
        %8147 = vmatpush1.bf16.msra.mxu0 %v7918
        %8148 = vmatprep.subr.bf16.mxu0 %v7923
        %8149 = vmatpush1.bf16.msra.mxu0 %v7922
        %8150 = vmatprep.mubr.bf16.mxu0 %v6332
        %8151 = vmatmul.mubr.bf16.gmra.mrb[0].mxu0 %v6325
        %v8152 = vpop.f32.mrb[0].mxu0
        %v8153 = vadd.f32 0.0, %v8152
        %v8154 = vpop.f32.mrb[0].mxu0
        %v8155 = vadd.f32 0.0, %v8154
        %v8156 = vpop.f32.mrb[0].mxu0
        %v8157 = vpop.f32.mrb[0].mxu0
        %8158 = vdwg.mxu0
        %8159 = vmatprep.subr.bf16.mxu0 %v7927
        %8160 = vmatpush1.bf16.msra.mxu0 %v7926
        %8161 = vmatprep.subr.bf16.mxu0 %v7931
        %8162 = vmatpush1.bf16.msra.mxu0 %v7930
        %8163 = vmatprep.subr.bf16.mxu0 %v7935
        %8164 = vmatpush1.bf16.msra.mxu0 %v7934
        %8165 = vmatprep.subr.bf16.mxu0 %v7939
        %8166 = vmatpush1.bf16.msra.mxu0 %v7938
        %8167 = vmatprep.subr.bf16.mxu0 %v7943
        %8168 = vmatpush1.bf16.msra.mxu0 %v7942
        %8169 = vmatprep.subr.bf16.mxu0 %v7947
        %8170 = vmatpush1.bf16.msra.mxu0 %v7946
        %8171 = vmatprep.subr.bf16.mxu0 %v7951
        %8172 = vmatpush1.bf16.msra.mxu0 %v7950
        %8173 = vmatprep.subr.bf16.mxu0 %v7955
        %8174 = vmatpush1.bf16.msra.mxu0 %v7954
        %8175 = vmatprep.subr.bf16.mxu0 %v7959
        %8176 = vmatpush1.bf16.msra.mxu0 %v7958
        %8177 = vmatprep.subr.bf16.mxu0 %v7963
        %8178 = vmatpush1.bf16.msra.mxu0 %v7962
        %8179 = vmatprep.subr.bf16.mxu0 %v7967
        %8180 = vmatpush1.bf16.msra.mxu0 %v7966
        %8181 = vmatprep.subr.bf16.mxu0 %v7971
        %8182 = vmatpush1.bf16.msra.mxu0 %v7970
        %8183 = vmatprep.subr.bf16.mxu0 %v7975
        %8184 = vmatpush1.bf16.msra.mxu0 %v7974
        %8185 = vmatprep.subr.bf16.mxu0 %v7979
        %8186 = vmatpush1.bf16.msra.mxu0 %v7978
        %8187 = vmatprep.subr.bf16.mxu0 %v7983
        %8188 = vmatpush1.bf16.msra.mxu0 %v7982
        %8189 = vmatprep.subr.bf16.mxu0 %v7987
        %8190 = vmatpush1.bf16.msra.mxu0 %v7986
        %8191 = vmatprep.mubr.bf16.mxu0 %v6346
        %8192 = vmatmul.mubr.bf16.gmra.mrb[0].mxu0 %v6339
        %v8193 = vpop.f32.mrb[0].mxu0
        %v8194 = vadd.f32 %v8153, %v8193
        %v8195 = vpop.f32.mrb[0].mxu0
        %v8196 = vadd.f32 %v8155, %v8195
        %v8197 = vpop.f32.mrb[0].mxu0
        %v8198 = vpop.f32.mrb[0].mxu0
        %8199 = vdwg.mxu0
        %8200 = vmatprep.subr.bf16.mxu0 %v7865
        %8201 = vmatpush1.bf16.msra.mxu0 %v7864
        %8202 = vmatprep.subr.bf16.mxu0 %v7869
        %8203 = vmatpush1.bf16.msra.mxu0 %v7868
        %8204 = vmatprep.subr.bf16.mxu0 %v7873
        %8205 = vmatpush1.bf16.msra.mxu0 %v7872
        %8206 = vmatprep.subr.bf16.mxu0 %v7877
        %8207 = vmatpush1.bf16.msra.mxu0 %v7876
        %8208 = vmatprep.subr.bf16.mxu0 %v7881
        %8209 = vmatpush1.bf16.msra.mxu0 %v7880
        %8210 = vmatprep.subr.bf16.mxu0 %v7885
        %8211 = vmatpush1.bf16.msra.mxu0 %v7884
        %8212 = vmatprep.subr.bf16.mxu0 %v7889
        %8213 = vmatpush1.bf16.msra.mxu0 %v7888
        %8214 = vmatprep.subr.bf16.mxu0 %v7893
        %8215 = vmatpush1.bf16.msra.mxu0 %v7892
        %8216 = vmatprep.subr.bf16.mxu0 %v7897
        %8217 = vmatpush1.bf16.msra.mxu0 %v7896
        %8218 = vmatprep.subr.bf16.mxu0 %v7901
        %8219 = vmatpush1.bf16.msra.mxu0 %v7900
        %8220 = vmatprep.subr.bf16.mxu0 %v7905
        %8221 = vmatpush1.bf16.msra.mxu0 %v7904
        %8222 = vmatprep.subr.bf16.mxu0 %v7909
        %8223 = vmatpush1.bf16.msra.mxu0 %v7908
        %8224 = vmatprep.subr.bf16.mxu0 %v7913
        %8225 = vmatpush1.bf16.msra.mxu0 %v7912
        %8226 = vmatprep.subr.bf16.mxu0 %v7917
        %8227 = vmatpush1.bf16.msra.mxu0 %v7916
        %8228 = vmatprep.subr.bf16.mxu0 %v7921
        %8229 = vmatpush1.bf16.msra.mxu0 %v7920
        %8230 = vmatprep.subr.bf16.mxu0 %v7925
        %8231 = vmatpush1.bf16.msra.mxu0 %v7924
        %8232 = vmatprep.mubr.bf16.mxu0 %v6332
        %8233 = vmatmul.mubr.bf16.gmra.mrb[0].mxu0 %v6325
        %v8234 = vpop.f32.mrb[0].mxu0
        %v8235 = vadd.f32 0.0, %v8234
        %v8236 = vpop.f32.mrb[0].mxu0
        %v8237 = vadd.f32 0.0, %v8236
        %v8238 = vpop.f32.mrb[0].mxu0
        %v8239 = vpop.f32.mrb[0].mxu0
        %8240 = vdwg.mxu0
        %8241 = vmatprep.subr.bf16.mxu0 %v7929
        %8242 = vmatpush1.bf16.msra.mxu0 %v7928
        %8243 = vmatprep.subr.bf16.mxu0 %v7933
        %8244 = vmatpush1.bf16.msra.mxu0 %v7932
        %8245 = vmatprep.subr.bf16.mxu0 %v7937
        %8246 = vmatpush1.bf16.msra.mxu0 %v7936
        %8247 = vmatprep.subr.bf16.mxu0 %v7941
        %8248 = vmatpush1.bf16.msra.mxu0 %v7940
        %8249 = vmatprep.subr.bf16.mxu0 %v7945
        %8250 = vmatpush1.bf16.msra.mxu0 %v7944
        %8251 = vmatprep.subr.bf16.mxu0 %v7949
        %8252 = vmatpush1.bf16.msra.mxu0 %v7948
        %8253 = vmatprep.subr.bf16.mxu0 %v7953
        %8254 = vmatpush1.bf16.msra.mxu0 %v7952
        %8255 = vmatprep.subr.bf16.mxu0 %v7957
        %8256 = vmatpush1.bf16.msra.mxu0 %v7956
        %8257 = vmatprep.subr.bf16.mxu0 %v7961
        %8258 = vmatpush1.bf16.msra.mxu0 %v7960
        %8259 = vmatprep.subr.bf16.mxu0 %v7965
        %8260 = vmatpush1.bf16.msra.mxu0 %v7964
        %8261 = vmatprep.subr.bf16.mxu0 %v7969
        %8262 = vmatpush1.bf16.msra.mxu0 %v7968
        %8263 = vmatprep.subr.bf16.mxu0 %v7973
        %8264 = vmatpush1.bf16.msra.mxu0 %v7972
        %8265 = vmatprep.subr.bf16.mxu0 %v7977
        %8266 = vmatpush1.bf16.msra.mxu0 %v7976
        %8267 = vmatprep.subr.bf16.mxu0 %v7981
        %8268 = vmatpush1.bf16.msra.mxu0 %v7980
        %8269 = vmatprep.subr.bf16.mxu0 %v7985
        %8270 = vmatpush1.bf16.msra.mxu0 %v7984
        %8271 = vmatprep.subr.bf16.mxu0 %v7989
        %8272 = vmatpush1.bf16.msra.mxu0 %v7988
        %8273 = vmatprep.mubr.bf16.mxu0 %v6346
        %8274 = vmatmul.mubr.bf16.gmra.mrb[0].mxu0 %v6339
        %v8275 = vpop.f32.mrb[0].mxu0
        %v8276 = vadd.f32 %v8235, %v8275
        %v8277 = vpop.f32.mrb[0].mxu0
        %v8278 = vadd.f32 %v8237, %v8277
        %v8279 = vpop.f32.mrb[0].mxu0
        %v8280 = vpop.f32.mrb[0].mxu0
        %8281 = vdwg.mxu0
        %v8286 = vrot.slane %v7217, 1
        %v8287 = vrot.slane %v7218, 1
        %v8288 = vrot.slane %v7219, 1
        %v8289 = vrot.slane %v7220, 1
        %v8422 = vunpack.c.l.b16 %v7221
        %v8423 = vunpack.c.h.b16 %v7221
        %v8424 = vunpack.c.l.b16 %v7222
        %v8425 = vunpack.c.h.b16 %v7222
        %v8426 = vunpack.c.l.b16 %v7223
        %v8427 = vunpack.c.h.b16 %v7223
        %v8428 = vunpack.c.l.b16 %v7224
        %v8429 = vunpack.c.h.b16 %v7224
        %v8430 = vunpack.c.l.b16 %v7225
        %v8431 = vunpack.c.h.b16 %v7225
        %v8432 = vunpack.c.l.b16 %v7226
        %v8433 = vunpack.c.h.b16 %v7226
        %v8434 = vunpack.c.l.b16 %v7227
        %v8435 = vunpack.c.h.b16 %v7227
        %v8436 = vunpack.c.l.b16 %v7228
        %v8437 = vunpack.c.h.b16 %v7228
        %v8438 = vunpack.c.l.b16 %v7229
        %v8439 = vunpack.c.h.b16 %v7229
        %v8440 = vunpack.c.l.b16 %v7230
        %v8441 = vunpack.c.h.b16 %v7230
        %v8442 = vunpack.c.l.b16 %v7231
        %v8443 = vunpack.c.h.b16 %v7231
        %v8444 = vunpack.c.l.b16 %v7232
        %v8445 = vunpack.c.h.b16 %v7232
        %v8446 = vunpack.c.l.b16 %v7233
        %v8447 = vunpack.c.h.b16 %v7233
        %v8448 = vunpack.c.l.b16 %v7234
        %v8449 = vunpack.c.h.b16 %v7234
        %v8450 = vunpack.c.l.b16 %v7235
        %v8451 = vunpack.c.h.b16 %v7235
        %v8452 = vunpack.c.l.b16 %v7236
        %v8453 = vunpack.c.h.b16 %v7236
        %v8454 = vunpack.c.l.b16 %v7237
        %v8455 = vunpack.c.h.b16 %v7237
        %v8456 = vunpack.c.l.b16 %v7238
        %v8457 = vunpack.c.h.b16 %v7238
        %v8458 = vunpack.c.l.b16 %v7239
        %v8459 = vunpack.c.h.b16 %v7239
        %v8460 = vunpack.c.l.b16 %v7240
        %v8461 = vunpack.c.h.b16 %v7240
        %v8462 = vunpack.c.l.b16 %v7241
        %v8463 = vunpack.c.h.b16 %v7241
        %v8464 = vunpack.c.l.b16 %v7242
        %v8465 = vunpack.c.h.b16 %v7242
        %v8466 = vunpack.c.l.b16 %v7243
        %v8467 = vunpack.c.h.b16 %v7243
        %v8468 = vunpack.c.l.b16 %v7244
        %v8469 = vunpack.c.h.b16 %v7244
        %v8470 = vunpack.c.l.b16 %v7245
        %v8471 = vunpack.c.h.b16 %v7245
        %v8472 = vunpack.c.l.b16 %v7246
        %v8473 = vunpack.c.h.b16 %v7246
        %v8474 = vunpack.c.l.b16 %v7247
        %v8475 = vunpack.c.h.b16 %v7247
        %v8476 = vunpack.c.l.b16 %v7248
        %v8477 = vunpack.c.h.b16 %v7248
        %v8478 = vunpack.c.l.b16 %v7249
        %v8479 = vunpack.c.h.b16 %v7249
        %v8480 = vunpack.c.l.b16 %v7250
        %v8481 = vunpack.c.h.b16 %v7250
        %v8482 = vunpack.c.l.b16 %v7251
        %v8483 = vunpack.c.h.b16 %v7251
        %v8484 = vunpack.c.l.b16 %v7252
        %v8485 = vunpack.c.h.b16 %v7252
        %v8486 = vunpack.c.l.b16 %v7253
        %v8487 = vunpack.c.h.b16 %v7253
        %v8488 = vunpack.c.l.b16 %v7254
        %v8489 = vunpack.c.h.b16 %v7254
        %v8490 = vunpack.c.l.b16 %v7255
        %v8491 = vunpack.c.h.b16 %v7255
        %v8492 = vunpack.c.l.b16 %v7256
        %v8493 = vunpack.c.h.b16 %v7256
        %v8494 = vunpack.c.l.b16 %v7257
        %v8495 = vunpack.c.h.b16 %v7257
        %v8496 = vunpack.c.l.b16 %v7258
        %v8497 = vunpack.c.h.b16 %v7258
        %v8498 = vunpack.c.l.b16 %v7259
        %v8499 = vunpack.c.h.b16 %v7259
        %v8500 = vunpack.c.l.b16 %v7260
        %v8501 = vunpack.c.h.b16 %v7260
        %v8502 = vunpack.c.l.b16 %v7261
        %v8503 = vunpack.c.h.b16 %v7261
        %v8504 = vunpack.c.l.b16 %v7262
        %v8505 = vunpack.c.h.b16 %v7262
        %v8506 = vunpack.c.l.b16 %v7263
        %v8507 = vunpack.c.h.b16 %v7263
        %v8508 = vunpack.c.l.b16 %v7264
        %v8509 = vunpack.c.h.b16 %v7264
        %v8510 = vunpack.c.l.b16 %v7265
        %v8511 = vunpack.c.h.b16 %v7265
        %v8512 = vunpack.c.l.b16 %v7266
        %v8513 = vunpack.c.h.b16 %v7266
        %v8514 = vunpack.c.l.b16 %v7267
        %v8515 = vunpack.c.h.b16 %v7267
        %v8516 = vunpack.c.l.b16 %v7268
        %v8517 = vunpack.c.h.b16 %v7268
        %v8518 = vunpack.c.l.b16 %v7269
        %v8519 = vunpack.c.h.b16 %v7269
        %v8520 = vunpack.c.l.b16 %v7270
        %v8521 = vunpack.c.h.b16 %v7270
        %v8522 = vunpack.c.l.b16 %v7271
        %v8523 = vunpack.c.h.b16 %v7271
        %v8524 = vunpack.c.l.b16 %v7272
        %v8525 = vunpack.c.h.b16 %v7272
        %v8526 = vunpack.c.l.b16 %v7273
        %v8527 = vunpack.c.h.b16 %v7273
        %v8528 = vunpack.c.l.b16 %v7274
        %v8529 = vunpack.c.h.b16 %v7274
        %v8530 = vunpack.c.l.b16 %v7275
        %v8531 = vunpack.c.h.b16 %v7275
        %v8532 = vunpack.c.l.b16 %v7276
        %v8533 = vunpack.c.h.b16 %v7276
        %v8534 = vunpack.c.l.b16 %v7277
        %v8535 = vunpack.c.h.b16 %v7277
        %v8536 = vunpack.c.l.b16 %v7278
        %v8537 = vunpack.c.h.b16 %v7278
        %v8538 = vunpack.c.l.b16 %v7279
        %v8539 = vunpack.c.h.b16 %v7279
        %v8540 = vunpack.c.l.b16 %v7280
        %v8541 = vunpack.c.h.b16 %v7280
        %v8542 = vunpack.c.l.b16 %v7281
        %v8543 = vunpack.c.h.b16 %v7281
        %v8544 = vunpack.c.l.b16 %v7282
        %v8545 = vunpack.c.h.b16 %v7282
        %v8546 = vunpack.c.l.b16 %v7283
        %v8547 = vunpack.c.h.b16 %v7283
        %v8548 = vunpack.c.l.b16 %v7284
        %v8549 = vunpack.c.h.b16 %v7284
        %v8550 = vunpack.c.l.b16 %v7285
        %v8551 = vunpack.c.h.b16 %v7285
        %v8552 = vunpack.c.l.b16 %v7286
        %v8553 = vunpack.c.h.b16 %v7286
        %v8554 = vunpack.c.l.b16 %v7287
        %v8555 = vunpack.c.h.b16 %v7287
        %v8556 = vunpack.c.l.b16 %v7288
        %v8557 = vunpack.c.h.b16 %v7288
        %v8558 = vunpack.c.l.b16 %v7289
        %v8559 = vunpack.c.h.b16 %v7289
        %v8560 = vunpack.c.l.b16 %v7290
        %v8561 = vunpack.c.h.b16 %v7290
        %v8562 = vunpack.c.l.b16 %v7291
        %v8563 = vunpack.c.h.b16 %v7291
        %v8564 = vunpack.c.l.b16 %v7292
        %v8565 = vunpack.c.h.b16 %v7292
        %v8566 = vunpack.c.l.b16 %v7293
        %v8567 = vunpack.c.h.b16 %v7293
        %v8568 = vunpack.c.l.b16 %v7294
        %v8569 = vunpack.c.h.b16 %v7294
        %v8570 = vunpack.c.l.b16 %v7295
        %v8571 = vunpack.c.h.b16 %v7295
        %v8572 = vunpack.c.l.b16 %v7296
        %v8573 = vunpack.c.h.b16 %v7296
        %v8574 = vunpack.c.l.b16 %v7297
        %v8575 = vunpack.c.h.b16 %v7297
        %v8576 = vunpack.c.l.b16 %v7298
        %v8577 = vunpack.c.h.b16 %v7298
        %v8578 = vunpack.c.l.b16 %v7299
        %v8579 = vunpack.c.h.b16 %v7299
        %v8580 = vunpack.c.l.b16 %v7300
        %v8581 = vunpack.c.h.b16 %v7300
        %v8582 = vunpack.c.l.b16 %v7301
        %v8583 = vunpack.c.h.b16 %v7301
        %v8584 = vunpack.c.l.b16 %v7302
        %v8585 = vunpack.c.h.b16 %v7302
        %v8586 = vunpack.c.l.b16 %v7303
        %v8587 = vunpack.c.h.b16 %v7303
        %v8588 = vunpack.c.l.b16 %v7304
        %v8589 = vunpack.c.h.b16 %v7304
        %v8590 = vunpack.c.l.b16 %v7305
        %v8591 = vunpack.c.h.b16 %v7305
        %v8592 = vunpack.c.l.b16 %v7306
        %v8593 = vunpack.c.h.b16 %v7306
        %v8594 = vunpack.c.l.b16 %v7307
        %v8595 = vunpack.c.h.b16 %v7307
        %v8596 = vunpack.c.l.b16 %v7308
        %v8597 = vunpack.c.h.b16 %v7308
        %v8598 = vunpack.c.l.b16 %v7309
        %v8599 = vunpack.c.h.b16 %v7309
        %v8600 = vunpack.c.l.b16 %v7310
        %v8601 = vunpack.c.h.b16 %v7310
        %v8602 = vunpack.c.l.b16 %v7311
        %v8603 = vunpack.c.h.b16 %v7311
        %v8604 = vunpack.c.l.b16 %v7312
        %v8605 = vunpack.c.h.b16 %v7312
        %v8606 = vunpack.c.l.b16 %v7313
        %v8607 = vunpack.c.h.b16 %v7313
        %v8608 = vunpack.c.l.b16 %v7314
        %v8609 = vunpack.c.h.b16 %v7314
        %v8610 = vunpack.c.l.b16 %v7315
        %v8611 = vunpack.c.h.b16 %v7315
        %v8612 = vunpack.c.l.b16 %v7316
        %v8613 = vunpack.c.h.b16 %v7316
        %v8614 = vunpack.c.l.b16 %v7317
        %v8615 = vunpack.c.h.b16 %v7317
        %v8616 = vunpack.c.l.b16 %v7318
        %v8617 = vunpack.c.h.b16 %v7318
        %v8618 = vunpack.c.l.b16 %v7319
        %v8619 = vunpack.c.h.b16 %v7319
        %v8620 = vunpack.c.l.b16 %v7320
        %v8621 = vunpack.c.h.b16 %v7320
        %v8622 = vunpack.c.l.b16 %v7321
        %v8623 = vunpack.c.h.b16 %v7321
        %v8624 = vunpack.c.l.b16 %v7322
        %v8625 = vunpack.c.h.b16 %v7322
        %v8626 = vunpack.c.l.b16 %v7323
        %v8627 = vunpack.c.h.b16 %v7323
        %v8628 = vunpack.c.l.b16 %v7324
        %v8629 = vunpack.c.h.b16 %v7324
        %v8630 = vunpack.c.l.b16 %v7325
        %v8631 = vunpack.c.h.b16 %v7325
        %v8632 = vunpack.c.l.b16 %v7326
        %v8633 = vunpack.c.h.b16 %v7326
        %v8634 = vunpack.c.l.b16 %v7327
        %v8635 = vunpack.c.h.b16 %v7327
        %v8636 = vunpack.c.l.b16 %v7328
        %v8637 = vunpack.c.h.b16 %v7328
        %v8638 = vunpack.c.l.b16 %v7329
        %v8639 = vunpack.c.h.b16 %v7329
        %v8640 = vunpack.c.l.b16 %v7330
        %v8641 = vunpack.c.h.b16 %v7330
        %v8642 = vunpack.c.l.b16 %v7331
        %v8643 = vunpack.c.h.b16 %v7331
        %v8644 = vunpack.c.l.b16 %v7332
        %v8645 = vunpack.c.h.b16 %v7332
        %v8646 = vunpack.c.l.b16 %v7333
        %v8647 = vunpack.c.h.b16 %v7333
        %v8648 = vunpack.c.l.b16 %v7334
        %v8649 = vunpack.c.h.b16 %v7334
        %v8650 = vunpack.c.l.b16 %v7335
        %v8651 = vunpack.c.h.b16 %v7335
        %v8652 = vunpack.c.l.b16 %v7336
        %v8653 = vunpack.c.h.b16 %v7336
        %v8654 = vunpack.c.l.b16 %v7337
        %v8655 = vunpack.c.h.b16 %v7337
        %v8656 = vunpack.c.l.b16 %v7338
        %v8657 = vunpack.c.h.b16 %v7338
        %v8658 = vunpack.c.l.b16 %v7339
        %v8659 = vunpack.c.h.b16 %v7339
        %v8660 = vunpack.c.l.b16 %v7340
        %v8661 = vunpack.c.h.b16 %v7340
        %v8662 = vunpack.c.l.b16 %v7341
        %v8663 = vunpack.c.h.b16 %v7341
        %v8664 = vunpack.c.l.b16 %v7342
        %v8665 = vunpack.c.h.b16 %v7342
        %v8666 = vunpack.c.l.b16 %v7343
        %v8667 = vunpack.c.h.b16 %v7343
        %v8668 = vunpack.c.l.b16 %v7344
        %v8669 = vunpack.c.h.b16 %v7344
        %v8670 = vunpack.c.l.b16 %v7345
        %v8671 = vunpack.c.h.b16 %v7345
        %v8672 = vunpack.c.l.b16 %v7346
        %v8673 = vunpack.c.h.b16 %v7346
        %v8674 = vunpack.c.l.b16 %v7347
        %v8675 = vunpack.c.h.b16 %v7347
        %v8676 = vunpack.c.l.b16 %v7348
        %v8677 = vunpack.c.h.b16 %v7348
        %v8678 = vpack.c.b16 %v8426, %v8422
        %v8679 = vpack.c.b16 %v8427, %v8423
        %v8680 = vpack.c.b16 %v8428, %v8424
        %v8681 = vpack.c.b16 %v8429, %v8425
        %v8682 = vpack.c.b16 %v8434, %v8430
        %v8683 = vpack.c.b16 %v8435, %v8431
        %v8684 = vpack.c.b16 %v8436, %v8432
        %v8685 = vpack.c.b16 %v8437, %v8433
        %v8686 = vpack.c.b16 %v8442, %v8438
        %v8687 = vpack.c.b16 %v8443, %v8439
        %v8688 = vpack.c.b16 %v8444, %v8440
        %v8689 = vpack.c.b16 %v8445, %v8441
        %v8690 = vpack.c.b16 %v8450, %v8446
        %v8691 = vpack.c.b16 %v8451, %v8447
        %v8692 = vpack.c.b16 %v8452, %v8448
        %v8693 = vpack.c.b16 %v8453, %v8449
        %v8694 = vpack.c.b16 %v8458, %v8454
        %v8695 = vpack.c.b16 %v8459, %v8455
        %v8696 = vpack.c.b16 %v8460, %v8456
        %v8697 = vpack.c.b16 %v8461, %v8457
        %v8698 = vpack.c.b16 %v8466, %v8462
        %v8699 = vpack.c.b16 %v8467, %v8463
        %v8700 = vpack.c.b16 %v8468, %v8464
        %v8701 = vpack.c.b16 %v8469, %v8465
        %v8702 = vpack.c.b16 %v8474, %v8470
        %v8703 = vpack.c.b16 %v8475, %v8471
        %v8704 = vpack.c.b16 %v8476, %v8472
        %v8705 = vpack.c.b16 %v8477, %v8473
        %v8706 = vpack.c.b16 %v8482, %v8478
        %v8707 = vpack.c.b16 %v8483, %v8479
        %v8708 = vpack.c.b16 %v8484, %v8480
        %v8709 = vpack.c.b16 %v8485, %v8481
        %v8710 = vpack.c.b16 %v8490, %v8486
        %v8711 = vpack.c.b16 %v8491, %v8487
        %v8712 = vpack.c.b16 %v8492, %v8488
        %v8713 = vpack.c.b16 %v8493, %v8489
        %v8714 = vpack.c.b16 %v8498, %v8494
        %v8715 = vpack.c.b16 %v8499, %v8495
        %v8716 = vpack.c.b16 %v8500, %v8496
        %v8717 = vpack.c.b16 %v8501, %v8497
        %v8718 = vpack.c.b16 %v8506, %v8502
        %v8719 = vpack.c.b16 %v8507, %v8503
        %v8720 = vpack.c.b16 %v8508, %v8504
        %v8721 = vpack.c.b16 %v8509, %v8505
        %v8722 = vpack.c.b16 %v8514, %v8510
        %v8723 = vpack.c.b16 %v8515, %v8511
        %v8724 = vpack.c.b16 %v8516, %v8512
        %v8725 = vpack.c.b16 %v8517, %v8513
        %v8726 = vpack.c.b16 %v8522, %v8518
        %v8727 = vpack.c.b16 %v8523, %v8519
        %v8728 = vpack.c.b16 %v8524, %v8520
        %v8729 = vpack.c.b16 %v8525, %v8521
        %v8730 = vpack.c.b16 %v8530, %v8526
        %v8731 = vpack.c.b16 %v8531, %v8527
        %v8732 = vpack.c.b16 %v8532, %v8528
        %v8733 = vpack.c.b16 %v8533, %v8529
        %v8734 = vpack.c.b16 %v8538, %v8534
        %v8735 = vpack.c.b16 %v8539, %v8535
        %v8736 = vpack.c.b16 %v8540, %v8536
        %v8737 = vpack.c.b16 %v8541, %v8537
        %v8738 = vpack.c.b16 %v8546, %v8542
        %v8739 = vpack.c.b16 %v8547, %v8543
        %v8740 = vpack.c.b16 %v8548, %v8544
        %v8741 = vpack.c.b16 %v8549, %v8545
        %v8742 = vpack.c.b16 %v8554, %v8550
        %v8743 = vpack.c.b16 %v8555, %v8551
        %v8744 = vpack.c.b16 %v8556, %v8552
        %v8745 = vpack.c.b16 %v8557, %v8553
        %v8746 = vpack.c.b16 %v8562, %v8558
        %v8747 = vpack.c.b16 %v8563, %v8559
        %v8748 = vpack.c.b16 %v8564, %v8560
        %v8749 = vpack.c.b16 %v8565, %v8561
        %v8750 = vpack.c.b16 %v8570, %v8566
        %v8751 = vpack.c.b16 %v8571, %v8567
        %v8752 = vpack.c.b16 %v8572, %v8568
        %v8753 = vpack.c.b16 %v8573, %v8569
        %v8754 = vpack.c.b16 %v8578, %v8574
        %v8755 = vpack.c.b16 %v8579, %v8575
        %v8756 = vpack.c.b16 %v8580, %v8576
        %v8757 = vpack.c.b16 %v8581, %v8577
        %v8758 = vpack.c.b16 %v8586, %v8582
        %v8759 = vpack.c.b16 %v8587, %v8583
        %v8760 = vpack.c.b16 %v8588, %v8584
        %v8761 = vpack.c.b16 %v8589, %v8585
        %v8762 = vpack.c.b16 %v8594, %v8590
        %v8763 = vpack.c.b16 %v8595, %v8591
        %v8764 = vpack.c.b16 %v8596, %v8592
        %v8765 = vpack.c.b16 %v8597, %v8593
        %v8766 = vpack.c.b16 %v8602, %v8598
        %v8767 = vpack.c.b16 %v8603, %v8599
        %v8768 = vpack.c.b16 %v8604, %v8600
        %v8769 = vpack.c.b16 %v8605, %v8601
        %v8770 = vpack.c.b16 %v8610, %v8606
        %v8771 = vpack.c.b16 %v8611, %v8607
        %v8772 = vpack.c.b16 %v8612, %v8608
        %v8773 = vpack.c.b16 %v8613, %v8609
        %v8774 = vpack.c.b16 %v8618, %v8614
        %v8775 = vpack.c.b16 %v8619, %v8615
        %v8776 = vpack.c.b16 %v8620, %v8616
        %v8777 = vpack.c.b16 %v8621, %v8617
        %v8778 = vpack.c.b16 %v8626, %v8622
        %v8779 = vpack.c.b16 %v8627, %v8623
        %v8780 = vpack.c.b16 %v8628, %v8624
        %v8781 = vpack.c.b16 %v8629, %v8625
        %v8782 = vpack.c.b16 %v8634, %v8630
        %v8783 = vpack.c.b16 %v8635, %v8631
        %v8784 = vpack.c.b16 %v8636, %v8632
        %v8785 = vpack.c.b16 %v8637, %v8633
        %v8786 = vpack.c.b16 %v8642, %v8638
        %v8787 = vpack.c.b16 %v8643, %v8639
        %v8788 = vpack.c.b16 %v8644, %v8640
        %v8789 = vpack.c.b16 %v8645, %v8641
        %v8790 = vpack.c.b16 %v8650, %v8646
        %v8791 = vpack.c.b16 %v8651, %v8647
        %v8792 = vpack.c.b16 %v8652, %v8648
        %v8793 = vpack.c.b16 %v8653, %v8649
        %v8794 = vpack.c.b16 %v8658, %v8654
        %v8795 = vpack.c.b16 %v8659, %v8655
        %v8796 = vpack.c.b16 %v8660, %v8656
        %v8797 = vpack.c.b16 %v8661, %v8657
        %v8798 = vpack.c.b16 %v8666, %v8662
        %v8799 = vpack.c.b16 %v8667, %v8663
        %v8800 = vpack.c.b16 %v8668, %v8664
        %v8801 = vpack.c.b16 %v8669, %v8665
        %v8802 = vpack.c.b16 %v8674, %v8670
        %v8803 = vpack.c.b16 %v8675, %v8671
        %v8804 = vpack.c.b16 %v8676, %v8672
        %v8805 = vpack.c.b16 %v8677, %v8673
        %8934 = vmatprep.subr.bf16.mxu0 %v8679
        %8935 = vmatpush1.bf16.msra.mxu0 %v8678
        %8936 = vmatprep.subr.bf16.mxu0 %v8683
        %8937 = vmatpush1.bf16.msra.mxu0 %v8682
        %8938 = vmatprep.subr.bf16.mxu0 %v8687
        %8939 = vmatpush1.bf16.msra.mxu0 %v8686
        %8940 = vmatprep.subr.bf16.mxu0 %v8691
        %8941 = vmatpush1.bf16.msra.mxu0 %v8690
        %8942 = vmatprep.subr.bf16.mxu0 %v8695
        %8943 = vmatpush1.bf16.msra.mxu0 %v8694
        %8944 = vmatprep.subr.bf16.mxu0 %v8699
        %8945 = vmatpush1.bf16.msra.mxu0 %v8698
        %8946 = vmatprep.subr.bf16.mxu0 %v8703
        %8947 = vmatpush1.bf16.msra.mxu0 %v8702
        %8948 = vmatprep.subr.bf16.mxu0 %v8707
        %8949 = vmatpush1.bf16.msra.mxu0 %v8706
        %8950 = vmatprep.subr.bf16.mxu0 %v8711
        %8951 = vmatpush1.bf16.msra.mxu0 %v8710
        %8952 = vmatprep.subr.bf16.mxu0 %v8715
        %8953 = vmatpush1.bf16.msra.mxu0 %v8714
        %8954 = vmatprep.subr.bf16.mxu0 %v8719
        %8955 = vmatpush1.bf16.msra.mxu0 %v8718
        %8956 = vmatprep.subr.bf16.mxu0 %v8723
        %8957 = vmatpush1.bf16.msra.mxu0 %v8722
        %8958 = vmatprep.subr.bf16.mxu0 %v8727
        %8959 = vmatpush1.bf16.msra.mxu0 %v8726
        %8960 = vmatprep.subr.bf16.mxu0 %v8731
        %8961 = vmatpush1.bf16.msra.mxu0 %v8730
        %8962 = vmatprep.subr.bf16.mxu0 %v8735
        %8963 = vmatpush1.bf16.msra.mxu0 %v8734
        %8964 = vmatprep.subr.bf16.mxu0 %v8739
        %8965 = vmatpush1.bf16.msra.mxu0 %v8738
        %8966 = vmatprep.mubr.bf16.mxu0 %v8287
        %8967 = vmatmul.mubr.bf16.gmra.mrb[0].mxu0 %v8286
        %v8968 = vpop.f32.mrb[0].mxu0
        %v8969 = vadd.f32 %v8194, %v8968
        %v8970 = vpop.f32.mrb[0].mxu0
        %v8971 = vadd.f32 %v8196, %v8970
        %v8972 = vpop.f32.mrb[0].mxu0
        %v8973 = vpop.f32.mrb[0].mxu0
        %8974 = vdwg.mxu0
        %8975 = vmatprep.subr.bf16.mxu0 %v8743
        %8976 = vmatpush1.bf16.msra.mxu0 %v8742
        %8977 = vmatprep.subr.bf16.mxu0 %v8747
        %8978 = vmatpush1.bf16.msra.mxu0 %v8746
        %8979 = vmatprep.subr.bf16.mxu0 %v8751
        %8980 = vmatpush1.bf16.msra.mxu0 %v8750
        %8981 = vmatprep.subr.bf16.mxu0 %v8755
        %8982 = vmatpush1.bf16.msra.mxu0 %v8754
        %8983 = vmatprep.subr.bf16.mxu0 %v8759
        %8984 = vmatpush1.bf16.msra.mxu0 %v8758
        %8985 = vmatprep.subr.bf16.mxu0 %v8763
        %8986 = vmatpush1.bf16.msra.mxu0 %v8762
        %8987 = vmatprep.subr.bf16.mxu0 %v8767
        %8988 = vmatpush1.bf16.msra.mxu0 %v8766
        %8989 = vmatprep.subr.bf16.mxu0 %v8771
        %8990 = vmatpush1.bf16.msra.mxu0 %v8770
        %8991 = vmatprep.subr.bf16.mxu0 %v8775
        %8992 = vmatpush1.bf16.msra.mxu0 %v8774
        %8993 = vmatprep.subr.bf16.mxu0 %v8779
        %8994 = vmatpush1.bf16.msra.mxu0 %v8778
        %8995 = vmatprep.subr.bf16.mxu0 %v8783
        %8996 = vmatpush1.bf16.msra.mxu0 %v8782
        %8997 = vmatprep.subr.bf16.mxu0 %v8787
        %8998 = vmatpush1.bf16.msra.mxu0 %v8786
        %8999 = vmatprep.subr.bf16.mxu0 %v8791
        %9000 = vmatpush1.bf16.msra.mxu0 %v8790
        %9001 = vmatprep.subr.bf16.mxu0 %v8795
        %9002 = vmatpush1.bf16.msra.mxu0 %v8794
        %9003 = vmatprep.subr.bf16.mxu0 %v8799
        %9004 = vmatpush1.bf16.msra.mxu0 %v8798
        %9005 = vmatprep.subr.bf16.mxu0 %v8803
        %9006 = vmatpush1.bf16.msra.mxu0 %v8802
        %9007 = vmatprep.mubr.bf16.mxu0 %v8289
        %9008 = vmatmul.mubr.bf16.gmra.mrb[0].mxu0 %v8288
        %v9009 = vpop.f32.mrb[0].mxu0
        %v9010 = vadd.f32 %v8969, %v9009
        %v9011 = vpop.f32.mrb[0].mxu0
        %v9012 = vadd.f32 %v8971, %v9011
        %v9013 = vpop.f32.mrb[0].mxu0
        %v9014 = vpop.f32.mrb[0].mxu0
        %9015 = vdwg.mxu0
        %9016 = vmatprep.subr.bf16.mxu0 %v8681
        %9017 = vmatpush1.bf16.msra.mxu0 %v8680
        %9018 = vmatprep.subr.bf16.mxu0 %v8685
        %9019 = vmatpush1.bf16.msra.mxu0 %v8684
        %9020 = vmatprep.subr.bf16.mxu0 %v8689
        %9021 = vmatpush1.bf16.msra.mxu0 %v8688
        %9022 = vmatprep.subr.bf16.mxu0 %v8693
        %9023 = vmatpush1.bf16.msra.mxu0 %v8692
        %9024 = vmatprep.subr.bf16.mxu0 %v8697
        %9025 = vmatpush1.bf16.msra.mxu0 %v8696
        %9026 = vmatprep.subr.bf16.mxu0 %v8701
        %9027 = vmatpush1.bf16.msra.mxu0 %v8700
        %9028 = vmatprep.subr.bf16.mxu0 %v8705
        %9029 = vmatpush1.bf16.msra.mxu0 %v8704
        %9030 = vmatprep.subr.bf16.mxu0 %v8709
        %9031 = vmatpush1.bf16.msra.mxu0 %v8708
        %9032 = vmatprep.subr.bf16.mxu0 %v8713
        %9033 = vmatpush1.bf16.msra.mxu0 %v8712
        %9034 = vmatprep.subr.bf16.mxu0 %v8717
        %9035 = vmatpush1.bf16.msra.mxu0 %v8716
        %9036 = vmatprep.subr.bf16.mxu0 %v8721
        %9037 = vmatpush1.bf16.msra.mxu0 %v8720
        %9038 = vmatprep.subr.bf16.mxu0 %v8725
        %9039 = vmatpush1.bf16.msra.mxu0 %v8724
        %9040 = vmatprep.subr.bf16.mxu0 %v8729
        %9041 = vmatpush1.bf16.msra.mxu0 %v8728
        %9042 = vmatprep.subr.bf16.mxu0 %v8733
        %9043 = vmatpush1.bf16.msra.mxu0 %v8732
        %9044 = vmatprep.subr.bf16.mxu0 %v8737
        %9045 = vmatpush1.bf16.msra.mxu0 %v8736
        %9046 = vmatprep.subr.bf16.mxu0 %v8741
        %9047 = vmatpush1.bf16.msra.mxu0 %v8740
        %9048 = vmatprep.mubr.bf16.mxu0 %v8287
        %9049 = vmatmul.mubr.bf16.gmra.mrb[0].mxu0 %v8286
        %v9050 = vpop.f32.mrb[0].mxu0
        %v9051 = vadd.f32 %v8276, %v9050
        %v9052 = vpop.f32.mrb[0].mxu0
        %v9053 = vadd.f32 %v8278, %v9052
        %v9054 = vpop.f32.mrb[0].mxu0
        %v9055 = vpop.f32.mrb[0].mxu0
        %9056 = vdwg.mxu0
        %9057 = vmatprep.subr.bf16.mxu0 %v8745
        %9058 = vmatpush1.bf16.msra.mxu0 %v8744
        %9059 = vmatprep.subr.bf16.mxu0 %v8749
        %9060 = vmatpush1.bf16.msra.mxu0 %v8748
        %9061 = vmatprep.subr.bf16.mxu0 %v8753
        %9062 = vmatpush1.bf16.msra.mxu0 %v8752
        %9063 = vmatprep.subr.bf16.mxu0 %v8757
        %9064 = vmatpush1.bf16.msra.mxu0 %v8756
        %9065 = vmatprep.subr.bf16.mxu0 %v8761
        %9066 = vmatpush1.bf16.msra.mxu0 %v8760
        %9067 = vmatprep.subr.bf16.mxu0 %v8765
        %9068 = vmatpush1.bf16.msra.mxu0 %v8764
        %9069 = vmatprep.subr.bf16.mxu0 %v8769
        %9070 = vmatpush1.bf16.msra.mxu0 %v8768
        %9071 = vmatprep.subr.bf16.mxu0 %v8773
        %9072 = vmatpush1.bf16.msra.mxu0 %v8772
        %9073 = vmatprep.subr.bf16.mxu0 %v8777
        %9074 = vmatpush1.bf16.msra.mxu0 %v8776
        %9075 = vmatprep.subr.bf16.mxu0 %v8781
        %9076 = vmatpush1.bf16.msra.mxu0 %v8780
        %9077 = vmatprep.subr.bf16.mxu0 %v8785
        %9078 = vmatpush1.bf16.msra.mxu0 %v8784
        %9079 = vmatprep.subr.bf16.mxu0 %v8789
        %9080 = vmatpush1.bf16.msra.mxu0 %v8788
        %9081 = vmatprep.subr.bf16.mxu0 %v8793
        %9082 = vmatpush1.bf16.msra.mxu0 %v8792
        %9083 = vmatprep.subr.bf16.mxu0 %v8797
        %9084 = vmatpush1.bf16.msra.mxu0 %v8796
        %9085 = vmatprep.subr.bf16.mxu0 %v8801
        %9086 = vmatpush1.bf16.msra.mxu0 %v8800
        %9087 = vmatprep.subr.bf16.mxu0 %v8805
        %9088 = vmatpush1.bf16.msra.mxu0 %v8804
        %9089 = vmatprep.mubr.bf16.mxu0 %v8289
        %9090 = vmatmul.mubr.bf16.gmra.mrb[0].mxu0 %v8288
        %v9091 = vpop.f32.mrb[0].mxu0
        %v9092 = vadd.f32 %v9051, %v9091
        %v9093 = vpop.f32.mrb[0].mxu0
        %v9094 = vadd.f32 %v9053, %v9093
        %v9095 = vpop.f32.mrb[0].mxu0
        %v9096 = vpop.f32.mrb[0].mxu0
        %9097 = vdwg.mxu0
        %v9098 = vadd.f32 %v9010, %v7160
        %v9099 = vadd.f32 %v9012, %v7164
        %v9100 = vadd.f32 %v9092, %v7168
        %v9101 = vadd.f32 %v9094, %v7172
        %v9102 = vxor.u32 %v9098, 2147483648
        %v9103 = vxor.u32 %v9099, 2147483648
        %v9104 = vxor.u32 %v9100, 2147483648
        %v9105 = vxor.u32 %v9101, 2147483648
        %v9106 = vmul.f32 %v9102, 1.442695
        %v9107 = vpow.pop %v9106
        %v9108 = vmul.f32 %v9103, 1.442695
        %v9109 = vpow.pop %v9108
        %v9110 = vmul.f32 %v9104, 1.442695
        %v9111 = vpow.pop %v9110
        %v9112 = vmul.f32 %v9105, 1.442695
        %v9113 = vpow.pop %v9112
        %v9114 = vadd.f32 %v9107, 1.0
        %v9115 = vadd.f32 %v9109, 1.0
        %v9116 = vadd.f32 %v9111, 1.0
        %v9117 = vadd.f32 %v9113, 1.0
        %v9118 = vrcp.pop %v9114
        %v9119 = vmul.f32 1.0, %v9118
        %v9120 = vrcp.pop %v9115
        %v9121 = vmul.f32 1.0, %v9120
        %v9122 = vrcp.pop %v9116
        %v9123 = vmul.f32 1.0, %v9122
        %v9124 = vrcp.pop %v9117
        %v9125 = vmul.f32 1.0, %v9124
        %v9126 = vmul.f32 %v9098, %v9119
        %v9127 = vmul.f32 %v9099, %v9121
        %v9128 = vmul.f32 %v9100, %v9123
        %v9129 = vmul.f32 %v9101, %v9125
        %v9134 = vcombine.low %v7205, %v7206
        %v9135 = vcombine.low %v7207, %v7208
        %v9137 = vunpack.c.l.s4 1966171168
        %v9138 = vunpack.c.0.s8 %v9137
        %v9139 = vlaneseq
        %v9140 = vshrl.u32 %v9139, 7
        %v9141 = vsub.s32 %v9138, %v9140
        %v9142 = vrot.slane %v9134, %v9141
        %v9144 = vunpack.c.l.s4 1966171168
        %v9145 = vunpack.c.0.s8 %v9144
        %v9146 = vlaneseq
        %v9147 = vshrl.u32 %v9146, 7
        %v9148 = vsub.s32 %v9145, %v9147
        %v9149 = vrot.slane %v9135, %v9148
        %v9150 = vcombine.low %v9142, %v9149
        %v9152 = vunpack.c.l.s4 1966171168
        %v9153 = vunpack.c.0.s8 %v9152
        %v9154 = vlaneseq
        %v9155 = vshrl.u32 %v9154, 7
        %v9156 = vsub.s32 %v9153, %v9155
        %v9157 = vrot.slane %v9150, %v9156
        %s9159 = scalar_lea.vmem [#allocation4], 1
        %9160 = vst.msk [vmem:[%s9159] ss:$8 sm:$0xf] %vm982, %v9157
        %9161 = vst.msk [vmem:[%s9159] ss:$8 sm:$0x0] %vm982, %v9157
        %v9166 = vcombine.low %v9126, %v9127
        %v9167 = vcombine.low %v9128, %v9129
        %v9169 = vunpack.c.l.s4 1966171168
        %v9170 = vunpack.c.0.s8 %v9169
        %v9171 = vlaneseq
        %v9172 = vshrl.u32 %v9171, 7
        %v9173 = vsub.s32 %v9170, %v9172
        %v9174 = vrot.slane %v9166, %v9173
        %v9176 = vunpack.c.l.s4 1966171168
        %v9177 = vunpack.c.0.s8 %v9176
        %v9178 = vlaneseq
        %v9179 = vshrl.u32 %v9178, 7
        %v9180 = vsub.s32 %v9177, %v9179
        %v9181 = vrot.slane %v9167, %v9180
        %v9182 = vcombine.low %v9174, %v9181
        %v9184 = vunpack.c.l.s4 1966171168
        %v9185 = vunpack.c.0.s8 %v9184
        %v9186 = vlaneseq
        %v9187 = vshrl.u32 %v9186, 7
        %v9188 = vsub.s32 %v9185, %v9187
        %v9189 = vrot.slane %v9182, %v9188
        %s9191 = scalar_lea.vmem [#allocation4], 2
        %9192 = vst.msk [vmem:[%s9191] ss:$8 sm:$0xf] %vm982, %v9189
        %9193 = vst.msk [vmem:[%s9191] ss:$8 sm:$0x0] %vm982, %v9189
        %v9194 = vcombine.high %v9142, %v9149
        %v9196 = vunpack.c.l.s4 1966171168
        %v9197 = vunpack.c.0.s8 %v9196
        %v9198 = vlaneseq
        %v9199 = vshrl.u32 %v9198, 7
        %v9200 = vsub.s32 %v9197, %v9199
        %v9201 = vrot.slane %v9194, %v9200
        %s9203 = scalar_lea.vmem [#allocation4], 3
        %9204 = vst.msk [vmem:[%s9203] ss:$8 sm:$0xf] %vm982, %v9201
        %9205 = vst.msk [vmem:[%s9203] ss:$8 sm:$0x0] %vm982, %v9201
        %v9206 = vcombine.high %v9174, %v9181
        %v9208 = vunpack.c.l.s4 1966171168
        %v9209 = vunpack.c.0.s8 %v9208
        %v9210 = vlaneseq
        %v9211 = vshrl.u32 %v9210, 7
        %v9212 = vsub.s32 %v9209, %v9211
        %v9213 = vrot.slane %v9206, %v9212
        %s9215 = scalar_lea.vmem [#allocation4], 4
        %9216 = vst.msk [vmem:[%s9215] ss:$8 sm:$0xf] %vm982, %v9213
        %9217 = vst.msk [vmem:[%s9215] ss:$8 sm:$0x0] %vm982, %v9213
        %v9218 = vcombine.high %v9157, %v9157
        %s9220 = scalar_lea.vmem [#allocation4], 5
        %9221 = vst.msk [vmem:[%s9220] ss:$8 sm:$0xf] %vm982, %v9218
        %9222 = vst.msk [vmem:[%s9220] ss:$8 sm:$0x0] %vm982, %v9218
        %v9223 = vcombine.high %v9189, %v9189
        %s9225 = scalar_lea.vmem [#allocation4], 6
        %9226 = vst.msk [vmem:[%s9225] ss:$8 sm:$0xf] %vm982, %v9223
        %9227 = vst.msk [vmem:[%s9225] ss:$8 sm:$0x0] %vm982, %v9223
        %v9228 = vcombine.high %v9201, %v9201
        %s9230 = scalar_lea.vmem [#allocation4], 7
        %9231 = vst.msk [vmem:[%s9230] ss:$8 sm:$0xf] %vm982, %v9228
        %9232 = vst.msk [vmem:[%s9230] ss:$8 sm:$0x0] %vm982, %v9228
        %v9233 = vcombine.high %v9213, %v9213
        %s9235 = scalar_lea.vmem [#allocation4], 32
        %9236 = vst.msk [vmem:[%s9235] ss:$8 sm:$0xf] %vm982, %v9233
        %9237 = vst.msk [vmem:[%s9235] ss:$8 sm:$0x0] %vm982, %v9233
        %v9238 = vcombine.high %v7205, %v7206
        %v9239 = vcombine.high %v7207, %v7208
        %v9241 = vunpack.c.l.s4 1966171168
        %v9242 = vunpack.c.0.s8 %v9241
        %v9243 = vlaneseq
        %v9244 = vshrl.u32 %v9243, 7
        %v9245 = vsub.s32 %v9242, %v9244
        %v9246 = vrot.slane %v9238, %v9245
        %v9248 = vunpack.c.l.s4 1966171168
        %v9249 = vunpack.c.0.s8 %v9248
        %v9250 = vlaneseq
        %v9251 = vshrl.u32 %v9250, 7
        %v9252 = vsub.s32 %v9249, %v9251
        %v9253 = vrot.slane %v9239, %v9252
        %v9254 = vcombine.low %v9246, %v9253
        %v9256 = vunpack.c.l.s4 1966171168
        %v9257 = vunpack.c.0.s8 %v9256
        %v9258 = vlaneseq
        %v9259 = vshrl.u32 %v9258, 7
        %v9260 = vsub.s32 %v9257, %v9259
        %v9261 = vrot.slane %v9254, %v9260
        %s9263 = scalar_lea.vmem [#allocation4], 33
        %9264 = vst.msk [vmem:[%s9263] ss:$8 sm:$0xf] %vm982, %v9261
        %9265 = vst.msk [vmem:[%s9263] ss:$8 sm:$0x0] %vm982, %v9261
        %v9266 = vcombine.high %v9126, %v9127
        %v9267 = vcombine.high %v9128, %v9129
        %v9269 = vunpack.c.l.s4 1966171168
        %v9270 = vunpack.c.0.s8 %v9269
        %v9271 = vlaneseq
        %v9272 = vshrl.u32 %v9271, 7
        %v9273 = vsub.s32 %v9270, %v9272
        %v9274 = vrot.slane %v9266, %v9273
        %v9276 = vunpack.c.l.s4 1966171168
        %v9277 = vunpack.c.0.s8 %v9276
        %v9278 = vlaneseq
        %v9279 = vshrl.u32 %v9278, 7
        %v9280 = vsub.s32 %v9277, %v9279
        %v9281 = vrot.slane %v9267, %v9280
        %v9282 = vcombine.low %v9274, %v9281
        %v9284 = vunpack.c.l.s4 1966171168
        %v9285 = vunpack.c.0.s8 %v9284
        %v9286 = vlaneseq
        %v9287 = vshrl.u32 %v9286, 7
        %v9288 = vsub.s32 %v9285, %v9287
        %v9289 = vrot.slane %v9282, %v9288
        %s9291 = scalar_lea.vmem [#allocation4], 34
        %9292 = vst.msk [vmem:[%s9291] ss:$8 sm:$0xf] %vm982, %v9289
        %9293 = vst.msk [vmem:[%s9291] ss:$8 sm:$0x0] %vm982, %v9289
        %v9294 = vcombine.high %v9246, %v9253
        %v9296 = vunpack.c.l.s4 1966171168
        %v9297 = vunpack.c.0.s8 %v9296
        %v9298 = vlaneseq
        %v9299 = vshrl.u32 %v9298, 7
        %v9300 = vsub.s32 %v9297, %v9299
        %v9301 = vrot.slane %v9294, %v9300
        %s9303 = scalar_lea.vmem [#allocation4], 35
        %9304 = vst.msk [vmem:[%s9303] ss:$8 sm:$0xf] %vm982, %v9301
        %9305 = vst.msk [vmem:[%s9303] ss:$8 sm:$0x0] %vm982, %v9301
        %v9306 = vcombine.high %v9274, %v9281
        %v9308 = vunpack.c.l.s4 1966171168
        %v9309 = vunpack.c.0.s8 %v9308
        %v9310 = vlaneseq
        %v9311 = vshrl.u32 %v9310, 7
        %v9312 = vsub.s32 %v9309, %v9311
        %v9313 = vrot.slane %v9306, %v9312
        %s9315 = scalar_lea.vmem [#allocation4], 36
        %9316 = vst.msk [vmem:[%s9315] ss:$8 sm:$0xf] %vm982, %v9313
        %9317 = vst.msk [vmem:[%s9315] ss:$8 sm:$0x0] %vm982, %v9313
        %v9318 = vcombine.high %v9261, %v9261
        %s9320 = scalar_lea.vmem [#allocation4], 37
        %9321 = vst.msk [vmem:[%s9320] ss:$8 sm:$0xf] %vm982, %v9318
        %9322 = vst.msk [vmem:[%s9320] ss:$8 sm:$0x0] %vm982, %v9318
        %v9323 = vcombine.high %v9289, %v9289
        %s9325 = scalar_lea.vmem [#allocation4], 38
        %9326 = vst.msk [vmem:[%s9325] ss:$8 sm:$0xf] %vm982, %v9323
        %9327 = vst.msk [vmem:[%s9325] ss:$8 sm:$0x0] %vm982, %v9323
        %v9328 = vcombine.high %v9301, %v9301
        %s9330 = scalar_lea.vmem [#allocation4], 39
        %9331 = vst.msk [vmem:[%s9330] ss:$8 sm:$0xf] %vm982, %v9328
        %9332 = vst.msk [vmem:[%s9330] ss:$8 sm:$0x0] %vm982, %v9328
        %v9333 = vcombine.high %v9313, %v9313
        %s9335 = scalar_lea.vmem [#allocation4], 64
        %9336 = vst.msk [vmem:[%s9335] ss:$8 sm:$0xf] %vm982, %v9333
        %9337 = vst.msk [vmem:[%s9335] ss:$8 sm:$0x0] %vm982, %v9333
        %v9338 = vld [vmem:[#allocation4] sm:$0xfe]
        %v9339 = vld [vmem:[#allocation4 + $0x8] sm:$0xfe]
        %v9340 = vld [vmem:[#allocation4 + $0x10] sm:$0xfe]
        %v9341 = vld [vmem:[#allocation4 + $0x18] sm:$0xfe]
        %v9342 = vld [vmem:[#allocation4 + $0x20] sm:$0xff]
        %v9343 = vld [vmem:[#allocation4 + $0x28] sm:$0xff]
        %v9344 = vld [vmem:[#allocation4 + $0x30] sm:$0xff]
        %v9345 = vld [vmem:[#allocation4 + $0x38] sm:$0xff]
        %v9346 = vld [vmem:[#allocation4 + $0x40] sm:$0x1]
        %v9347 = vld [vmem:[#allocation4 + $0x48] sm:$0x1]
        %v9348 = vld [vmem:[#allocation4 + $0x50] sm:$0x1]
        %v9349 = vld [vmem:[#allocation4 + $0x58] sm:$0x1]
        %v9350 = vpack.c.bf16 %v9342, %v9338
        %v9351 = vpack.c.bf16 %v9343, %v9339
        %v9352 = vpack.c.bf16 %v9344, %v9340
        %v9353 = vpack.c.bf16 %v9345, %v9341
        %v9354 = vpack.c.bf16 %v9346, %v9346
        %v9355 = vpack.c.bf16 %v9347, %v9347
        %v9356 = vpack.c.bf16 %v9348, %v9348
        %v9357 = vpack.c.bf16 %v9349, %v9349
        %s9358 = scalar_lea.vmem %s4, 256
        %v9359 = vld [vmem:[%s9358] sm:$0xf]
        %v9360 = vld [vmem:[%s9358 + $0x4] sm:$0xf]
        %v9361 = vld [vmem:[%s9358 + $0x8] sm:$0xf]
        %v9362 = vld [vmem:[%s9358 + $0xc] sm:$0xf]
        %v9363 = vld [vmem:[%s9358 + $0x10] sm:$0xf]
        %v9364 = vld [vmem:[%s9358 + $0x14] sm:$0xf]
        %v9365 = vld [vmem:[%s9358 + $0x18] sm:$0xf]
        %v9366 = vld [vmem:[%s9358 + $0x1c] sm:$0xf]
        %v9367 = vld [vmem:[%s9358 + $0x20] sm:$0xf]
        %v9368 = vld [vmem:[%s9358 + $0x24] sm:$0xf]
        %v9369 = vld [vmem:[%s9358 + $0x28] sm:$0xf]
        %v9370 = vld [vmem:[%s9358 + $0x2c] sm:$0xf]
        %v9371 = vld [vmem:[%s9358 + $0x30] sm:$0xf]
        %v9372 = vld [vmem:[%s9358 + $0x34] sm:$0xf]
        %v9373 = vld [vmem:[%s9358 + $0x38] sm:$0xf]
        %v9374 = vld [vmem:[%s9358 + $0x3c] sm:$0xf]
        %v9375 = vld [vmem:[%s9358 + $0x40] sm:$0xf]
        %v9376 = vld [vmem:[%s9358 + $0x44] sm:$0xf]
        %v9377 = vld [vmem:[%s9358 + $0x48] sm:$0xf]
        %v9378 = vld [vmem:[%s9358 + $0x4c] sm:$0xf]
        %v9379 = vld [vmem:[%s9358 + $0x50] sm:$0xf]
        %v9380 = vld [vmem:[%s9358 + $0x54] sm:$0xf]
        %v9381 = vld [vmem:[%s9358 + $0x58] sm:$0xf]
        %v9382 = vld [vmem:[%s9358 + $0x5c] sm:$0xf]
        %v9383 = vld [vmem:[%s9358 + $0x60] sm:$0xf]
        %v9384 = vld [vmem:[%s9358 + $0x64] sm:$0xf]
        %v9385 = vld [vmem:[%s9358 + $0x68] sm:$0xf]
        %v9386 = vld [vmem:[%s9358 + $0x6c] sm:$0xf]
        %v9387 = vld [vmem:[%s9358 + $0x70] sm:$0xf]
        %v9388 = vld [vmem:[%s9358 + $0x74] sm:$0xf]
        %v9389 = vld [vmem:[%s9358 + $0x78] sm:$0xf]
        %v9390 = vld [vmem:[%s9358 + $0x7c] sm:$0xf]
        %v9391 = vld [vmem:[%s9358 + $0x80] sm:$0xf]
        %v9392 = vld [vmem:[%s9358 + $0x84] sm:$0xf]
        %v9393 = vld [vmem:[%s9358 + $0x88] sm:$0xf]
        %v9394 = vld [vmem:[%s9358 + $0x8c] sm:$0xf]
        %v9395 = vld [vmem:[%s9358 + $0x90] sm:$0xf]
        %v9396 = vld [vmem:[%s9358 + $0x94] sm:$0xf]
        %v9397 = vld [vmem:[%s9358 + $0x98] sm:$0xf]
        %v9398 = vld [vmem:[%s9358 + $0x9c] sm:$0xf]
        %v9399 = vld [vmem:[%s9358 + $0xa0] sm:$0xf]
        %v9400 = vld [vmem:[%s9358 + $0xa4] sm:$0xf]
        %v9401 = vld [vmem:[%s9358 + $0xa8] sm:$0xf]
        %v9402 = vld [vmem:[%s9358 + $0xac] sm:$0xf]
        %v9403 = vld [vmem:[%s9358 + $0xb0] sm:$0xf]
        %v9404 = vld [vmem:[%s9358 + $0xb4] sm:$0xf]
        %v9405 = vld [vmem:[%s9358 + $0xb8] sm:$0xf]
        %v9406 = vld [vmem:[%s9358 + $0xbc] sm:$0xf]
        %v9407 = vld [vmem:[%s9358 + $0xc0] sm:$0xf]
        %v9408 = vld [vmem:[%s9358 + $0xc4] sm:$0xf]
        %v9409 = vld [vmem:[%s9358 + $0xc8] sm:$0xf]
        %v9410 = vld [vmem:[%s9358 + $0xcc] sm:$0xf]
        %v9411 = vld [vmem:[%s9358 + $0xd0] sm:$0xf]
        %v9412 = vld [vmem:[%s9358 + $0xd4] sm:$0xf]
        %v9413 = vld [vmem:[%s9358 + $0xd8] sm:$0xf]
        %v9414 = vld [vmem:[%s9358 + $0xdc] sm:$0xf]
        %v9415 = vld [vmem:[%s9358 + $0xe0] sm:$0xf]
        %v9416 = vld [vmem:[%s9358 + $0xe4] sm:$0xf]
        %v9417 = vld [vmem:[%s9358 + $0xe8] sm:$0xf]
        %v9418 = vld [vmem:[%s9358 + $0xec] sm:$0xf]
        %v9419 = vld [vmem:[%s9358 + $0xf0] sm:$0xf]
        %v9420 = vld [vmem:[%s9358 + $0xf4] sm:$0xf]
        %v9421 = vld [vmem:[%s9358 + $0xf8] sm:$0xf]
        %v9422 = vld [vmem:[%s9358 + $0xfc] sm:$0xf]
        %v9423 = vld [vmem:[#allocation4] sm:$0xff]
        %v9424 = vld [vmem:[#allocation4 + $0x8] sm:$0xff]
        %v9425 = vld [vmem:[#allocation4 + $0x10] sm:$0xff]
        %v9426 = vld [vmem:[#allocation4 + $0x18] sm:$0xff]
        %v9427 = vpack.c.bf16 %v9342, %v9423
        %v9428 = vpack.c.bf16 %v9343, %v9424
        %v9429 = vpack.c.bf16 %v9344, %v9425
        %v9430 = vpack.c.bf16 %v9345, %v9426
        %s9431 = scalar_lea.vmem %s4, 768
        %v9432 = vld [vmem:[%s9431] sm:$0xf]
        %v9433 = vld [vmem:[%s9431 + $0x4] sm:$0xf]
        %v9434 = vld [vmem:[%s9431 + $0x8] sm:$0xf]
        %v9435 = vld [vmem:[%s9431 + $0xc] sm:$0xf]
        %v9436 = vld [vmem:[%s9431 + $0x10] sm:$0xf]
        %v9437 = vld [vmem:[%s9431 + $0x14] sm:$0xf]
        %v9438 = vld [vmem:[%s9431 + $0x18] sm:$0xf]
        %v9439 = vld [vmem:[%s9431 + $0x1c] sm:$0xf]
        %v9440 = vld [vmem:[%s9431 + $0x20] sm:$0xf]
        %v9441 = vld [vmem:[%s9431 + $0x24] sm:$0xf]
        %v9442 = vld [vmem:[%s9431 + $0x28] sm:$0xf]
        %v9443 = vld [vmem:[%s9431 + $0x2c] sm:$0xf]
        %v9444 = vld [vmem:[%s9431 + $0x30] sm:$0xf]
        %v9445 = vld [vmem:[%s9431 + $0x34] sm:$0xf]
        %v9446 = vld [vmem:[%s9431 + $0x38] sm:$0xf]
        %v9447 = vld [vmem:[%s9431 + $0x3c] sm:$0xf]
        %v9448 = vld [vmem:[%s9431 + $0x40] sm:$0xf]
        %v9449 = vld [vmem:[%s9431 + $0x44] sm:$0xf]
        %v9450 = vld [vmem:[%s9431 + $0x48] sm:$0xf]
        %v9451 = vld [vmem:[%s9431 + $0x4c] sm:$0xf]
        %v9452 = vld [vmem:[%s9431 + $0x50] sm:$0xf]
        %v9453 = vld [vmem:[%s9431 + $0x54] sm:$0xf]
        %v9454 = vld [vmem:[%s9431 + $0x58] sm:$0xf]
        %v9455 = vld [vmem:[%s9431 + $0x5c] sm:$0xf]
        %v9456 = vld [vmem:[%s9431 + $0x60] sm:$0xf]
        %v9457 = vld [vmem:[%s9431 + $0x64] sm:$0xf]
        %v9458 = vld [vmem:[%s9431 + $0x68] sm:$0xf]
        %v9459 = vld [vmem:[%s9431 + $0x6c] sm:$0xf]
        %v9460 = vld [vmem:[%s9431 + $0x70] sm:$0xf]
        %v9461 = vld [vmem:[%s9431 + $0x74] sm:$0xf]
        %v9462 = vld [vmem:[%s9431 + $0x78] sm:$0xf]
        %v9463 = vld [vmem:[%s9431 + $0x7c] sm:$0xf]
        %v9464 = vld [vmem:[%s9431 + $0x80] sm:$0xf]
        %v9465 = vld [vmem:[%s9431 + $0x84] sm:$0xf]
        %v9466 = vld [vmem:[%s9431 + $0x88] sm:$0xf]
        %v9467 = vld [vmem:[%s9431 + $0x8c] sm:$0xf]
        %v9468 = vld [vmem:[%s9431 + $0x90] sm:$0xf]
        %v9469 = vld [vmem:[%s9431 + $0x94] sm:$0xf]
        %v9470 = vld [vmem:[%s9431 + $0x98] sm:$0xf]
        %v9471 = vld [vmem:[%s9431 + $0x9c] sm:$0xf]
        %v9472 = vld [vmem:[%s9431 + $0xa0] sm:$0xf]
        %v9473 = vld [vmem:[%s9431 + $0xa4] sm:$0xf]
        %v9474 = vld [vmem:[%s9431 + $0xa8] sm:$0xf]
        %v9475 = vld [vmem:[%s9431 + $0xac] sm:$0xf]
        %v9476 = vld [vmem:[%s9431 + $0xb0] sm:$0xf]
        %v9477 = vld [vmem:[%s9431 + $0xb4] sm:$0xf]
        %v9478 = vld [vmem:[%s9431 + $0xb8] sm:$0xf]
        %v9479 = vld [vmem:[%s9431 + $0xbc] sm:$0xf]
        %v9480 = vld [vmem:[%s9431 + $0xc0] sm:$0xf]
        %v9481 = vld [vmem:[%s9431 + $0xc4] sm:$0xf]
        %v9482 = vld [vmem:[%s9431 + $0xc8] sm:$0xf]
        %v9483 = vld [vmem:[%s9431 + $0xcc] sm:$0xf]
        %v9484 = vld [vmem:[%s9431 + $0xd0] sm:$0xf]
        %v9485 = vld [vmem:[%s9431 + $0xd4] sm:$0xf]
        %v9486 = vld [vmem:[%s9431 + $0xd8] sm:$0xf]
        %v9487 = vld [vmem:[%s9431 + $0xdc] sm:$0xf]
        %v9488 = vld [vmem:[%s9431 + $0xe0] sm:$0xf]
        %v9489 = vld [vmem:[%s9431 + $0xe4] sm:$0xf]
        %v9490 = vld [vmem:[%s9431 + $0xe8] sm:$0xf]
        %v9491 = vld [vmem:[%s9431 + $0xec] sm:$0xf]
        %v9492 = vld [vmem:[%s9431 + $0xf0] sm:$0xf]
        %v9493 = vld [vmem:[%s9431 + $0xf4] sm:$0xf]
        %v9494 = vld [vmem:[%s9431 + $0xf8] sm:$0xf]
        %v9495 = vld [vmem:[%s9431 + $0xfc] sm:$0xf]
        %v9560 = vunpack.c.l.b16 %v9432
        %v9561 = vunpack.c.l.b16 %v9433
        %v9562 = vunpack.c.l.b16 %v9434
        %v9563 = vunpack.c.l.b16 %v9435
        %v9564 = vunpack.c.l.b16 %v9436
        %v9565 = vunpack.c.l.b16 %v9437
        %v9566 = vunpack.c.l.b16 %v9438
        %v9567 = vunpack.c.l.b16 %v9439
        %v9568 = vunpack.c.l.b16 %v9440
        %v9569 = vunpack.c.l.b16 %v9441
        %v9570 = vunpack.c.l.b16 %v9442
        %v9571 = vunpack.c.l.b16 %v9443
        %v9572 = vunpack.c.l.b16 %v9444
        %v9573 = vunpack.c.l.b16 %v9445
        %v9574 = vunpack.c.l.b16 %v9446
        %v9575 = vunpack.c.l.b16 %v9447
        %v9576 = vunpack.c.l.b16 %v9448
        %v9577 = vunpack.c.l.b16 %v9449
        %v9578 = vunpack.c.l.b16 %v9450
        %v9579 = vunpack.c.l.b16 %v9451
        %v9580 = vunpack.c.l.b16 %v9452
        %v9581 = vunpack.c.l.b16 %v9453
        %v9582 = vunpack.c.l.b16 %v9454
        %v9583 = vunpack.c.l.b16 %v9455
        %v9584 = vunpack.c.l.b16 %v9456
        %v9585 = vunpack.c.l.b16 %v9457
        %v9586 = vunpack.c.l.b16 %v9458
        %v9587 = vunpack.c.l.b16 %v9459
        %v9588 = vunpack.c.l.b16 %v9460
        %v9589 = vunpack.c.l.b16 %v9461
        %v9590 = vunpack.c.l.b16 %v9462
        %v9591 = vunpack.c.l.b16 %v9463
        %v9592 = vunpack.c.l.b16 %v9464
        %v9593 = vunpack.c.l.b16 %v9465
        %v9594 = vunpack.c.l.b16 %v9466
        %v9595 = vunpack.c.l.b16 %v9467
        %v9596 = vunpack.c.l.b16 %v9468
        %v9597 = vunpack.c.l.b16 %v9469
        %v9598 = vunpack.c.l.b16 %v9470
        %v9599 = vunpack.c.l.b16 %v9471
        %v9600 = vunpack.c.l.b16 %v9472
        %v9601 = vunpack.c.l.b16 %v9473
        %v9602 = vunpack.c.l.b16 %v9474
        %v9603 = vunpack.c.l.b16 %v9475
        %v9604 = vunpack.c.l.b16 %v9476
        %v9605 = vunpack.c.l.b16 %v9477
        %v9606 = vunpack.c.l.b16 %v9478
        %v9607 = vunpack.c.l.b16 %v9479
        %v9608 = vunpack.c.l.b16 %v9480
        %v9609 = vunpack.c.l.b16 %v9481
        %v9610 = vunpack.c.l.b16 %v9482
        %v9611 = vunpack.c.l.b16 %v9483
        %v9612 = vunpack.c.l.b16 %v9484
        %v9613 = vunpack.c.l.b16 %v9485
        %v9614 = vunpack.c.l.b16 %v9486
        %v9615 = vunpack.c.l.b16 %v9487
        %v9616 = vunpack.c.l.b16 %v9488
        %v9617 = vunpack.c.l.b16 %v9489
        %v9618 = vunpack.c.l.b16 %v9490
        %v9619 = vunpack.c.l.b16 %v9491
        %v9620 = vunpack.c.l.b16 %v9492
        %v9621 = vunpack.c.l.b16 %v9493
        %v9622 = vunpack.c.l.b16 %v9494
        %v9623 = vunpack.c.l.b16 %v9495
        %v9624 = vpack.c.b16 %v9561, %v9560
        %v9625 = vpack.c.b16 %v9563, %v9562
        %v9626 = vpack.c.b16 %v9565, %v9564
        %v9627 = vpack.c.b16 %v9567, %v9566
        %v9628 = vpack.c.b16 %v9569, %v9568
        %v9629 = vpack.c.b16 %v9571, %v9570
        %v9630 = vpack.c.b16 %v9573, %v9572
        %v9631 = vpack.c.b16 %v9575, %v9574
        %v9632 = vpack.c.b16 %v9577, %v9576
        %v9633 = vpack.c.b16 %v9579, %v9578
        %v9634 = vpack.c.b16 %v9581, %v9580
        %v9635 = vpack.c.b16 %v9583, %v9582
        %v9636 = vpack.c.b16 %v9585, %v9584
        %v9637 = vpack.c.b16 %v9587, %v9586
        %v9638 = vpack.c.b16 %v9589, %v9588
        %v9639 = vpack.c.b16 %v9591, %v9590
        %v9640 = vpack.c.b16 %v9593, %v9592
        %v9641 = vpack.c.b16 %v9595, %v9594
        %v9642 = vpack.c.b16 %v9597, %v9596
        %v9643 = vpack.c.b16 %v9599, %v9598
        %v9644 = vpack.c.b16 %v9601, %v9600
        %v9645 = vpack.c.b16 %v9603, %v9602
        %v9646 = vpack.c.b16 %v9605, %v9604
        %v9647 = vpack.c.b16 %v9607, %v9606
        %v9648 = vpack.c.b16 %v9609, %v9608
        %v9649 = vpack.c.b16 %v9611, %v9610
        %v9650 = vpack.c.b16 %v9613, %v9612
        %v9651 = vpack.c.b16 %v9615, %v9614
        %v9652 = vpack.c.b16 %v9617, %v9616
        %v9653 = vpack.c.b16 %v9619, %v9618
        %v9654 = vpack.c.b16 %v9621, %v9620
        %v9655 = vpack.c.b16 %v9623, %v9622
        %9688 = vmatprep.subr.bf16.mxu0 0
        %9689 = vmatpush1.bf16.msra.mxu0 %v9624
        %9690 = vmatprep.subr.bf16.mxu0 0
        %9691 = vmatpush1.bf16.msra.mxu0 %v9625
        %9692 = vmatprep.subr.bf16.mxu0 0
        %9693 = vmatpush1.bf16.msra.mxu0 %v9626
        %9694 = vmatprep.subr.bf16.mxu0 0
        %9695 = vmatpush1.bf16.msra.mxu0 %v9627
        %9696 = vmatprep.subr.bf16.mxu0 0
        %9697 = vmatpush1.bf16.msra.mxu0 %v9628
        %9698 = vmatprep.subr.bf16.mxu0 0
        %9699 = vmatpush1.bf16.msra.mxu0 %v9629
        %9700 = vmatprep.subr.bf16.mxu0 0
        %9701 = vmatpush1.bf16.msra.mxu0 %v9630
        %9702 = vmatprep.subr.bf16.mxu0 0
        %9703 = vmatpush1.bf16.msra.mxu0 %v9631
        %9704 = vmatprep.subr.bf16.mxu0 0
        %9705 = vmatpush1.bf16.msra.mxu0 %v9632
        %9706 = vmatprep.subr.bf16.mxu0 0
        %9707 = vmatpush1.bf16.msra.mxu0 %v9633
        %9708 = vmatprep.subr.bf16.mxu0 0
        %9709 = vmatpush1.bf16.msra.mxu0 %v9634
        %9710 = vmatprep.subr.bf16.mxu0 0
        %9711 = vmatpush1.bf16.msra.mxu0 %v9635
        %9712 = vmatprep.subr.bf16.mxu0 0
        %9713 = vmatpush1.bf16.msra.mxu0 %v9636
        %9714 = vmatprep.subr.bf16.mxu0 0
        %9715 = vmatpush1.bf16.msra.mxu0 %v9637
        %9716 = vmatprep.subr.bf16.mxu0 0
        %9717 = vmatpush1.bf16.msra.mxu0 %v9638
        %9718 = vmatprep.subr.bf16.mxu0 0
        %9719 = vmatpush1.bf16.msra.mxu0 %v9639
        %9720 = vmatprep.mubr.bf16.mxu0 %v9428
        %9721 = vmatmul.mubr.bf16.gmra.mrb[0].mxu0 %v9427
        %v9722 = vpop.f32.mrb[0].mxu0
        %v9723 = vadd.f32 0.0, %v9722
        %v9724 = vpop.f32.mrb[0].mxu0
        %v9725 = vpop.f32.mrb[0].mxu0
        %v9726 = vadd.f32 0.0, %v9725
        %v9727 = vpop.f32.mrb[0].mxu0
        %9728 = vdwg.mxu0
        %9729 = vmatprep.subr.bf16.mxu0 0
        %9730 = vmatpush1.bf16.msra.mxu0 %v9640
        %9731 = vmatprep.subr.bf16.mxu0 0
        %9732 = vmatpush1.bf16.msra.mxu0 %v9641
        %9733 = vmatprep.subr.bf16.mxu0 0
        %9734 = vmatpush1.bf16.msra.mxu0 %v9642
        %9735 = vmatprep.subr.bf16.mxu0 0
        %9736 = vmatpush1.bf16.msra.mxu0 %v9643
        %9737 = vmatprep.subr.bf16.mxu0 0
        %9738 = vmatpush1.bf16.msra.mxu0 %v9644
        %9739 = vmatprep.subr.bf16.mxu0 0
        %9740 = vmatpush1.bf16.msra.mxu0 %v9645
        %9741 = vmatprep.subr.bf16.mxu0 0
        %9742 = vmatpush1.bf16.msra.mxu0 %v9646
        %9743 = vmatprep.subr.bf16.mxu0 0
        %9744 = vmatpush1.bf16.msra.mxu0 %v9647
        %9745 = vmatprep.subr.bf16.mxu0 0
        %9746 = vmatpush1.bf16.msra.mxu0 %v9648
        %9747 = vmatprep.subr.bf16.mxu0 0
        %9748 = vmatpush1.bf16.msra.mxu0 %v9649
        %9749 = vmatprep.subr.bf16.mxu0 0
        %9750 = vmatpush1.bf16.msra.mxu0 %v9650
        %9751 = vmatprep.subr.bf16.mxu0 0
        %9752 = vmatpush1.bf16.msra.mxu0 %v9651
        %9753 = vmatprep.subr.bf16.mxu0 0
        %9754 = vmatpush1.bf16.msra.mxu0 %v9652
        %9755 = vmatprep.subr.bf16.mxu0 0
        %9756 = vmatpush1.bf16.msra.mxu0 %v9653
        %9757 = vmatprep.subr.bf16.mxu0 0
        %9758 = vmatpush1.bf16.msra.mxu0 %v9654
        %9759 = vmatprep.subr.bf16.mxu0 0
        %9760 = vmatpush1.bf16.msra.mxu0 %v9655
        %9761 = vmatprep.mubr.bf16.mxu0 %v9430
        %9762 = vmatmul.mubr.bf16.gmra.mrb[0].mxu0 %v9429
        %v9763 = vpop.f32.mrb[0].mxu0
        %v9764 = vadd.f32 %v9723, %v9763
        %v9765 = vpop.f32.mrb[0].mxu0
        %v9766 = vpop.f32.mrb[0].mxu0
        %v9767 = vadd.f32 %v9726, %v9766
        %v9768 = vpop.f32.mrb[0].mxu0
        %9769 = vdwg.mxu0
        %vm9770 = vsmask.f32 7424
        %v9772 = vshrl.u32 %v9350, 16
        %v9774 = vshll.u32 %v9350, 16
        %v9776 = vrot.slane %v9774, 1
        %v9777 = vor.u32 %v9772, %v9776
        %v9779 = vshll.u32 %v9354, 16
        %v9781 = vrot.slane %v9779, 1
        %v9782 = vsel %vm9770, %v9777, %v9781
        %v9784 = vshrl.u32 %v9351, 16
        %v9786 = vshll.u32 %v9351, 16
        %v9788 = vrot.slane %v9786, 1
        %v9789 = vor.u32 %v9784, %v9788
        %v9791 = vshll.u32 %v9355, 16
        %v9793 = vrot.slane %v9791, 1
        %v9794 = vsel %vm9770, %v9789, %v9793
        %v9796 = vshrl.u32 %v9352, 16
        %v9798 = vshll.u32 %v9352, 16
        %v9800 = vrot.slane %v9798, 1
        %v9801 = vor.u32 %v9796, %v9800
        %v9803 = vshll.u32 %v9356, 16
        %v9805 = vrot.slane %v9803, 1
        %v9806 = vsel %vm9770, %v9801, %v9805
        %v9808 = vshrl.u32 %v9353, 16
        %v9810 = vshll.u32 %v9353, 16
        %v9812 = vrot.slane %v9810, 1
        %v9813 = vor.u32 %v9808, %v9812
        %v9815 = vshll.u32 %v9357, 16
        %v9817 = vrot.slane %v9815, 1
        %v9818 = vsel %vm9770, %v9813, %v9817
        %v9887 = vunpack.c.l.b16 %v9359
        %v9888 = vunpack.c.l.b16 %v9360
        %v9889 = vunpack.c.l.b16 %v9361
        %v9890 = vunpack.c.l.b16 %v9362
        %v9891 = vunpack.c.l.b16 %v9363
        %v9892 = vunpack.c.l.b16 %v9364
        %v9893 = vunpack.c.l.b16 %v9365
        %v9894 = vunpack.c.l.b16 %v9366
        %v9895 = vunpack.c.l.b16 %v9367
        %v9896 = vunpack.c.l.b16 %v9368
        %v9897 = vunpack.c.l.b16 %v9369
        %v9898 = vunpack.c.l.b16 %v9370
        %v9899 = vunpack.c.l.b16 %v9371
        %v9900 = vunpack.c.l.b16 %v9372
        %v9901 = vunpack.c.l.b16 %v9373
        %v9902 = vunpack.c.l.b16 %v9374
        %v9903 = vunpack.c.l.b16 %v9375
        %v9904 = vunpack.c.l.b16 %v9376
        %v9905 = vunpack.c.l.b16 %v9377
        %v9906 = vunpack.c.l.b16 %v9378
        %v9907 = vunpack.c.l.b16 %v9379
        %v9908 = vunpack.c.l.b16 %v9380
        %v9909 = vunpack.c.l.b16 %v9381
        %v9910 = vunpack.c.l.b16 %v9382
        %v9911 = vunpack.c.l.b16 %v9383
        %v9912 = vunpack.c.l.b16 %v9384
        %v9913 = vunpack.c.l.b16 %v9385
        %v9914 = vunpack.c.l.b16 %v9386
        %v9915 = vunpack.c.l.b16 %v9387
        %v9916 = vunpack.c.l.b16 %v9388
        %v9917 = vunpack.c.l.b16 %v9389
        %v9918 = vunpack.c.l.b16 %v9390
        %v9919 = vunpack.c.l.b16 %v9391
        %v9920 = vunpack.c.l.b16 %v9392
        %v9921 = vunpack.c.l.b16 %v9393
        %v9922 = vunpack.c.l.b16 %v9394
        %v9923 = vunpack.c.l.b16 %v9395
        %v9924 = vunpack.c.l.b16 %v9396
        %v9925 = vunpack.c.l.b16 %v9397
        %v9926 = vunpack.c.l.b16 %v9398
        %v9927 = vunpack.c.l.b16 %v9399
        %v9928 = vunpack.c.l.b16 %v9400
        %v9929 = vunpack.c.l.b16 %v9401
        %v9930 = vunpack.c.l.b16 %v9402
        %v9931 = vunpack.c.l.b16 %v9403
        %v9932 = vunpack.c.l.b16 %v9404
        %v9933 = vunpack.c.l.b16 %v9405
        %v9934 = vunpack.c.l.b16 %v9406
        %v9935 = vunpack.c.l.b16 %v9407
        %v9936 = vunpack.c.l.b16 %v9408
        %v9937 = vunpack.c.l.b16 %v9409
        %v9938 = vunpack.c.l.b16 %v9410
        %v9939 = vunpack.c.l.b16 %v9411
        %v9940 = vunpack.c.l.b16 %v9412
        %v9941 = vunpack.c.l.b16 %v9413
        %v9942 = vunpack.c.l.b16 %v9414
        %v9943 = vunpack.c.l.b16 %v9415
        %v9944 = vunpack.c.l.b16 %v9416
        %v9945 = vunpack.c.l.b16 %v9417
        %v9946 = vunpack.c.l.b16 %v9418
        %v9947 = vunpack.c.l.b16 %v9419
        %v9948 = vunpack.c.l.b16 %v9420
        %v9949 = vunpack.c.l.b16 %v9421
        %v9950 = vunpack.c.l.b16 %v9422
        %v9951 = vpack.c.b16 %v9888, %v9887
        %v9952 = vpack.c.b16 %v9890, %v9889
        %v9953 = vpack.c.b16 %v9892, %v9891
        %v9954 = vpack.c.b16 %v9894, %v9893
        %v9955 = vpack.c.b16 %v9896, %v9895
        %v9956 = vpack.c.b16 %v9898, %v9897
        %v9957 = vpack.c.b16 %v9900, %v9899
        %v9958 = vpack.c.b16 %v9902, %v9901
        %v9959 = vpack.c.b16 %v9904, %v9903
        %v9960 = vpack.c.b16 %v9906, %v9905
        %v9961 = vpack.c.b16 %v9908, %v9907
        %v9962 = vpack.c.b16 %v9910, %v9909
        %v9963 = vpack.c.b16 %v9912, %v9911
        %v9964 = vpack.c.b16 %v9914, %v9913
        %v9965 = vpack.c.b16 %v9916, %v9915
        %v9966 = vpack.c.b16 %v9918, %v9917
        %v9967 = vpack.c.b16 %v9920, %v9919
        %v9968 = vpack.c.b16 %v9922, %v9921
        %v9969 = vpack.c.b16 %v9924, %v9923
        %v9970 = vpack.c.b16 %v9926, %v9925
        %v9971 = vpack.c.b16 %v9928, %v9927
        %v9972 = vpack.c.b16 %v9930, %v9929
        %v9973 = vpack.c.b16 %v9932, %v9931
        %v9974 = vpack.c.b16 %v9934, %v9933
        %v9975 = vpack.c.b16 %v9936, %v9935
        %v9976 = vpack.c.b16 %v9938, %v9937
        %v9977 = vpack.c.b16 %v9940, %v9939
        %v9978 = vpack.c.b16 %v9942, %v9941
        %v9979 = vpack.c.b16 %v9944, %v9943
        %v9980 = vpack.c.b16 %v9946, %v9945
        %v9981 = vpack.c.b16 %v9948, %v9947
        %v9982 = vpack.c.b16 %v9950, %v9949
        %10015 = vmatprep.subr.bf16.mxu0 0
        %10016 = vmatpush1.bf16.msra.mxu0 %v9951
        %10017 = vmatprep.subr.bf16.mxu0 0
        %10018 = vmatpush1.bf16.msra.mxu0 %v9952
        %10019 = vmatprep.subr.bf16.mxu0 0
        %10020 = vmatpush1.bf16.msra.mxu0 %v9953
        %10021 = vmatprep.subr.bf16.mxu0 0
        %10022 = vmatpush1.bf16.msra.mxu0 %v9954
        %10023 = vmatprep.subr.bf16.mxu0 0
        %10024 = vmatpush1.bf16.msra.mxu0 %v9955
        %10025 = vmatprep.subr.bf16.mxu0 0
        %10026 = vmatpush1.bf16.msra.mxu0 %v9956
        %10027 = vmatprep.subr.bf16.mxu0 0
        %10028 = vmatpush1.bf16.msra.mxu0 %v9957
        %10029 = vmatprep.subr.bf16.mxu0 0
        %10030 = vmatpush1.bf16.msra.mxu0 %v9958
        %10031 = vmatprep.subr.bf16.mxu0 0
        %10032 = vmatpush1.bf16.msra.mxu0 %v9959
        %10033 = vmatprep.subr.bf16.mxu0 0
        %10034 = vmatpush1.bf16.msra.mxu0 %v9960
        %10035 = vmatprep.subr.bf16.mxu0 0
        %10036 = vmatpush1.bf16.msra.mxu0 %v9961
        %10037 = vmatprep.subr.bf16.mxu0 0
        %10038 = vmatpush1.bf16.msra.mxu0 %v9962
        %10039 = vmatprep.subr.bf16.mxu0 0
        %10040 = vmatpush1.bf16.msra.mxu0 %v9963
        %10041 = vmatprep.subr.bf16.mxu0 0
        %10042 = vmatpush1.bf16.msra.mxu0 %v9964
        %10043 = vmatprep.subr.bf16.mxu0 0
        %10044 = vmatpush1.bf16.msra.mxu0 %v9965
        %10045 = vmatprep.subr.bf16.mxu0 0
        %10046 = vmatpush1.bf16.msra.mxu0 %v9966
        %10047 = vmatprep.mubr.bf16.mxu0 %v9794
        %10048 = vmatmul.mubr.bf16.gmra.mrb[0].mxu0 %v9782
        %v10049 = vpop.f32.mrb[0].mxu0
        %v10050 = vadd.f32 %v9764, %v10049
        %v10051 = vpop.f32.mrb[0].mxu0
        %v10052 = vpop.f32.mrb[0].mxu0
        %v10053 = vadd.f32 %v9767, %v10052
        %v10054 = vpop.f32.mrb[0].mxu0
        %10055 = vdwg.mxu0
        %10056 = vmatprep.subr.bf16.mxu0 0
        %10057 = vmatpush1.bf16.msra.mxu0 %v9967
        %10058 = vmatprep.subr.bf16.mxu0 0
        %10059 = vmatpush1.bf16.msra.mxu0 %v9968
        %10060 = vmatprep.subr.bf16.mxu0 0
        %10061 = vmatpush1.bf16.msra.mxu0 %v9969
        %10062 = vmatprep.subr.bf16.mxu0 0
        %10063 = vmatpush1.bf16.msra.mxu0 %v9970
        %10064 = vmatprep.subr.bf16.mxu0 0
        %10065 = vmatpush1.bf16.msra.mxu0 %v9971
        %10066 = vmatprep.subr.bf16.mxu0 0
        %10067 = vmatpush1.bf16.msra.mxu0 %v9972
        %10068 = vmatprep.subr.bf16.mxu0 0
        %10069 = vmatpush1.bf16.msra.mxu0 %v9973
        %10070 = vmatprep.subr.bf16.mxu0 0
        %10071 = vmatpush1.bf16.msra.mxu0 %v9974
        %10072 = vmatprep.subr.bf16.mxu0 0
        %10073 = vmatpush1.bf16.msra.mxu0 %v9975
        %10074 = vmatprep.subr.bf16.mxu0 0
        %10075 = vmatpush1.bf16.msra.mxu0 %v9976
        %10076 = vmatprep.subr.bf16.mxu0 0
        %10077 = vmatpush1.bf16.msra.mxu0 %v9977
        %10078 = vmatprep.subr.bf16.mxu0 0
        %10079 = vmatpush1.bf16.msra.mxu0 %v9978
        %10080 = vmatprep.subr.bf16.mxu0 0
        %10081 = vmatpush1.bf16.msra.mxu0 %v9979
        %10082 = vmatprep.subr.bf16.mxu0 0
        %10083 = vmatpush1.bf16.msra.mxu0 %v9980
        %10084 = vmatprep.subr.bf16.mxu0 0
        %10085 = vmatpush1.bf16.msra.mxu0 %v9981
        %10086 = vmatprep.subr.bf16.mxu0 0
        %10087 = vmatpush1.bf16.msra.mxu0 %v9982
        %10088 = vmatprep.mubr.bf16.mxu0 %v9818
        %10089 = vmatmul.mubr.bf16.gmra.mrb[0].mxu0 %v9806
        %v10090 = vpop.f32.mrb[0].mxu0
        %v10091 = vadd.f32 %v10050, %v10090
        %v10092 = vpop.f32.mrb[0].mxu0
        %v10093 = vpop.f32.mrb[0].mxu0
        %v10094 = vadd.f32 %v10053, %v10093
        %v10095 = vpop.f32.mrb[0].mxu0
        %10096 = vdwg.mxu0
        %v10097 = vld [vmem:[#allocation16] sm:$0x1]
        %v10099 = vlaneseq
        %v10100 = vshrl.u32 %v10099, 7
        %v10101 = vsub.s32 0, %v10100
        %v10102 = vrot.slane %v10097, %v10101
        %v10104 = vadd.f32 %v10091, %v10102
        %v10105 = vadd.f32 %v10094, %v10102
        %v10106 = vxor.u32 %v10104, 2147483648
        %v10107 = vxor.u32 %v10105, 2147483648
        %v10108 = vmul.f32 %v10106, 1.442695
        %v10109 = vpow.pop %v10108
        %v10110 = vmul.f32 %v10107, 1.442695
        %v10111 = vpow.pop %v10110
        %v10112 = vadd.f32 %v10109, 1.0
        %v10113 = vadd.f32 %v10111, 1.0
        %v10114 = vrcp.pop %v10112
        %v10115 = vmul.f32 1.0, %v10114
        %v10116 = vrcp.pop %v10113
        %v10117 = vmul.f32 1.0, %v10116
        %v10118 = vld [vmem:[#allocation4] sm:$0xfc]
        %v10119 = vld [vmem:[#allocation4 + $0x8] sm:$0xfc]
        %v10120 = vld [vmem:[#allocation4 + $0x10] sm:$0xfc]
        %v10121 = vld [vmem:[#allocation4 + $0x18] sm:$0xfc]
        %v10122 = vld [vmem:[#allocation4 + $0x40] sm:$0x3]
        %v10123 = vld [vmem:[#allocation4 + $0x48] sm:$0x3]
        %v10124 = vld [vmem:[#allocation4 + $0x50] sm:$0x3]
        %v10125 = vld [vmem:[#allocation4 + $0x58] sm:$0x3]
        %v10126 = vpack.c.bf16 %v9342, %v10118
        %v10127 = vpack.c.bf16 %v9343, %v10119
        %v10128 = vpack.c.bf16 %v9344, %v10120
        %v10129 = vpack.c.bf16 %v9345, %v10121
        %v10130 = vpack.c.bf16 %v10122, %v10122
        %v10131 = vpack.c.bf16 %v10123, %v10123
        %v10132 = vpack.c.bf16 %v10124, %v10124
        %v10133 = vpack.c.bf16 %v10125, %v10125
        %v10134 = vld [vmem:[%s4] sm:$0xf]
        %v10135 = vld [vmem:[%s4 + $0x4] sm:$0xf]
        %v10136 = vld [vmem:[%s4 + $0x8] sm:$0xf]
        %v10137 = vld [vmem:[%s4 + $0xc] sm:$0xf]
        %v10138 = vld [vmem:[%s4 + $0x10] sm:$0xf]
        %v10139 = vld [vmem:[%s4 + $0x14] sm:$0xf]
        %v10140 = vld [vmem:[%s4 + $0x18] sm:$0xf]
        %v10141 = vld [vmem:[%s4 + $0x1c] sm:$0xf]
        %v10142 = vld [vmem:[%s4 + $0x20] sm:$0xf]
        %v10143 = vld [vmem:[%s4 + $0x24] sm:$0xf]
        %v10144 = vld [vmem:[%s4 + $0x28] sm:$0xf]
        %v10145 = vld [vmem:[%s4 + $0x2c] sm:$0xf]
        %v10146 = vld [vmem:[%s4 + $0x30] sm:$0xf]
        %v10147 = vld [vmem:[%s4 + $0x34] sm:$0xf]
        %v10148 = vld [vmem:[%s4 + $0x38] sm:$0xf]
        %v10149 = vld [vmem:[%s4 + $0x3c] sm:$0xf]
        %v10150 = vld [vmem:[%s4 + $0x40] sm:$0xf]
        %v10151 = vld [vmem:[%s4 + $0x44] sm:$0xf]
        %v10152 = vld [vmem:[%s4 + $0x48] sm:$0xf]
        %v10153 = vld [vmem:[%s4 + $0x4c] sm:$0xf]
        %v10154 = vld [vmem:[%s4 + $0x50] sm:$0xf]
        %v10155 = vld [vmem:[%s4 + $0x54] sm:$0xf]
        %v10156 = vld [vmem:[%s4 + $0x58] sm:$0xf]
        %v10157 = vld [vmem:[%s4 + $0x5c] sm:$0xf]
        %v10158 = vld [vmem:[%s4 + $0x60] sm:$0xf]
        %v10159 = vld [vmem:[%s4 + $0x64] sm:$0xf]
        %v10160 = vld [vmem:[%s4 + $0x68] sm:$0xf]
        %v10161 = vld [vmem:[%s4 + $0x6c] sm:$0xf]
        %v10162 = vld [vmem:[%s4 + $0x70] sm:$0xf]
        %v10163 = vld [vmem:[%s4 + $0x74] sm:$0xf]
        %v10164 = vld [vmem:[%s4 + $0x78] sm:$0xf]
        %v10165 = vld [vmem:[%s4 + $0x7c] sm:$0xf]
        %v10166 = vld [vmem:[%s4 + $0x80] sm:$0xf]
        %v10167 = vld [vmem:[%s4 + $0x84] sm:$0xf]
        %v10168 = vld [vmem:[%s4 + $0x88] sm:$0xf]
        %v10169 = vld [vmem:[%s4 + $0x8c] sm:$0xf]
        %v10170 = vld [vmem:[%s4 + $0x90] sm:$0xf]
        %v10171 = vld [vmem:[%s4 + $0x94] sm:$0xf]
        %v10172 = vld [vmem:[%s4 + $0x98] sm:$0xf]
        %v10173 = vld [vmem:[%s4 + $0x9c] sm:$0xf]
        %v10174 = vld [vmem:[%s4 + $0xa0] sm:$0xf]
        %v10175 = vld [vmem:[%s4 + $0xa4] sm:$0xf]
        %v10176 = vld [vmem:[%s4 + $0xa8] sm:$0xf]
        %v10177 = vld [vmem:[%s4 + $0xac] sm:$0xf]
        %v10178 = vld [vmem:[%s4 + $0xb0] sm:$0xf]
        %v10179 = vld [vmem:[%s4 + $0xb4] sm:$0xf]
        %v10180 = vld [vmem:[%s4 + $0xb8] sm:$0xf]
        %v10181 = vld [vmem:[%s4 + $0xbc] sm:$0xf]
        %v10182 = vld [vmem:[%s4 + $0xc0] sm:$0xf]
        %v10183 = vld [vmem:[%s4 + $0xc4] sm:$0xf]
        %v10184 = vld [vmem:[%s4 + $0xc8] sm:$0xf]
        %v10185 = vld [vmem:[%s4 + $0xcc] sm:$0xf]
        %v10186 = vld [vmem:[%s4 + $0xd0] sm:$0xf]
        %v10187 = vld [vmem:[%s4 + $0xd4] sm:$0xf]
        %v10188 = vld [vmem:[%s4 + $0xd8] sm:$0xf]
        %v10189 = vld [vmem:[%s4 + $0xdc] sm:$0xf]
        %v10190 = vld [vmem:[%s4 + $0xe0] sm:$0xf]
        %v10191 = vld [vmem:[%s4 + $0xe4] sm:$0xf]
        %v10192 = vld [vmem:[%s4 + $0xe8] sm:$0xf]
        %v10193 = vld [vmem:[%s4 + $0xec] sm:$0xf]
        %v10194 = vld [vmem:[%s4 + $0xf0] sm:$0xf]
        %v10195 = vld [vmem:[%s4 + $0xf4] sm:$0xf]
        %v10196 = vld [vmem:[%s4 + $0xf8] sm:$0xf]
        %v10197 = vld [vmem:[%s4 + $0xfc] sm:$0xf]
        %s10198 = scalar_lea.vmem %s4, 512
        %v10199 = vld [vmem:[%s10198] sm:$0xf]
        %v10200 = vld [vmem:[%s10198 + $0x4] sm:$0xf]
        %v10201 = vld [vmem:[%s10198 + $0x8] sm:$0xf]
        %v10202 = vld [vmem:[%s10198 + $0xc] sm:$0xf]
        %v10203 = vld [vmem:[%s10198 + $0x10] sm:$0xf]
        %v10204 = vld [vmem:[%s10198 + $0x14] sm:$0xf]
        %v10205 = vld [vmem:[%s10198 + $0x18] sm:$0xf]
        %v10206 = vld [vmem:[%s10198 + $0x1c] sm:$0xf]
        %v10207 = vld [vmem:[%s10198 + $0x20] sm:$0xf]
        %v10208 = vld [vmem:[%s10198 + $0x24] sm:$0xf]
        %v10209 = vld [vmem:[%s10198 + $0x28] sm:$0xf]
        %v10210 = vld [vmem:[%s10198 + $0x2c] sm:$0xf]
        %v10211 = vld [vmem:[%s10198 + $0x30] sm:$0xf]
        %v10212 = vld [vmem:[%s10198 + $0x34] sm:$0xf]
        %v10213 = vld [vmem:[%s10198 + $0x38] sm:$0xf]
        %v10214 = vld [vmem:[%s10198 + $0x3c] sm:$0xf]
        %v10215 = vld [vmem:[%s10198 + $0x40] sm:$0xf]
        %v10216 = vld [vmem:[%s10198 + $0x44] sm:$0xf]
        %v10217 = vld [vmem:[%s10198 + $0x48] sm:$0xf]
        %v10218 = vld [vmem:[%s10198 + $0x4c] sm:$0xf]
        %v10219 = vld [vmem:[%s10198 + $0x50] sm:$0xf]
        %v10220 = vld [vmem:[%s10198 + $0x54] sm:$0xf]
        %v10221 = vld [vmem:[%s10198 + $0x58] sm:$0xf]
        %v10222 = vld [vmem:[%s10198 + $0x5c] sm:$0xf]
        %v10223 = vld [vmem:[%s10198 + $0x60] sm:$0xf]
        %v10224 = vld [vmem:[%s10198 + $0x64] sm:$0xf]
        %v10225 = vld [vmem:[%s10198 + $0x68] sm:$0xf]
        %v10226 = vld [vmem:[%s10198 + $0x6c] sm:$0xf]
        %v10227 = vld [vmem:[%s10198 + $0x70] sm:$0xf]
        %v10228 = vld [vmem:[%s10198 + $0x74] sm:$0xf]
        %v10229 = vld [vmem:[%s10198 + $0x78] sm:$0xf]
        %v10230 = vld [vmem:[%s10198 + $0x7c] sm:$0xf]
        %v10231 = vld [vmem:[%s10198 + $0x80] sm:$0xf]
        %v10232 = vld [vmem:[%s10198 + $0x84] sm:$0xf]
        %v10233 = vld [vmem:[%s10198 + $0x88] sm:$0xf]
        %v10234 = vld [vmem:[%s10198 + $0x8c] sm:$0xf]
        %v10235 = vld [vmem:[%s10198 + $0x90] sm:$0xf]
        %v10236 = vld [vmem:[%s10198 + $0x94] sm:$0xf]
        %v10237 = vld [vmem:[%s10198 + $0x98] sm:$0xf]
        %v10238 = vld [vmem:[%s10198 + $0x9c] sm:$0xf]
        %v10239 = vld [vmem:[%s10198 + $0xa0] sm:$0xf]
        %v10240 = vld [vmem:[%s10198 + $0xa4] sm:$0xf]
        %v10241 = vld [vmem:[%s10198 + $0xa8] sm:$0xf]
        %v10242 = vld [vmem:[%s10198 + $0xac] sm:$0xf]
        %v10243 = vld [vmem:[%s10198 + $0xb0] sm:$0xf]
        %v10244 = vld [vmem:[%s10198 + $0xb4] sm:$0xf]
        %v10245 = vld [vmem:[%s10198 + $0xb8] sm:$0xf]
        %v10246 = vld [vmem:[%s10198 + $0xbc] sm:$0xf]
        %v10247 = vld [vmem:[%s10198 + $0xc0] sm:$0xf]
        %v10248 = vld [vmem:[%s10198 + $0xc4] sm:$0xf]
        %v10249 = vld [vmem:[%s10198 + $0xc8] sm:$0xf]
        %v10250 = vld [vmem:[%s10198 + $0xcc] sm:$0xf]
        %v10251 = vld [vmem:[%s10198 + $0xd0] sm:$0xf]
        %v10252 = vld [vmem:[%s10198 + $0xd4] sm:$0xf]
        %v10253 = vld [vmem:[%s10198 + $0xd8] sm:$0xf]
        %v10254 = vld [vmem:[%s10198 + $0xdc] sm:$0xf]
        %v10255 = vld [vmem:[%s10198 + $0xe0] sm:$0xf]
        %v10256 = vld [vmem:[%s10198 + $0xe4] sm:$0xf]
        %v10257 = vld [vmem:[%s10198 + $0xe8] sm:$0xf]
        %v10258 = vld [vmem:[%s10198 + $0xec] sm:$0xf]
        %v10259 = vld [vmem:[%s10198 + $0xf0] sm:$0xf]
        %v10260 = vld [vmem:[%s10198 + $0xf4] sm:$0xf]
        %v10261 = vld [vmem:[%s10198 + $0xf8] sm:$0xf]
        %v10262 = vld [vmem:[%s10198 + $0xfc] sm:$0xf]
        %v10327 = vunpack.c.l.b16 %v10199
        %v10328 = vunpack.c.l.b16 %v10200
        %v10329 = vunpack.c.l.b16 %v10201
        %v10330 = vunpack.c.l.b16 %v10202
        %v10331 = vunpack.c.l.b16 %v10203
        %v10332 = vunpack.c.l.b16 %v10204
        %v10333 = vunpack.c.l.b16 %v10205
        %v10334 = vunpack.c.l.b16 %v10206
        %v10335 = vunpack.c.l.b16 %v10207
        %v10336 = vunpack.c.l.b16 %v10208
        %v10337 = vunpack.c.l.b16 %v10209
        %v10338 = vunpack.c.l.b16 %v10210
        %v10339 = vunpack.c.l.b16 %v10211
        %v10340 = vunpack.c.l.b16 %v10212
        %v10341 = vunpack.c.l.b16 %v10213
        %v10342 = vunpack.c.l.b16 %v10214
        %v10343 = vunpack.c.l.b16 %v10215
        %v10344 = vunpack.c.l.b16 %v10216
        %v10345 = vunpack.c.l.b16 %v10217
        %v10346 = vunpack.c.l.b16 %v10218
        %v10347 = vunpack.c.l.b16 %v10219
        %v10348 = vunpack.c.l.b16 %v10220
        %v10349 = vunpack.c.l.b16 %v10221
        %v10350 = vunpack.c.l.b16 %v10222
        %v10351 = vunpack.c.l.b16 %v10223
        %v10352 = vunpack.c.l.b16 %v10224
        %v10353 = vunpack.c.l.b16 %v10225
        %v10354 = vunpack.c.l.b16 %v10226
        %v10355 = vunpack.c.l.b16 %v10227
        %v10356 = vunpack.c.l.b16 %v10228
        %v10357 = vunpack.c.l.b16 %v10229
        %v10358 = vunpack.c.l.b16 %v10230
        %v10359 = vunpack.c.l.b16 %v10231
        %v10360 = vunpack.c.l.b16 %v10232
        %v10361 = vunpack.c.l.b16 %v10233
        %v10362 = vunpack.c.l.b16 %v10234
        %v10363 = vunpack.c.l.b16 %v10235
        %v10364 = vunpack.c.l.b16 %v10236
        %v10365 = vunpack.c.l.b16 %v10237
        %v10366 = vunpack.c.l.b16 %v10238
        %v10367 = vunpack.c.l.b16 %v10239
        %v10368 = vunpack.c.l.b16 %v10240
        %v10369 = vunpack.c.l.b16 %v10241
        %v10370 = vunpack.c.l.b16 %v10242
        %v10371 = vunpack.c.l.b16 %v10243
        %v10372 = vunpack.c.l.b16 %v10244
        %v10373 = vunpack.c.l.b16 %v10245
        %v10374 = vunpack.c.l.b16 %v10246
        %v10375 = vunpack.c.l.b16 %v10247
        %v10376 = vunpack.c.l.b16 %v10248
        %v10377 = vunpack.c.l.b16 %v10249
        %v10378 = vunpack.c.l.b16 %v10250
        %v10379 = vunpack.c.l.b16 %v10251
        %v10380 = vunpack.c.l.b16 %v10252
        %v10381 = vunpack.c.l.b16 %v10253
        %v10382 = vunpack.c.l.b16 %v10254
        %v10383 = vunpack.c.l.b16 %v10255
        %v10384 = vunpack.c.l.b16 %v10256
        %v10385 = vunpack.c.l.b16 %v10257
        %v10386 = vunpack.c.l.b16 %v10258
        %v10387 = vunpack.c.l.b16 %v10259
        %v10388 = vunpack.c.l.b16 %v10260
        %v10389 = vunpack.c.l.b16 %v10261
        %v10390 = vunpack.c.l.b16 %v10262
        %v10391 = vpack.c.b16 %v10328, %v10327
        %v10392 = vpack.c.b16 %v10330, %v10329
        %v10393 = vpack.c.b16 %v10332, %v10331
        %v10394 = vpack.c.b16 %v10334, %v10333
        %v10395 = vpack.c.b16 %v10336, %v10335
        %v10396 = vpack.c.b16 %v10338, %v10337
        %v10397 = vpack.c.b16 %v10340, %v10339
        %v10398 = vpack.c.b16 %v10342, %v10341
        %v10399 = vpack.c.b16 %v10344, %v10343
        %v10400 = vpack.c.b16 %v10346, %v10345
        %v10401 = vpack.c.b16 %v10348, %v10347
        %v10402 = vpack.c.b16 %v10350, %v10349
        %v10403 = vpack.c.b16 %v10352, %v10351
        %v10404 = vpack.c.b16 %v10354, %v10353
        %v10405 = vpack.c.b16 %v10356, %v10355
        %v10406 = vpack.c.b16 %v10358, %v10357
        %v10407 = vpack.c.b16 %v10360, %v10359
        %v10408 = vpack.c.b16 %v10362, %v10361
        %v10409 = vpack.c.b16 %v10364, %v10363
        %v10410 = vpack.c.b16 %v10366, %v10365
        %v10411 = vpack.c.b16 %v10368, %v10367
        %v10412 = vpack.c.b16 %v10370, %v10369
        %v10413 = vpack.c.b16 %v10372, %v10371
        %v10414 = vpack.c.b16 %v10374, %v10373
        %v10415 = vpack.c.b16 %v10376, %v10375
        %v10416 = vpack.c.b16 %v10378, %v10377
        %v10417 = vpack.c.b16 %v10380, %v10379
        %v10418 = vpack.c.b16 %v10382, %v10381
        %v10419 = vpack.c.b16 %v10384, %v10383
        %v10420 = vpack.c.b16 %v10386, %v10385
        %v10421 = vpack.c.b16 %v10388, %v10387
        %v10422 = vpack.c.b16 %v10390, %v10389
        %10455 = vmatprep.subr.bf16.mxu0 0
        %10456 = vmatpush1.bf16.msra.mxu0 %v10391
        %10457 = vmatprep.subr.bf16.mxu0 0
        %10458 = vmatpush1.bf16.msra.mxu0 %v10392
        %10459 = vmatprep.subr.bf16.mxu0 0
        %10460 = vmatpush1.bf16.msra.mxu0 %v10393
        %10461 = vmatprep.subr.bf16.mxu0 0
        %10462 = vmatpush1.bf16.msra.mxu0 %v10394
        %10463 = vmatprep.subr.bf16.mxu0 0
        %10464 = vmatpush1.bf16.msra.mxu0 %v10395
        %10465 = vmatprep.subr.bf16.mxu0 0
        %10466 = vmatpush1.bf16.msra.mxu0 %v10396
        %10467 = vmatprep.subr.bf16.mxu0 0
        %10468 = vmatpush1.bf16.msra.mxu0 %v10397
        %10469 = vmatprep.subr.bf16.mxu0 0
        %10470 = vmatpush1.bf16.msra.mxu0 %v10398
        %10471 = vmatprep.subr.bf16.mxu0 0
        %10472 = vmatpush1.bf16.msra.mxu0 %v10399
        %10473 = vmatprep.subr.bf16.mxu0 0
        %10474 = vmatpush1.bf16.msra.mxu0 %v10400
        %10475 = vmatprep.subr.bf16.mxu0 0
        %10476 = vmatpush1.bf16.msra.mxu0 %v10401
        %10477 = vmatprep.subr.bf16.mxu0 0
        %10478 = vmatpush1.bf16.msra.mxu0 %v10402
        %10479 = vmatprep.subr.bf16.mxu0 0
        %10480 = vmatpush1.bf16.msra.mxu0 %v10403
        %10481 = vmatprep.subr.bf16.mxu0 0
        %10482 = vmatpush1.bf16.msra.mxu0 %v10404
        %10483 = vmatprep.subr.bf16.mxu0 0
        %10484 = vmatpush1.bf16.msra.mxu0 %v10405
        %10485 = vmatprep.subr.bf16.mxu0 0
        %10486 = vmatpush1.bf16.msra.mxu0 %v10406
        %10487 = vmatprep.mubr.bf16.mxu0 %v9794
        %10488 = vmatmul.mubr.bf16.gmra.mrb[0].mxu0 %v9782
        %v10489 = vpop.f32.mrb[0].mxu0
        %v10490 = vadd.f32 0.0, %v10489
        %v10491 = vpop.f32.mrb[0].mxu0
        %v10492 = vpop.f32.mrb[0].mxu0
        %v10493 = vadd.f32 0.0, %v10492
        %v10494 = vpop.f32.mrb[0].mxu0
        %10495 = vdwg.mxu0
        %10496 = vmatprep.subr.bf16.mxu0 0
        %10497 = vmatpush1.bf16.msra.mxu0 %v10407
        %10498 = vmatprep.subr.bf16.mxu0 0
        %10499 = vmatpush1.bf16.msra.mxu0 %v10408
        %10500 = vmatprep.subr.bf16.mxu0 0
        %10501 = vmatpush1.bf16.msra.mxu0 %v10409
        %10502 = vmatprep.subr.bf16.mxu0 0
        %10503 = vmatpush1.bf16.msra.mxu0 %v10410
        %10504 = vmatprep.subr.bf16.mxu0 0
        %10505 = vmatpush1.bf16.msra.mxu0 %v10411
        %10506 = vmatprep.subr.bf16.mxu0 0
        %10507 = vmatpush1.bf16.msra.mxu0 %v10412
        %10508 = vmatprep.subr.bf16.mxu0 0
        %10509 = vmatpush1.bf16.msra.mxu0 %v10413
        %10510 = vmatprep.subr.bf16.mxu0 0
        %10511 = vmatpush1.bf16.msra.mxu0 %v10414
        %10512 = vmatprep.subr.bf16.mxu0 0
        %10513 = vmatpush1.bf16.msra.mxu0 %v10415
        %10514 = vmatprep.subr.bf16.mxu0 0
        %10515 = vmatpush1.bf16.msra.mxu0 %v10416
        %10516 = vmatprep.subr.bf16.mxu0 0
        %10517 = vmatpush1.bf16.msra.mxu0 %v10417
        %10518 = vmatprep.subr.bf16.mxu0 0
        %10519 = vmatpush1.bf16.msra.mxu0 %v10418
        %10520 = vmatprep.subr.bf16.mxu0 0
        %10521 = vmatpush1.bf16.msra.mxu0 %v10419
        %10522 = vmatprep.subr.bf16.mxu0 0
        %10523 = vmatpush1.bf16.msra.mxu0 %v10420
        %10524 = vmatprep.subr.bf16.mxu0 0
        %10525 = vmatpush1.bf16.msra.mxu0 %v10421
        %10526 = vmatprep.subr.bf16.mxu0 0
        %10527 = vmatpush1.bf16.msra.mxu0 %v10422
        %10528 = vmatprep.mubr.bf16.mxu0 %v9818
        %10529 = vmatmul.mubr.bf16.gmra.mrb[0].mxu0 %v9806
        %v10530 = vpop.f32.mrb[0].mxu0
        %v10531 = vadd.f32 %v10490, %v10530
        %v10532 = vpop.f32.mrb[0].mxu0
        %v10533 = vpop.f32.mrb[0].mxu0
        %v10534 = vadd.f32 %v10493, %v10533
        %v10535 = vpop.f32.mrb[0].mxu0
        %10536 = vdwg.mxu0
        %vm10545 = vcmask 1046528
        %v10546 = vrot.slane %v10126, 1
        %v10547 = vrot.slane %v10130, 1
        %v10548 = vsel %vm10545, %v10546, %v10547
        %v10549 = vrot.slane %v10127, 1
        %v10550 = vrot.slane %v10131, 1
        %v10551 = vsel %vm10545, %v10549, %v10550
        %v10552 = vrot.slane %v10128, 1
        %v10553 = vrot.slane %v10132, 1
        %v10554 = vsel %vm10545, %v10552, %v10553
        %v10555 = vrot.slane %v10129, 1
        %v10556 = vrot.slane %v10133, 1
        %v10557 = vsel %vm10545, %v10555, %v10556
        %v10626 = vunpack.c.l.b16 %v10134
        %v10627 = vunpack.c.l.b16 %v10135
        %v10628 = vunpack.c.l.b16 %v10136
        %v10629 = vunpack.c.l.b16 %v10137
        %v10630 = vunpack.c.l.b16 %v10138
        %v10631 = vunpack.c.l.b16 %v10139
        %v10632 = vunpack.c.l.b16 %v10140
        %v10633 = vunpack.c.l.b16 %v10141
        %v10634 = vunpack.c.l.b16 %v10142
        %v10635 = vunpack.c.l.b16 %v10143
        %v10636 = vunpack.c.l.b16 %v10144
        %v10637 = vunpack.c.l.b16 %v10145
        %v10638 = vunpack.c.l.b16 %v10146
        %v10639 = vunpack.c.l.b16 %v10147
        %v10640 = vunpack.c.l.b16 %v10148
        %v10641 = vunpack.c.l.b16 %v10149
        %v10642 = vunpack.c.l.b16 %v10150
        %v10643 = vunpack.c.l.b16 %v10151
        %v10644 = vunpack.c.l.b16 %v10152
        %v10645 = vunpack.c.l.b16 %v10153
        %v10646 = vunpack.c.l.b16 %v10154
        %v10647 = vunpack.c.l.b16 %v10155
        %v10648 = vunpack.c.l.b16 %v10156
        %v10649 = vunpack.c.l.b16 %v10157
        %v10650 = vunpack.c.l.b16 %v10158
        %v10651 = vunpack.c.l.b16 %v10159
        %v10652 = vunpack.c.l.b16 %v10160
        %v10653 = vunpack.c.l.b16 %v10161
        %v10654 = vunpack.c.l.b16 %v10162
        %v10655 = vunpack.c.l.b16 %v10163
        %v10656 = vunpack.c.l.b16 %v10164
        %v10657 = vunpack.c.l.b16 %v10165
        %v10658 = vunpack.c.l.b16 %v10166
        %v10659 = vunpack.c.l.b16 %v10167
        %v10660 = vunpack.c.l.b16 %v10168
        %v10661 = vunpack.c.l.b16 %v10169
        %v10662 = vunpack.c.l.b16 %v10170
        %v10663 = vunpack.c.l.b16 %v10171
        %v10664 = vunpack.c.l.b16 %v10172
        %v10665 = vunpack.c.l.b16 %v10173
        %v10666 = vunpack.c.l.b16 %v10174
        %v10667 = vunpack.c.l.b16 %v10175
        %v10668 = vunpack.c.l.b16 %v10176
        %v10669 = vunpack.c.l.b16 %v10177
        %v10670 = vunpack.c.l.b16 %v10178
        %v10671 = vunpack.c.l.b16 %v10179
        %v10672 = vunpack.c.l.b16 %v10180
        %v10673 = vunpack.c.l.b16 %v10181
        %v10674 = vunpack.c.l.b16 %v10182
        %v10675 = vunpack.c.l.b16 %v10183
        %v10676 = vunpack.c.l.b16 %v10184
        %v10677 = vunpack.c.l.b16 %v10185
        %v10678 = vunpack.c.l.b16 %v10186
        %v10679 = vunpack.c.l.b16 %v10187
        %v10680 = vunpack.c.l.b16 %v10188
        %v10681 = vunpack.c.l.b16 %v10189
        %v10682 = vunpack.c.l.b16 %v10190
        %v10683 = vunpack.c.l.b16 %v10191
        %v10684 = vunpack.c.l.b16 %v10192
        %v10685 = vunpack.c.l.b16 %v10193
        %v10686 = vunpack.c.l.b16 %v10194
        %v10687 = vunpack.c.l.b16 %v10195
        %v10688 = vunpack.c.l.b16 %v10196
        %v10689 = vunpack.c.l.b16 %v10197
        %v10690 = vpack.c.b16 %v10627, %v10626
        %v10691 = vpack.c.b16 %v10629, %v10628
        %v10692 = vpack.c.b16 %v10631, %v10630
        %v10693 = vpack.c.b16 %v10633, %v10632
        %v10694 = vpack.c.b16 %v10635, %v10634
        %v10695 = vpack.c.b16 %v10637, %v10636
        %v10696 = vpack.c.b16 %v10639, %v10638
        %v10697 = vpack.c.b16 %v10641, %v10640
        %v10698 = vpack.c.b16 %v10643, %v10642
        %v10699 = vpack.c.b16 %v10645, %v10644
        %v10700 = vpack.c.b16 %v10647, %v10646
        %v10701 = vpack.c.b16 %v10649, %v10648
        %v10702 = vpack.c.b16 %v10651, %v10650
        %v10703 = vpack.c.b16 %v10653, %v10652
        %v10704 = vpack.c.b16 %v10655, %v10654
        %v10705 = vpack.c.b16 %v10657, %v10656
        %v10706 = vpack.c.b16 %v10659, %v10658
        %v10707 = vpack.c.b16 %v10661, %v10660
        %v10708 = vpack.c.b16 %v10663, %v10662
        %v10709 = vpack.c.b16 %v10665, %v10664
        %v10710 = vpack.c.b16 %v10667, %v10666
        %v10711 = vpack.c.b16 %v10669, %v10668
        %v10712 = vpack.c.b16 %v10671, %v10670
        %v10713 = vpack.c.b16 %v10673, %v10672
        %v10714 = vpack.c.b16 %v10675, %v10674
        %v10715 = vpack.c.b16 %v10677, %v10676
        %v10716 = vpack.c.b16 %v10679, %v10678
        %v10717 = vpack.c.b16 %v10681, %v10680
        %v10718 = vpack.c.b16 %v10683, %v10682
        %v10719 = vpack.c.b16 %v10685, %v10684
        %v10720 = vpack.c.b16 %v10687, %v10686
        %v10721 = vpack.c.b16 %v10689, %v10688
        %10754 = vmatprep.subr.bf16.mxu0 0
        %10755 = vmatpush1.bf16.msra.mxu0 %v10690
        %10756 = vmatprep.subr.bf16.mxu0 0
        %10757 = vmatpush1.bf16.msra.mxu0 %v10691
        %10758 = vmatprep.subr.bf16.mxu0 0
        %10759 = vmatpush1.bf16.msra.mxu0 %v10692
        %10760 = vmatprep.subr.bf16.mxu0 0
        %10761 = vmatpush1.bf16.msra.mxu0 %v10693
        %10762 = vmatprep.subr.bf16.mxu0 0
        %10763 = vmatpush1.bf16.msra.mxu0 %v10694
        %10764 = vmatprep.subr.bf16.mxu0 0
        %10765 = vmatpush1.bf16.msra.mxu0 %v10695
        %10766 = vmatprep.subr.bf16.mxu0 0
        %10767 = vmatpush1.bf16.msra.mxu0 %v10696
        %10768 = vmatprep.subr.bf16.mxu0 0
        %10769 = vmatpush1.bf16.msra.mxu0 %v10697
        %10770 = vmatprep.subr.bf16.mxu0 0
        %10771 = vmatpush1.bf16.msra.mxu0 %v10698
        %10772 = vmatprep.subr.bf16.mxu0 0
        %10773 = vmatpush1.bf16.msra.mxu0 %v10699
        %10774 = vmatprep.subr.bf16.mxu0 0
        %10775 = vmatpush1.bf16.msra.mxu0 %v10700
        %10776 = vmatprep.subr.bf16.mxu0 0
        %10777 = vmatpush1.bf16.msra.mxu0 %v10701
        %10778 = vmatprep.subr.bf16.mxu0 0
        %10779 = vmatpush1.bf16.msra.mxu0 %v10702
        %10780 = vmatprep.subr.bf16.mxu0 0
        %10781 = vmatpush1.bf16.msra.mxu0 %v10703
        %10782 = vmatprep.subr.bf16.mxu0 0
        %10783 = vmatpush1.bf16.msra.mxu0 %v10704
        %10784 = vmatprep.subr.bf16.mxu0 0
        %10785 = vmatpush1.bf16.msra.mxu0 %v10705
        %10786 = vmatprep.mubr.bf16.mxu0 %v10551
        %10787 = vmatmul.mubr.bf16.gmra.mrb[0].mxu0 %v10548
        %v10788 = vpop.f32.mrb[0].mxu0
        %v10789 = vadd.f32 %v10531, %v10788
        %v10790 = vpop.f32.mrb[0].mxu0
        %v10791 = vpop.f32.mrb[0].mxu0
        %v10792 = vadd.f32 %v10534, %v10791
        %v10793 = vpop.f32.mrb[0].mxu0
        %10794 = vdwg.mxu0
        %10795 = vmatprep.subr.bf16.mxu0 0
        %10796 = vmatpush1.bf16.msra.mxu0 %v10706
        %10797 = vmatprep.subr.bf16.mxu0 0
        %10798 = vmatpush1.bf16.msra.mxu0 %v10707
        %10799 = vmatprep.subr.bf16.mxu0 0
        %10800 = vmatpush1.bf16.msra.mxu0 %v10708
        %10801 = vmatprep.subr.bf16.mxu0 0
        %10802 = vmatpush1.bf16.msra.mxu0 %v10709
        %10803 = vmatprep.subr.bf16.mxu0 0
        %10804 = vmatpush1.bf16.msra.mxu0 %v10710
        %10805 = vmatprep.subr.bf16.mxu0 0
        %10806 = vmatpush1.bf16.msra.mxu0 %v10711
        %10807 = vmatprep.subr.bf16.mxu0 0
        %10808 = vmatpush1.bf16.msra.mxu0 %v10712
        %10809 = vmatprep.subr.bf16.mxu0 0
        %10810 = vmatpush1.bf16.msra.mxu0 %v10713
        %10811 = vmatprep.subr.bf16.mxu0 0
        %10812 = vmatpush1.bf16.msra.mxu0 %v10714
        %10813 = vmatprep.subr.bf16.mxu0 0
        %10814 = vmatpush1.bf16.msra.mxu0 %v10715
        %10815 = vmatprep.subr.bf16.mxu0 0
        %10816 = vmatpush1.bf16.msra.mxu0 %v10716
        %10817 = vmatprep.subr.bf16.mxu0 0
        %10818 = vmatpush1.bf16.msra.mxu0 %v10717
        %10819 = vmatprep.subr.bf16.mxu0 0
        %10820 = vmatpush1.bf16.msra.mxu0 %v10718
        %10821 = vmatprep.subr.bf16.mxu0 0
        %10822 = vmatpush1.bf16.msra.mxu0 %v10719
        %10823 = vmatprep.subr.bf16.mxu0 0
        %10824 = vmatpush1.bf16.msra.mxu0 %v10720
        %10825 = vmatprep.subr.bf16.mxu0 0
        %10826 = vmatpush1.bf16.msra.mxu0 %v10721
        %10827 = vmatprep.mubr.bf16.mxu0 %v10557
        %10828 = vmatmul.mubr.bf16.gmra.mrb[0].mxu0 %v10554
        %v10829 = vpop.f32.mrb[0].mxu0
        %v10830 = vadd.f32 %v10789, %v10829
        %v10831 = vpop.f32.mrb[0].mxu0
        %v10832 = vpop.f32.mrb[0].mxu0
        %v10833 = vadd.f32 %v10792, %v10832
        %v10834 = vpop.f32.mrb[0].mxu0
        %10835 = vdwg.mxu0
        %v10836 = vadd.f32 %v10830, %v10102
        %v10837 = vadd.f32 %v10833, %v10102
        %v10838 = vxor.u32 %v10836, 2147483648
        %v10839 = vxor.u32 %v10837, 2147483648
        %v10840 = vmul.f32 %v10838, 1.442695
        %v10841 = vpow.pop %v10840
        %v10842 = vmul.f32 %v10839, 1.442695
        %v10843 = vpow.pop %v10842
        %v10844 = vadd.f32 %v10841, 1.0
        %v10845 = vadd.f32 %v10843, 1.0
        %v10846 = vrcp.pop %v10844
        %v10847 = vmul.f32 1.0, %v10846
        %v10848 = vrcp.pop %v10845
        %v10849 = vmul.f32 1.0, %v10848
        %vm10850 = vcmask 785408
        %10851 = vst.msk [vmem:[%s440] sm:$0xff] %vm10850, %v10115
        %10852 = vst.msk [vmem:[%s440 + $0x8] sm:$0xff] %vm10850, %v10117
        %s10853 = scalar_lea.vmem %s440, 16
        %10854 = vst.msk [vmem:[%s10853] sm:$0xff] %vm10850, %v10847
        %10855 = vst.msk [vmem:[%s10853 + $0x8] sm:$0xff] %vm10850, %v10849
        %p10856 = scmp.lt.s32.totalorder %s27, 1
        %s10857 = scalar_select %p10856, %s27, 1
        %s10858 = smul.addr %s10857, 4
        %s10859 = smul.addr %s10858, 8
        %s10860 = scalar_lea.vmem %s9, %s10859
        // Predicated region
        $region89: #{svhn_decoder_forward.1} parent=55 // pred_check
          %p10861 = pneg %p239
        $region90: #{svhn_decoder_forward.1} parent=55 // pred_check_branch
          %10863 = sbr.rel (%p10861) target = $region92
        $region91: #{svhn_decoder_forward.1} parent=55 // pred_region
          _
        $region92: #{svhn_decoder_forward.1} parent=55 // pred_fallthru
          _
      $region56: #{svhn_decoder_forward.1} parent=5 // pred_fallthru
        _
      %p10864 = scmp.le.s32.totalorder 2, %s22
      // Predicated region
      $region93: #{svhn_decoder_forward.1} parent=5 // pred_check
        %p10865 = pneg %p10864
      $region94: #{svhn_decoder_forward.1} parent=5 // pred_check_branch
        %10867 = sbr.rel (%p10865) target = $region96
      $region95: #{svhn_decoder_forward.1} parent=5 // pred_region
        %s10868 = ssub.s32 %s22, 2
        // Predicated region
        $region97: #{svhn_decoder_forward.1} parent=95 // pred_check
          %p10869 = pneg %p245
        $region98: #{svhn_decoder_forward.1} parent=95 // pred_check_branch
          %10871 = sbr.rel (%p10869) target = $region100
        $region99: #{svhn_decoder_forward.1} parent=95 // pred_region
          %p10872 = scmp.lt.s32.totalorder %s28, 1
          %s10873 = scalar_select %p10872, %s28, 1
          %s10874 = smul.addr %s10873, 4
          %s10875 = smul.addr %s10874, 8
          %s10876 = scalar_lea.vmem %s9, %s10875
        $region100: #{svhn_decoder_forward.1} parent=95 // pred_fallthru
          _
      $region96: #{svhn_decoder_forward.1} parent=5 // pred_fallthru
        _
    $region6: #{svhn_decoder_forward.1} parent=1 // loop_footer
      %s26 = sadd.s32 1, %s22
    $region7: #{svhn_decoder_forward.1} parent=1 // loop_footer_branch
      %21 = sbr.rel target = $region3
    $region8: #{svhn_decoder_forward.1} parent=1 // loop_exit
      _
    %10877 = vsyncpa [#allocation6], 1
    %s10878 = scalar_lea.sflag [#allocation6], 1
    %10879 = vsyncpa %s10878, 1
    %10880 = vsyncpa [#allocation8], 1
    %10881 = vsyncpa [#allocation11], 1
    %10882 = vsyncpa [#allocation14], 1
    %10883 = vsyncpa [#allocation17], 1

</llo_original>
